<compile_context>
chip_gen: v7x
topology: tpu7x:2x2x1
jax: 0.10.0
libtpu: 0.0.40
codegen_flags: <defaults>
</compile_context>

<pallas_src>
import functools

import jax
import jax.numpy as jnp
from jax.experimental import pallas as pl
from jax.experimental.pallas import tpu as pltpu


_ACC_OFF = 8  # sublane offset of the frame inside the accumulator: keeps the final read and the
              # dy=1 (center) write 8-aligned; dy=0/dy=2 writes are the unavoidable +/-1 shifts.


# ----------------------------------------------------------------------------
# Fused kernel: conv3x3 -> BN -> ReLU -> conv3x3 -> BN -> SE, B images per grid step
# ----------------------------------------------------------------------------
def _fused_kernel(x_ref, w1_ref, w2_ref, s1_ref, b1_ref, s2_ref, b2_ref,
                  fc1_ref, fc2_ref, o_ref, acc_ref, y1_ref, *, H, W, C, B, has_se):
    """Shapes (Hp = H+2, WC = W*C):
      x_ref   : (B, Hp, W*Cin) bf16   zero row-halo top/bottom, lane index = w*Cin + ci
      w1_ref  : (3, W*Cin, WC) bf16   dx-banded conv1 weights, one matrix per dy
      w2_ref  : (3, WC, WC)    bf16   dx-banded conv2 weights
      s*/b*   : (1, WC)        f32    folded BN affine, per-channel values repeated W times
      fc1_ref : (inter, C)     f32    SE first FC
      fc2_ref : (inter, WC)    f32    SE second FC, repeated W times along lanes
      o_ref   : (B, Hp, WC)    f32    padded-frame output (halo rows stripped in the wrapper)
      scratch : acc (Hp+9, WC) f32, y1 (Hp, WC) bf16
    """
    Hp = H + 2
    OFF = _ACC_OFF

    row = jax.lax.broadcasted_iota(jnp.int32, (Hp, 1), 0)
    interior_row = (row >= 1) & (row <= H)        # real rows of the padded frame
    inv_hw = 1.0 / float(H * W)

    def conv3x3(lhs_bf16, w_ref):
        # 3x3 conv as 3 dy-matmuls against dx-banded weights, accumulated at +/-1 row shifts.
        # First write is `=` (no accumulator zeroing).  Halo rows of the result carry garbage
        # (possibly NaN on the very first use of uninitialized scratch) and are masked with
        # NaN-safe selects by the callers; interior rows are exact.
        acc_ref[pl.ds(OFF + 1, Hp), :] = jnp.dot(
            lhs_bf16, w_ref[0], preferred_element_type=jnp.float32)
        acc_ref[pl.ds(OFF, Hp), :] += jnp.dot(
            lhs_bf16, w_ref[1], preferred_element_type=jnp.float32)
        acc_ref[pl.ds(OFF - 1, Hp), :] += jnp.dot(
            lhs_bf16, w_ref[2], preferred_element_type=jnp.float32)
        return acc_ref[pl.ds(OFF, Hp), :]          # (Hp, WC) f32 on the padded frame

    for b in range(B):                             # static unroll: images in this block
        # ---- conv1 -> BN1 -> ReLU (halo rows zeroed so it can feed conv2 directly) ----
        a1 = conv3x3(x_ref[b], w1_ref)
        y1 = jnp.maximum(a1 * s1_ref[...] + b1_ref[...], 0.0)
        y1_ref[...] = jnp.where(interior_row, y1, 0.0).astype(y1_ref.dtype)   # bf16 for the MXU

        # ---- conv2 -> BN2 ----
        a2 = conv3x3(y1_ref[...], w2_ref)
        y2 = a2 * s2_ref[...] + b2_ref[...]

        # ---- SE: masked global mean -> FC -> ReLU -> FC -> sigmoid -> channel scale ----
        if has_se:
            colsum = jnp.sum(jnp.where(interior_row, y2, 0.0), axis=0, keepdims=True)  # (1, WC)
            mean = colsum[:, 0:C]
            for w in range(1, W):                  # fold the W lane groups down to (1, C)
                mean = mean + colsum[:, w * C:(w + 1) * C]
            mean = mean * inv_hw                   # (1, C)
            h1 = jnp.maximum(jnp.sum(fc1_ref[...] * mean, axis=1, keepdims=True), 0.0)  # (inter,1)
            # fc2 is pre-replicated to (inter, WC), so this directly yields the per-channel SE
            # scale broadcast across the W lane groups -- no in-kernel tiling needed.
            se = jax.nn.sigmoid(jnp.sum(fc2_ref[...] * h1, axis=0, keepdims=True))      # (1, WC)
            y2 = y2 * se

        # ---- single contiguous lane-dense store; halo rows are stripped in the wrapper ----
        o_ref[b] = y2.astype(o_ref.dtype)


# ----------------------------------------------------------------------------
# Wrapper helpers
# ----------------------------------------------------------------------------
def _band_weights(w_hwio, W):
    """(3, 3, Cin, Cout) -> (3, W*Cin, W*Cout): one dx-banded matrix per dy row-offset.

    band[dy][wi*Cin+ci, wo*Cout+co] = w[dy, wi-wo+1, ci, co] if wi-wo+1 in {0,1,2} else 0.
    The dx taps and the width zero-padding of the 3x3/pad-1 conv are folded into the weights.
    """
    wi = jnp.arange(W)[:, None]
    wo = jnp.arange(W)[None, :]
    sel = jnp.stack([(wi == wo + dx - 1) for dx in range(3)], axis=0).astype(w_hwio.dtype)
    band = jnp.einsum("dio,ydck->yicok", sel, w_hwio)      # (3, W, Cin, W, Cout)
    Cin, Cout = w_hwio.shape[2], w_hwio.shape[3]
    return band.reshape(3, W * Cin, W * Cout)


def _images_per_step(N, cap=8):
    """Largest divisor of N (<= cap) that still leaves >= 2 grid steps (v7x has 2 TCs)."""
    for b in range(min(cap, N), 0, -1):
        if N % b == 0 and N // b >= 2:
            return b
    return 1


# ----------------------------------------------------------------------------
# Wrapper (NCHW in / NCHW out, like the PyTorch module)
# ----------------------------------------------------------------------------
@functools.partial(jax.jit, static_argnames=("has_se",))
def conv_conv_se_forward(x_nchw, params, has_se=True):
    N, Cin, H, W = x_nchw.shape
    C = params["w1"].shape[-1]
    inter = params["fc1"].shape[0]
    Hp = H + 2
    WC = W * C

    B = _images_per_step(N)
    grid = (N // B,)

    # NCHW -> (N, Hp, W*Cin) bf16: channels+width on the lane dim, one zero halo row top/bottom.
    x = jnp.transpose(x_nchw, (0, 2, 3, 1))                 # (N, H, W, Cin)
    x = jnp.pad(x, ((0, 0), (1, 1), (0, 0), (0, 0)))        # (N, Hp, W, Cin)
    x = x.reshape(N, Hp, W * Cin).astype(jnp.bfloat16)

    w1b = _band_weights(params["w1"], W).astype(jnp.bfloat16)   # (3, W*Cin, WC)
    w2b = _band_weights(params["w2"], W).astype(jnp.bfloat16)   # (3, WC, WC)

    def rep(v):   # per-channel (C,) -> (1, WC): lane index = w*C + c
        return jnp.tile(v.reshape(1, C).astype(jnp.float32), (1, W))

    s1r, b1r = rep(params["bn1_scale"]), rep(params["bn1_bias"])
    s2r, b2r = rep(params["bn2_scale"]), rep(params["bn2_bias"])
    fc1 = params["fc1"].astype(jnp.float32)                       # (inter, C)
    fc2r = jnp.tile(params["fc2"].astype(jnp.float32), (1, W))    # (inter, WC)

    kernel = functools.partial(_fused_kernel, H=H, W=W, C=C, B=B, has_se=has_se)
    out = pl.pallas_call(
        kernel,
        out_shape=jax.ShapeDtypeStruct((N, Hp, WC), jnp.float32),
        grid=grid,
        in_specs=[
            pl.BlockSpec((B, Hp, W * Cin), lambda n: (n, 0, 0)),
            pl.BlockSpec((3, W * Cin, WC), lambda n: (0, 0, 0)),
            pl.BlockSpec((3, WC, WC), lambda n: (0, 0, 0)),
            pl.BlockSpec((1, WC), lambda n: (0, 0)),
            pl.BlockSpec((1, WC), lambda n: (0, 0)),
            pl.BlockSpec((1, WC), lambda n: (0, 0)),
            pl.BlockSpec((1, WC), lambda n: (0, 0)),
            pl.BlockSpec((inter, C), lambda n: (0, 0)),
            pl.BlockSpec((inter, WC), lambda n: (0, 0)),
        ],
        out_specs=pl.BlockSpec((B, Hp, WC), lambda n: (n, 0, 0)),
        scratch_shapes=[
            pltpu.VMEM((Hp + _ACC_OFF + 1, WC), jnp.float32),   # row-shift accumulator
            pltpu.VMEM((Hp, WC), jnp.bfloat16),                 # conv1 output -> conv2 lhs
        ],
        compiler_params=pltpu.CompilerParams(
            dimension_semantics=("parallel",),      # shard grid steps across v7x TensorCores
            vmem_limit_bytes=32 * 1024 * 1024,
        ),
    )(x, w1b, w2b, s1r, b1r, s2r, b2r, fc1, fc2r)

    out = out.reshape(N, Hp, W, C)[:, 1:H + 1]      # drop the halo rows (XLA slice)
    return jnp.transpose(out, (0, 3, 1, 2))         # NHWC -> NCHW (module interface)


# ----------------------------------------------------------------------------
# Params (deterministic) + folded BN
# ----------------------------------------------------------------------------
def fold_bn(gamma, beta, running_mean, running_var, eps=1e-5):
    scale = gamma / jnp.sqrt(running_var + eps)
    bias = beta - running_mean * scale
    return scale, bias


def init_params(key, in_ch, out_ch, reduction=16):
    inter = max(out_ch // reduction, 1)
    ks = jax.random.split(key, 12)
    # conv weights in HWIO layout (3, 3, Cin, Cout); torch is (Cout, Cin, 3, 3).
    w1 = 0.1 * jax.random.normal(ks[0], (3, 3, in_ch, out_ch), jnp.float32)
    w2 = 0.1 * jax.random.normal(ks[1], (3, 3, out_ch, out_ch), jnp.float32)
    g1 = 1.0 + 0.1 * jax.random.normal(ks[2], (out_ch,), jnp.float32)
    b1 = 0.1 * jax.random.normal(ks[3], (out_ch,), jnp.float32)
    rm1 = 0.1 * jax.random.normal(ks[4], (out_ch,), jnp.float32)
    rv1 = 1.0 + 0.5 * jax.random.uniform(ks[5], (out_ch,), jnp.float32)
    g2 = 1.0 + 0.1 * jax.random.normal(ks[6], (out_ch,), jnp.float32)
    b2 = 0.1 * jax.random.normal(ks[7], (out_ch,), jnp.float32)
    rm2 = 0.1 * jax.random.normal(ks[8], (out_ch,), jnp.float32)
    rv2 = 1.0 + 0.5 * jax.random.uniform(ks[9], (out_ch,), jnp.float32)
    bn1_scale, bn1_bias = fold_bn(g1, b1, rm1, rv1)
    bn2_scale, bn2_bias = fold_bn(g2, b2, rm2, rv2)
    # SE weights: fc1 == torch Linear(ch, inter).weight   -> (inter, ch)
    #             fc2 == torch Linear(inter, ch).weight.T -> (inter, ch)
    fc1 = 0.3 * jax.random.normal(ks[10], (inter, out_ch), jnp.float32)
    fc2 = 0.3 * jax.random.normal(ks[11], (inter, out_ch), jnp.float32)
    return dict(w1=w1, w2=w2, bn1_scale=bn1_scale, bn1_bias=bn1_bias,
                bn2_scale=bn2_scale, bn2_bias=bn2_bias, fc1=fc1, fc2=fc2)


# ----------------------------------------------------------------------------
# Pure-JAX reference.  bf16_matmul=True mirrors the kernel's precision recipe
# (bf16 MXU operands, f32 accumulation, bf16 intermediate); False is full f32.
# ----------------------------------------------------------------------------
def reference_forward(x_nchw, params, has_se=True, bf16_matmul=True):
    def conv(x, w_hwio):
        if bf16_matmul:
            x = x.astype(jnp.bfloat16)
            w_hwio = w_hwio.astype(jnp.bfloat16)
        return jax.lax.conv_general_dilated(
            x, w_hwio, window_strides=(1, 1), padding="SAME",
            dimension_numbers=("NCHW", "HWIO", "NCHW"),
            preferred_element_type=jnp.float32,
            precision=None if bf16_matmul else jax.lax.Precision.HIGHEST)

    y = conv(x_nchw, params["w1"])
    y = y * params["bn1_scale"][None, :, None, None] + params["bn1_bias"][None, :, None, None]
    y = jnp.maximum(y, 0.0)
    if bf16_matmul:
        y = y.astype(jnp.bfloat16).astype(jnp.float32)    # kernel stores the intermediate in bf16
    y = conv(y, params["w2"])
    y = y * params["bn2_scale"][None, :, None, None] + params["bn2_bias"][None, :, None, None]
    if has_se:
        se = jnp.mean(y, axis=(2, 3))                                               # (N, C)
        se = jnp.maximum(jnp.matmul(se, params["fc1"].T,
                                    precision=jax.lax.Precision.HIGHEST), 0.0)      # (N, inter)
        se = jax.nn.sigmoid(jnp.matmul(se, params["fc2"],
                                       precision=jax.lax.Precision.HIGHEST))        # (N, C)
        y = y * se[:, :, None, None]
    return y


if __name__ == "__main__":
    in_ch, out_ch, reduction = 4, 32, 16
    N, H, W = 4, 16, 16      # N=4 -> 2 images per grid step, 2 grid steps

    key = jax.random.PRNGKey(0)
    k_x, k_p = jax.random.split(key)
    x = jax.random.normal(k_x, (N, in_ch, H, W), jnp.float32)    # NCHW, like torch
    params = init_params(k_p, in_ch, out_ch, reduction)

    out = jax.block_until_ready(conv_conv_se_forward(x, params, has_se=True))
    assert out.shape == (N, out_ch, H, W)

    # Tight check against a reference that uses the same bf16-operand / f32-accumulate recipe.
    ref_bf16 = jax.block_until_ready(reference_forward(x, params, has_se=True, bf16_matmul=True))
    assert jnp.allclose(out, ref_bf16, atol=5e-3, rtol=5e-3), \
        f"mismatch vs bf16-matched reference: {jnp.max(jnp.abs(out - ref_bf16))}"

    # Looser check against the full-f32 module semantics (bf16 MXU operands lose some precision).
    ref_f32 = jax.block_until_ready(reference_forward(x, params, has_se=True, bf16_matmul=False))
    assert jnp.allclose(out, ref_f32, atol=7e-2, rtol=7e-2), \
        f"mismatch vs f32 reference: {jnp.max(jnp.abs(out - ref_f32))}"

    print("KERNEL_OK")
</pallas_src>

<mosaic_0001>
module attributes {stable_mosaic.version = 11 : i64} {
  func.func @_fused_kernel(%arg0: i32, %arg1: memref<2x18x64xbf16, #tpu.memory_space<vmem>>, %arg2: memref<3x64x512xbf16, #tpu.memory_space<vmem>>, %arg3: memref<3x512x512xbf16, #tpu.memory_space<vmem>>, %arg4: memref<1x512xf32, #tpu.memory_space<vmem>>, %arg5: memref<1x512xf32, #tpu.memory_space<vmem>>, %arg6: memref<1x512xf32, #tpu.memory_space<vmem>>, %arg7: memref<1x512xf32, #tpu.memory_space<vmem>>, %arg8: memref<2x32xf32, #tpu.memory_space<vmem>>, %arg9: memref<2x512xf32, #tpu.memory_space<vmem>>, %arg10: memref<2x18x512xf32, #tpu.memory_space<vmem>>, %arg11: memref<27x512xf32, #tpu.memory_space<vmem>>, %arg12: memref<18x512xbf16, #tpu.memory_space<vmem>>) attributes {dimension_semantics = [#tpu.dimension_semantics<parallel>], iteration_bounds = array<i64: 2>, scalar_prefetch = 0 : i64, scratch_operands = 2 : i64, tpu.core_type = #tpu.core_type<tc>, window_params = [{transform_indices = @transform_0, window_bounds = array<i64: 2, 18, 64>}, {pipeline_mode = #tpu.pipeline_mode<synchronous>, transform_indices = @transform_1, window_bounds = array<i64: 3, 64, 512>}, {pipeline_mode = #tpu.pipeline_mode<synchronous>, transform_indices = @transform_2, window_bounds = array<i64: 3, 512, 512>}, {pipeline_mode = #tpu.pipeline_mode<synchronous>, transform_indices = @transform_3, window_bounds = array<i64: 1, 512>}, {pipeline_mode = #tpu.pipeline_mode<synchronous>, transform_indices = @transform_4, window_bounds = array<i64: 1, 512>}, {pipeline_mode = #tpu.pipeline_mode<synchronous>, transform_indices = @transform_5, window_bounds = array<i64: 1, 512>}, {pipeline_mode = #tpu.pipeline_mode<synchronous>, transform_indices = @transform_6, window_bounds = array<i64: 1, 512>}, {pipeline_mode = #tpu.pipeline_mode<synchronous>, transform_indices = @transform_7, window_bounds = array<i64: 2, 32>}, {pipeline_mode = #tpu.pipeline_mode<synchronous>, transform_indices = @transform_8, window_bounds = array<i64: 2, 512>}, {transform_indices = @transform_9, window_bounds = array<i64: 2, 18, 512>}]} {
    %0 = tpu.iota {dimensions = array<i32: 0>} : vector<18x1xi32>
    %c1_i32 = arith.constant 1 : i32
    %1 = vector.broadcast %c1_i32 : i32 to vector<18x1xi32>
    %2 = arith.cmpi sge, %0, %1 : vector<18x1xi32>
    %c16_i32 = arith.constant 16 : i32
    %3 = vector.broadcast %c16_i32 : i32 to vector<18x1xi32>
    %4 = arith.cmpi sle, %0, %3 : vector<18x1xi32>
    %5 = arith.andi %2, %4 : vector<18x1xi1>
    %c0 = arith.constant 0 : index
    %c0_0 = arith.constant 0 : index
    %c0_1 = arith.constant 0 : index
    %6 = vector.load %arg1[%c0, %c0_0, %c0_1] : memref<2x18x64xbf16, #tpu.memory_space<vmem>>, vector<1x18x64xbf16>
    %7 = vector.shape_cast %6 : vector<1x18x64xbf16> to vector<18x64xbf16>
    %c0_2 = arith.constant 0 : index
    %c0_3 = arith.constant 0 : index
    %c0_4 = arith.constant 0 : index
    %8 = vector.load %arg2[%c0_2, %c0_3, %c0_4] : memref<3x64x512xbf16, #tpu.memory_space<vmem>>, vector<1x64x512xbf16>
    %9 = vector.shape_cast %8 : vector<1x64x512xbf16> to vector<64x512xbf16>
    %cst = arith.constant dense<0.000000e+00> : vector<18x512xf32>
    %10 = tpu.matmul %7, %9, %cst {dimension_numbers = #tpu.dot_dimension_numbers<[1], [0], [0], [1], [0, 0, 1, 1], [], []>} : vector<18x64xbf16>, vector<64x512xbf16>, vector<18x512xf32> -> vector<18x512xf32>
    %c9 = arith.constant 9 : index
    %c0_5 = arith.constant 0 : index
    %11 = vector.load %arg11[%c9, %c0_5] : memref<27x512xf32, #tpu.memory_space<vmem>>, vector<18x512xf32>
    tpu.vector_store %arg11[%c9, %c0_5], %10 {strides = array<i32>} : memref<27x512xf32, #tpu.memory_space<vmem>>, vector<18x512xf32>,
    %c8 = arith.constant 8 : index
    %c0_6 = arith.constant 0 : index
    %12 = vector.load %arg11[%c8, %c0_6] : memref<27x512xf32, #tpu.memory_space<vmem>>, vector<18x512xf32>
    %c1 = arith.constant 1 : index
    %c0_7 = arith.constant 0 : index
    %c0_8 = arith.constant 0 : index
    %13 = vector.load %arg2[%c1, %c0_7, %c0_8] : memref<3x64x512xbf16, #tpu.memory_space<vmem>>, vector<1x64x512xbf16>
    %14 = vector.shape_cast %13 : vector<1x64x512xbf16> to vector<64x512xbf16>
    %cst_9 = arith.constant dense<0.000000e+00> : vector<18x512xf32>
    %15 = tpu.matmul %7, %14, %cst_9 {dimension_numbers = #tpu.dot_dimension_numbers<[1], [0], [0], [1], [0, 0, 1, 1], [], []>} : vector<18x64xbf16>, vector<64x512xbf16>, vector<18x512xf32> -> vector<18x512xf32>
    %16 = arith.addf %12, %15 : vector<18x512xf32>
    %c8_10 = arith.constant 8 : index
    %c0_11 = arith.constant 0 : index
    %17 = vector.load %arg11[%c8_10, %c0_11] : memref<27x512xf32, #tpu.memory_space<vmem>>, vector<18x512xf32>
    tpu.vector_store %arg11[%c8_10, %c0_11], %16 {strides = array<i32>} : memref<27x512xf32, #tpu.memory_space<vmem>>, vector<18x512xf32>,
    %c7 = arith.constant 7 : index
    %c0_12 = arith.constant 0 : index
    %18 = vector.load %arg11[%c7, %c0_12] : memref<27x512xf32, #tpu.memory_space<vmem>>, vector<18x512xf32>
    %c2 = arith.constant 2 : index
    %c0_13 = arith.constant 0 : index
    %c0_14 = arith.constant 0 : index
    %19 = vector.load %arg2[%c2, %c0_13, %c0_14] : memref<3x64x512xbf16, #tpu.memory_space<vmem>>, vector<1x64x512xbf16>
    %20 = vector.shape_cast %19 : vector<1x64x512xbf16> to vector<64x512xbf16>
    %cst_15 = arith.constant dense<0.000000e+00> : vector<18x512xf32>
    %21 = tpu.matmul %7, %20, %cst_15 {dimension_numbers = #tpu.dot_dimension_numbers<[1], [0], [0], [1], [0, 0, 1, 1], [], []>} : vector<18x64xbf16>, vector<64x512xbf16>, vector<18x512xf32> -> vector<18x512xf32>
    %22 = arith.addf %18, %21 : vector<18x512xf32>
    %c7_16 = arith.constant 7 : index
    %c0_17 = arith.constant 0 : index
    %23 = vector.load %arg11[%c7_16, %c0_17] : memref<27x512xf32, #tpu.memory_space<vmem>>, vector<18x512xf32>
    tpu.vector_store %arg11[%c7_16, %c0_17], %22 {strides = array<i32>} : memref<27x512xf32, #tpu.memory_space<vmem>>, vector<18x512xf32>,
    %c8_18 = arith.constant 8 : index
    %c0_19 = arith.constant 0 : index
    %24 = vector.load %arg11[%c8_18, %c0_19] : memref<27x512xf32, #tpu.memory_space<vmem>>, vector<18x512xf32>
    %c0_20 = arith.constant 0 : index
    %c0_21 = arith.constant 0 : index
    %25 = vector.load %arg4[%c0_20, %c0_21] : memref<1x512xf32, #tpu.memory_space<vmem>>, vector<1x512xf32>
    %26 = vector.broadcast %25 : vector<1x512xf32> to vector<18x512xf32>
    %27 = arith.mulf %24, %26 : vector<18x512xf32>
    %c0_22 = arith.constant 0 : index
    %c0_23 = arith.constant 0 : index
    %28 = vector.load %arg5[%c0_22, %c0_23] : memref<1x512xf32, #tpu.memory_space<vmem>>, vector<1x512xf32>
    %29 = vector.broadcast %28 : vector<1x512xf32> to vector<18x512xf32>
    %30 = arith.addf %27, %29 : vector<18x512xf32>
    %cst_24 = arith.constant 0.000000e+00 : f32
    %31 = vector.broadcast %cst_24 : f32 to vector<18x512xf32>
    %32 = arith.maximumf %30, %31 : vector<18x512xf32>
    %cst_25 = arith.constant 0.000000e+00 : f32
    %33 = vector.shape_cast %5 : vector<18x1xi1> to vector<18x1xi1>
    %34 = vector.broadcast %33 : vector<18x1xi1> to vector<18x512xi1>
    %35 = vector.broadcast %cst_25 : f32 to vector<18x512xf32>
    %36 = arith.select %34, %32, %35 : vector<18x512xi1>, vector<18x512xf32>
    %37 = arith.truncf %36 : vector<18x512xf32> to vector<18x512xbf16>
    %c0_26 = arith.constant 0 : index
    %c0_27 = arith.constant 0 : index
    %38 = vector.load %arg12[%c0_26, %c0_27] : memref<18x512xbf16, #tpu.memory_space<vmem>>, vector<18x512xbf16>
    tpu.vector_store %arg12[%c0_26, %c0_27], %37 {strides = array<i32>} : memref<18x512xbf16, #tpu.memory_space<vmem>>, vector<18x512xbf16>,
    %c0_28 = arith.constant 0 : index
    %c0_29 = arith.constant 0 : index
    %39 = vector.load %arg12[%c0_28, %c0_29] : memref<18x512xbf16, #tpu.memory_space<vmem>>, vector<18x512xbf16>
    %c0_30 = arith.constant 0 : index
    %c0_31 = arith.constant 0 : index
    %c0_32 = arith.constant 0 : index
    %40 = vector.load %arg3[%c0_30, %c0_31, %c0_32] : memref<3x512x512xbf16, #tpu.memory_space<vmem>>, vector<1x512x512xbf16>
    %41 = vector.shape_cast %40 : vector<1x512x512xbf16> to vector<512x512xbf16>
    %cst_33 = arith.constant dense<0.000000e+00> : vector<18x512xf32>
    %42 = tpu.matmul %39, %41, %cst_33 {dimension_numbers = #tpu.dot_dimension_numbers<[1], [0], [0], [1], [0, 0, 1, 1], [], []>} : vector<18x512xbf16>, vector<512x512xbf16>, vector<18x512xf32> -> vector<18x512xf32>
    %c9_34 = arith.constant 9 : index
    %c0_35 = arith.constant 0 : index
    %43 = vector.load %arg11[%c9_34, %c0_35] : memref<27x512xf32, #tpu.memory_space<vmem>>, vector<18x512xf32>
    tpu.vector_store %arg11[%c9_34, %c0_35], %42 {strides = array<i32>} : memref<27x512xf32, #tpu.memory_space<vmem>>, vector<18x512xf32>,
    %c8_36 = arith.constant 8 : index
    %c0_37 = arith.constant 0 : index
    %44 = vector.load %arg11[%c8_36, %c0_37] : memref<27x512xf32, #tpu.memory_space<vmem>>, vector<18x512xf32>
    %c1_38 = arith.constant 1 : index
    %c0_39 = arith.constant 0 : index
    %c0_40 = arith.constant 0 : index
    %45 = vector.load %arg3[%c1_38, %c0_39, %c0_40] : memref<3x512x512xbf16, #tpu.memory_space<vmem>>, vector<1x512x512xbf16>
    %46 = vector.shape_cast %45 : vector<1x512x512xbf16> to vector<512x512xbf16>
    %cst_41 = arith.constant dense<0.000000e+00> : vector<18x512xf32>
    %47 = tpu.matmul %39, %46, %cst_41 {dimension_numbers = #tpu.dot_dimension_numbers<[1], [0], [0], [1], [0, 0, 1, 1], [], []>} : vector<18x512xbf16>, vector<512x512xbf16>, vector<18x512xf32> -> vector<18x512xf32>
    %48 = arith.addf %44, %47 : vector<18x512xf32>
    %c8_42 = arith.constant 8 : index
    %c0_43 = arith.constant 0 : index
    %49 = vector.load %arg11[%c8_42, %c0_43] : memref<27x512xf32, #tpu.memory_space<vmem>>, vector<18x512xf32>
    tpu.vector_store %arg11[%c8_42, %c0_43], %48 {strides = array<i32>} : memref<27x512xf32, #tpu.memory_space<vmem>>, vector<18x512xf32>,
    %c7_44 = arith.constant 7 : index
    %c0_45 = arith.constant 0 : index
    %50 = vector.load %arg11[%c7_44, %c0_45] : memref<27x512xf32, #tpu.memory_space<vmem>>, vector<18x512xf32>
    %c2_46 = arith.constant 2 : index
    %c0_47 = arith.constant 0 : index
    %c0_48 = arith.constant 0 : index
    %51 = vector.load %arg3[%c2_46, %c0_47, %c0_48] : memref<3x512x512xbf16, #tpu.memory_space<vmem>>, vector<1x512x512xbf16>
    %52 = vector.shape_cast %51 : vector<1x512x512xbf16> to vector<512x512xbf16>
    %cst_49 = arith.constant dense<0.000000e+00> : vector<18x512xf32>
    %53 = tpu.matmul %39, %52, %cst_49 {dimension_numbers = #tpu.dot_dimension_numbers<[1], [0], [0], [1], [0, 0, 1, 1], [], []>} : vector<18x512xbf16>, vector<512x512xbf16>, vector<18x512xf32> -> vector<18x512xf32>
    %54 = arith.addf %50, %53 : vector<18x512xf32>
    %c7_50 = arith.constant 7 : index
    %c0_51 = arith.constant 0 : index
    %55 = vector.load %arg11[%c7_50, %c0_51] : memref<27x512xf32, #tpu.memory_space<vmem>>, vector<18x512xf32>
    tpu.vector_store %arg11[%c7_50, %c0_51], %54 {strides = array<i32>} : memref<27x512xf32, #tpu.memory_space<vmem>>, vector<18x512xf32>,
    %c8_52 = arith.constant 8 : index
    %c0_53 = arith.constant 0 : index
    %56 = vector.load %arg11[%c8_52, %c0_53] : memref<27x512xf32, #tpu.memory_space<vmem>>, vector<18x512xf32>
    %c0_54 = arith.constant 0 : index
    %c0_55 = arith.constant 0 : index
    %57 = vector.load %arg6[%c0_54, %c0_55] : memref<1x512xf32, #tpu.memory_space<vmem>>, vector<1x512xf32>
    %58 = vector.broadcast %57 : vector<1x512xf32> to vector<18x512xf32>
    %59 = arith.mulf %56, %58 : vector<18x512xf32>
    %c0_56 = arith.constant 0 : index
    %c0_57 = arith.constant 0 : index
    %60 = vector.load %arg7[%c0_56, %c0_57] : memref<1x512xf32, #tpu.memory_space<vmem>>, vector<1x512xf32>
    %61 = vector.broadcast %60 : vector<1x512xf32> to vector<18x512xf32>
    %62 = arith.addf %59, %61 : vector<18x512xf32>
    %cst_58 = arith.constant 0.000000e+00 : f32
    %63 = vector.shape_cast %5 : vector<18x1xi1> to vector<18x1xi1>
    %64 = vector.broadcast %63 : vector<18x1xi1> to vector<18x512xi1>
    %65 = vector.broadcast %cst_58 : f32 to vector<18x512xf32>
    %66 = arith.select %64, %62, %65 : vector<18x512xi1>, vector<18x512xf32>
    %cst_59 = arith.constant dense<0.000000e+00> : vector<512xf32>
    %67 = vector.multi_reduction <add>, %66, %cst_59 [0] : vector<18x512xf32> to vector<512xf32>
    %68 = vector.shape_cast %67 : vector<512xf32> to vector<1x512xf32>
    %69 = vector.extract_strided_slice %68 {offsets = [0, 0], sizes = [1, 32], strides = [1, 1]} : vector<1x512xf32> to vector<1x32xf32>
    %70 = vector.extract_strided_slice %68 {offsets = [0, 32], sizes = [1, 32], strides = [1, 1]} : vector<1x512xf32> to vector<1x32xf32>
    %71 = arith.addf %69, %70 : vector<1x32xf32>
    %72 = vector.extract_strided_slice %68 {offsets = [0, 64], sizes = [1, 32], strides = [1, 1]} : vector<1x512xf32> to vector<1x32xf32>
    %73 = arith.addf %71, %72 : vector<1x32xf32>
    %74 = vector.extract_strided_slice %68 {offsets = [0, 96], sizes = [1, 32], strides = [1, 1]} : vector<1x512xf32> to vector<1x32xf32>
    %75 = arith.addf %73, %74 : vector<1x32xf32>
    %76 = vector.extract_strided_slice %68 {offsets = [0, 128], sizes = [1, 32], strides = [1, 1]} : vector<1x512xf32> to vector<1x32xf32>
    %77 = arith.addf %75, %76 : vector<1x32xf32>
    %78 = vector.extract_strided_slice %68 {offsets = [0, 160], sizes = [1, 32], strides = [1, 1]} : vector<1x512xf32> to vector<1x32xf32>
    %79 = arith.addf %77, %78 : vector<1x32xf32>
    %80 = vector.extract_strided_slice %68 {offsets = [0, 192], sizes = [1, 32], strides = [1, 1]} : vector<1x512xf32> to vector<1x32xf32>
    %81 = arith.addf %79, %80 : vector<1x32xf32>
    %82 = vector.extract_strided_slice %68 {offsets = [0, 224], sizes = [1, 32], strides = [1, 1]} : vector<1x512xf32> to vector<1x32xf32>
    %83 = arith.addf %81, %82 : vector<1x32xf32>
    %84 = vector.extract_strided_slice %68 {offsets = [0, 256], sizes = [1, 32], strides = [1, 1]} : vector<1x512xf32> to vector<1x32xf32>
    %85 = arith.addf %83, %84 : vector<1x32xf32>
    %86 = vector.extract_strided_slice %68 {offsets = [0, 288], sizes = [1, 32], strides = [1, 1]} : vector<1x512xf32> to vector<1x32xf32>
    %87 = arith.addf %85, %86 : vector<1x32xf32>
    %88 = vector.extract_strided_slice %68 {offsets = [0, 320], sizes = [1, 32], strides = [1, 1]} : vector<1x512xf32> to vector<1x32xf32>
    %89 = arith.addf %87, %88 : vector<1x32xf32>
    %90 = vector.extract_strided_slice %68 {offsets = [0, 352], sizes = [1, 32], strides = [1, 1]} : vector<1x512xf32> to vector<1x32xf32>
    %91 = arith.addf %89, %90 : vector<1x32xf32>
    %92 = vector.extract_strided_slice %68 {offsets = [0, 384], sizes = [1, 32], strides = [1, 1]} : vector<1x512xf32> to vector<1x32xf32>
    %93 = arith.addf %91, %92 : vector<1x32xf32>
    %94 = vector.extract_strided_slice %68 {offsets = [0, 416], sizes = [1, 32], strides = [1, 1]} : vector<1x512xf32> to vector<1x32xf32>
    %95 = arith.addf %93, %94 : vector<1x32xf32>
    %96 = vector.extract_strided_slice %68 {offsets = [0, 448], sizes = [1, 32], strides = [1, 1]} : vector<1x512xf32> to vector<1x32xf32>
    %97 = arith.addf %95, %96 : vector<1x32xf32>
    %98 = vector.extract_strided_slice %68 {offsets = [0, 480], sizes = [1, 32], strides = [1, 1]} : vector<1x512xf32> to vector<1x32xf32>
    %99 = arith.addf %97, %98 : vector<1x32xf32>
    %cst_60 = arith.constant 3.906250e-03 : f32
    %100 = vector.broadcast %cst_60 : f32 to vector<1x32xf32>
    %101 = arith.mulf %99, %100 : vector<1x32xf32>
    %c0_61 = arith.constant 0 : index
    %c0_62 = arith.constant 0 : index
    %102 = vector.load %arg8[%c0_61, %c0_62] : memref<2x32xf32, #tpu.memory_space<vmem>>, vector<2x32xf32>
    %103 = vector.broadcast %101 : vector<1x32xf32> to vector<2x32xf32>
    %104 = arith.mulf %102, %103 : vector<2x32xf32>
    %cst_63 = arith.constant dense<0.000000e+00> : vector<2xf32>
    %105 = vector.multi_reduction <add>, %104, %cst_63 [1] : vector<2x32xf32> to vector<2xf32>
    %106 = vector.shape_cast %105 : vector<2xf32> to vector<2x1xf32>
    %cst_64 = arith.constant 0.000000e+00 : f32
    %107 = vector.broadcast %cst_64 : f32 to vector<2x1xf32>
    %108 = arith.maximumf %106, %107 : vector<2x1xf32>
    %c0_65 = arith.constant 0 : index
    %c0_66 = arith.constant 0 : index
    %109 = vector.load %arg9[%c0_65, %c0_66] : memref<2x512xf32, #tpu.memory_space<vmem>>, vector<2x512xf32>
    %110 = vector.broadcast %108 : vector<2x1xf32> to vector<2x512xf32>
    %111 = arith.mulf %109, %110 : vector<2x512xf32>
    %cst_67 = arith.constant dense<0.000000e+00> : vector<512xf32>
    %112 = vector.multi_reduction <add>, %111, %cst_67 [0] : vector<2x512xf32> to vector<512xf32>
    %113 = vector.shape_cast %112 : vector<512xf32> to vector<1x512xf32>
    %114 = arith.negf %113 : vector<1x512xf32>
    %115 = math.exp %114 : vector<1x512xf32>
    %cst_68 = arith.constant 1.000000e+00 : f32
    %116 = vector.broadcast %cst_68 : f32 to vector<1x512xf32>
    %117 = arith.addf %116, %115 : vector<1x512xf32>
    %118 = arith.divf %116, %117 : vector<1x512xf32>
    %119 = vector.broadcast %118 : vector<1x512xf32> to vector<18x512xf32>
    %120 = arith.mulf %62, %119 : vector<18x512xf32>
    %c0_69 = arith.constant 0 : index
    %c0_70 = arith.constant 0 : index
    %c0_71 = arith.constant 0 : index
    %121 = vector.load %arg10[%c0_69, %c0_70, %c0_71] : memref<2x18x512xf32, #tpu.memory_space<vmem>>, vector<1x18x512xf32>
    %122 = vector.shape_cast %121 : vector<1x18x512xf32> to vector<18x512xf32>
    %123 = vector.shape_cast %120 : vector<18x512xf32> to vector<1x18x512xf32>
    tpu.vector_store %arg10[%c0_69, %c0_70, %c0_71], %123 {strides = array<i32>} : memref<2x18x512xf32, #tpu.memory_space<vmem>>, vector<1x18x512xf32>,
    %c1_72 = arith.constant 1 : index
    %c0_73 = arith.constant 0 : index
    %c0_74 = arith.constant 0 : index
    %124 = vector.load %arg1[%c1_72, %c0_73, %c0_74] : memref<2x18x64xbf16, #tpu.memory_space<vmem>>, vector<1x18x64xbf16>
    %125 = vector.shape_cast %124 : vector<1x18x64xbf16> to vector<18x64xbf16>
    %c0_75 = arith.constant 0 : index
    %c0_76 = arith.constant 0 : index
    %c0_77 = arith.constant 0 : index
    %126 = vector.load %arg2[%c0_75, %c0_76, %c0_77] : memref<3x64x512xbf16, #tpu.memory_space<vmem>>, vector<1x64x512xbf16>
    %127 = vector.shape_cast %126 : vector<1x64x512xbf16> to vector<64x512xbf16>
    %cst_78 = arith.constant dense<0.000000e+00> : vector<18x512xf32>
    %128 = tpu.matmul %125, %127, %cst_78 {dimension_numbers = #tpu.dot_dimension_numbers<[1], [0], [0], [1], [0, 0, 1, 1], [], []>} : vector<18x64xbf16>, vector<64x512xbf16>, vector<18x512xf32> -> vector<18x512xf32>
    %c9_79 = arith.constant 9 : index
    %c0_80 = arith.constant 0 : index
    %129 = vector.load %arg11[%c9_79, %c0_80] : memref<27x512xf32, #tpu.memory_space<vmem>>, vector<18x512xf32>
    tpu.vector_store %arg11[%c9_79, %c0_80], %128 {strides = array<i32>} : memref<27x512xf32, #tpu.memory_space<vmem>>, vector<18x512xf32>,
    %c8_81 = arith.constant 8 : index
    %c0_82 = arith.constant 0 : index
    %130 = vector.load %arg11[%c8_81, %c0_82] : memref<27x512xf32, #tpu.memory_space<vmem>>, vector<18x512xf32>
    %c1_83 = arith.constant 1 : index
    %c0_84 = arith.constant 0 : index
    %c0_85 = arith.constant 0 : index
    %131 = vector.load %arg2[%c1_83, %c0_84, %c0_85] : memref<3x64x512xbf16, #tpu.memory_space<vmem>>, vector<1x64x512xbf16>
    %132 = vector.shape_cast %131 : vector<1x64x512xbf16> to vector<64x512xbf16>
    %cst_86 = arith.constant dense<0.000000e+00> : vector<18x512xf32>
    %133 = tpu.matmul %125, %132, %cst_86 {dimension_numbers = #tpu.dot_dimension_numbers<[1], [0], [0], [1], [0, 0, 1, 1], [], []>} : vector<18x64xbf16>, vector<64x512xbf16>, vector<18x512xf32> -> vector<18x512xf32>
    %134 = arith.addf %130, %133 : vector<18x512xf32>
    %c8_87 = arith.constant 8 : index
    %c0_88 = arith.constant 0 : index
    %135 = vector.load %arg11[%c8_87, %c0_88] : memref<27x512xf32, #tpu.memory_space<vmem>>, vector<18x512xf32>
    tpu.vector_store %arg11[%c8_87, %c0_88], %134 {strides = array<i32>} : memref<27x512xf32, #tpu.memory_space<vmem>>, vector<18x512xf32>,
    %c7_89 = arith.constant 7 : index
    %c0_90 = arith.constant 0 : index
    %136 = vector.load %arg11[%c7_89, %c0_90] : memref<27x512xf32, #tpu.memory_space<vmem>>, vector<18x512xf32>
    %c2_91 = arith.constant 2 : index
    %c0_92 = arith.constant 0 : index
    %c0_93 = arith.constant 0 : index
    %137 = vector.load %arg2[%c2_91, %c0_92, %c0_93] : memref<3x64x512xbf16, #tpu.memory_space<vmem>>, vector<1x64x512xbf16>
    %138 = vector.shape_cast %137 : vector<1x64x512xbf16> to vector<64x512xbf16>
    %cst_94 = arith.constant dense<0.000000e+00> : vector<18x512xf32>
    %139 = tpu.matmul %125, %138, %cst_94 {dimension_numbers = #tpu.dot_dimension_numbers<[1], [0], [0], [1], [0, 0, 1, 1], [], []>} : vector<18x64xbf16>, vector<64x512xbf16>, vector<18x512xf32> -> vector<18x512xf32>
    %140 = arith.addf %136, %139 : vector<18x512xf32>
    %c7_95 = arith.constant 7 : index
    %c0_96 = arith.constant 0 : index
    %141 = vector.load %arg11[%c7_95, %c0_96] : memref<27x512xf32, #tpu.memory_space<vmem>>, vector<18x512xf32>
    tpu.vector_store %arg11[%c7_95, %c0_96], %140 {strides = array<i32>} : memref<27x512xf32, #tpu.memory_space<vmem>>, vector<18x512xf32>,
    %c8_97 = arith.constant 8 : index
    %c0_98 = arith.constant 0 : index
    %142 = vector.load %arg11[%c8_97, %c0_98] : memref<27x512xf32, #tpu.memory_space<vmem>>, vector<18x512xf32>
    %c0_99 = arith.constant 0 : index
    %c0_100 = arith.constant 0 : index
    %143 = vector.load %arg4[%c0_99, %c0_100] : memref<1x512xf32, #tpu.memory_space<vmem>>, vector<1x512xf32>
    %144 = vector.broadcast %143 : vector<1x512xf32> to vector<18x512xf32>
    %145 = arith.mulf %142, %144 : vector<18x512xf32>
    %c0_101 = arith.constant 0 : index
    %c0_102 = arith.constant 0 : index
    %146 = vector.load %arg5[%c0_101, %c0_102] : memref<1x512xf32, #tpu.memory_space<vmem>>, vector<1x512xf32>
    %147 = vector.broadcast %146 : vector<1x512xf32> to vector<18x512xf32>
    %148 = arith.addf %145, %147 : vector<18x512xf32>
    %cst_103 = arith.constant 0.000000e+00 : f32
    %149 = vector.broadcast %cst_103 : f32 to vector<18x512xf32>
    %150 = arith.maximumf %148, %149 : vector<18x512xf32>
    %cst_104 = arith.constant 0.000000e+00 : f32
    %151 = vector.shape_cast %5 : vector<18x1xi1> to vector<18x1xi1>
    %152 = vector.broadcast %151 : vector<18x1xi1> to vector<18x512xi1>
    %153 = vector.broadcast %cst_104 : f32 to vector<18x512xf32>
    %154 = arith.select %152, %150, %153 : vector<18x512xi1>, vector<18x512xf32>
    %155 = arith.truncf %154 : vector<18x512xf32> to vector<18x512xbf16>
    %c0_105 = arith.constant 0 : index
    %c0_106 = arith.constant 0 : index
    %156 = vector.load %arg12[%c0_105, %c0_106] : memref<18x512xbf16, #tpu.memory_space<vmem>>, vector<18x512xbf16>
    tpu.vector_store %arg12[%c0_105, %c0_106], %155 {strides = array<i32>} : memref<18x512xbf16, #tpu.memory_space<vmem>>, vector<18x512xbf16>,
    %c0_107 = arith.constant 0 : index
    %c0_108 = arith.constant 0 : index
    %157 = vector.load %arg12[%c0_107, %c0_108] : memref<18x512xbf16, #tpu.memory_space<vmem>>, vector<18x512xbf16>
    %c0_109 = arith.constant 0 : index
    %c0_110 = arith.constant 0 : index
    %c0_111 = arith.constant 0 : index
    %158 = vector.load %arg3[%c0_109, %c0_110, %c0_111] : memref<3x512x512xbf16, #tpu.memory_space<vmem>>, vector<1x512x512xbf16>
    %159 = vector.shape_cast %158 : vector<1x512x512xbf16> to vector<512x512xbf16>
    %cst_112 = arith.constant dense<0.000000e+00> : vector<18x512xf32>
    %160 = tpu.matmul %157, %159, %cst_112 {dimension_numbers = #tpu.dot_dimension_numbers<[1], [0], [0], [1], [0, 0, 1, 1], [], []>} : vector<18x512xbf16>, vector<512x512xbf16>, vector<18x512xf32> -> vector<18x512xf32>
    %c9_113 = arith.constant 9 : index
    %c0_114 = arith.constant 0 : index
    %161 = vector.load %arg11[%c9_113, %c0_114] : memref<27x512xf32, #tpu.memory_space<vmem>>, vector<18x512xf32>
    tpu.vector_store %arg11[%c9_113, %c0_114], %160 {strides = array<i32>} : memref<27x512xf32, #tpu.memory_space<vmem>>, vector<18x512xf32>,
    %c8_115 = arith.constant 8 : index
    %c0_116 = arith.constant 0 : index
    %162 = vector.load %arg11[%c8_115, %c0_116] : memref<27x512xf32, #tpu.memory_space<vmem>>, vector<18x512xf32>
    %c1_117 = arith.constant 1 : index
    %c0_118 = arith.constant 0 : index
    %c0_119 = arith.constant 0 : index
    %163 = vector.load %arg3[%c1_117, %c0_118, %c0_119] : memref<3x512x512xbf16, #tpu.memory_space<vmem>>, vector<1x512x512xbf16>
    %164 = vector.shape_cast %163 : vector<1x512x512xbf16> to vector<512x512xbf16>
    %cst_120 = arith.constant dense<0.000000e+00> : vector<18x512xf32>
    %165 = tpu.matmul %157, %164, %cst_120 {dimension_numbers = #tpu.dot_dimension_numbers<[1], [0], [0], [1], [0, 0, 1, 1], [], []>} : vector<18x512xbf16>, vector<512x512xbf16>, vector<18x512xf32> -> vector<18x512xf32>
    %166 = arith.addf %162, %165 : vector<18x512xf32>
    %c8_121 = arith.constant 8 : index
    %c0_122 = arith.constant 0 : index
    %167 = vector.load %arg11[%c8_121, %c0_122] : memref<27x512xf32, #tpu.memory_space<vmem>>, vector<18x512xf32>
    tpu.vector_store %arg11[%c8_121, %c0_122], %166 {strides = array<i32>} : memref<27x512xf32, #tpu.memory_space<vmem>>, vector<18x512xf32>,
    %c7_123 = arith.constant 7 : index
    %c0_124 = arith.constant 0 : index
    %168 = vector.load %arg11[%c7_123, %c0_124] : memref<27x512xf32, #tpu.memory_space<vmem>>, vector<18x512xf32>
    %c2_125 = arith.constant 2 : index
    %c0_126 = arith.constant 0 : index
    %c0_127 = arith.constant 0 : index
    %169 = vector.load %arg3[%c2_125, %c0_126, %c0_127] : memref<3x512x512xbf16, #tpu.memory_space<vmem>>, vector<1x512x512xbf16>
    %170 = vector.shape_cast %169 : vector<1x512x512xbf16> to vector<512x512xbf16>
    %cst_128 = arith.constant dense<0.000000e+00> : vector<18x512xf32>
    %171 = tpu.matmul %157, %170, %cst_128 {dimension_numbers = #tpu.dot_dimension_numbers<[1], [0], [0], [1], [0, 0, 1, 1], [], []>} : vector<18x512xbf16>, vector<512x512xbf16>, vector<18x512xf32> -> vector<18x512xf32>
    %172 = arith.addf %168, %171 : vector<18x512xf32>
    %c7_129 = arith.constant 7 : index
    %c0_130 = arith.constant 0 : index
    %173 = vector.load %arg11[%c7_129, %c0_130] : memref<27x512xf32, #tpu.memory_space<vmem>>, vector<18x512xf32>
    tpu.vector_store %arg11[%c7_129, %c0_130], %172 {strides = array<i32>} : memref<27x512xf32, #tpu.memory_space<vmem>>, vector<18x512xf32>,
    %c8_131 = arith.constant 8 : index
    %c0_132 = arith.constant 0 : index
    %174 = vector.load %arg11[%c8_131, %c0_132] : memref<27x512xf32, #tpu.memory_space<vmem>>, vector<18x512xf32>
    %c0_133 = arith.constant 0 : index
    %c0_134 = arith.constant 0 : index
    %175 = vector.load %arg6[%c0_133, %c0_134] : memref<1x512xf32, #tpu.memory_space<vmem>>, vector<1x512xf32>
    %176 = vector.broadcast %175 : vector<1x512xf32> to vector<18x512xf32>
    %177 = arith.mulf %174, %176 : vector<18x512xf32>
    %c0_135 = arith.constant 0 : index
    %c0_136 = arith.constant 0 : index
    %178 = vector.load %arg7[%c0_135, %c0_136] : memref<1x512xf32, #tpu.memory_space<vmem>>, vector<1x512xf32>
    %179 = vector.broadcast %178 : vector<1x512xf32> to vector<18x512xf32>
    %180 = arith.addf %177, %179 : vector<18x512xf32>
    %cst_137 = arith.constant 0.000000e+00 : f32
    %181 = vector.shape_cast %5 : vector<18x1xi1> to vector<18x1xi1>
    %182 = vector.broadcast %181 : vector<18x1xi1> to vector<18x512xi1>
    %183 = vector.broadcast %cst_137 : f32 to vector<18x512xf32>
    %184 = arith.select %182, %180, %183 : vector<18x512xi1>, vector<18x512xf32>
    %cst_138 = arith.constant dense<0.000000e+00> : vector<512xf32>
    %185 = vector.multi_reduction <add>, %184, %cst_138 [0] : vector<18x512xf32> to vector<512xf32>
    %186 = vector.shape_cast %185 : vector<512xf32> to vector<1x512xf32>
    %187 = vector.extract_strided_slice %186 {offsets = [0, 0], sizes = [1, 32], strides = [1, 1]} : vector<1x512xf32> to vector<1x32xf32>
    %188 = vector.extract_strided_slice %186 {offsets = [0, 32], sizes = [1, 32], strides = [1, 1]} : vector<1x512xf32> to vector<1x32xf32>
    %189 = arith.addf %187, %188 : vector<1x32xf32>
    %190 = vector.extract_strided_slice %186 {offsets = [0, 64], sizes = [1, 32], strides = [1, 1]} : vector<1x512xf32> to vector<1x32xf32>
    %191 = arith.addf %189, %190 : vector<1x32xf32>
    %192 = vector.extract_strided_slice %186 {offsets = [0, 96], sizes = [1, 32], strides = [1, 1]} : vector<1x512xf32> to vector<1x32xf32>
    %193 = arith.addf %191, %192 : vector<1x32xf32>
    %194 = vector.extract_strided_slice %186 {offsets = [0, 128], sizes = [1, 32], strides = [1, 1]} : vector<1x512xf32> to vector<1x32xf32>
    %195 = arith.addf %193, %194 : vector<1x32xf32>
    %196 = vector.extract_strided_slice %186 {offsets = [0, 160], sizes = [1, 32], strides = [1, 1]} : vector<1x512xf32> to vector<1x32xf32>
    %197 = arith.addf %195, %196 : vector<1x32xf32>
    %198 = vector.extract_strided_slice %186 {offsets = [0, 192], sizes = [1, 32], strides = [1, 1]} : vector<1x512xf32> to vector<1x32xf32>
    %199 = arith.addf %197, %198 : vector<1x32xf32>
    %200 = vector.extract_strided_slice %186 {offsets = [0, 224], sizes = [1, 32], strides = [1, 1]} : vector<1x512xf32> to vector<1x32xf32>
    %201 = arith.addf %199, %200 : vector<1x32xf32>
    %202 = vector.extract_strided_slice %186 {offsets = [0, 256], sizes = [1, 32], strides = [1, 1]} : vector<1x512xf32> to vector<1x32xf32>
    %203 = arith.addf %201, %202 : vector<1x32xf32>
    %204 = vector.extract_strided_slice %186 {offsets = [0, 288], sizes = [1, 32], strides = [1, 1]} : vector<1x512xf32> to vector<1x32xf32>
    %205 = arith.addf %203, %204 : vector<1x32xf32>
    %206 = vector.extract_strided_slice %186 {offsets = [0, 320], sizes = [1, 32], strides = [1, 1]} : vector<1x512xf32> to vector<1x32xf32>
    %207 = arith.addf %205, %206 : vector<1x32xf32>
    %208 = vector.extract_strided_slice %186 {offsets = [0, 352], sizes = [1, 32], strides = [1, 1]} : vector<1x512xf32> to vector<1x32xf32>
    %209 = arith.addf %207, %208 : vector<1x32xf32>
    %210 = vector.extract_strided_slice %186 {offsets = [0, 384], sizes = [1, 32], strides = [1, 1]} : vector<1x512xf32> to vector<1x32xf32>
    %211 = arith.addf %209, %210 : vector<1x32xf32>
    %212 = vector.extract_strided_slice %186 {offsets = [0, 416], sizes = [1, 32], strides = [1, 1]} : vector<1x512xf32> to vector<1x32xf32>
    %213 = arith.addf %211, %212 : vector<1x32xf32>
    %214 = vector.extract_strided_slice %186 {offsets = [0, 448], sizes = [1, 32], strides = [1, 1]} : vector<1x512xf32> to vector<1x32xf32>
    %215 = arith.addf %213, %214 : vector<1x32xf32>
    %216 = vector.extract_strided_slice %186 {offsets = [0, 480], sizes = [1, 32], strides = [1, 1]} : vector<1x512xf32> to vector<1x32xf32>
    %217 = arith.addf %215, %216 : vector<1x32xf32>
    %cst_139 = arith.constant 3.906250e-03 : f32
    %218 = vector.broadcast %cst_139 : f32 to vector<1x32xf32>
    %219 = arith.mulf %217, %218 : vector<1x32xf32>
    %c0_140 = arith.constant 0 : index
    %c0_141 = arith.constant 0 : index
    %220 = vector.load %arg8[%c0_140, %c0_141] : memref<2x32xf32, #tpu.memory_space<vmem>>, vector<2x32xf32>
    %221 = vector.broadcast %219 : vector<1x32xf32> to vector<2x32xf32>
    %222 = arith.mulf %220, %221 : vector<2x32xf32>
    %cst_142 = arith.constant dense<0.000000e+00> : vector<2xf32>
    %223 = vector.multi_reduction <add>, %222, %cst_142 [1] : vector<2x32xf32> to vector<2xf32>
    %224 = vector.shape_cast %223 : vector<2xf32> to vector<2x1xf32>
    %cst_143 = arith.constant 0.000000e+00 : f32
    %225 = vector.broadcast %cst_143 : f32 to vector<2x1xf32>
    %226 = arith.maximumf %224, %225 : vector<2x1xf32>
    %c0_144 = arith.constant 0 : index
    %c0_145 = arith.constant 0 : index
    %227 = vector.load %arg9[%c0_144, %c0_145] : memref<2x512xf32, #tpu.memory_space<vmem>>, vector<2x512xf32>
    %228 = vector.broadcast %226 : vector<2x1xf32> to vector<2x512xf32>
    %229 = arith.mulf %227, %228 : vector<2x512xf32>
    %cst_146 = arith.constant dense<0.000000e+00> : vector<512xf32>
    %230 = vector.multi_reduction <add>, %229, %cst_146 [0] : vector<2x512xf32> to vector<512xf32>
    %231 = vector.shape_cast %230 : vector<512xf32> to vector<1x512xf32>
    %232 = arith.negf %231 : vector<1x512xf32>
    %233 = math.exp %232 : vector<1x512xf32>
    %cst_147 = arith.constant 1.000000e+00 : f32
    %234 = vector.broadcast %cst_147 : f32 to vector<1x512xf32>
    %235 = arith.addf %234, %233 : vector<1x512xf32>
    %236 = arith.divf %234, %235 : vector<1x512xf32>
    %237 = vector.broadcast %236 : vector<1x512xf32> to vector<18x512xf32>
    %238 = arith.mulf %180, %237 : vector<18x512xf32>
    %c1_148 = arith.constant 1 : index
    %c0_149 = arith.constant 0 : index
    %c0_150 = arith.constant 0 : index
    %239 = vector.load %arg10[%c1_148, %c0_149, %c0_150] : memref<2x18x512xf32, #tpu.memory_space<vmem>>, vector<1x18x512xf32>
    %240 = vector.shape_cast %239 : vector<1x18x512xf32> to vector<18x512xf32>
    %241 = vector.shape_cast %238 : vector<18x512xf32> to vector<1x18x512xf32>
    tpu.vector_store %arg10[%c1_148, %c0_149, %c0_150], %241 {strides = array<i32>} : memref<2x18x512xf32, #tpu.memory_space<vmem>>, vector<1x18x512xf32>,
    return
  }
  func.func @transform_0(%arg0: i32) -> (i32, i32, i32) {
    %c0_i32 = arith.constant 0 : i32
    %c0_i32_0 = arith.constant 0 : i32
    %c0_i32_1 = arith.constant 0 : i32
    return %arg0, %c0_i32, %c0_i32_0 : i32, i32, i32
  }
  func.func @transform_1(%arg0: i32) -> (i32, i32, i32) {
    %c0_i32 = arith.constant 0 : i32
    %c0_i32_0 = arith.constant 0 : i32
    %c0_i32_1 = arith.constant 0 : i32
    %c0_i32_2 = arith.constant 0 : i32
    return %c0_i32, %c0_i32_0, %c0_i32_1 : i32, i32, i32
  }
  func.func @transform_2(%arg0: i32) -> (i32, i32, i32) {
    %c0_i32 = arith.constant 0 : i32
    %c0_i32_0 = arith.constant 0 : i32
    %c0_i32_1 = arith.constant 0 : i32
    %c0_i32_2 = arith.constant 0 : i32
    return %c0_i32, %c0_i32_0, %c0_i32_1 : i32, i32, i32
  }
  func.func @transform_3(%arg0: i32) -> (i32, i32) {
    %c0_i32 = arith.constant 0 : i32
    %c0_i32_0 = arith.constant 0 : i32
    %c0_i32_1 = arith.constant 0 : i32
    return %c0_i32, %c0_i32_0 : i32, i32
  }
  func.func @transform_4(%arg0: i32) -> (i32, i32) {
    %c0_i32 = arith.constant 0 : i32
    %c0_i32_0 = arith.constant 0 : i32
    %c0_i32_1 = arith.constant 0 : i32
    return %c0_i32, %c0_i32_0 : i32, i32
  }
  func.func @transform_5(%arg0: i32) -> (i32, i32) {
    %c0_i32 = arith.constant 0 : i32
    %c0_i32_0 = arith.constant 0 : i32
    %c0_i32_1 = arith.constant 0 : i32
    return %c0_i32, %c0_i32_0 : i32, i32
  }
  func.func @transform_6(%arg0: i32) -> (i32, i32) {
    %c0_i32 = arith.constant 0 : i32
    %c0_i32_0 = arith.constant 0 : i32
    %c0_i32_1 = arith.constant 0 : i32
    return %c0_i32, %c0_i32_0 : i32, i32
  }
  func.func @transform_7(%arg0: i32) -> (i32, i32) {
    %c0_i32 = arith.constant 0 : i32
    %c0_i32_0 = arith.constant 0 : i32
    %c0_i32_1 = arith.constant 0 : i32
    return %c0_i32, %c0_i32_0 : i32, i32
  }
  func.func @transform_8(%arg0: i32) -> (i32, i32) {
    %c0_i32 = arith.constant 0 : i32
    %c0_i32_0 = arith.constant 0 : i32
    %c0_i32_1 = arith.constant 0 : i32
    return %c0_i32, %c0_i32_0 : i32, i32
  }
  func.func @transform_9(%arg0: i32) -> (i32, i32, i32) {
    %c0_i32 = arith.constant 0 : i32
    %c0_i32_0 = arith.constant 0 : i32
    %c0_i32_1 = arith.constant 0 : i32
    return %arg0, %c0_i32, %c0_i32_0 : i32, i32, i32
  }
}

</mosaic_0001>

<llo_original>
// kernel: tile.41
$region0: #{tile.41}
  %s0 = inlined_call_operand.vmem [shape: f32[2,16,32], index: 0, kind: input, shape index: {}]
  %s1 = inlined_call_operand.vmem [shape: f32[2,512], index: 1, kind: output, shape index: {}]
  $region1: #{tile.41} parent=0
    #allocation0 [shape = 'u8[16384]{0}', space=vmem, size = 0x4000, scoped, tag = 'scoped mem for output reshape']
    %v2 = vld [vmem:[%s0] ss:$4 sm:$0xff]
    %vm3 = vcmask 261120
    %4 = vst.msk [vmem:[#allocation0] ss:$8 sm:$0xf] %vm3, %v2
    %s5 = scalar_lea.vmem [#allocation0], 4294967265
    %6 = vst.msk [vmem:[%s5] ss:$8 sm:$0xf0] %vm3, %v2
    %s7 = scalar_lea.vmem %s0, 3
    %s8 = smov 3
    %v9 = vld [vmem:[%s7] ss:$16 sm:%s8]
    %s10 = scalar_lea.vmem %s0, 4294967271
    %s11 = smov 12
    %v12 = vld [vmem:[%s10] ss:$16 sm:%s11]
    %vm13 = vcmask 1043458
    %v14 = vsel %vm13, %v12, %v9
    %s15 = scalar_lea.vmem %s0, 4294967243
    %s16 = smov 48
    %v17 = vld [vmem:[%s15] ss:$16 sm:%s16]
    %vm18 = vcmask 1045508
    %v19 = vsel %vm18, %v17, %v14
    %s20 = scalar_lea.vmem %s0, 4294967215
    %s21 = smov 192
    %v22 = vld [vmem:[%s20] ss:$16 sm:%s21]
    %vm23 = vcmask 1047558
    %v24 = vsel %vm23, %v22, %v19
    %25 = vrot.lane.b32.xlu0 %v24, 96
    %v26 = vpop.permute.xlu0 %25
    %vm27 = vcmask 1048320
    %28 = vst.msk [vmem:[#allocation0] sm:$0x3] %vm27, %v26
    %s29 = scalar_lea.vmem [#allocation0], 6
    %30 = vst.msk [vmem:[%s29] sm:$0xc] %vm27, %v26
    %s31 = scalar_lea.vmem [#allocation0], 12
    %32 = vst.msk [vmem:[%s31] sm:$0x30] %vm27, %v26
    %s33 = scalar_lea.vmem [#allocation0], 18
    %34 = vst.msk [vmem:[%s33] sm:$0xc0] %vm27, %v26
    %s35 = scalar_lea.vmem %s0, 2
    %s36 = smov 3
    %v37 = vld [vmem:[%s35] ss:$16 sm:%s36]
    %s38 = scalar_lea.vmem %s0, 4294967270
    %s39 = smov 12
    %v40 = vld [vmem:[%s38] ss:$16 sm:%s39]
    %vm41 = vcmask 1043458
    %v42 = vsel %vm41, %v40, %v37
    %s43 = scalar_lea.vmem %s0, 4294967242
    %s44 = smov 48
    %v45 = vld [vmem:[%s43] ss:$16 sm:%s44]
    %vm46 = vcmask 1045508
    %v47 = vsel %vm46, %v45, %v42
    %s48 = scalar_lea.vmem %s0, 4294967214
    %s49 = smov 192
    %v50 = vld [vmem:[%s48] ss:$16 sm:%s49]
    %vm51 = vcmask 1047558
    %v52 = vsel %vm51, %v50, %v47
    %53 = vrot.lane.b32.xlu0 %v52, 64
    %v54 = vpop.permute.xlu0 %53
    %vm55 = vcmask 785920
    %56 = vst.msk [vmem:[#allocation0] sm:$0x3] %vm55, %v54
    %s57 = scalar_lea.vmem [#allocation0], 6
    %58 = vst.msk [vmem:[%s57] sm:$0xc] %vm55, %v54
    %s59 = scalar_lea.vmem [#allocation0], 12
    %60 = vst.msk [vmem:[%s59] sm:$0x30] %vm55, %v54
    %s61 = scalar_lea.vmem [#allocation0], 18
    %62 = vst.msk [vmem:[%s61] sm:$0xc0] %vm55, %v54
    %s63 = scalar_lea.vmem %s0, 1
    %s64 = smov 3
    %v65 = vld [vmem:[%s63] ss:$16 sm:%s64]
    %s66 = scalar_lea.vmem %s0, 4294967269
    %s67 = smov 12
    %v68 = vld [vmem:[%s66] ss:$16 sm:%s67]
    %vm69 = vcmask 1043458
    %v70 = vsel %vm69, %v68, %v65
    %s71 = scalar_lea.vmem %s0, 4294967241
    %s72 = smov 48
    %v73 = vld [vmem:[%s71] ss:$16 sm:%s72]
    %vm74 = vcmask 1045508
    %v75 = vsel %vm74, %v73, %v70
    %s76 = scalar_lea.vmem %s0, 4294967213
    %s77 = smov 192
    %v78 = vld [vmem:[%s76] ss:$16 sm:%s77]
    %vm79 = vcmask 1047558
    %v80 = vsel %vm79, %v78, %v75
    %81 = vrot.lane.b32.xlu0 %v80, 32
    %v82 = vpop.permute.xlu0 %81
    %vm83 = vcmask 523520
    %84 = vst.msk [vmem:[#allocation0] sm:$0x3] %vm83, %v82
    %s85 = scalar_lea.vmem [#allocation0], 6
    %86 = vst.msk [vmem:[%s85] sm:$0xc] %vm83, %v82
    %s87 = scalar_lea.vmem [#allocation0], 12
    %88 = vst.msk [vmem:[%s87] sm:$0x30] %vm83, %v82
    %s89 = scalar_lea.vmem [#allocation0], 18
    %90 = vst.msk [vmem:[%s89] sm:$0xc0] %vm83, %v82
    %s92 = sshllo.u32 0, 2
    %v94 = vld [vmem:[#allocation0] sm:%s92]
    %s95 = sshllo.u32 0, 2
    %96 = vst [vmem:[%s1] sm:%s95] %v94
    %s97 = scalar_lea.vmem [#allocation0], 8
    %v98 = vld [vmem:[%s97] sm:%s92]
    %s99 = sshllo.u32 0, 2
    %s100 = scalar_lea.vmem %s1, 2
    %101 = vst [vmem:[%s100] sm:%s99] %v98
    %s102 = scalar_lea.vmem [#allocation0], 16
    %v103 = vld [vmem:[%s102] sm:%s92]
    %s104 = sshllo.u32 0, 2
    %s105 = smul.addr 2, 2
    %s106 = scalar_lea.vmem %s1, %s105
    %107 = vst [vmem:[%s106] sm:%s104] %v103
    %s108 = scalar_lea.vmem [#allocation0], 24
    %v109 = vld [vmem:[%s108] sm:%s92]
    %s110 = sshllo.u32 0, 2
    %s111 = smul.addr 2, 3
    %s112 = scalar_lea.vmem %s1, %s111
    %113 = vst [vmem:[%s112] sm:%s110] %v109

// kernel: conv_conv_se_forward.1
$region0: #{conv_conv_se_forward.1}
  #allocation0 [shape = 'u32[]', space=smem, size = 0x4, offset = 0x4, fixed_abs, tag = 'smem constant byte address 0x4 - core index']
  #allocation1 [shape = 'u32[144,128]{1,0:T(1,128)}', space=vmem, size = 0x12000, scoped, tag = 'internal scratch']
  #allocation2 [shape = 'f32[27,512]{1,0:T(8,128)}', space=vmem, size = 0x10000, scoped, tag = 'scratch operand']
  #allocation3 [shape = 'bf16[18,512]{1,0:T(8,128)(2,1)}', space=vmem, size = 0x6000, scoped, tag = 'scratch operand']
  %s0 = inlined_call_operand.vmem [shape: bf16[4,18,64], index: 0, kind: input, shape index: {}]
  %s1 = inlined_call_operand.vmem [shape: bf16[3,64,512], index: 1, kind: input, shape index: {}]
  %s2 = inlined_call_operand.vmem [shape: bf16[3,512,512], index: 2, kind: input, shape index: {}]
  %s3 = inlined_call_operand.vmem [shape: f32[1,512], index: 3, kind: input, shape index: {}]
  %s4 = inlined_call_operand.vmem [shape: f32[1,512], index: 4, kind: input, shape index: {}]
  %s5 = inlined_call_operand.vmem [shape: f32[1,512], index: 5, kind: input, shape index: {}]
  %s6 = inlined_call_operand.vmem [shape: f32[1,512], index: 6, kind: input, shape index: {}]
  %s7 = inlined_call_operand.vmem [shape: f32[2,32], index: 7, kind: input, shape index: {}]
  %s8 = inlined_call_operand.vmem [shape: f32[2,512], index: 8, kind: input, shape index: {}]
  %s9 = inlined_call_operand.vmem [shape: f32[4,18,512], index: 9, kind: output, shape index: {}]
  %s10 = sld [smem:[#allocation0]]
  $region69: #{conv_conv_se_forward.1} parent=0
    _
  %s12 = ssub.s32 1, %s10
  %s13 = scalar_select 0, %s12, %s10
  loop: start=0, step=1, limit=4
  $region2: #{conv_conv_se_forward.1} parent=0 // loop_pre_header
    _
  $region3: #{conv_conv_se_forward.1} parent=0 // loop_header
    %s15 = sphi 0, %s19
    %p16 = scmp.ge.s32.totalorder %s15, 4
    %s25 = sphi 0, %s27
    %s28 = sphi 0, %s25
    %s29 = sphi 0, %s28
    %s45 = sphi 0, %s29
    %s49 = sphi 0, %s49
    %s51 = sphi 0, %s49
    %s52 = sphi 0, %s51
    %s66 = sphi 0, %s52
    %s70 = sphi 0, %s70
    %s72 = sphi 0, %s70
    %s73 = sphi 0, %s72
    %s87 = sphi 0, %s73
    %s91 = sphi 0, %s91
    %s93 = sphi 0, %s91
    %s94 = sphi 0, %s93
    %s108 = sphi 0, %s94
    %s112 = sphi 0, %s112
    %s114 = sphi 0, %s112
    %s115 = sphi 0, %s114
    %s129 = sphi 0, %s115
    %s133 = sphi 0, %s133
    %s135 = sphi 0, %s133
    %s136 = sphi 0, %s135
    %s150 = sphi 0, %s136
    %s154 = sphi 0, %s154
    %s156 = sphi 0, %s154
    %s157 = sphi 0, %s156
    %s171 = sphi 0, %s157
    %s175 = sphi 0, %s175
    %s177 = sphi 0, %s175
    %s178 = sphi 0, %s177
    %s192 = sphi 0, %s178
    %s196 = sphi 0, %s196
    %s198 = sphi 0, %s196
    %s199 = sphi 0, %s198
    %s213 = sphi 0, %s199
    %s219 = sphi 0, %s221
    %s222 = sphi 0, %s219
    %s223 = sphi 0, %s222
    %s239 = sphi 0, %s223
  $region4: #{conv_conv_se_forward.1} parent=0 // loop_header_branch
    %18 = sbr.rel (%p16) target = $region8
  $region5: #{conv_conv_se_forward.1} parent=0 // loop_body
    %s20 = ssub.s32 %s15, 1
    %s21 = ssub.s32 %s15, 2
    %s22 = sadd.s32 %s15, 1
    %s23 = ssub.s32 %s15, %s22
    %p24 = scmp.eq.s32.totalorder %s23, 0
    %s26 = sadd.s32 %s25, 1
    %s27 = scalar_select %p24, %s25, %s26
    %p30 = pneg %p24
    %p31 = scmp.eq.s32.totalorder %s15, 1
    %p32 = por %p30, %p31
    %p33 = scmp.ne.s32.totalorder %s25, %s28
    %p34 = scmp.eq.s32.totalorder %s15, 0
    %p35 = por %p33, %p34
    %p36 = scmp.ne.s32.totalorder %s25, %s28
    %p37 = scmp.eq.s32.totalorder %s20, 1
    %p38 = por %p36, %p37
    %p39 = scmp.ne.s32.totalorder %s28, %s29
    %p40 = scmp.eq.s32.totalorder %s20, 0
    %p41 = por %p39, %p40
    %p42 = scmp.ne.s32.totalorder %s28, %s29
    %p43 = scmp.eq.s32.totalorder %s21, 1
    %p44 = por %p42, %p43
    %p46 = scmp.ne.s32.totalorder %s29, %s45
    %p47 = scmp.eq.s32.totalorder %s21, 0
    %p48 = por %p46, %p47
    %s50 = sadd.s32 %s49, 1
    %p53 = scmp.eq.s32.totalorder %s15, 1
    %p54 = scmp.ne.s32.totalorder %s49, %s51
    %p55 = scmp.eq.s32.totalorder %s15, 0
    %p56 = por %p54, %p55
    %p57 = scmp.ne.s32.totalorder %s49, %s51
    %p58 = scmp.eq.s32.totalorder %s20, 1
    %p59 = por %p57, %p58
    %p60 = scmp.ne.s32.totalorder %s51, %s52
    %p61 = scmp.eq.s32.totalorder %s20, 0
    %p62 = por %p60, %p61
    %p63 = scmp.ne.s32.totalorder %s51, %s52
    %p64 = scmp.eq.s32.totalorder %s21, 1
    %p65 = por %p63, %p64
    %p67 = scmp.ne.s32.totalorder %s52, %s66
    %p68 = scmp.eq.s32.totalorder %s21, 0
    %p69 = por %p67, %p68
    %s71 = sadd.s32 %s70, 1
    %p74 = scmp.eq.s32.totalorder %s15, 1
    %p75 = scmp.ne.s32.totalorder %s70, %s72
    %p76 = scmp.eq.s32.totalorder %s15, 0
    %p77 = por %p75, %p76
    %p78 = scmp.ne.s32.totalorder %s70, %s72
    %p79 = scmp.eq.s32.totalorder %s20, 1
    %p80 = por %p78, %p79
    %p81 = scmp.ne.s32.totalorder %s72, %s73
    %p82 = scmp.eq.s32.totalorder %s20, 0
    %p83 = por %p81, %p82
    %p84 = scmp.ne.s32.totalorder %s72, %s73
    %p85 = scmp.eq.s32.totalorder %s21, 1
    %p86 = por %p84, %p85
    %p88 = scmp.ne.s32.totalorder %s73, %s87
    %p89 = scmp.eq.s32.totalorder %s21, 0
    %p90 = por %p88, %p89
    %s92 = sadd.s32 %s91, 1
    %p95 = scmp.eq.s32.totalorder %s15, 1
    %p96 = scmp.ne.s32.totalorder %s91, %s93
    %p97 = scmp.eq.s32.totalorder %s15, 0
    %p98 = por %p96, %p97
    %p99 = scmp.ne.s32.totalorder %s91, %s93
    %p100 = scmp.eq.s32.totalorder %s20, 1
    %p101 = por %p99, %p100
    %p102 = scmp.ne.s32.totalorder %s93, %s94
    %p103 = scmp.eq.s32.totalorder %s20, 0
    %p104 = por %p102, %p103
    %p105 = scmp.ne.s32.totalorder %s93, %s94
    %p106 = scmp.eq.s32.totalorder %s21, 1
    %p107 = por %p105, %p106
    %p109 = scmp.ne.s32.totalorder %s94, %s108
    %p110 = scmp.eq.s32.totalorder %s21, 0
    %p111 = por %p109, %p110
    %s113 = sadd.s32 %s112, 1
    %p116 = scmp.eq.s32.totalorder %s15, 1
    %p117 = scmp.ne.s32.totalorder %s112, %s114
    %p118 = scmp.eq.s32.totalorder %s15, 0
    %p119 = por %p117, %p118
    %p120 = scmp.ne.s32.totalorder %s112, %s114
    %p121 = scmp.eq.s32.totalorder %s20, 1
    %p122 = por %p120, %p121
    %p123 = scmp.ne.s32.totalorder %s114, %s115
    %p124 = scmp.eq.s32.totalorder %s20, 0
    %p125 = por %p123, %p124
    %p126 = scmp.ne.s32.totalorder %s114, %s115
    %p127 = scmp.eq.s32.totalorder %s21, 1
    %p128 = por %p126, %p127
    %p130 = scmp.ne.s32.totalorder %s115, %s129
    %p131 = scmp.eq.s32.totalorder %s21, 0
    %p132 = por %p130, %p131
    %s134 = sadd.s32 %s133, 1
    %p137 = scmp.eq.s32.totalorder %s15, 1
    %p138 = scmp.ne.s32.totalorder %s133, %s135
    %p139 = scmp.eq.s32.totalorder %s15, 0
    %p140 = por %p138, %p139
    %p141 = scmp.ne.s32.totalorder %s133, %s135
    %p142 = scmp.eq.s32.totalorder %s20, 1
    %p143 = por %p141, %p142
    %p144 = scmp.ne.s32.totalorder %s135, %s136
    %p145 = scmp.eq.s32.totalorder %s20, 0
    %p146 = por %p144, %p145
    %p147 = scmp.ne.s32.totalorder %s135, %s136
    %p148 = scmp.eq.s32.totalorder %s21, 1
    %p149 = por %p147, %p148
    %p151 = scmp.ne.s32.totalorder %s136, %s150
    %p152 = scmp.eq.s32.totalorder %s21, 0
    %p153 = por %p151, %p152
    %s155 = sadd.s32 %s154, 1
    %p158 = scmp.eq.s32.totalorder %s15, 1
    %p159 = scmp.ne.s32.totalorder %s154, %s156
    %p160 = scmp.eq.s32.totalorder %s15, 0
    %p161 = por %p159, %p160
    %p162 = scmp.ne.s32.totalorder %s154, %s156
    %p163 = scmp.eq.s32.totalorder %s20, 1
    %p164 = por %p162, %p163
    %p165 = scmp.ne.s32.totalorder %s156, %s157
    %p166 = scmp.eq.s32.totalorder %s20, 0
    %p167 = por %p165, %p166
    %p168 = scmp.ne.s32.totalorder %s156, %s157
    %p169 = scmp.eq.s32.totalorder %s21, 1
    %p170 = por %p168, %p169
    %p172 = scmp.ne.s32.totalorder %s157, %s171
    %p173 = scmp.eq.s32.totalorder %s21, 0
    %p174 = por %p172, %p173
    %s176 = sadd.s32 %s175, 1
    %p179 = scmp.eq.s32.totalorder %s15, 1
    %p180 = scmp.ne.s32.totalorder %s175, %s177
    %p181 = scmp.eq.s32.totalorder %s15, 0
    %p182 = por %p180, %p181
    %p183 = scmp.ne.s32.totalorder %s175, %s177
    %p184 = scmp.eq.s32.totalorder %s20, 1
    %p185 = por %p183, %p184
    %p186 = scmp.ne.s32.totalorder %s177, %s178
    %p187 = scmp.eq.s32.totalorder %s20, 0
    %p188 = por %p186, %p187
    %p189 = scmp.ne.s32.totalorder %s177, %s178
    %p190 = scmp.eq.s32.totalorder %s21, 1
    %p191 = por %p189, %p190
    %p193 = scmp.ne.s32.totalorder %s178, %s192
    %p194 = scmp.eq.s32.totalorder %s21, 0
    %p195 = por %p193, %p194
    %s197 = sadd.s32 %s196, 1
    %p200 = scmp.eq.s32.totalorder %s15, 1
    %p201 = scmp.ne.s32.totalorder %s196, %s198
    %p202 = scmp.eq.s32.totalorder %s15, 0
    %p203 = por %p201, %p202
    %p204 = scmp.ne.s32.totalorder %s196, %s198
    %p205 = scmp.eq.s32.totalorder %s20, 1
    %p206 = por %p204, %p205
    %p207 = scmp.ne.s32.totalorder %s198, %s199
    %p208 = scmp.eq.s32.totalorder %s20, 0
    %p209 = por %p207, %p208
    %p210 = scmp.ne.s32.totalorder %s198, %s199
    %p211 = scmp.eq.s32.totalorder %s21, 1
    %p212 = por %p210, %p211
    %p214 = scmp.ne.s32.totalorder %s199, %s213
    %p215 = scmp.eq.s32.totalorder %s21, 0
    %p216 = por %p214, %p215
    %s217 = ssub.s32 %s15, %s22
    %p218 = scmp.eq.s32.totalorder %s217, 0
    %s220 = sadd.s32 %s219, 1
    %s221 = scalar_select %p218, %s219, %s220
    %p224 = pneg %p218
    %p225 = scmp.eq.s32.totalorder %s15, 1
    %p226 = por %p224, %p225
    %p227 = scmp.ne.s32.totalorder %s219, %s222
    %p228 = scmp.eq.s32.totalorder %s15, 0
    %p229 = por %p227, %p228
    %p230 = scmp.ne.s32.totalorder %s219, %s222
    %p231 = scmp.eq.s32.totalorder %s20, 1
    %p232 = por %p230, %p231
    %p233 = scmp.ne.s32.totalorder %s222, %s223
    %p234 = scmp.eq.s32.totalorder %s20, 0
    %p235 = por %p233, %p234
    %p236 = scmp.ne.s32.totalorder %s222, %s223
    %p237 = scmp.eq.s32.totalorder %s21, 1
    %p238 = por %p236, %p237
    %p240 = scmp.ne.s32.totalorder %s223, %s239
    %p241 = scmp.eq.s32.totalorder %s21, 0
    %p242 = por %p240, %p241
    %p243 = scmp.le.s32.totalorder 1, %s15
    %p244 = scmp.lt.s32.totalorder %s15, 3
    %p245 = pnand %p243, %p244
    %p246 = pneg %p245
    // Predicated region
    $region9: #{conv_conv_se_forward.1} parent=5 // pred_check
      _
    $region10: #{conv_conv_se_forward.1} parent=5 // pred_check_branch
      %248 = sbr.rel (%p245) target = $region12
    $region11: #{conv_conv_se_forward.1} parent=5 // pred_region
      %s249 = ssub.s32 %s15, 1
      // Predicated region
      $region13: #{conv_conv_se_forward.1} parent=11 // pred_check
        %p250 = pneg %p62
      $region14: #{conv_conv_se_forward.1} parent=11 // pred_check_branch
        %252 = sbr.rel (%p250) target = $region16
      $region15: #{conv_conv_se_forward.1} parent=11 // pred_region
        _
      $region16: #{conv_conv_se_forward.1} parent=11 // pred_fallthru
        _
      // Predicated region
      $region17: #{conv_conv_se_forward.1} parent=11 // pred_check
        %p253 = pneg %p83
      $region18: #{conv_conv_se_forward.1} parent=11 // pred_check_branch
        %255 = sbr.rel (%p253) target = $region20
      $region19: #{conv_conv_se_forward.1} parent=11 // pred_region
        _
      $region20: #{conv_conv_se_forward.1} parent=11 // pred_fallthru
        _
      // Predicated region
      $region21: #{conv_conv_se_forward.1} parent=11 // pred_check
        %p256 = pneg %p104
      $region22: #{conv_conv_se_forward.1} parent=11 // pred_check_branch
        %258 = sbr.rel (%p256) target = $region24
      $region23: #{conv_conv_se_forward.1} parent=11 // pred_region
        _
      $region24: #{conv_conv_se_forward.1} parent=11 // pred_fallthru
        _
      // Predicated region
      $region25: #{conv_conv_se_forward.1} parent=11 // pred_check
        %p259 = pneg %p125
      $region26: #{conv_conv_se_forward.1} parent=11 // pred_check_branch
        %261 = sbr.rel (%p259) target = $region28
      $region27: #{conv_conv_se_forward.1} parent=11 // pred_region
        _
      $region28: #{conv_conv_se_forward.1} parent=11 // pred_fallthru
        _
      // Predicated region
      $region29: #{conv_conv_se_forward.1} parent=11 // pred_check
        %p262 = pneg %p146
      $region30: #{conv_conv_se_forward.1} parent=11 // pred_check_branch
        %264 = sbr.rel (%p262) target = $region32
      $region31: #{conv_conv_se_forward.1} parent=11 // pred_region
        _
      $region32: #{conv_conv_se_forward.1} parent=11 // pred_fallthru
        _
      // Predicated region
      $region33: #{conv_conv_se_forward.1} parent=11 // pred_check
        %p265 = pneg %p167
      $region34: #{conv_conv_se_forward.1} parent=11 // pred_check_branch
        %267 = sbr.rel (%p265) target = $region36
      $region35: #{conv_conv_se_forward.1} parent=11 // pred_region
        _
      $region36: #{conv_conv_se_forward.1} parent=11 // pred_fallthru
        _
      // Predicated region
      $region37: #{conv_conv_se_forward.1} parent=11 // pred_check
        %p268 = pneg %p188
      $region38: #{conv_conv_se_forward.1} parent=11 // pred_check_branch
        %270 = sbr.rel (%p268) target = $region40
      $region39: #{conv_conv_se_forward.1} parent=11 // pred_region
        _
      $region40: #{conv_conv_se_forward.1} parent=11 // pred_fallthru
        _
      // Predicated region
      $region41: #{conv_conv_se_forward.1} parent=11 // pred_check
        %p271 = pneg %p209
      $region42: #{conv_conv_se_forward.1} parent=11 // pred_check_branch
        %273 = sbr.rel (%p271) target = $region44
      $region43: #{conv_conv_se_forward.1} parent=11 // pred_region
        _
      $region44: #{conv_conv_se_forward.1} parent=11 // pred_fallthru
        _
    $region12: #{conv_conv_se_forward.1} parent=5 // pred_fallthru
      _
    %p274 = scmp.lt.s32.totalorder %s15, 2
    // Predicated region
    $region45: #{conv_conv_se_forward.1} parent=5 // pred_check
      %p275 = pneg %p274
    $region46: #{conv_conv_se_forward.1} parent=5 // pred_check_branch
      %277 = sbr.rel (%p275) target = $region48
    $region47: #{conv_conv_se_forward.1} parent=5 // pred_region
      // Predicated region
      $region49: #{conv_conv_se_forward.1} parent=47 // pred_check
        %p278 = pneg %p35
      $region50: #{conv_conv_se_forward.1} parent=47 // pred_check_branch
        %280 = sbr.rel (%p278) target = $region52
      $region51: #{conv_conv_se_forward.1} parent=47 // pred_region
        %s281 = smul.u32 2, %s15
        %p282 = scmp.lt.s32.totalorder %s281, 3
        %s283 = scalar_select %p282, %s281, 3
        %s284 = smul.addr %s283, 3
        %s285 = smul.addr %s284, 4
        %s286 = scalar_lea.vmem %s0, %s285
        %s287 = smul.u32 2, %s15
      $region52: #{conv_conv_se_forward.1} parent=47 // pred_fallthru
        _
    $region48: #{conv_conv_se_forward.1} parent=5 // pred_fallthru
      _
    %p288 = scmp.le.s32.totalorder 1, %s15
    %p289 = scmp.lt.s32.totalorder %s15, 3
    %p290 = pnand %p288, %p289
    %p291 = pneg %p290
    // Predicated region
    $region53: #{conv_conv_se_forward.1} parent=5 // pred_check
      _
    $region54: #{conv_conv_se_forward.1} parent=5 // pred_check_branch
      %293 = sbr.rel (%p290) target = $region56
    $region55: #{conv_conv_se_forward.1} parent=5 // pred_region
      %s294 = ssub.s32 %s15, 1
      %s295 = smul.u32 2, %s20
      %p296 = scmp.lt.s32.totalorder %s295, 3
      %s297 = scalar_select %p296, %s295, 3
      %s298 = smul.addr %s297, 3
      %s299 = smul.addr %s298, 4
      %s300 = scalar_lea.vmem %s0, %s299
      %p301 = pneg %p41
      %p302 = pneg %p38
      %p303 = pneg %p62
      %p304 = pneg %p59
      %p305 = pneg %p83
      %p306 = pneg %p80
      %p307 = pneg %p104
      %p308 = pneg %p101
      %p309 = pneg %p125
      %p310 = pneg %p122
      %p311 = pneg %p146
      %p312 = pneg %p143
      %p313 = pneg %p167
      %p314 = pneg %p164
      %p315 = pneg %p188
      %p316 = pneg %p185
      %p317 = pneg %p209
      %p318 = pneg %p206
      %p319 = pneg %p235
      %p320 = pneg %p232
      %s321 = smul.u32 2, %s20
      %p322 = scmp.lt.s32.totalorder %s321, 3
      %s323 = scalar_select %p322, %s321, 3
      %s324 = smul.addr %s323, 12
      %s325 = smul.addr %s324, 8
      %s326 = scalar_lea.vmem %s9, %s325
      %s327 = smul.u32 2, %s20
      %p328 = scmp.lt.s32.totalorder %s327, 3
      %s329 = scalar_select %p328, %s327, 3
      %s330 = smul.addr %s329, 3
      %s331 = smul.addr %s330, 4
      %s332 = scalar_lea.vmem %s0, %s331
      %s333 = smul.u32 2, %s20
      %s334 = smul.u32 2, %s20
      %p335 = scmp.lt.s32.totalorder %s334, 3
      %s336 = scalar_select %p335, %s334, 3
      %s337 = smul.addr %s336, 12
      %s338 = smul.addr %s337, 8
      %s339 = scalar_lea.vmem %s9, %s338
      %s340 = smul.u32 2, %s20
      %v342 = vlaneseq
      %v343 = vshrl.u32 %v342, 7
      %v344 = vadd.s32 %v343, 8
      %v345 = vadd.s32 %v343, 16
      %vm346 = vcmp.ge.s32.totalorder %v343, 1
      %vm347 = vcmp.ge.s32.totalorder %v344, 1
      %vm348 = vcmp.ge.s32.totalorder %v345, 1
      %vm349 = vcmp.le.s32.totalorder %v343, 16
      %vm350 = vcmp.le.s32.totalorder %v344, 16
      %vm351 = vcmp.le.s32.totalorder %v345, 16
      %vm352 = vmand %vm346, %vm349
      %vm353 = vmand %vm347, %vm350
      %vm354 = vmand %vm348, %vm351
      %v355 = vld [vmem:[%s332] sm:$0xf]
      %v356 = vld [vmem:[%s332 + $0x4] sm:$0xf]
      %v357 = vld [vmem:[%s332 + $0x8] sm:$0x1]
      %v358 = vld [vmem:[%s1] sm:$0xff]
      %v359 = vld [vmem:[%s1 + $0x8] sm:$0xff]
      %v360 = vld [vmem:[%s1 + $0x10] sm:$0xff]
      %v361 = vld [vmem:[%s1 + $0x18] sm:$0xff]
      %v362 = vld [vmem:[%s1 + $0x20] sm:$0xff]
      %v363 = vld [vmem:[%s1 + $0x28] sm:$0xff]
      %v364 = vld [vmem:[%s1 + $0x30] sm:$0xff]
      %v365 = vld [vmem:[%s1 + $0x38] sm:$0xff]
      %v366 = vld [vmem:[%s1 + $0x40] sm:$0xff]
      %v367 = vld [vmem:[%s1 + $0x48] sm:$0xff]
      %v368 = vld [vmem:[%s1 + $0x50] sm:$0xff]
      %v369 = vld [vmem:[%s1 + $0x58] sm:$0xff]
      %v370 = vld [vmem:[%s1 + $0x60] sm:$0xff]
      %v371 = vld [vmem:[%s1 + $0x68] sm:$0xff]
      %v372 = vld [vmem:[%s1 + $0x70] sm:$0xff]
      %v373 = vld [vmem:[%s1 + $0x78] sm:$0xff]
      %v377 = vunpack.c.l.b16 %v355
      %v378 = vunpack.c.l.b16 %v356
      %v379 = vunpack.c.l.b16 %v357
      %v380 = vpack.c.b16 %v378, %v377
      %v381 = vpack.c.b16 %v379, %v379
      %v398 = vunpack.c.l.b16 %v358
      %v399 = vunpack.c.h.b16 %v358
      %v400 = vunpack.c.l.b16 %v359
      %v401 = vunpack.c.h.b16 %v359
      %v402 = vunpack.c.l.b16 %v360
      %v403 = vunpack.c.h.b16 %v360
      %v404 = vunpack.c.l.b16 %v361
      %v405 = vunpack.c.h.b16 %v361
      %v406 = vunpack.c.l.b16 %v362
      %v407 = vunpack.c.h.b16 %v362
      %v408 = vunpack.c.l.b16 %v363
      %v409 = vunpack.c.h.b16 %v363
      %v410 = vunpack.c.l.b16 %v364
      %v411 = vunpack.c.h.b16 %v364
      %v412 = vunpack.c.l.b16 %v365
      %v413 = vunpack.c.h.b16 %v365
      %v414 = vunpack.c.l.b16 %v366
      %v415 = vunpack.c.h.b16 %v366
      %v416 = vunpack.c.l.b16 %v367
      %v417 = vunpack.c.h.b16 %v367
      %v418 = vunpack.c.l.b16 %v368
      %v419 = vunpack.c.h.b16 %v368
      %v420 = vunpack.c.l.b16 %v369
      %v421 = vunpack.c.h.b16 %v369
      %v422 = vunpack.c.l.b16 %v370
      %v423 = vunpack.c.h.b16 %v370
      %v424 = vunpack.c.l.b16 %v371
      %v425 = vunpack.c.h.b16 %v371
      %v426 = vunpack.c.l.b16 %v372
      %v427 = vunpack.c.h.b16 %v372
      %v428 = vunpack.c.l.b16 %v373
      %v429 = vunpack.c.h.b16 %v373
      %v430 = vpack.c.b16 %v402, %v398
      %v431 = vpack.c.b16 %v403, %v399
      %v432 = vpack.c.b16 %v404, %v400
      %v433 = vpack.c.b16 %v405, %v401
      %v434 = vpack.c.b16 %v410, %v406
      %v435 = vpack.c.b16 %v411, %v407
      %v436 = vpack.c.b16 %v412, %v408
      %v437 = vpack.c.b16 %v413, %v409
      %v438 = vpack.c.b16 %v418, %v414
      %v439 = vpack.c.b16 %v419, %v415
      %v440 = vpack.c.b16 %v420, %v416
      %v441 = vpack.c.b16 %v421, %v417
      %v442 = vpack.c.b16 %v426, %v422
      %v443 = vpack.c.b16 %v427, %v423
      %v444 = vpack.c.b16 %v428, %v424
      %v445 = vpack.c.b16 %v429, %v425
      %vm462 = vcmask 523264
      %v464 = vsel %vm462, %v380, 0
      %v467 = vsel %vm462, %v381, 0
      %469 = vmatprep.subr.bf16.mxu0 %v431
      %470 = vmatpush1.bf16.msra.mxu0 %v430
      %471 = vmatprep.subr.bf16.mxu0 %v435
      %472 = vmatpush1.bf16.msra.mxu0 %v434
      %473 = vmatprep.subr.bf16.mxu0 %v439
      %474 = vmatpush1.bf16.msra.mxu0 %v438
      %475 = vmatprep.subr.bf16.mxu0 %v443
      %476 = vmatpush1.bf16.msra.mxu0 %v442
      %477 = vmatprep.subr.bf16.mxu0 0
      %478 = vmatpush1.bf16.msra.mxu0 0
      %479 = vmatprep.subr.bf16.mxu0 0
      %480 = vmatpush1.bf16.msra.mxu0 0
      %481 = vmatprep.subr.bf16.mxu0 0
      %482 = vmatpush1.bf16.msra.mxu0 0
      %483 = vmatprep.subr.bf16.mxu0 0
      %484 = vmatpush1.bf16.msra.mxu0 0
      %485 = vmatprep.subr.bf16.mxu0 0
      %486 = vmatpush1.bf16.msra.mxu0 0
      %487 = vmatprep.subr.bf16.mxu0 0
      %488 = vmatpush1.bf16.msra.mxu0 0
      %489 = vmatprep.subr.bf16.mxu0 0
      %490 = vmatpush1.bf16.msra.mxu0 0
      %491 = vmatprep.subr.bf16.mxu0 0
      %492 = vmatpush1.bf16.msra.mxu0 0
      %493 = vmatprep.subr.bf16.mxu0 0
      %494 = vmatpush1.bf16.msra.mxu0 0
      %495 = vmatprep.subr.bf16.mxu0 0
      %496 = vmatpush1.bf16.msra.mxu0 0
      %497 = vmatprep.subr.bf16.mxu0 0
      %498 = vmatpush1.bf16.msra.mxu0 0
      %499 = vmatprep.subr.bf16.mxu0 0
      %500 = vmatpush1.bf16.msra.mxu0 0
      %501 = vmatprep.mubr.bf16.mxu0 0
      %502 = vmatmul.mubr.bf16.gmra.mrb[0].mxu0 %v464
      %v503 = vpop.f32.mrb[0].mxu0
      %v504 = vadd.f32 0.0, %v503
      %v505 = vpop.f32.mrb[0].mxu0
      %v506 = vadd.f32 0.0, %v505
      %v507 = vpop.f32.mrb[0].mxu0
      %v508 = vadd.f32 0.0, %v507
      %v509 = vpop.f32.mrb[0].mxu0
      %v510 = vadd.f32 0.0, %v509
      %511 = vmatprep.mubr.bf16.mxu0 0
      %512 = vmatmul.mubr.bf16.gmra.mrb[0].mxu0 %v467
      %v513 = vpop.f32.mrb[0].mxu0
      %v514 = vadd.f32 0.0, %v513
      %v515 = vpop.f32.mrb[0].mxu0
      %v516 = vadd.f32 0.0, %v515
      %v517 = vpop.f32.mrb[0].mxu0
      %v518 = vpop.f32.mrb[0].mxu0
      %519 = vdwg.mxu0
      %520 = vmatprep.subr.bf16.mxu0 %v433
      %521 = vmatpush1.bf16.msra.mxu0 %v432
      %522 = vmatprep.subr.bf16.mxu0 %v437
      %523 = vmatpush1.bf16.msra.mxu0 %v436
      %524 = vmatprep.subr.bf16.mxu0 %v441
      %525 = vmatpush1.bf16.msra.mxu0 %v440
      %526 = vmatprep.subr.bf16.mxu0 %v445
      %527 = vmatpush1.bf16.msra.mxu0 %v444
      %528 = vmatprep.subr.bf16.mxu0 0
      %529 = vmatpush1.bf16.msra.mxu0 0
      %530 = vmatprep.subr.bf16.mxu0 0
      %531 = vmatpush1.bf16.msra.mxu0 0
      %532 = vmatprep.subr.bf16.mxu0 0
      %533 = vmatpush1.bf16.msra.mxu0 0
      %534 = vmatprep.subr.bf16.mxu0 0
      %535 = vmatpush1.bf16.msra.mxu0 0
      %536 = vmatprep.subr.bf16.mxu0 0
      %537 = vmatpush1.bf16.msra.mxu0 0
      %538 = vmatprep.subr.bf16.mxu0 0
      %539 = vmatpush1.bf16.msra.mxu0 0
      %540 = vmatprep.subr.bf16.mxu0 0
      %541 = vmatpush1.bf16.msra.mxu0 0
      %542 = vmatprep.subr.bf16.mxu0 0
      %543 = vmatpush1.bf16.msra.mxu0 0
      %544 = vmatprep.subr.bf16.mxu0 0
      %545 = vmatpush1.bf16.msra.mxu0 0
      %546 = vmatprep.subr.bf16.mxu0 0
      %547 = vmatpush1.bf16.msra.mxu0 0
      %548 = vmatprep.subr.bf16.mxu0 0
      %549 = vmatpush1.bf16.msra.mxu0 0
      %550 = vmatprep.subr.bf16.mxu0 0
      %551 = vmatpush1.bf16.msra.mxu0 0
      %552 = vmatprep.mubr.bf16.mxu0 0
      %553 = vmatmul.mubr.bf16.gmra.mrb[0].mxu0 %v464
      %v554 = vpop.f32.mrb[0].mxu0
      %v555 = vadd.f32 0.0, %v554
      %v556 = vpop.f32.mrb[0].mxu0
      %v557 = vadd.f32 0.0, %v556
      %v558 = vpop.f32.mrb[0].mxu0
      %v559 = vadd.f32 0.0, %v558
      %v560 = vpop.f32.mrb[0].mxu0
      %v561 = vadd.f32 0.0, %v560
      %562 = vmatprep.mubr.bf16.mxu0 0
      %563 = vmatmul.mubr.bf16.gmra.mrb[0].mxu0 %v467
      %v564 = vpop.f32.mrb[0].mxu0
      %v565 = vadd.f32 0.0, %v564
      %v566 = vpop.f32.mrb[0].mxu0
      %v567 = vadd.f32 0.0, %v566
      %v568 = vpop.f32.mrb[0].mxu0
      %v569 = vpop.f32.mrb[0].mxu0
      %570 = vdwg.mxu0
      %vm583 = vcmask 1040384
      %v584 = vrot.slane %v504, 7
      %v585 = vrot.slane %v506, 7
      %v586 = vrot.slane %v555, 7
      %v587 = vrot.slane %v557, 7
      %v588 = vrot.slane %v508, 7
      %v589 = vsel %vm583, %v584, %v588
      %v590 = vrot.slane %v510, 7
      %v591 = vsel %vm583, %v585, %v590
      %v592 = vrot.slane %v559, 7
      %v593 = vsel %vm583, %v586, %v592
      %v594 = vrot.slane %v561, 7
      %v595 = vsel %vm583, %v587, %v594
      %v596 = vrot.slane %v514, 7
      %v597 = vsel %vm583, %v588, %v596
      %v598 = vrot.slane %v516, 7
      %v599 = vsel %vm583, %v590, %v598
      %v600 = vrot.slane %v565, 7
      %v601 = vsel %vm583, %v592, %v600
      %v602 = vrot.slane %v567, 7
      %v603 = vsel %vm583, %v594, %v602
      %616 = vst [vmem:[#allocation2 + $0x20] sm:$0xfe] %v584
      %617 = vst [vmem:[#allocation2 + $0x28] sm:$0xfe] %v585
      %618 = vst [vmem:[#allocation2 + $0x30] sm:$0xfe] %v586
      %619 = vst [vmem:[#allocation2 + $0x38] sm:$0xfe] %v587
      %620 = vst [vmem:[#allocation2 + $0x40] sm:$0xff] %v589
      %621 = vst [vmem:[#allocation2 + $0x48] sm:$0xff] %v591
      %622 = vst [vmem:[#allocation2 + $0x50] sm:$0xff] %v593
      %623 = vst [vmem:[#allocation2 + $0x58] sm:$0xff] %v595
      %624 = vst [vmem:[#allocation2 + $0x60] sm:$0x7] %v597
      %625 = vst [vmem:[#allocation2 + $0x68] sm:$0x7] %v599
      %626 = vst [vmem:[#allocation2 + $0x70] sm:$0x7] %v601
      %627 = vst [vmem:[#allocation2 + $0x78] sm:$0x7] %v603
      %v628 = vld [vmem:[#allocation2 + $0x20] sm:$0xff]
      %v629 = vld [vmem:[#allocation2 + $0x28] sm:$0xff]
      %v630 = vld [vmem:[#allocation2 + $0x30] sm:$0xff]
      %v631 = vld [vmem:[#allocation2 + $0x38] sm:$0xff]
      %v632 = vld [vmem:[#allocation2 + $0x40] sm:$0xff]
      %v633 = vld [vmem:[#allocation2 + $0x48] sm:$0xff]
      %v634 = vld [vmem:[#allocation2 + $0x50] sm:$0xff]
      %v635 = vld [vmem:[#allocation2 + $0x58] sm:$0xff]
      %v636 = vld [vmem:[#allocation2 + $0x60] sm:$0x3]
      %v637 = vld [vmem:[#allocation2 + $0x68] sm:$0x3]
      %v638 = vld [vmem:[#allocation2 + $0x70] sm:$0x3]
      %v639 = vld [vmem:[#allocation2 + $0x78] sm:$0x3]
      %s640 = scalar_lea.vmem %s1, 128
      %v641 = vld [vmem:[%s640] sm:$0xff]
      %v642 = vld [vmem:[%s640 + $0x8] sm:$0xff]
      %v643 = vld [vmem:[%s640 + $0x10] sm:$0xff]
      %v644 = vld [vmem:[%s640 + $0x18] sm:$0xff]
      %v645 = vld [vmem:[%s640 + $0x20] sm:$0xff]
      %v646 = vld [vmem:[%s640 + $0x28] sm:$0xff]
      %v647 = vld [vmem:[%s640 + $0x30] sm:$0xff]
      %v648 = vld [vmem:[%s640 + $0x38] sm:$0xff]
      %v649 = vld [vmem:[%s640 + $0x40] sm:$0xff]
      %v650 = vld [vmem:[%s640 + $0x48] sm:$0xff]
      %v651 = vld [vmem:[%s640 + $0x50] sm:$0xff]
      %v652 = vld [vmem:[%s640 + $0x58] sm:$0xff]
      %v653 = vld [vmem:[%s640 + $0x60] sm:$0xff]
      %v654 = vld [vmem:[%s640 + $0x68] sm:$0xff]
      %v655 = vld [vmem:[%s640 + $0x70] sm:$0xff]
      %v656 = vld [vmem:[%s640 + $0x78] sm:$0xff]
      %v673 = vunpack.c.l.b16 %v641
      %v674 = vunpack.c.h.b16 %v641
      %v675 = vunpack.c.l.b16 %v642
      %v676 = vunpack.c.h.b16 %v642
      %v677 = vunpack.c.l.b16 %v643
      %v678 = vunpack.c.h.b16 %v643
      %v679 = vunpack.c.l.b16 %v644
      %v680 = vunpack.c.h.b16 %v644
      %v681 = vunpack.c.l.b16 %v645
      %v682 = vunpack.c.h.b16 %v645
      %v683 = vunpack.c.l.b16 %v646
      %v684 = vunpack.c.h.b16 %v646
      %v685 = vunpack.c.l.b16 %v647
      %v686 = vunpack.c.h.b16 %v647
      %v687 = vunpack.c.l.b16 %v648
      %v688 = vunpack.c.h.b16 %v648
      %v689 = vunpack.c.l.b16 %v649
      %v690 = vunpack.c.h.b16 %v649
      %v691 = vunpack.c.l.b16 %v650
      %v692 = vunpack.c.h.b16 %v650
      %v693 = vunpack.c.l.b16 %v651
      %v694 = vunpack.c.h.b16 %v651
      %v695 = vunpack.c.l.b16 %v652
      %v696 = vunpack.c.h.b16 %v652
      %v697 = vunpack.c.l.b16 %v653
      %v698 = vunpack.c.h.b16 %v653
      %v699 = vunpack.c.l.b16 %v654
      %v700 = vunpack.c.h.b16 %v654
      %v701 = vunpack.c.l.b16 %v655
      %v702 = vunpack.c.h.b16 %v655
      %v703 = vunpack.c.l.b16 %v656
      %v704 = vunpack.c.h.b16 %v656
      %v705 = vpack.c.b16 %v677, %v673
      %v706 = vpack.c.b16 %v678, %v674
      %v707 = vpack.c.b16 %v679, %v675
      %v708 = vpack.c.b16 %v680, %v676
      %v709 = vpack.c.b16 %v685, %v681
      %v710 = vpack.c.b16 %v686, %v682
      %v711 = vpack.c.b16 %v687, %v683
      %v712 = vpack.c.b16 %v688, %v684
      %v713 = vpack.c.b16 %v693, %v689
      %v714 = vpack.c.b16 %v694, %v690
      %v715 = vpack.c.b16 %v695, %v691
      %v716 = vpack.c.b16 %v696, %v692
      %v717 = vpack.c.b16 %v701, %v697
      %v718 = vpack.c.b16 %v702, %v698
      %v719 = vpack.c.b16 %v703, %v699
      %v720 = vpack.c.b16 %v704, %v700
      %737 = vmatprep.subr.bf16.mxu0 %v706
      %738 = vmatpush1.bf16.msra.mxu0 %v705
      %739 = vmatprep.subr.bf16.mxu0 %v710
      %740 = vmatpush1.bf16.msra.mxu0 %v709
      %741 = vmatprep.subr.bf16.mxu0 %v714
      %742 = vmatpush1.bf16.msra.mxu0 %v713
      %743 = vmatprep.subr.bf16.mxu0 %v718
      %744 = vmatpush1.bf16.msra.mxu0 %v717
      %745 = vmatprep.subr.bf16.mxu0 0
      %746 = vmatpush1.bf16.msra.mxu0 0
      %747 = vmatprep.subr.bf16.mxu0 0
      %748 = vmatpush1.bf16.msra.mxu0 0
      %749 = vmatprep.subr.bf16.mxu0 0
      %750 = vmatpush1.bf16.msra.mxu0 0
      %751 = vmatprep.subr.bf16.mxu0 0
      %752 = vmatpush1.bf16.msra.mxu0 0
      %753 = vmatprep.subr.bf16.mxu0 0
      %754 = vmatpush1.bf16.msra.mxu0 0
      %755 = vmatprep.subr.bf16.mxu0 0
      %756 = vmatpush1.bf16.msra.mxu0 0
      %757 = vmatprep.subr.bf16.mxu0 0
      %758 = vmatpush1.bf16.msra.mxu0 0
      %759 = vmatprep.subr.bf16.mxu0 0
      %760 = vmatpush1.bf16.msra.mxu0 0
      %761 = vmatprep.subr.bf16.mxu0 0
      %762 = vmatpush1.bf16.msra.mxu0 0
      %763 = vmatprep.subr.bf16.mxu0 0
      %764 = vmatpush1.bf16.msra.mxu0 0
      %765 = vmatprep.subr.bf16.mxu0 0
      %766 = vmatpush1.bf16.msra.mxu0 0
      %767 = vmatprep.subr.bf16.mxu0 0
      %768 = vmatpush1.bf16.msra.mxu0 0
      %769 = vmatprep.mubr.bf16.mxu0 0
      %770 = vmatmul.mubr.bf16.gmra.mrb[0].mxu0 %v464
      %v771 = vpop.f32.mrb[0].mxu0
      %v772 = vadd.f32 0.0, %v771
      %v773 = vpop.f32.mrb[0].mxu0
      %v774 = vadd.f32 0.0, %v773
      %v775 = vpop.f32.mrb[0].mxu0
      %v776 = vadd.f32 0.0, %v775
      %v777 = vpop.f32.mrb[0].mxu0
      %v778 = vadd.f32 0.0, %v777
      %779 = vmatprep.mubr.bf16.mxu0 0
      %780 = vmatmul.mubr.bf16.gmra.mrb[0].mxu0 %v467
      %v781 = vpop.f32.mrb[0].mxu0
      %v782 = vadd.f32 0.0, %v781
      %v783 = vpop.f32.mrb[0].mxu0
      %v784 = vadd.f32 0.0, %v783
      %v785 = vpop.f32.mrb[0].mxu0
      %v786 = vpop.f32.mrb[0].mxu0
      %787 = vdwg.mxu0
      %788 = vmatprep.subr.bf16.mxu0 %v708
      %789 = vmatpush1.bf16.msra.mxu0 %v707
      %790 = vmatprep.subr.bf16.mxu0 %v712
      %791 = vmatpush1.bf16.msra.mxu0 %v711
      %792 = vmatprep.subr.bf16.mxu0 %v716
      %793 = vmatpush1.bf16.msra.mxu0 %v715
      %794 = vmatprep.subr.bf16.mxu0 %v720
      %795 = vmatpush1.bf16.msra.mxu0 %v719
      %796 = vmatprep.subr.bf16.mxu0 0
      %797 = vmatpush1.bf16.msra.mxu0 0
      %798 = vmatprep.subr.bf16.mxu0 0
      %799 = vmatpush1.bf16.msra.mxu0 0
      %800 = vmatprep.subr.bf16.mxu0 0
      %801 = vmatpush1.bf16.msra.mxu0 0
      %802 = vmatprep.subr.bf16.mxu0 0
      %803 = vmatpush1.bf16.msra.mxu0 0
      %804 = vmatprep.subr.bf16.mxu0 0
      %805 = vmatpush1.bf16.msra.mxu0 0
      %806 = vmatprep.subr.bf16.mxu0 0
      %807 = vmatpush1.bf16.msra.mxu0 0
      %808 = vmatprep.subr.bf16.mxu0 0
      %809 = vmatpush1.bf16.msra.mxu0 0
      %810 = vmatprep.subr.bf16.mxu0 0
      %811 = vmatpush1.bf16.msra.mxu0 0
      %812 = vmatprep.subr.bf16.mxu0 0
      %813 = vmatpush1.bf16.msra.mxu0 0
      %814 = vmatprep.subr.bf16.mxu0 0
      %815 = vmatpush1.bf16.msra.mxu0 0
      %816 = vmatprep.subr.bf16.mxu0 0
      %817 = vmatpush1.bf16.msra.mxu0 0
      %818 = vmatprep.subr.bf16.mxu0 0
      %819 = vmatpush1.bf16.msra.mxu0 0
      %820 = vmatprep.mubr.bf16.mxu0 0
      %821 = vmatmul.mubr.bf16.gmra.mrb[0].mxu0 %v464
      %v822 = vpop.f32.mrb[0].mxu0
      %v823 = vadd.f32 0.0, %v822
      %v824 = vpop.f32.mrb[0].mxu0
      %v825 = vadd.f32 0.0, %v824
      %v826 = vpop.f32.mrb[0].mxu0
      %v827 = vadd.f32 0.0, %v826
      %v828 = vpop.f32.mrb[0].mxu0
      %v829 = vadd.f32 0.0, %v828
      %830 = vmatprep.mubr.bf16.mxu0 0
      %831 = vmatmul.mubr.bf16.gmra.mrb[0].mxu0 %v467
      %v832 = vpop.f32.mrb[0].mxu0
      %v833 = vadd.f32 0.0, %v832
      %v834 = vpop.f32.mrb[0].mxu0
      %v835 = vadd.f32 0.0, %v834
      %v836 = vpop.f32.mrb[0].mxu0
      %v837 = vpop.f32.mrb[0].mxu0
      %838 = vdwg.mxu0
      %v839 = vadd.f32 %v628, %v772
      %v840 = vadd.f32 %v629, %v774
      %v841 = vadd.f32 %v630, %v823
      %v842 = vadd.f32 %v631, %v825
      %v843 = vadd.f32 %v632, %v776
      %v844 = vadd.f32 %v633, %v778
      %v845 = vadd.f32 %v634, %v827
      %v846 = vadd.f32 %v635, %v829
      %v847 = vadd.f32 %v636, %v782
      %v848 = vadd.f32 %v637, %v784
      %v849 = vadd.f32 %v638, %v833
      %v850 = vadd.f32 %v639, %v835
      %851 = vst [vmem:[#allocation2 + $0x20] sm:$0xff] %v839
      %852 = vst [vmem:[#allocation2 + $0x28] sm:$0xff] %v840
      %853 = vst [vmem:[#allocation2 + $0x30] sm:$0xff] %v841
      %854 = vst [vmem:[#allocation2 + $0x38] sm:$0xff] %v842
      %855 = vst [vmem:[#allocation2 + $0x40] sm:$0xff] %v843
      %856 = vst [vmem:[#allocation2 + $0x48] sm:$0xff] %v844
      %857 = vst [vmem:[#allocation2 + $0x50] sm:$0xff] %v845
      %858 = vst [vmem:[#allocation2 + $0x58] sm:$0xff] %v846
      %859 = vst [vmem:[#allocation2 + $0x60] sm:$0x3] %v847
      %860 = vst [vmem:[#allocation2 + $0x68] sm:$0x3] %v848
      %861 = vst [vmem:[#allocation2 + $0x70] sm:$0x3] %v849
      %862 = vst [vmem:[#allocation2 + $0x78] sm:$0x3] %v850
      %v863 = vld [vmem:[#allocation2] sm:$0x80]
      %v864 = vld [vmem:[#allocation2 + $0x8] sm:$0x80]
      %v865 = vld [vmem:[#allocation2 + $0x10] sm:$0x80]
      %v866 = vld [vmem:[#allocation2 + $0x18] sm:$0x80]
      %v867 = vld [vmem:[#allocation2 + $0x20] sm:$0xff]
      %v868 = vld [vmem:[#allocation2 + $0x28] sm:$0xff]
      %v869 = vld [vmem:[#allocation2 + $0x30] sm:$0xff]
      %v870 = vld [vmem:[#allocation2 + $0x38] sm:$0xff]
      %v871 = vld [vmem:[#allocation2 + $0x40] sm:$0xff]
      %v872 = vld [vmem:[#allocation2 + $0x48] sm:$0xff]
      %v873 = vld [vmem:[#allocation2 + $0x50] sm:$0xff]
      %v874 = vld [vmem:[#allocation2 + $0x58] sm:$0xff]
      %v875 = vld [vmem:[#allocation2 + $0x60] sm:$0x1]
      %v876 = vld [vmem:[#allocation2 + $0x68] sm:$0x1]
      %v877 = vld [vmem:[#allocation2 + $0x70] sm:$0x1]
      %v878 = vld [vmem:[#allocation2 + $0x78] sm:$0x1]
      %s879 = scalar_lea.vmem %s1, 256
      %v880 = vld [vmem:[%s879] sm:$0xff]
      %v881 = vld [vmem:[%s879 + $0x8] sm:$0xff]
      %v882 = vld [vmem:[%s879 + $0x10] sm:$0xff]
      %v883 = vld [vmem:[%s879 + $0x18] sm:$0xff]
      %v884 = vld [vmem:[%s879 + $0x20] sm:$0xff]
      %v885 = vld [vmem:[%s879 + $0x28] sm:$0xff]
      %v886 = vld [vmem:[%s879 + $0x30] sm:$0xff]
      %v887 = vld [vmem:[%s879 + $0x38] sm:$0xff]
      %v888 = vld [vmem:[%s879 + $0x40] sm:$0xff]
      %v889 = vld [vmem:[%s879 + $0x48] sm:$0xff]
      %v890 = vld [vmem:[%s879 + $0x50] sm:$0xff]
      %v891 = vld [vmem:[%s879 + $0x58] sm:$0xff]
      %v892 = vld [vmem:[%s879 + $0x60] sm:$0xff]
      %v893 = vld [vmem:[%s879 + $0x68] sm:$0xff]
      %v894 = vld [vmem:[%s879 + $0x70] sm:$0xff]
      %v895 = vld [vmem:[%s879 + $0x78] sm:$0xff]
      %v912 = vunpack.c.l.b16 %v880
      %v913 = vunpack.c.h.b16 %v880
      %v914 = vunpack.c.l.b16 %v881
      %v915 = vunpack.c.h.b16 %v881
      %v916 = vunpack.c.l.b16 %v882
      %v917 = vunpack.c.h.b16 %v882
      %v918 = vunpack.c.l.b16 %v883
      %v919 = vunpack.c.h.b16 %v883
      %v920 = vunpack.c.l.b16 %v884
      %v921 = vunpack.c.h.b16 %v884
      %v922 = vunpack.c.l.b16 %v885
      %v923 = vunpack.c.h.b16 %v885
      %v924 = vunpack.c.l.b16 %v886
      %v925 = vunpack.c.h.b16 %v886
      %v926 = vunpack.c.l.b16 %v887
      %v927 = vunpack.c.h.b16 %v887
      %v928 = vunpack.c.l.b16 %v888
      %v929 = vunpack.c.h.b16 %v888
      %v930 = vunpack.c.l.b16 %v889
      %v931 = vunpack.c.h.b16 %v889
      %v932 = vunpack.c.l.b16 %v890
      %v933 = vunpack.c.h.b16 %v890
      %v934 = vunpack.c.l.b16 %v891
      %v935 = vunpack.c.h.b16 %v891
      %v936 = vunpack.c.l.b16 %v892
      %v937 = vunpack.c.h.b16 %v892
      %v938 = vunpack.c.l.b16 %v893
      %v939 = vunpack.c.h.b16 %v893
      %v940 = vunpack.c.l.b16 %v894
      %v941 = vunpack.c.h.b16 %v894
      %v942 = vunpack.c.l.b16 %v895
      %v943 = vunpack.c.h.b16 %v895
      %v944 = vpack.c.b16 %v916, %v912
      %v945 = vpack.c.b16 %v917, %v913
      %v946 = vpack.c.b16 %v918, %v914
      %v947 = vpack.c.b16 %v919, %v915
      %v948 = vpack.c.b16 %v924, %v920
      %v949 = vpack.c.b16 %v925, %v921
      %v950 = vpack.c.b16 %v926, %v922
      %v951 = vpack.c.b16 %v927, %v923
      %v952 = vpack.c.b16 %v932, %v928
      %v953 = vpack.c.b16 %v933, %v929
      %v954 = vpack.c.b16 %v934, %v930
      %v955 = vpack.c.b16 %v935, %v931
      %v956 = vpack.c.b16 %v940, %v936
      %v957 = vpack.c.b16 %v941, %v937
      %v958 = vpack.c.b16 %v942, %v938
      %v959 = vpack.c.b16 %v943, %v939
      %976 = vmatprep.subr.bf16.mxu0 %v945
      %977 = vmatpush1.bf16.msra.mxu0 %v944
      %978 = vmatprep.subr.bf16.mxu0 %v949
      %979 = vmatpush1.bf16.msra.mxu0 %v948
      %980 = vmatprep.subr.bf16.mxu0 %v953
      %981 = vmatpush1.bf16.msra.mxu0 %v952
      %982 = vmatprep.subr.bf16.mxu0 %v957
      %983 = vmatpush1.bf16.msra.mxu0 %v956
      %984 = vmatprep.subr.bf16.mxu0 0
      %985 = vmatpush1.bf16.msra.mxu0 0
      %986 = vmatprep.subr.bf16.mxu0 0
      %987 = vmatpush1.bf16.msra.mxu0 0
      %988 = vmatprep.subr.bf16.mxu0 0
      %989 = vmatpush1.bf16.msra.mxu0 0
      %990 = vmatprep.subr.bf16.mxu0 0
      %991 = vmatpush1.bf16.msra.mxu0 0
      %992 = vmatprep.subr.bf16.mxu0 0
      %993 = vmatpush1.bf16.msra.mxu0 0
      %994 = vmatprep.subr.bf16.mxu0 0
      %995 = vmatpush1.bf16.msra.mxu0 0
      %996 = vmatprep.subr.bf16.mxu0 0
      %997 = vmatpush1.bf16.msra.mxu0 0
      %998 = vmatprep.subr.bf16.mxu0 0
      %999 = vmatpush1.bf16.msra.mxu0 0
      %1000 = vmatprep.subr.bf16.mxu0 0
      %1001 = vmatpush1.bf16.msra.mxu0 0
      %1002 = vmatprep.subr.bf16.mxu0 0
      %1003 = vmatpush1.bf16.msra.mxu0 0
      %1004 = vmatprep.subr.bf16.mxu0 0
      %1005 = vmatpush1.bf16.msra.mxu0 0
      %1006 = vmatprep.subr.bf16.mxu0 0
      %1007 = vmatpush1.bf16.msra.mxu0 0
      %1008 = vmatprep.mubr.bf16.mxu0 0
      %1009 = vmatmul.mubr.bf16.gmra.mrb[0].mxu0 %v464
      %v1010 = vpop.f32.mrb[0].mxu0
      %v1011 = vadd.f32 0.0, %v1010
      %v1012 = vpop.f32.mrb[0].mxu0
      %v1013 = vadd.f32 0.0, %v1012
      %v1014 = vpop.f32.mrb[0].mxu0
      %v1015 = vadd.f32 0.0, %v1014
      %v1016 = vpop.f32.mrb[0].mxu0
      %v1017 = vadd.f32 0.0, %v1016
      %1018 = vmatprep.mubr.bf16.mxu0 0
      %1019 = vmatmul.mubr.bf16.gmra.mrb[0].mxu0 %v467
      %v1020 = vpop.f32.mrb[0].mxu0
      %v1021 = vadd.f32 0.0, %v1020
      %v1022 = vpop.f32.mrb[0].mxu0
      %v1023 = vadd.f32 0.0, %v1022
      %v1024 = vpop.f32.mrb[0].mxu0
      %v1025 = vpop.f32.mrb[0].mxu0
      %1026 = vdwg.mxu0
      %1027 = vmatprep.subr.bf16.mxu0 %v947
      %1028 = vmatpush1.bf16.msra.mxu0 %v946
      %1029 = vmatprep.subr.bf16.mxu0 %v951
      %1030 = vmatpush1.bf16.msra.mxu0 %v950
      %1031 = vmatprep.subr.bf16.mxu0 %v955
      %1032 = vmatpush1.bf16.msra.mxu0 %v954
      %1033 = vmatprep.subr.bf16.mxu0 %v959
      %1034 = vmatpush1.bf16.msra.mxu0 %v958
      %1035 = vmatprep.subr.bf16.mxu0 0
      %1036 = vmatpush1.bf16.msra.mxu0 0
      %1037 = vmatprep.subr.bf16.mxu0 0
      %1038 = vmatpush1.bf16.msra.mxu0 0
      %1039 = vmatprep.subr.bf16.mxu0 0
      %1040 = vmatpush1.bf16.msra.mxu0 0
      %1041 = vmatprep.subr.bf16.mxu0 0
      %1042 = vmatpush1.bf16.msra.mxu0 0
      %1043 = vmatprep.subr.bf16.mxu0 0
      %1044 = vmatpush1.bf16.msra.mxu0 0
      %1045 = vmatprep.subr.bf16.mxu0 0
      %1046 = vmatpush1.bf16.msra.mxu0 0
      %1047 = vmatprep.subr.bf16.mxu0 0
      %1048 = vmatpush1.bf16.msra.mxu0 0
      %1049 = vmatprep.subr.bf16.mxu0 0
      %1050 = vmatpush1.bf16.msra.mxu0 0
      %1051 = vmatprep.subr.bf16.mxu0 0
      %1052 = vmatpush1.bf16.msra.mxu0 0
      %1053 = vmatprep.subr.bf16.mxu0 0
      %1054 = vmatpush1.bf16.msra.mxu0 0
      %1055 = vmatprep.subr.bf16.mxu0 0
      %1056 = vmatpush1.bf16.msra.mxu0 0
      %1057 = vmatprep.subr.bf16.mxu0 0
      %1058 = vmatpush1.bf16.msra.mxu0 0
      %1059 = vmatprep.mubr.bf16.mxu0 0
      %1060 = vmatmul.mubr.bf16.gmra.mrb[0].mxu0 %v464
      %v1061 = vpop.f32.mrb[0].mxu0
      %v1062 = vadd.f32 0.0, %v1061
      %v1063 = vpop.f32.mrb[0].mxu0
      %v1064 = vadd.f32 0.0, %v1063
      %v1065 = vpop.f32.mrb[0].mxu0
      %v1066 = vadd.f32 0.0, %v1065
      %v1067 = vpop.f32.mrb[0].mxu0
      %v1068 = vadd.f32 0.0, %v1067
      %1069 = vmatprep.mubr.bf16.mxu0 0
      %1070 = vmatmul.mubr.bf16.gmra.mrb[0].mxu0 %v467
      %v1071 = vpop.f32.mrb[0].mxu0
      %v1072 = vadd.f32 0.0, %v1071
      %v1073 = vpop.f32.mrb[0].mxu0
      %v1074 = vadd.f32 0.0, %v1073
      %v1075 = vpop.f32.mrb[0].mxu0
      %v1076 = vpop.f32.mrb[0].mxu0
      %1077 = vdwg.mxu0
      %vm1090 = vcmask 1046528
      %v1091 = vrot.slane %v1011, 1
      %v1092 = vrot.slane %v1013, 1
      %v1093 = vrot.slane %v1062, 1
      %v1094 = vrot.slane %v1064, 1
      %v1095 = vrot.slane %v1015, 1
      %v1096 = vsel %vm1090, %v1091, %v1095
      %v1097 = vrot.slane %v1017, 1
      %v1098 = vsel %vm1090, %v1092, %v1097
      %v1099 = vrot.slane %v1066, 1
      %v1100 = vsel %vm1090, %v1093, %v1099
      %v1101 = vrot.slane %v1068, 1
      %v1102 = vsel %vm1090, %v1094, %v1101
      %v1103 = vrot.slane %v1021, 1
      %v1104 = vsel %vm1090, %v1095, %v1103
      %v1105 = vrot.slane %v1023, 1
      %v1106 = vsel %vm1090, %v1097, %v1105
      %v1107 = vrot.slane %v1072, 1
      %v1108 = vsel %vm1090, %v1099, %v1107
      %v1109 = vrot.slane %v1074, 1
      %v1110 = vsel %vm1090, %v1101, %v1109
      %v1127 = vadd.f32 %v863, %v1091
      %v1128 = vadd.f32 %v864, %v1092
      %v1129 = vadd.f32 %v865, %v1093
      %v1130 = vadd.f32 %v866, %v1094
      %v1131 = vadd.f32 %v867, %v1096
      %v1132 = vadd.f32 %v868, %v1098
      %v1133 = vadd.f32 %v869, %v1100
      %v1134 = vadd.f32 %v870, %v1102
      %v1135 = vadd.f32 %v871, %v1104
      %v1136 = vadd.f32 %v872, %v1106
      %v1137 = vadd.f32 %v873, %v1108
      %v1138 = vadd.f32 %v874, %v1110
      %v1139 = vadd.f32 %v875, %v1103
      %v1140 = vadd.f32 %v876, %v1105
      %v1141 = vadd.f32 %v877, %v1107
      %v1142 = vadd.f32 %v878, %v1109
      %1143 = vst [vmem:[#allocation2] sm:$0x80] %v1127
      %1144 = vst [vmem:[#allocation2 + $0x8] sm:$0x80] %v1128
      %1145 = vst [vmem:[#allocation2 + $0x10] sm:$0x80] %v1129
      %1146 = vst [vmem:[#allocation2 + $0x18] sm:$0x80] %v1130
      %1147 = vst [vmem:[#allocation2 + $0x20] sm:$0xff] %v1131
      %1148 = vst [vmem:[#allocation2 + $0x28] sm:$0xff] %v1132
      %1149 = vst [vmem:[#allocation2 + $0x30] sm:$0xff] %v1133
      %1150 = vst [vmem:[#allocation2 + $0x38] sm:$0xff] %v1134
      %1151 = vst [vmem:[#allocation2 + $0x40] sm:$0xff] %v1135
      %1152 = vst [vmem:[#allocation2 + $0x48] sm:$0xff] %v1136
      %1153 = vst [vmem:[#allocation2 + $0x50] sm:$0xff] %v1137
      %1154 = vst [vmem:[#allocation2 + $0x58] sm:$0xff] %v1138
      %1155 = vst [vmem:[#allocation2 + $0x60] sm:$0x1] %v1139
      %1156 = vst [vmem:[#allocation2 + $0x68] sm:$0x1] %v1140
      %1157 = vst [vmem:[#allocation2 + $0x70] sm:$0x1] %v1141
      %1158 = vst [vmem:[#allocation2 + $0x78] sm:$0x1] %v1142
      %v1159 = vld [vmem:[#allocation2 + $0x20] sm:$0xff]
      %v1160 = vld [vmem:[#allocation2 + $0x28] sm:$0xff]
      %v1161 = vld [vmem:[#allocation2 + $0x30] sm:$0xff]
      %v1162 = vld [vmem:[#allocation2 + $0x38] sm:$0xff]
      %v1163 = vld [vmem:[#allocation2 + $0x40] sm:$0xff]
      %v1164 = vld [vmem:[#allocation2 + $0x48] sm:$0xff]
      %v1165 = vld [vmem:[#allocation2 + $0x50] sm:$0xff]
      %v1166 = vld [vmem:[#allocation2 + $0x58] sm:$0xff]
      %v1167 = vld [vmem:[#allocation2 + $0x60] sm:$0x3]
      %v1168 = vld [vmem:[#allocation2 + $0x68] sm:$0x3]
      %v1169 = vld [vmem:[#allocation2 + $0x70] sm:$0x3]
      %v1170 = vld [vmem:[#allocation2 + $0x78] sm:$0x3]
      %v1171 = vld [vmem:[%s3] sm:$0xf]
      %v1173 = vlaneseq
      %v1174 = vshrl.u32 %v1173, 7
      %v1175 = vsub.s32 0, %v1174
      %v1176 = vrot.slane %v1171, %v1175
      %v1177 = vlaneseq
      %v1178 = vshrl.u32 %v1177, 7
      %v1179 = vsub.s32 1, %v1178
      %v1180 = vrot.slane %v1171, %v1179
      %v1181 = vlaneseq
      %v1182 = vshrl.u32 %v1181, 7
      %v1183 = vsub.s32 2, %v1182
      %v1184 = vrot.slane %v1171, %v1183
      %v1185 = vlaneseq
      %v1186 = vshrl.u32 %v1185, 7
      %v1187 = vsub.s32 3, %v1186
      %v1188 = vrot.slane %v1171, %v1187
      %v1193 = vmul.f32 %v1159, %v1176
      %v1194 = vmul.f32 %v1160, %v1180
      %v1195 = vmul.f32 %v1161, %v1184
      %v1196 = vmul.f32 %v1162, %v1188
      %v1197 = vmul.f32 %v1163, %v1176
      %v1198 = vmul.f32 %v1164, %v1180
      %v1199 = vmul.f32 %v1165, %v1184
      %v1200 = vmul.f32 %v1166, %v1188
      %v1201 = vmul.f32 %v1167, %v1176
      %v1202 = vmul.f32 %v1168, %v1180
      %v1203 = vmul.f32 %v1169, %v1184
      %v1204 = vmul.f32 %v1170, %v1188
      %v1205 = vld [vmem:[%s4] sm:$0xf]
      %v1207 = vlaneseq
      %v1208 = vshrl.u32 %v1207, 7
      %v1209 = vsub.s32 0, %v1208
      %v1210 = vrot.slane %v1205, %v1209
      %v1211 = vlaneseq
      %v1212 = vshrl.u32 %v1211, 7
      %v1213 = vsub.s32 1, %v1212
      %v1214 = vrot.slane %v1205, %v1213
      %v1215 = vlaneseq
      %v1216 = vshrl.u32 %v1215, 7
      %v1217 = vsub.s32 2, %v1216
      %v1218 = vrot.slane %v1205, %v1217
      %v1219 = vlaneseq
      %v1220 = vshrl.u32 %v1219, 7
      %v1221 = vsub.s32 3, %v1220
      %v1222 = vrot.slane %v1205, %v1221
      %v1227 = vadd.f32 %v1193, %v1210
      %v1228 = vadd.f32 %v1194, %v1214
      %v1229 = vadd.f32 %v1195, %v1218
      %v1230 = vadd.f32 %v1196, %v1222
      %v1231 = vadd.f32 %v1197, %v1210
      %v1232 = vadd.f32 %v1198, %v1214
      %v1233 = vadd.f32 %v1199, %v1218
      %v1234 = vadd.f32 %v1200, %v1222
      %v1235 = vadd.f32 %v1201, %v1210
      %v1236 = vadd.f32 %v1202, %v1214
      %v1237 = vadd.f32 %v1203, %v1218
      %v1238 = vadd.f32 %v1204, %v1222
      %v1239 = vmax.f32 %v1227, 0.0
      %v1240 = vmax.f32 %v1228, 0.0
      %v1241 = vmax.f32 %v1229, 0.0
      %v1242 = vmax.f32 %v1230, 0.0
      %v1243 = vmax.f32 %v1231, 0.0
      %v1244 = vmax.f32 %v1232, 0.0
      %v1245 = vmax.f32 %v1233, 0.0
      %v1246 = vmax.f32 %v1234, 0.0
      %v1247 = vmax.f32 %v1235, 0.0
      %v1248 = vmax.f32 %v1236, 0.0
      %v1249 = vmax.f32 %v1237, 0.0
      %v1250 = vmax.f32 %v1238, 0.0
      %v1251 = vsel %vm352, 1, 0
      %v1252 = vsel %vm353, 1, 0
      %v1253 = vsel %vm354, 1, 0
      %vm1254 = vcmp.eq.s32.totalorder %v1251, 1
      %vm1255 = vcmp.eq.s32.totalorder %v1252, 1
      %vm1256 = vcmp.eq.s32.totalorder %v1253, 1
      %v1257 = vsel %vm1254, %v1239, 0.0
      %v1258 = vsel %vm1254, %v1240, 0.0
      %v1259 = vsel %vm1254, %v1241, 0.0
      %v1260 = vsel %vm1254, %v1242, 0.0
      %v1261 = vsel %vm1255, %v1243, 0.0
      %v1262 = vsel %vm1255, %v1244, 0.0
      %v1263 = vsel %vm1255, %v1245, 0.0
      %v1264 = vsel %vm1255, %v1246, 0.0
      %v1265 = vsel %vm1256, %v1247, 0.0
      %v1266 = vsel %vm1256, %v1248, 0.0
      %v1267 = vsel %vm1256, %v1249, 0.0
      %v1268 = vsel %vm1256, %v1250, 0.0
      %v1269 = vpack.c.bf16 %v1261, %v1257
      %v1270 = vpack.c.bf16 %v1262, %v1258
      %v1271 = vpack.c.bf16 %v1263, %v1259
      %v1272 = vpack.c.bf16 %v1264, %v1260
      %v1273 = vpack.c.bf16 %v1265, %v1265
      %v1274 = vpack.c.bf16 %v1266, %v1266
      %v1275 = vpack.c.bf16 %v1267, %v1267
      %v1276 = vpack.c.bf16 %v1268, %v1268
      %v1285 = vunpack.c.l.b16 %v1269
      %v1286 = vunpack.c.l.b16 %v1270
      %v1287 = vunpack.c.l.b16 %v1271
      %v1288 = vunpack.c.l.b16 %v1272
      %v1289 = vunpack.c.h.b16 %v1269
      %v1290 = vunpack.c.h.b16 %v1270
      %v1291 = vunpack.c.h.b16 %v1271
      %v1292 = vunpack.c.h.b16 %v1272
      %v1293 = vunpack.c.l.b16 %v1273
      %v1294 = vunpack.c.l.b16 %v1274
      %v1295 = vunpack.c.l.b16 %v1275
      %v1296 = vunpack.c.l.b16 %v1276
      %v1297 = vpack.c.b16 %v1286, %v1285
      %v1298 = vpack.c.b16 %v1288, %v1287
      %v1299 = vpack.c.b16 %v1290, %v1289
      %v1300 = vpack.c.b16 %v1292, %v1291
      %v1301 = vpack.c.b16 %v1294, %v1293
      %v1302 = vpack.c.b16 %v1296, %v1295
      %1309 = vst [vmem:[#allocation3] sm:$0xff] %v1297
      %1310 = vst [vmem:[#allocation3 + $0x8] sm:$0xff] %v1298
      %1311 = vst [vmem:[#allocation3 + $0x10] sm:$0xff] %v1299
      %1312 = vst [vmem:[#allocation3 + $0x18] sm:$0xff] %v1300
      %1313 = vst [vmem:[#allocation3 + $0x20] sm:$0x11] %v1301
      %1314 = vst [vmem:[#allocation3 + $0x28] sm:$0x11] %v1302
      %v1315 = vld [vmem:[#allocation3] sm:$0xff]
      %v1316 = vld [vmem:[#allocation3 + $0x8] sm:$0xff]
      %v1317 = vld [vmem:[#allocation3 + $0x10] sm:$0xff]
      %v1318 = vld [vmem:[#allocation3 + $0x18] sm:$0xff]
      %v1319 = vld [vmem:[#allocation3 + $0x20] sm:$0x11]
      %v1320 = vld [vmem:[#allocation3 + $0x28] sm:$0x11]
      %v1321 = vld [vmem:[%s2] sm:$0xff]
      %v1322 = vld [vmem:[%s2 + $0x8] sm:$0xff]
      %v1323 = vld [vmem:[%s2 + $0x10] sm:$0xff]
      %v1324 = vld [vmem:[%s2 + $0x18] sm:$0xff]
      %v1325 = vld [vmem:[%s2 + $0x20] sm:$0xff]
      %v1326 = vld [vmem:[%s2 + $0x28] sm:$0xff]
      %v1327 = vld [vmem:[%s2 + $0x30] sm:$0xff]
      %v1328 = vld [vmem:[%s2 + $0x38] sm:$0xff]
      %v1329 = vld [vmem:[%s2 + $0x40] sm:$0xff]
      %v1330 = vld [vmem:[%s2 + $0x48] sm:$0xff]
      %v1331 = vld [vmem:[%s2 + $0x50] sm:$0xff]
      %v1332 = vld [vmem:[%s2 + $0x58] sm:$0xff]
      %v1333 = vld [vmem:[%s2 + $0x60] sm:$0xff]
      %v1334 = vld [vmem:[%s2 + $0x68] sm:$0xff]
      %v1335 = vld [vmem:[%s2 + $0x70] sm:$0xff]
      %v1336 = vld [vmem:[%s2 + $0x78] sm:$0xff]
      %v1337 = vld [vmem:[%s2 + $0x80] sm:$0xff]
      %v1338 = vld [vmem:[%s2 + $0x88] sm:$0xff]
      %v1339 = vld [vmem:[%s2 + $0x90] sm:$0xff]
      %v1340 = vld [vmem:[%s2 + $0x98] sm:$0xff]
      %v1341 = vld [vmem:[%s2 + $0xa0] sm:$0xff]
      %v1342 = vld [vmem:[%s2 + $0xa8] sm:$0xff]
      %v1343 = vld [vmem:[%s2 + $0xb0] sm:$0xff]
      %v1344 = vld [vmem:[%s2 + $0xb8] sm:$0xff]
      %v1345 = vld [vmem:[%s2 + $0xc0] sm:$0xff]
      %v1346 = vld [vmem:[%s2 + $0xc8] sm:$0xff]
      %v1347 = vld [vmem:[%s2 + $0xd0] sm:$0xff]
      %v1348 = vld [vmem:[%s2 + $0xd8] sm:$0xff]
      %v1349 = vld [vmem:[%s2 + $0xe0] sm:$0xff]
      %v1350 = vld [vmem:[%s2 + $0xe8] sm:$0xff]
      %v1351 = vld [vmem:[%s2 + $0xf0] sm:$0xff]
      %v1352 = vld [vmem:[%s2 + $0xf8] sm:$0xff]
      %v1353 = vld [vmem:[%s2 + $0x100] sm:$0xff]
      %v1354 = vld [vmem:[%s2 + $0x108] sm:$0xff]
      %v1355 = vld [vmem:[%s2 + $0x110] sm:$0xff]
      %v1356 = vld [vmem:[%s2 + $0x118] sm:$0xff]
      %v1357 = vld [vmem:[%s2 + $0x120] sm:$0xff]
      %v1358 = vld [vmem:[%s2 + $0x128] sm:$0xff]
      %v1359 = vld [vmem:[%s2 + $0x130] sm:$0xff]
      %v1360 = vld [vmem:[%s2 + $0x138] sm:$0xff]
      %v1361 = vld [vmem:[%s2 + $0x140] sm:$0xff]
      %v1362 = vld [vmem:[%s2 + $0x148] sm:$0xff]
      %v1363 = vld [vmem:[%s2 + $0x150] sm:$0xff]
      %v1364 = vld [vmem:[%s2 + $0x158] sm:$0xff]
      %v1365 = vld [vmem:[%s2 + $0x160] sm:$0xff]
      %v1366 = vld [vmem:[%s2 + $0x168] sm:$0xff]
      %v1367 = vld [vmem:[%s2 + $0x170] sm:$0xff]
      %v1368 = vld [vmem:[%s2 + $0x178] sm:$0xff]
      %v1369 = vld [vmem:[%s2 + $0x180] sm:$0xff]
      %v1370 = vld [vmem:[%s2 + $0x188] sm:$0xff]
      %v1371 = vld [vmem:[%s2 + $0x190] sm:$0xff]
      %v1372 = vld [vmem:[%s2 + $0x198] sm:$0xff]
      %v1373 = vld [vmem:[%s2 + $0x1a0] sm:$0xff]
      %v1374 = vld [vmem:[%s2 + $0x1a8] sm:$0xff]
      %v1375 = vld [vmem:[%s2 + $0x1b0] sm:$0xff]
      %v1376 = vld [vmem:[%s2 + $0x1b8] sm:$0xff]
      %v1377 = vld [vmem:[%s2 + $0x1c0] sm:$0xff]
      %v1378 = vld [vmem:[%s2 + $0x1c8] sm:$0xff]
      %v1379 = vld [vmem:[%s2 + $0x1d0] sm:$0xff]
      %v1380 = vld [vmem:[%s2 + $0x1d8] sm:$0xff]
      %v1381 = vld [vmem:[%s2 + $0x1e0] sm:$0xff]
      %v1382 = vld [vmem:[%s2 + $0x1e8] sm:$0xff]
      %v1383 = vld [vmem:[%s2 + $0x1f0] sm:$0xff]
      %v1384 = vld [vmem:[%s2 + $0x1f8] sm:$0xff]
      %v1385 = vld [vmem:[%s2 + $0x200] sm:$0xff]
      %v1386 = vld [vmem:[%s2 + $0x208] sm:$0xff]
      %v1387 = vld [vmem:[%s2 + $0x210] sm:$0xff]
      %v1388 = vld [vmem:[%s2 + $0x218] sm:$0xff]
      %v1389 = vld [vmem:[%s2 + $0x220] sm:$0xff]
      %v1390 = vld [vmem:[%s2 + $0x228] sm:$0xff]
      %v1391 = vld [vmem:[%s2 + $0x230] sm:$0xff]
      %v1392 = vld [vmem:[%s2 + $0x238] sm:$0xff]
      %v1393 = vld [vmem:[%s2 + $0x240] sm:$0xff]
      %v1394 = vld [vmem:[%s2 + $0x248] sm:$0xff]
      %v1395 = vld [vmem:[%s2 + $0x250] sm:$0xff]
      %v1396 = vld [vmem:[%s2 + $0x258] sm:$0xff]
      %v1397 = vld [vmem:[%s2 + $0x260] sm:$0xff]
      %v1398 = vld [vmem:[%s2 + $0x268] sm:$0xff]
      %v1399 = vld [vmem:[%s2 + $0x270] sm:$0xff]
      %v1400 = vld [vmem:[%s2 + $0x278] sm:$0xff]
      %v1401 = vld [vmem:[%s2 + $0x280] sm:$0xff]
      %v1402 = vld [vmem:[%s2 + $0x288] sm:$0xff]
      %v1403 = vld [vmem:[%s2 + $0x290] sm:$0xff]
      %v1404 = vld [vmem:[%s2 + $0x298] sm:$0xff]
      %v1405 = vld [vmem:[%s2 + $0x2a0] sm:$0xff]
      %v1406 = vld [vmem:[%s2 + $0x2a8] sm:$0xff]
      %v1407 = vld [vmem:[%s2 + $0x2b0] sm:$0xff]
      %v1408 = vld [vmem:[%s2 + $0x2b8] sm:$0xff]
      %v1409 = vld [vmem:[%s2 + $0x2c0] sm:$0xff]
      %v1410 = vld [vmem:[%s2 + $0x2c8] sm:$0xff]
      %v1411 = vld [vmem:[%s2 + $0x2d0] sm:$0xff]
      %v1412 = vld [vmem:[%s2 + $0x2d8] sm:$0xff]
      %v1413 = vld [vmem:[%s2 + $0x2e0] sm:$0xff]
      %v1414 = vld [vmem:[%s2 + $0x2e8] sm:$0xff]
      %v1415 = vld [vmem:[%s2 + $0x2f0] sm:$0xff]
      %v1416 = vld [vmem:[%s2 + $0x2f8] sm:$0xff]
      %v1417 = vld [vmem:[%s2 + $0x300] sm:$0xff]
      %v1418 = vld [vmem:[%s2 + $0x308] sm:$0xff]
      %v1419 = vld [vmem:[%s2 + $0x310] sm:$0xff]
      %v1420 = vld [vmem:[%s2 + $0x318] sm:$0xff]
      %v1421 = vld [vmem:[%s2 + $0x320] sm:$0xff]
      %v1422 = vld [vmem:[%s2 + $0x328] sm:$0xff]
      %v1423 = vld [vmem:[%s2 + $0x330] sm:$0xff]
      %v1424 = vld [vmem:[%s2 + $0x338] sm:$0xff]
      %v1425 = vld [vmem:[%s2 + $0x340] sm:$0xff]
      %v1426 = vld [vmem:[%s2 + $0x348] sm:$0xff]
      %v1427 = vld [vmem:[%s2 + $0x350] sm:$0xff]
      %v1428 = vld [vmem:[%s2 + $0x358] sm:$0xff]
      %v1429 = vld [vmem:[%s2 + $0x360] sm:$0xff]
      %v1430 = vld [vmem:[%s2 + $0x368] sm:$0xff]
      %v1431 = vld [vmem:[%s2 + $0x370] sm:$0xff]
      %v1432 = vld [vmem:[%s2 + $0x378] sm:$0xff]
      %v1433 = vld [vmem:[%s2 + $0x380] sm:$0xff]
      %v1434 = vld [vmem:[%s2 + $0x388] sm:$0xff]
      %v1435 = vld [vmem:[%s2 + $0x390] sm:$0xff]
      %v1436 = vld [vmem:[%s2 + $0x398] sm:$0xff]
      %v1437 = vld [vmem:[%s2 + $0x3a0] sm:$0xff]
      %v1438 = vld [vmem:[%s2 + $0x3a8] sm:$0xff]
      %v1439 = vld [vmem:[%s2 + $0x3b0] sm:$0xff]
      %v1440 = vld [vmem:[%s2 + $0x3b8] sm:$0xff]
      %v1441 = vld [vmem:[%s2 + $0x3c0] sm:$0xff]
      %v1442 = vld [vmem:[%s2 + $0x3c8] sm:$0xff]
      %v1443 = vld [vmem:[%s2 + $0x3d0] sm:$0xff]
      %v1444 = vld [vmem:[%s2 + $0x3d8] sm:$0xff]
      %v1445 = vld [vmem:[%s2 + $0x3e0] sm:$0xff]
      %v1446 = vld [vmem:[%s2 + $0x3e8] sm:$0xff]
      %v1447 = vld [vmem:[%s2 + $0x3f0] sm:$0xff]
      %v1448 = vld [vmem:[%s2 + $0x3f8] sm:$0xff]
      %v1455 = vunpack.c.l.b16 %v1315
      %v1456 = vunpack.c.h.b16 %v1315
      %v1457 = vunpack.c.l.b16 %v1316
      %v1458 = vunpack.c.h.b16 %v1316
      %v1459 = vunpack.c.l.b16 %v1317
      %v1460 = vunpack.c.h.b16 %v1317
      %v1461 = vunpack.c.l.b16 %v1318
      %v1462 = vunpack.c.h.b16 %v1318
      %v1463 = vunpack.c.l.b16 %v1319
      %v1464 = vunpack.c.h.b16 %v1319
      %v1465 = vunpack.c.l.b16 %v1320
      %v1466 = vunpack.c.h.b16 %v1320
      %v1467 = vpack.c.b16 %v1459, %v1455
      %v1468 = vpack.c.b16 %v1460, %v1456
      %v1469 = vpack.c.b16 %v1461, %v1457
      %v1470 = vpack.c.b16 %v1462, %v1458
      %v1471 = vpack.c.b16 %v1463, %v1463
      %v1472 = vpack.c.b16 %v1464, %v1464
      %v1473 = vpack.c.b16 %v1465, %v1465
      %v1474 = vpack.c.b16 %v1466, %v1466
      %v1611 = vunpack.c.l.b16 %v1321
      %v1612 = vunpack.c.h.b16 %v1321
      %v1613 = vunpack.c.l.b16 %v1322
      %v1614 = vunpack.c.h.b16 %v1322
      %v1615 = vunpack.c.l.b16 %v1323
      %v1616 = vunpack.c.h.b16 %v1323
      %v1617 = vunpack.c.l.b16 %v1324
      %v1618 = vunpack.c.h.b16 %v1324
      %v1619 = vunpack.c.l.b16 %v1325
      %v1620 = vunpack.c.h.b16 %v1325
      %v1621 = vunpack.c.l.b16 %v1326
      %v1622 = vunpack.c.h.b16 %v1326
      %v1623 = vunpack.c.l.b16 %v1327
      %v1624 = vunpack.c.h.b16 %v1327
      %v1625 = vunpack.c.l.b16 %v1328
      %v1626 = vunpack.c.h.b16 %v1328
      %v1627 = vunpack.c.l.b16 %v1329
      %v1628 = vunpack.c.h.b16 %v1329
      %v1629 = vunpack.c.l.b16 %v1330
      %v1630 = vunpack.c.h.b16 %v1330
      %v1631 = vunpack.c.l.b16 %v1331
      %v1632 = vunpack.c.h.b16 %v1331
      %v1633 = vunpack.c.l.b16 %v1332
      %v1634 = vunpack.c.h.b16 %v1332
      %v1635 = vunpack.c.l.b16 %v1333
      %v1636 = vunpack.c.h.b16 %v1333
      %v1637 = vunpack.c.l.b16 %v1334
      %v1638 = vunpack.c.h.b16 %v1334
      %v1639 = vunpack.c.l.b16 %v1335
      %v1640 = vunpack.c.h.b16 %v1335
      %v1641 = vunpack.c.l.b16 %v1336
      %v1642 = vunpack.c.h.b16 %v1336
      %v1643 = vunpack.c.l.b16 %v1337
      %v1644 = vunpack.c.h.b16 %v1337
      %v1645 = vunpack.c.l.b16 %v1338
      %v1646 = vunpack.c.h.b16 %v1338
      %v1647 = vunpack.c.l.b16 %v1339
      %v1648 = vunpack.c.h.b16 %v1339
      %v1649 = vunpack.c.l.b16 %v1340
      %v1650 = vunpack.c.h.b16 %v1340
      %v1651 = vunpack.c.l.b16 %v1341
      %v1652 = vunpack.c.h.b16 %v1341
      %v1653 = vunpack.c.l.b16 %v1342
      %v1654 = vunpack.c.h.b16 %v1342
      %v1655 = vunpack.c.l.b16 %v1343
      %v1656 = vunpack.c.h.b16 %v1343
      %v1657 = vunpack.c.l.b16 %v1344
      %v1658 = vunpack.c.h.b16 %v1344
      %v1659 = vunpack.c.l.b16 %v1345
      %v1660 = vunpack.c.h.b16 %v1345
      %v1661 = vunpack.c.l.b16 %v1346
      %v1662 = vunpack.c.h.b16 %v1346
      %v1663 = vunpack.c.l.b16 %v1347
      %v1664 = vunpack.c.h.b16 %v1347
      %v1665 = vunpack.c.l.b16 %v1348
      %v1666 = vunpack.c.h.b16 %v1348
      %v1667 = vunpack.c.l.b16 %v1349
      %v1668 = vunpack.c.h.b16 %v1349
      %v1669 = vunpack.c.l.b16 %v1350
      %v1670 = vunpack.c.h.b16 %v1350
      %v1671 = vunpack.c.l.b16 %v1351
      %v1672 = vunpack.c.h.b16 %v1351
      %v1673 = vunpack.c.l.b16 %v1352
      %v1674 = vunpack.c.h.b16 %v1352
      %v1675 = vunpack.c.l.b16 %v1353
      %v1676 = vunpack.c.h.b16 %v1353
      %v1677 = vunpack.c.l.b16 %v1354
      %v1678 = vunpack.c.h.b16 %v1354
      %v1679 = vunpack.c.l.b16 %v1355
      %v1680 = vunpack.c.h.b16 %v1355
      %v1681 = vunpack.c.l.b16 %v1356
      %v1682 = vunpack.c.h.b16 %v1356
      %v1683 = vunpack.c.l.b16 %v1357
      %v1684 = vunpack.c.h.b16 %v1357
      %v1685 = vunpack.c.l.b16 %v1358
      %v1686 = vunpack.c.h.b16 %v1358
      %v1687 = vunpack.c.l.b16 %v1359
      %v1688 = vunpack.c.h.b16 %v1359
      %v1689 = vunpack.c.l.b16 %v1360
      %v1690 = vunpack.c.h.b16 %v1360
      %v1691 = vunpack.c.l.b16 %v1361
      %v1692 = vunpack.c.h.b16 %v1361
      %v1693 = vunpack.c.l.b16 %v1362
      %v1694 = vunpack.c.h.b16 %v1362
      %v1695 = vunpack.c.l.b16 %v1363
      %v1696 = vunpack.c.h.b16 %v1363
      %v1697 = vunpack.c.l.b16 %v1364
      %v1698 = vunpack.c.h.b16 %v1364
      %v1699 = vunpack.c.l.b16 %v1365
      %v1700 = vunpack.c.h.b16 %v1365
      %v1701 = vunpack.c.l.b16 %v1366
      %v1702 = vunpack.c.h.b16 %v1366
      %v1703 = vunpack.c.l.b16 %v1367
      %v1704 = vunpack.c.h.b16 %v1367
      %v1705 = vunpack.c.l.b16 %v1368
      %v1706 = vunpack.c.h.b16 %v1368
      %v1707 = vunpack.c.l.b16 %v1369
      %v1708 = vunpack.c.h.b16 %v1369
      %v1709 = vunpack.c.l.b16 %v1370
      %v1710 = vunpack.c.h.b16 %v1370
      %v1711 = vunpack.c.l.b16 %v1371
      %v1712 = vunpack.c.h.b16 %v1371
      %v1713 = vunpack.c.l.b16 %v1372
      %v1714 = vunpack.c.h.b16 %v1372
      %v1715 = vunpack.c.l.b16 %v1373
      %v1716 = vunpack.c.h.b16 %v1373
      %v1717 = vunpack.c.l.b16 %v1374
      %v1718 = vunpack.c.h.b16 %v1374
      %v1719 = vunpack.c.l.b16 %v1375
      %v1720 = vunpack.c.h.b16 %v1375
      %v1721 = vunpack.c.l.b16 %v1376
      %v1722 = vunpack.c.h.b16 %v1376
      %v1723 = vunpack.c.l.b16 %v1377
      %v1724 = vunpack.c.h.b16 %v1377
      %v1725 = vunpack.c.l.b16 %v1378
      %v1726 = vunpack.c.h.b16 %v1378
      %v1727 = vunpack.c.l.b16 %v1379
      %v1728 = vunpack.c.h.b16 %v1379
      %v1729 = vunpack.c.l.b16 %v1380
      %v1730 = vunpack.c.h.b16 %v1380
      %v1731 = vunpack.c.l.b16 %v1381
      %v1732 = vunpack.c.h.b16 %v1381
      %v1733 = vunpack.c.l.b16 %v1382
      %v1734 = vunpack.c.h.b16 %v1382
      %v1735 = vunpack.c.l.b16 %v1383
      %v1736 = vunpack.c.h.b16 %v1383
      %v1737 = vunpack.c.l.b16 %v1384
      %v1738 = vunpack.c.h.b16 %v1384
      %v1739 = vunpack.c.l.b16 %v1385
      %v1740 = vunpack.c.h.b16 %v1385
      %v1741 = vunpack.c.l.b16 %v1386
      %v1742 = vunpack.c.h.b16 %v1386
      %v1743 = vunpack.c.l.b16 %v1387
      %v1744 = vunpack.c.h.b16 %v1387
      %v1745 = vunpack.c.l.b16 %v1388
      %v1746 = vunpack.c.h.b16 %v1388
      %v1747 = vunpack.c.l.b16 %v1389
      %v1748 = vunpack.c.h.b16 %v1389
      %v1749 = vunpack.c.l.b16 %v1390
      %v1750 = vunpack.c.h.b16 %v1390
      %v1751 = vunpack.c.l.b16 %v1391
      %v1752 = vunpack.c.h.b16 %v1391
      %v1753 = vunpack.c.l.b16 %v1392
      %v1754 = vunpack.c.h.b16 %v1392
      %v1755 = vunpack.c.l.b16 %v1393
      %v1756 = vunpack.c.h.b16 %v1393
      %v1757 = vunpack.c.l.b16 %v1394
      %v1758 = vunpack.c.h.b16 %v1394
      %v1759 = vunpack.c.l.b16 %v1395
      %v1760 = vunpack.c.h.b16 %v1395
      %v1761 = vunpack.c.l.b16 %v1396
      %v1762 = vunpack.c.h.b16 %v1396
      %v1763 = vunpack.c.l.b16 %v1397
      %v1764 = vunpack.c.h.b16 %v1397
      %v1765 = vunpack.c.l.b16 %v1398
      %v1766 = vunpack.c.h.b16 %v1398
      %v1767 = vunpack.c.l.b16 %v1399
      %v1768 = vunpack.c.h.b16 %v1399
      %v1769 = vunpack.c.l.b16 %v1400
      %v1770 = vunpack.c.h.b16 %v1400
      %v1771 = vunpack.c.l.b16 %v1401
      %v1772 = vunpack.c.h.b16 %v1401
      %v1773 = vunpack.c.l.b16 %v1402
      %v1774 = vunpack.c.h.b16 %v1402
      %v1775 = vunpack.c.l.b16 %v1403
      %v1776 = vunpack.c.h.b16 %v1403
      %v1777 = vunpack.c.l.b16 %v1404
      %v1778 = vunpack.c.h.b16 %v1404
      %v1779 = vunpack.c.l.b16 %v1405
      %v1780 = vunpack.c.h.b16 %v1405
      %v1781 = vunpack.c.l.b16 %v1406
      %v1782 = vunpack.c.h.b16 %v1406
      %v1783 = vunpack.c.l.b16 %v1407
      %v1784 = vunpack.c.h.b16 %v1407
      %v1785 = vunpack.c.l.b16 %v1408
      %v1786 = vunpack.c.h.b16 %v1408
      %v1787 = vunpack.c.l.b16 %v1409
      %v1788 = vunpack.c.h.b16 %v1409
      %v1789 = vunpack.c.l.b16 %v1410
      %v1790 = vunpack.c.h.b16 %v1410
      %v1791 = vunpack.c.l.b16 %v1411
      %v1792 = vunpack.c.h.b16 %v1411
      %v1793 = vunpack.c.l.b16 %v1412
      %v1794 = vunpack.c.h.b16 %v1412
      %v1795 = vunpack.c.l.b16 %v1413
      %v1796 = vunpack.c.h.b16 %v1413
      %v1797 = vunpack.c.l.b16 %v1414
      %v1798 = vunpack.c.h.b16 %v1414
      %v1799 = vunpack.c.l.b16 %v1415
      %v1800 = vunpack.c.h.b16 %v1415
      %v1801 = vunpack.c.l.b16 %v1416
      %v1802 = vunpack.c.h.b16 %v1416
      %v1803 = vunpack.c.l.b16 %v1417
      %v1804 = vunpack.c.h.b16 %v1417
      %v1805 = vunpack.c.l.b16 %v1418
      %v1806 = vunpack.c.h.b16 %v1418
      %v1807 = vunpack.c.l.b16 %v1419
      %v1808 = vunpack.c.h.b16 %v1419
      %v1809 = vunpack.c.l.b16 %v1420
      %v1810 = vunpack.c.h.b16 %v1420
      %v1811 = vunpack.c.l.b16 %v1421
      %v1812 = vunpack.c.h.b16 %v1421
      %v1813 = vunpack.c.l.b16 %v1422
      %v1814 = vunpack.c.h.b16 %v1422
      %v1815 = vunpack.c.l.b16 %v1423
      %v1816 = vunpack.c.h.b16 %v1423
      %v1817 = vunpack.c.l.b16 %v1424
      %v1818 = vunpack.c.h.b16 %v1424
      %v1819 = vunpack.c.l.b16 %v1425
      %v1820 = vunpack.c.h.b16 %v1425
      %v1821 = vunpack.c.l.b16 %v1426
      %v1822 = vunpack.c.h.b16 %v1426
      %v1823 = vunpack.c.l.b16 %v1427
      %v1824 = vunpack.c.h.b16 %v1427
      %v1825 = vunpack.c.l.b16 %v1428
      %v1826 = vunpack.c.h.b16 %v1428
      %v1827 = vunpack.c.l.b16 %v1429
      %v1828 = vunpack.c.h.b16 %v1429
      %v1829 = vunpack.c.l.b16 %v1430
      %v1830 = vunpack.c.h.b16 %v1430
      %v1831 = vunpack.c.l.b16 %v1431
      %v1832 = vunpack.c.h.b16 %v1431
      %v1833 = vunpack.c.l.b16 %v1432
      %v1834 = vunpack.c.h.b16 %v1432
      %v1835 = vunpack.c.l.b16 %v1433
      %v1836 = vunpack.c.h.b16 %v1433
      %v1837 = vunpack.c.l.b16 %v1434
      %v1838 = vunpack.c.h.b16 %v1434
      %v1839 = vunpack.c.l.b16 %v1435
      %v1840 = vunpack.c.h.b16 %v1435
      %v1841 = vunpack.c.l.b16 %v1436
      %v1842 = vunpack.c.h.b16 %v1436
      %v1843 = vunpack.c.l.b16 %v1437
      %v1844 = vunpack.c.h.b16 %v1437
      %v1845 = vunpack.c.l.b16 %v1438
      %v1846 = vunpack.c.h.b16 %v1438
      %v1847 = vunpack.c.l.b16 %v1439
      %v1848 = vunpack.c.h.b16 %v1439
      %v1849 = vunpack.c.l.b16 %v1440
      %v1850 = vunpack.c.h.b16 %v1440
      %v1851 = vunpack.c.l.b16 %v1441
      %v1852 = vunpack.c.h.b16 %v1441
      %v1853 = vunpack.c.l.b16 %v1442
      %v1854 = vunpack.c.h.b16 %v1442
      %v1855 = vunpack.c.l.b16 %v1443
      %v1856 = vunpack.c.h.b16 %v1443
      %v1857 = vunpack.c.l.b16 %v1444
      %v1858 = vunpack.c.h.b16 %v1444
      %v1859 = vunpack.c.l.b16 %v1445
      %v1860 = vunpack.c.h.b16 %v1445
      %v1861 = vunpack.c.l.b16 %v1446
      %v1862 = vunpack.c.h.b16 %v1446
      %v1863 = vunpack.c.l.b16 %v1447
      %v1864 = vunpack.c.h.b16 %v1447
      %v1865 = vunpack.c.l.b16 %v1448
      %v1866 = vunpack.c.h.b16 %v1448
      %v1867 = vpack.c.b16 %v1615, %v1611
      %v1868 = vpack.c.b16 %v1616, %v1612
      %v1869 = vpack.c.b16 %v1617, %v1613
      %v1870 = vpack.c.b16 %v1618, %v1614
      %v1871 = vpack.c.b16 %v1623, %v1619
      %v1872 = vpack.c.b16 %v1624, %v1620
      %v1873 = vpack.c.b16 %v1625, %v1621
      %v1874 = vpack.c.b16 %v1626, %v1622
      %v1875 = vpack.c.b16 %v1631, %v1627
      %v1876 = vpack.c.b16 %v1632, %v1628
      %v1877 = vpack.c.b16 %v1633, %v1629
      %v1878 = vpack.c.b16 %v1634, %v1630
      %v1879 = vpack.c.b16 %v1639, %v1635
      %v1880 = vpack.c.b16 %v1640, %v1636
      %v1881 = vpack.c.b16 %v1641, %v1637
      %v1882 = vpack.c.b16 %v1642, %v1638
      %v1883 = vpack.c.b16 %v1647, %v1643
      %v1884 = vpack.c.b16 %v1648, %v1644
      %v1885 = vpack.c.b16 %v1649, %v1645
      %v1886 = vpack.c.b16 %v1650, %v1646
      %v1887 = vpack.c.b16 %v1655, %v1651
      %v1888 = vpack.c.b16 %v1656, %v1652
      %v1889 = vpack.c.b16 %v1657, %v1653
      %v1890 = vpack.c.b16 %v1658, %v1654
      %v1891 = vpack.c.b16 %v1663, %v1659
      %v1892 = vpack.c.b16 %v1664, %v1660
      %v1893 = vpack.c.b16 %v1665, %v1661
      %v1894 = vpack.c.b16 %v1666, %v1662
      %v1895 = vpack.c.b16 %v1671, %v1667
      %v1896 = vpack.c.b16 %v1672, %v1668
      %v1897 = vpack.c.b16 %v1673, %v1669
      %v1898 = vpack.c.b16 %v1674, %v1670
      %v1899 = vpack.c.b16 %v1679, %v1675
      %v1900 = vpack.c.b16 %v1680, %v1676
      %v1901 = vpack.c.b16 %v1681, %v1677
      %v1902 = vpack.c.b16 %v1682, %v1678
      %v1903 = vpack.c.b16 %v1687, %v1683
      %v1904 = vpack.c.b16 %v1688, %v1684
      %v1905 = vpack.c.b16 %v1689, %v1685
      %v1906 = vpack.c.b16 %v1690, %v1686
      %v1907 = vpack.c.b16 %v1695, %v1691
      %v1908 = vpack.c.b16 %v1696, %v1692
      %v1909 = vpack.c.b16 %v1697, %v1693
      %v1910 = vpack.c.b16 %v1698, %v1694
      %v1911 = vpack.c.b16 %v1703, %v1699
      %v1912 = vpack.c.b16 %v1704, %v1700
      %v1913 = vpack.c.b16 %v1705, %v1701
      %v1914 = vpack.c.b16 %v1706, %v1702
      %v1915 = vpack.c.b16 %v1711, %v1707
      %v1916 = vpack.c.b16 %v1712, %v1708
      %v1917 = vpack.c.b16 %v1713, %v1709
      %v1918 = vpack.c.b16 %v1714, %v1710
      %v1919 = vpack.c.b16 %v1719, %v1715
      %v1920 = vpack.c.b16 %v1720, %v1716
      %v1921 = vpack.c.b16 %v1721, %v1717
      %v1922 = vpack.c.b16 %v1722, %v1718
      %v1923 = vpack.c.b16 %v1727, %v1723
      %v1924 = vpack.c.b16 %v1728, %v1724
      %v1925 = vpack.c.b16 %v1729, %v1725
      %v1926 = vpack.c.b16 %v1730, %v1726
      %v1927 = vpack.c.b16 %v1735, %v1731
      %v1928 = vpack.c.b16 %v1736, %v1732
      %v1929 = vpack.c.b16 %v1737, %v1733
      %v1930 = vpack.c.b16 %v1738, %v1734
      %v1931 = vpack.c.b16 %v1743, %v1739
      %v1932 = vpack.c.b16 %v1744, %v1740
      %v1933 = vpack.c.b16 %v1745, %v1741
      %v1934 = vpack.c.b16 %v1746, %v1742
      %v1935 = vpack.c.b16 %v1751, %v1747
      %v1936 = vpack.c.b16 %v1752, %v1748
      %v1937 = vpack.c.b16 %v1753, %v1749
      %v1938 = vpack.c.b16 %v1754, %v1750
      %v1939 = vpack.c.b16 %v1759, %v1755
      %v1940 = vpack.c.b16 %v1760, %v1756
      %v1941 = vpack.c.b16 %v1761, %v1757
      %v1942 = vpack.c.b16 %v1762, %v1758
      %v1943 = vpack.c.b16 %v1767, %v1763
      %v1944 = vpack.c.b16 %v1768, %v1764
      %v1945 = vpack.c.b16 %v1769, %v1765
      %v1946 = vpack.c.b16 %v1770, %v1766
      %v1947 = vpack.c.b16 %v1775, %v1771
      %v1948 = vpack.c.b16 %v1776, %v1772
      %v1949 = vpack.c.b16 %v1777, %v1773
      %v1950 = vpack.c.b16 %v1778, %v1774
      %v1951 = vpack.c.b16 %v1783, %v1779
      %v1952 = vpack.c.b16 %v1784, %v1780
      %v1953 = vpack.c.b16 %v1785, %v1781
      %v1954 = vpack.c.b16 %v1786, %v1782
      %v1955 = vpack.c.b16 %v1791, %v1787
      %v1956 = vpack.c.b16 %v1792, %v1788
      %v1957 = vpack.c.b16 %v1793, %v1789
      %v1958 = vpack.c.b16 %v1794, %v1790
      %v1959 = vpack.c.b16 %v1799, %v1795
      %v1960 = vpack.c.b16 %v1800, %v1796
      %v1961 = vpack.c.b16 %v1801, %v1797
      %v1962 = vpack.c.b16 %v1802, %v1798
      %v1963 = vpack.c.b16 %v1807, %v1803
      %v1964 = vpack.c.b16 %v1808, %v1804
      %v1965 = vpack.c.b16 %v1809, %v1805
      %v1966 = vpack.c.b16 %v1810, %v1806
      %v1967 = vpack.c.b16 %v1815, %v1811
      %v1968 = vpack.c.b16 %v1816, %v1812
      %v1969 = vpack.c.b16 %v1817, %v1813
      %v1970 = vpack.c.b16 %v1818, %v1814
      %v1971 = vpack.c.b16 %v1823, %v1819
      %v1972 = vpack.c.b16 %v1824, %v1820
      %v1973 = vpack.c.b16 %v1825, %v1821
      %v1974 = vpack.c.b16 %v1826, %v1822
      %v1975 = vpack.c.b16 %v1831, %v1827
      %v1976 = vpack.c.b16 %v1832, %v1828
      %v1977 = vpack.c.b16 %v1833, %v1829
      %v1978 = vpack.c.b16 %v1834, %v1830
      %v1979 = vpack.c.b16 %v1839, %v1835
      %v1980 = vpack.c.b16 %v1840, %v1836
      %v1981 = vpack.c.b16 %v1841, %v1837
      %v1982 = vpack.c.b16 %v1842, %v1838
      %v1983 = vpack.c.b16 %v1847, %v1843
      %v1984 = vpack.c.b16 %v1848, %v1844
      %v1985 = vpack.c.b16 %v1849, %v1845
      %v1986 = vpack.c.b16 %v1850, %v1846
      %v1987 = vpack.c.b16 %v1855, %v1851
      %v1988 = vpack.c.b16 %v1856, %v1852
      %v1989 = vpack.c.b16 %v1857, %v1853
      %v1990 = vpack.c.b16 %v1858, %v1854
      %v1991 = vpack.c.b16 %v1863, %v1859
      %v1992 = vpack.c.b16 %v1864, %v1860
      %v1993 = vpack.c.b16 %v1865, %v1861
      %v1994 = vpack.c.b16 %v1866, %v1862
      %2123 = vmatprep.subr.bf16.mxu0 %v1868
      %2124 = vmatpush1.bf16.msra.mxu0 %v1867
      %2125 = vmatprep.subr.bf16.mxu0 %v1872
      %2126 = vmatpush1.bf16.msra.mxu0 %v1871
      %2127 = vmatprep.subr.bf16.mxu0 %v1876
      %2128 = vmatpush1.bf16.msra.mxu0 %v1875
      %2129 = vmatprep.subr.bf16.mxu0 %v1880
      %2130 = vmatpush1.bf16.msra.mxu0 %v1879
      %2131 = vmatprep.subr.bf16.mxu0 %v1884
      %2132 = vmatpush1.bf16.msra.mxu0 %v1883
      %2133 = vmatprep.subr.bf16.mxu0 %v1888
      %2134 = vmatpush1.bf16.msra.mxu0 %v1887
      %2135 = vmatprep.subr.bf16.mxu0 %v1892
      %2136 = vmatpush1.bf16.msra.mxu0 %v1891
      %2137 = vmatprep.subr.bf16.mxu0 %v1896
      %2138 = vmatpush1.bf16.msra.mxu0 %v1895
      %2139 = vmatprep.subr.bf16.mxu0 %v1900
      %2140 = vmatpush1.bf16.msra.mxu0 %v1899
      %2141 = vmatprep.subr.bf16.mxu0 %v1904
      %2142 = vmatpush1.bf16.msra.mxu0 %v1903
      %2143 = vmatprep.subr.bf16.mxu0 %v1908
      %2144 = vmatpush1.bf16.msra.mxu0 %v1907
      %2145 = vmatprep.subr.bf16.mxu0 %v1912
      %2146 = vmatpush1.bf16.msra.mxu0 %v1911
      %2147 = vmatprep.subr.bf16.mxu0 %v1916
      %2148 = vmatpush1.bf16.msra.mxu0 %v1915
      %2149 = vmatprep.subr.bf16.mxu0 %v1920
      %2150 = vmatpush1.bf16.msra.mxu0 %v1919
      %2151 = vmatprep.subr.bf16.mxu0 %v1924
      %2152 = vmatpush1.bf16.msra.mxu0 %v1923
      %2153 = vmatprep.subr.bf16.mxu0 %v1928
      %2154 = vmatpush1.bf16.msra.mxu0 %v1927
      %2155 = vmatprep.mubr.bf16.mxu0 %v1468
      %2156 = vmatmul.mubr.bf16.gmra.mrb[0].mxu0 %v1467
      %v2157 = vpop.f32.mrb[0].mxu0
      %v2158 = vadd.f32 0.0, %v2157
      %v2159 = vpop.f32.mrb[0].mxu0
      %v2160 = vadd.f32 0.0, %v2159
      %v2161 = vpop.f32.mrb[0].mxu0
      %v2162 = vadd.f32 0.0, %v2161
      %v2163 = vpop.f32.mrb[0].mxu0
      %v2164 = vadd.f32 0.0, %v2163
      %2165 = vmatprep.mubr.bf16.mxu0 %v1472
      %2166 = vmatmul.mubr.bf16.gmra.mrb[0].mxu0 %v1471
      %v2167 = vpop.f32.mrb[0].mxu0
      %v2168 = vadd.f32 0.0, %v2167
      %v2169 = vpop.f32.mrb[0].mxu0
      %v2170 = vadd.f32 0.0, %v2169
      %v2171 = vpop.f32.mrb[0].mxu0
      %v2172 = vpop.f32.mrb[0].mxu0
      %2173 = vdwg.mxu0
      %2174 = vmatprep.subr.bf16.mxu0 %v1932
      %2175 = vmatpush1.bf16.msra.mxu0 %v1931
      %2176 = vmatprep.subr.bf16.mxu0 %v1936
      %2177 = vmatpush1.bf16.msra.mxu0 %v1935
      %2178 = vmatprep.subr.bf16.mxu0 %v1940
      %2179 = vmatpush1.bf16.msra.mxu0 %v1939
      %2180 = vmatprep.subr.bf16.mxu0 %v1944
      %2181 = vmatpush1.bf16.msra.mxu0 %v1943
      %2182 = vmatprep.subr.bf16.mxu0 %v1948
      %2183 = vmatpush1.bf16.msra.mxu0 %v1947
      %2184 = vmatprep.subr.bf16.mxu0 %v1952
      %2185 = vmatpush1.bf16.msra.mxu0 %v1951
      %2186 = vmatprep.subr.bf16.mxu0 %v1956
      %2187 = vmatpush1.bf16.msra.mxu0 %v1955
      %2188 = vmatprep.subr.bf16.mxu0 %v1960
      %2189 = vmatpush1.bf16.msra.mxu0 %v1959
      %2190 = vmatprep.subr.bf16.mxu0 %v1964
      %2191 = vmatpush1.bf16.msra.mxu0 %v1963
      %2192 = vmatprep.subr.bf16.mxu0 %v1968
      %2193 = vmatpush1.bf16.msra.mxu0 %v1967
      %2194 = vmatprep.subr.bf16.mxu0 %v1972
      %2195 = vmatpush1.bf16.msra.mxu0 %v1971
      %2196 = vmatprep.subr.bf16.mxu0 %v1976
      %2197 = vmatpush1.bf16.msra.mxu0 %v1975
      %2198 = vmatprep.subr.bf16.mxu0 %v1980
      %2199 = vmatpush1.bf16.msra.mxu0 %v1979
      %2200 = vmatprep.subr.bf16.mxu0 %v1984
      %2201 = vmatpush1.bf16.msra.mxu0 %v1983
      %2202 = vmatprep.subr.bf16.mxu0 %v1988
      %2203 = vmatpush1.bf16.msra.mxu0 %v1987
      %2204 = vmatprep.subr.bf16.mxu0 %v1992
      %2205 = vmatpush1.bf16.msra.mxu0 %v1991
      %2206 = vmatprep.mubr.bf16.mxu0 %v1470
      %2207 = vmatmul.mubr.bf16.gmra.mrb[0].mxu0 %v1469
      %v2208 = vpop.f32.mrb[0].mxu0
      %v2209 = vadd.f32 %v2158, %v2208
      %v2210 = vpop.f32.mrb[0].mxu0
      %v2211 = vadd.f32 %v2160, %v2210
      %v2212 = vpop.f32.mrb[0].mxu0
      %v2213 = vadd.f32 %v2162, %v2212
      %v2214 = vpop.f32.mrb[0].mxu0
      %v2215 = vadd.f32 %v2164, %v2214
      %2216 = vmatprep.mubr.bf16.mxu0 %v1474
      %2217 = vmatmul.mubr.bf16.gmra.mrb[0].mxu0 %v1473
      %v2218 = vpop.f32.mrb[0].mxu0
      %v2219 = vadd.f32 %v2168, %v2218
      %v2220 = vpop.f32.mrb[0].mxu0
      %v2221 = vadd.f32 %v2170, %v2220
      %v2222 = vpop.f32.mrb[0].mxu0
      %v2223 = vpop.f32.mrb[0].mxu0
      %2224 = vdwg.mxu0
      %2225 = vmatprep.subr.bf16.mxu0 %v1870
      %2226 = vmatpush1.bf16.msra.mxu0 %v1869
      %2227 = vmatprep.subr.bf16.mxu0 %v1874
      %2228 = vmatpush1.bf16.msra.mxu0 %v1873
      %2229 = vmatprep.subr.bf16.mxu0 %v1878
      %2230 = vmatpush1.bf16.msra.mxu0 %v1877
      %2231 = vmatprep.subr.bf16.mxu0 %v1882
      %2232 = vmatpush1.bf16.msra.mxu0 %v1881
      %2233 = vmatprep.subr.bf16.mxu0 %v1886
      %2234 = vmatpush1.bf16.msra.mxu0 %v1885
      %2235 = vmatprep.subr.bf16.mxu0 %v1890
      %2236 = vmatpush1.bf16.msra.mxu0 %v1889
      %2237 = vmatprep.subr.bf16.mxu0 %v1894
      %2238 = vmatpush1.bf16.msra.mxu0 %v1893
      %2239 = vmatprep.subr.bf16.mxu0 %v1898
      %2240 = vmatpush1.bf16.msra.mxu0 %v1897
      %2241 = vmatprep.subr.bf16.mxu0 %v1902
      %2242 = vmatpush1.bf16.msra.mxu0 %v1901
      %2243 = vmatprep.subr.bf16.mxu0 %v1906
      %2244 = vmatpush1.bf16.msra.mxu0 %v1905
      %2245 = vmatprep.subr.bf16.mxu0 %v1910
      %2246 = vmatpush1.bf16.msra.mxu0 %v1909
      %2247 = vmatprep.subr.bf16.mxu0 %v1914
      %2248 = vmatpush1.bf16.msra.mxu0 %v1913
      %2249 = vmatprep.subr.bf16.mxu0 %v1918
      %2250 = vmatpush1.bf16.msra.mxu0 %v1917
      %2251 = vmatprep.subr.bf16.mxu0 %v1922
      %2252 = vmatpush1.bf16.msra.mxu0 %v1921
      %2253 = vmatprep.subr.bf16.mxu0 %v1926
      %2254 = vmatpush1.bf16.msra.mxu0 %v1925
      %2255 = vmatprep.subr.bf16.mxu0 %v1930
      %2256 = vmatpush1.bf16.msra.mxu0 %v1929
      %2257 = vmatprep.mubr.bf16.mxu0 %v1468
      %2258 = vmatmul.mubr.bf16.gmra.mrb[0].mxu0 %v1467
      %v2259 = vpop.f32.mrb[0].mxu0
      %v2260 = vadd.f32 0.0, %v2259
      %v2261 = vpop.f32.mrb[0].mxu0
      %v2262 = vadd.f32 0.0, %v2261
      %v2263 = vpop.f32.mrb[0].mxu0
      %v2264 = vadd.f32 0.0, %v2263
      %v2265 = vpop.f32.mrb[0].mxu0
      %v2266 = vadd.f32 0.0, %v2265
      %2267 = vmatprep.mubr.bf16.mxu0 %v1472
      %2268 = vmatmul.mubr.bf16.gmra.mrb[0].mxu0 %v1471
      %v2269 = vpop.f32.mrb[0].mxu0
      %v2270 = vadd.f32 0.0, %v2269
      %v2271 = vpop.f32.mrb[0].mxu0
      %v2272 = vadd.f32 0.0, %v2271
      %v2273 = vpop.f32.mrb[0].mxu0
      %v2274 = vpop.f32.mrb[0].mxu0
      %2275 = vdwg.mxu0
      %2276 = vmatprep.subr.bf16.mxu0 %v1934
      %2277 = vmatpush1.bf16.msra.mxu0 %v1933
      %2278 = vmatprep.subr.bf16.mxu0 %v1938
      %2279 = vmatpush1.bf16.msra.mxu0 %v1937
      %2280 = vmatprep.subr.bf16.mxu0 %v1942
      %2281 = vmatpush1.bf16.msra.mxu0 %v1941
      %2282 = vmatprep.subr.bf16.mxu0 %v1946
      %2283 = vmatpush1.bf16.msra.mxu0 %v1945
      %2284 = vmatprep.subr.bf16.mxu0 %v1950
      %2285 = vmatpush1.bf16.msra.mxu0 %v1949
      %2286 = vmatprep.subr.bf16.mxu0 %v1954
      %2287 = vmatpush1.bf16.msra.mxu0 %v1953
      %2288 = vmatprep.subr.bf16.mxu0 %v1958
      %2289 = vmatpush1.bf16.msra.mxu0 %v1957
      %2290 = vmatprep.subr.bf16.mxu0 %v1962
      %2291 = vmatpush1.bf16.msra.mxu0 %v1961
      %2292 = vmatprep.subr.bf16.mxu0 %v1966
      %2293 = vmatpush1.bf16.msra.mxu0 %v1965
      %2294 = vmatprep.subr.bf16.mxu0 %v1970
      %2295 = vmatpush1.bf16.msra.mxu0 %v1969
      %2296 = vmatprep.subr.bf16.mxu0 %v1974
      %2297 = vmatpush1.bf16.msra.mxu0 %v1973
      %2298 = vmatprep.subr.bf16.mxu0 %v1978
      %2299 = vmatpush1.bf16.msra.mxu0 %v1977
      %2300 = vmatprep.subr.bf16.mxu0 %v1982
      %2301 = vmatpush1.bf16.msra.mxu0 %v1981
      %2302 = vmatprep.subr.bf16.mxu0 %v1986
      %2303 = vmatpush1.bf16.msra.mxu0 %v1985
      %2304 = vmatprep.subr.bf16.mxu0 %v1990
      %2305 = vmatpush1.bf16.msra.mxu0 %v1989
      %2306 = vmatprep.subr.bf16.mxu0 %v1994
      %2307 = vmatpush1.bf16.msra.mxu0 %v1993
      %2308 = vmatprep.mubr.bf16.mxu0 %v1470
      %2309 = vmatmul.mubr.bf16.gmra.mrb[0].mxu0 %v1469
      %v2310 = vpop.f32.mrb[0].mxu0
      %v2311 = vadd.f32 %v2260, %v2310
      %v2312 = vpop.f32.mrb[0].mxu0
      %v2313 = vadd.f32 %v2262, %v2312
      %v2314 = vpop.f32.mrb[0].mxu0
      %v2315 = vadd.f32 %v2264, %v2314
      %v2316 = vpop.f32.mrb[0].mxu0
      %v2317 = vadd.f32 %v2266, %v2316
      %2318 = vmatprep.mubr.bf16.mxu0 %v1474
      %2319 = vmatmul.mubr.bf16.gmra.mrb[0].mxu0 %v1473
      %v2320 = vpop.f32.mrb[0].mxu0
      %v2321 = vadd.f32 %v2270, %v2320
      %v2322 = vpop.f32.mrb[0].mxu0
      %v2323 = vadd.f32 %v2272, %v2322
      %v2324 = vpop.f32.mrb[0].mxu0
      %v2325 = vpop.f32.mrb[0].mxu0
      %2326 = vdwg.mxu0
      %v2339 = vrot.slane %v2209, 7
      %v2340 = vrot.slane %v2211, 7
      %v2341 = vrot.slane %v2311, 7
      %v2342 = vrot.slane %v2313, 7
      %v2343 = vrot.slane %v2213, 7
      %v2344 = vsel %vm583, %v2339, %v2343
      %v2345 = vrot.slane %v2215, 7
      %v2346 = vsel %vm583, %v2340, %v2345
      %v2347 = vrot.slane %v2315, 7
      %v2348 = vsel %vm583, %v2341, %v2347
      %v2349 = vrot.slane %v2317, 7
      %v2350 = vsel %vm583, %v2342, %v2349
      %v2351 = vrot.slane %v2219, 7
      %v2352 = vsel %vm583, %v2343, %v2351
      %v2353 = vrot.slane %v2221, 7
      %v2354 = vsel %vm583, %v2345, %v2353
      %v2355 = vrot.slane %v2321, 7
      %v2356 = vsel %vm583, %v2347, %v2355
      %v2357 = vrot.slane %v2323, 7
      %v2358 = vsel %vm583, %v2349, %v2357
      %2371 = vst [vmem:[#allocation2 + $0x20] sm:$0xfe] %v2339
      %2372 = vst [vmem:[#allocation2 + $0x28] sm:$0xfe] %v2340
      %2373 = vst [vmem:[#allocation2 + $0x30] sm:$0xfe] %v2341
      %2374 = vst [vmem:[#allocation2 + $0x38] sm:$0xfe] %v2342
      %2375 = vst [vmem:[#allocation2 + $0x40] sm:$0xff] %v2344
      %2376 = vst [vmem:[#allocation2 + $0x48] sm:$0xff] %v2346
      %2377 = vst [vmem:[#allocation2 + $0x50] sm:$0xff] %v2348
      %2378 = vst [vmem:[#allocation2 + $0x58] sm:$0xff] %v2350
      %2379 = vst [vmem:[#allocation2 + $0x60] sm:$0x7] %v2352
      %2380 = vst [vmem:[#allocation2 + $0x68] sm:$0x7] %v2354
      %2381 = vst [vmem:[#allocation2 + $0x70] sm:$0x7] %v2356
      %2382 = vst [vmem:[#allocation2 + $0x78] sm:$0x7] %v2358
      %v2383 = vld [vmem:[#allocation2 + $0x20] sm:$0xff]
      %v2384 = vld [vmem:[#allocation2 + $0x28] sm:$0xff]
      %v2385 = vld [vmem:[#allocation2 + $0x30] sm:$0xff]
      %v2386 = vld [vmem:[#allocation2 + $0x38] sm:$0xff]
      %v2387 = vld [vmem:[#allocation2 + $0x40] sm:$0xff]
      %v2388 = vld [vmem:[#allocation2 + $0x48] sm:$0xff]
      %v2389 = vld [vmem:[#allocation2 + $0x50] sm:$0xff]
      %v2390 = vld [vmem:[#allocation2 + $0x58] sm:$0xff]
      %v2391 = vld [vmem:[#allocation2 + $0x60] sm:$0x3]
      %v2392 = vld [vmem:[#allocation2 + $0x68] sm:$0x3]
      %v2393 = vld [vmem:[#allocation2 + $0x70] sm:$0x3]
      %v2394 = vld [vmem:[#allocation2 + $0x78] sm:$0x3]
      %s2395 = scalar_lea.vmem %s2, 1024
      %v2396 = vld [vmem:[%s2395] sm:$0xff]
      %v2397 = vld [vmem:[%s2395 + $0x8] sm:$0xff]
      %v2398 = vld [vmem:[%s2395 + $0x10] sm:$0xff]
      %v2399 = vld [vmem:[%s2395 + $0x18] sm:$0xff]
      %v2400 = vld [vmem:[%s2395 + $0x20] sm:$0xff]
      %v2401 = vld [vmem:[%s2395 + $0x28] sm:$0xff]
      %v2402 = vld [vmem:[%s2395 + $0x30] sm:$0xff]
      %v2403 = vld [vmem:[%s2395 + $0x38] sm:$0xff]
      %v2404 = vld [vmem:[%s2395 + $0x40] sm:$0xff]
      %v2405 = vld [vmem:[%s2395 + $0x48] sm:$0xff]
      %v2406 = vld [vmem:[%s2395 + $0x50] sm:$0xff]
      %v2407 = vld [vmem:[%s2395 + $0x58] sm:$0xff]
      %v2408 = vld [vmem:[%s2395 + $0x60] sm:$0xff]
      %v2409 = vld [vmem:[%s2395 + $0x68] sm:$0xff]
      %v2410 = vld [vmem:[%s2395 + $0x70] sm:$0xff]
      %v2411 = vld [vmem:[%s2395 + $0x78] sm:$0xff]
      %v2412 = vld [vmem:[%s2395 + $0x80] sm:$0xff]
      %v2413 = vld [vmem:[%s2395 + $0x88] sm:$0xff]
      %v2414 = vld [vmem:[%s2395 + $0x90] sm:$0xff]
      %v2415 = vld [vmem:[%s2395 + $0x98] sm:$0xff]
      %v2416 = vld [vmem:[%s2395 + $0xa0] sm:$0xff]
      %v2417 = vld [vmem:[%s2395 + $0xa8] sm:$0xff]
      %v2418 = vld [vmem:[%s2395 + $0xb0] sm:$0xff]
      %v2419 = vld [vmem:[%s2395 + $0xb8] sm:$0xff]
      %v2420 = vld [vmem:[%s2395 + $0xc0] sm:$0xff]
      %v2421 = vld [vmem:[%s2395 + $0xc8] sm:$0xff]
      %v2422 = vld [vmem:[%s2395 + $0xd0] sm:$0xff]
      %v2423 = vld [vmem:[%s2395 + $0xd8] sm:$0xff]
      %v2424 = vld [vmem:[%s2395 + $0xe0] sm:$0xff]
      %v2425 = vld [vmem:[%s2395 + $0xe8] sm:$0xff]
      %v2426 = vld [vmem:[%s2395 + $0xf0] sm:$0xff]
      %v2427 = vld [vmem:[%s2395 + $0xf8] sm:$0xff]
      %v2428 = vld [vmem:[%s2395 + $0x100] sm:$0xff]
      %v2429 = vld [vmem:[%s2395 + $0x108] sm:$0xff]
      %v2430 = vld [vmem:[%s2395 + $0x110] sm:$0xff]
      %v2431 = vld [vmem:[%s2395 + $0x118] sm:$0xff]
      %v2432 = vld [vmem:[%s2395 + $0x120] sm:$0xff]
      %v2433 = vld [vmem:[%s2395 + $0x128] sm:$0xff]
      %v2434 = vld [vmem:[%s2395 + $0x130] sm:$0xff]
      %v2435 = vld [vmem:[%s2395 + $0x138] sm:$0xff]
      %v2436 = vld [vmem:[%s2395 + $0x140] sm:$0xff]
      %v2437 = vld [vmem:[%s2395 + $0x148] sm:$0xff]
      %v2438 = vld [vmem:[%s2395 + $0x150] sm:$0xff]
      %v2439 = vld [vmem:[%s2395 + $0x158] sm:$0xff]
      %v2440 = vld [vmem:[%s2395 + $0x160] sm:$0xff]
      %v2441 = vld [vmem:[%s2395 + $0x168] sm:$0xff]
      %v2442 = vld [vmem:[%s2395 + $0x170] sm:$0xff]
      %v2443 = vld [vmem:[%s2395 + $0x178] sm:$0xff]
      %v2444 = vld [vmem:[%s2395 + $0x180] sm:$0xff]
      %v2445 = vld [vmem:[%s2395 + $0x188] sm:$0xff]
      %v2446 = vld [vmem:[%s2395 + $0x190] sm:$0xff]
      %v2447 = vld [vmem:[%s2395 + $0x198] sm:$0xff]
      %v2448 = vld [vmem:[%s2395 + $0x1a0] sm:$0xff]
      %v2449 = vld [vmem:[%s2395 + $0x1a8] sm:$0xff]
      %v2450 = vld [vmem:[%s2395 + $0x1b0] sm:$0xff]
      %v2451 = vld [vmem:[%s2395 + $0x1b8] sm:$0xff]
      %v2452 = vld [vmem:[%s2395 + $0x1c0] sm:$0xff]
      %v2453 = vld [vmem:[%s2395 + $0x1c8] sm:$0xff]
      %v2454 = vld [vmem:[%s2395 + $0x1d0] sm:$0xff]
      %v2455 = vld [vmem:[%s2395 + $0x1d8] sm:$0xff]
      %v2456 = vld [vmem:[%s2395 + $0x1e0] sm:$0xff]
      %v2457 = vld [vmem:[%s2395 + $0x1e8] sm:$0xff]
      %v2458 = vld [vmem:[%s2395 + $0x1f0] sm:$0xff]
      %v2459 = vld [vmem:[%s2395 + $0x1f8] sm:$0xff]
      %v2460 = vld [vmem:[%s2395 + $0x200] sm:$0xff]
      %v2461 = vld [vmem:[%s2395 + $0x208] sm:$0xff]
      %v2462 = vld [vmem:[%s2395 + $0x210] sm:$0xff]
      %v2463 = vld [vmem:[%s2395 + $0x218] sm:$0xff]
      %v2464 = vld [vmem:[%s2395 + $0x220] sm:$0xff]
      %v2465 = vld [vmem:[%s2395 + $0x228] sm:$0xff]
      %v2466 = vld [vmem:[%s2395 + $0x230] sm:$0xff]
      %v2467 = vld [vmem:[%s2395 + $0x238] sm:$0xff]
      %v2468 = vld [vmem:[%s2395 + $0x240] sm:$0xff]
      %v2469 = vld [vmem:[%s2395 + $0x248] sm:$0xff]
      %v2470 = vld [vmem:[%s2395 + $0x250] sm:$0xff]
      %v2471 = vld [vmem:[%s2395 + $0x258] sm:$0xff]
      %v2472 = vld [vmem:[%s2395 + $0x260] sm:$0xff]
      %v2473 = vld [vmem:[%s2395 + $0x268] sm:$0xff]
      %v2474 = vld [vmem:[%s2395 + $0x270] sm:$0xff]
      %v2475 = vld [vmem:[%s2395 + $0x278] sm:$0xff]
      %v2476 = vld [vmem:[%s2395 + $0x280] sm:$0xff]
      %v2477 = vld [vmem:[%s2395 + $0x288] sm:$0xff]
      %v2478 = vld [vmem:[%s2395 + $0x290] sm:$0xff]
      %v2479 = vld [vmem:[%s2395 + $0x298] sm:$0xff]
      %v2480 = vld [vmem:[%s2395 + $0x2a0] sm:$0xff]
      %v2481 = vld [vmem:[%s2395 + $0x2a8] sm:$0xff]
      %v2482 = vld [vmem:[%s2395 + $0x2b0] sm:$0xff]
      %v2483 = vld [vmem:[%s2395 + $0x2b8] sm:$0xff]
      %v2484 = vld [vmem:[%s2395 + $0x2c0] sm:$0xff]
      %v2485 = vld [vmem:[%s2395 + $0x2c8] sm:$0xff]
      %v2486 = vld [vmem:[%s2395 + $0x2d0] sm:$0xff]
      %v2487 = vld [vmem:[%s2395 + $0x2d8] sm:$0xff]
      %v2488 = vld [vmem:[%s2395 + $0x2e0] sm:$0xff]
      %v2489 = vld [vmem:[%s2395 + $0x2e8] sm:$0xff]
      %v2490 = vld [vmem:[%s2395 + $0x2f0] sm:$0xff]
      %v2491 = vld [vmem:[%s2395 + $0x2f8] sm:$0xff]
      %v2492 = vld [vmem:[%s2395 + $0x300] sm:$0xff]
      %v2493 = vld [vmem:[%s2395 + $0x308] sm:$0xff]
      %v2494 = vld [vmem:[%s2395 + $0x310] sm:$0xff]
      %v2495 = vld [vmem:[%s2395 + $0x318] sm:$0xff]
      %v2496 = vld [vmem:[%s2395 + $0x320] sm:$0xff]
      %v2497 = vld [vmem:[%s2395 + $0x328] sm:$0xff]
      %v2498 = vld [vmem:[%s2395 + $0x330] sm:$0xff]
      %v2499 = vld [vmem:[%s2395 + $0x338] sm:$0xff]
      %v2500 = vld [vmem:[%s2395 + $0x340] sm:$0xff]
      %v2501 = vld [vmem:[%s2395 + $0x348] sm:$0xff]
      %v2502 = vld [vmem:[%s2395 + $0x350] sm:$0xff]
      %v2503 = vld [vmem:[%s2395 + $0x358] sm:$0xff]
      %v2504 = vld [vmem:[%s2395 + $0x360] sm:$0xff]
      %v2505 = vld [vmem:[%s2395 + $0x368] sm:$0xff]
      %v2506 = vld [vmem:[%s2395 + $0x370] sm:$0xff]
      %v2507 = vld [vmem:[%s2395 + $0x378] sm:$0xff]
      %v2508 = vld [vmem:[%s2395 + $0x380] sm:$0xff]
      %v2509 = vld [vmem:[%s2395 + $0x388] sm:$0xff]
      %v2510 = vld [vmem:[%s2395 + $0x390] sm:$0xff]
      %v2511 = vld [vmem:[%s2395 + $0x398] sm:$0xff]
      %v2512 = vld [vmem:[%s2395 + $0x3a0] sm:$0xff]
      %v2513 = vld [vmem:[%s2395 + $0x3a8] sm:$0xff]
      %v2514 = vld [vmem:[%s2395 + $0x3b0] sm:$0xff]
      %v2515 = vld [vmem:[%s2395 + $0x3b8] sm:$0xff]
      %v2516 = vld [vmem:[%s2395 + $0x3c0] sm:$0xff]
      %v2517 = vld [vmem:[%s2395 + $0x3c8] sm:$0xff]
      %v2518 = vld [vmem:[%s2395 + $0x3d0] sm:$0xff]
      %v2519 = vld [vmem:[%s2395 + $0x3d8] sm:$0xff]
      %v2520 = vld [vmem:[%s2395 + $0x3e0] sm:$0xff]
      %v2521 = vld [vmem:[%s2395 + $0x3e8] sm:$0xff]
      %v2522 = vld [vmem:[%s2395 + $0x3f0] sm:$0xff]
      %v2523 = vld [vmem:[%s2395 + $0x3f8] sm:$0xff]
      %v2652 = vunpack.c.l.b16 %v2396
      %v2653 = vunpack.c.h.b16 %v2396
      %v2654 = vunpack.c.l.b16 %v2397
      %v2655 = vunpack.c.h.b16 %v2397
      %v2656 = vunpack.c.l.b16 %v2398
      %v2657 = vunpack.c.h.b16 %v2398
      %v2658 = vunpack.c.l.b16 %v2399
      %v2659 = vunpack.c.h.b16 %v2399
      %v2660 = vunpack.c.l.b16 %v2400
      %v2661 = vunpack.c.h.b16 %v2400
      %v2662 = vunpack.c.l.b16 %v2401
      %v2663 = vunpack.c.h.b16 %v2401
      %v2664 = vunpack.c.l.b16 %v2402
      %v2665 = vunpack.c.h.b16 %v2402
      %v2666 = vunpack.c.l.b16 %v2403
      %v2667 = vunpack.c.h.b16 %v2403
      %v2668 = vunpack.c.l.b16 %v2404
      %v2669 = vunpack.c.h.b16 %v2404
      %v2670 = vunpack.c.l.b16 %v2405
      %v2671 = vunpack.c.h.b16 %v2405
      %v2672 = vunpack.c.l.b16 %v2406
      %v2673 = vunpack.c.h.b16 %v2406
      %v2674 = vunpack.c.l.b16 %v2407
      %v2675 = vunpack.c.h.b16 %v2407
      %v2676 = vunpack.c.l.b16 %v2408
      %v2677 = vunpack.c.h.b16 %v2408
      %v2678 = vunpack.c.l.b16 %v2409
      %v2679 = vunpack.c.h.b16 %v2409
      %v2680 = vunpack.c.l.b16 %v2410
      %v2681 = vunpack.c.h.b16 %v2410
      %v2682 = vunpack.c.l.b16 %v2411
      %v2683 = vunpack.c.h.b16 %v2411
      %v2684 = vunpack.c.l.b16 %v2412
      %v2685 = vunpack.c.h.b16 %v2412
      %v2686 = vunpack.c.l.b16 %v2413
      %v2687 = vunpack.c.h.b16 %v2413
      %v2688 = vunpack.c.l.b16 %v2414
      %v2689 = vunpack.c.h.b16 %v2414
      %v2690 = vunpack.c.l.b16 %v2415
      %v2691 = vunpack.c.h.b16 %v2415
      %v2692 = vunpack.c.l.b16 %v2416
      %v2693 = vunpack.c.h.b16 %v2416
      %v2694 = vunpack.c.l.b16 %v2417
      %v2695 = vunpack.c.h.b16 %v2417
      %v2696 = vunpack.c.l.b16 %v2418
      %v2697 = vunpack.c.h.b16 %v2418
      %v2698 = vunpack.c.l.b16 %v2419
      %v2699 = vunpack.c.h.b16 %v2419
      %v2700 = vunpack.c.l.b16 %v2420
      %v2701 = vunpack.c.h.b16 %v2420
      %v2702 = vunpack.c.l.b16 %v2421
      %v2703 = vunpack.c.h.b16 %v2421
      %v2704 = vunpack.c.l.b16 %v2422
      %v2705 = vunpack.c.h.b16 %v2422
      %v2706 = vunpack.c.l.b16 %v2423
      %v2707 = vunpack.c.h.b16 %v2423
      %v2708 = vunpack.c.l.b16 %v2424
      %v2709 = vunpack.c.h.b16 %v2424
      %v2710 = vunpack.c.l.b16 %v2425
      %v2711 = vunpack.c.h.b16 %v2425
      %v2712 = vunpack.c.l.b16 %v2426
      %v2713 = vunpack.c.h.b16 %v2426
      %v2714 = vunpack.c.l.b16 %v2427
      %v2715 = vunpack.c.h.b16 %v2427
      %v2716 = vunpack.c.l.b16 %v2428
      %v2717 = vunpack.c.h.b16 %v2428
      %v2718 = vunpack.c.l.b16 %v2429
      %v2719 = vunpack.c.h.b16 %v2429
      %v2720 = vunpack.c.l.b16 %v2430
      %v2721 = vunpack.c.h.b16 %v2430
      %v2722 = vunpack.c.l.b16 %v2431
      %v2723 = vunpack.c.h.b16 %v2431
      %v2724 = vunpack.c.l.b16 %v2432
      %v2725 = vunpack.c.h.b16 %v2432
      %v2726 = vunpack.c.l.b16 %v2433
      %v2727 = vunpack.c.h.b16 %v2433
      %v2728 = vunpack.c.l.b16 %v2434
      %v2729 = vunpack.c.h.b16 %v2434
      %v2730 = vunpack.c.l.b16 %v2435
      %v2731 = vunpack.c.h.b16 %v2435
      %v2732 = vunpack.c.l.b16 %v2436
      %v2733 = vunpack.c.h.b16 %v2436
      %v2734 = vunpack.c.l.b16 %v2437
      %v2735 = vunpack.c.h.b16 %v2437
      %v2736 = vunpack.c.l.b16 %v2438
      %v2737 = vunpack.c.h.b16 %v2438
      %v2738 = vunpack.c.l.b16 %v2439
      %v2739 = vunpack.c.h.b16 %v2439
      %v2740 = vunpack.c.l.b16 %v2440
      %v2741 = vunpack.c.h.b16 %v2440
      %v2742 = vunpack.c.l.b16 %v2441
      %v2743 = vunpack.c.h.b16 %v2441
      %v2744 = vunpack.c.l.b16 %v2442
      %v2745 = vunpack.c.h.b16 %v2442
      %v2746 = vunpack.c.l.b16 %v2443
      %v2747 = vunpack.c.h.b16 %v2443
      %v2748 = vunpack.c.l.b16 %v2444
      %v2749 = vunpack.c.h.b16 %v2444
      %v2750 = vunpack.c.l.b16 %v2445
      %v2751 = vunpack.c.h.b16 %v2445
      %v2752 = vunpack.c.l.b16 %v2446
      %v2753 = vunpack.c.h.b16 %v2446
      %v2754 = vunpack.c.l.b16 %v2447
      %v2755 = vunpack.c.h.b16 %v2447
      %v2756 = vunpack.c.l.b16 %v2448
      %v2757 = vunpack.c.h.b16 %v2448
      %v2758 = vunpack.c.l.b16 %v2449
      %v2759 = vunpack.c.h.b16 %v2449
      %v2760 = vunpack.c.l.b16 %v2450
      %v2761 = vunpack.c.h.b16 %v2450
      %v2762 = vunpack.c.l.b16 %v2451
      %v2763 = vunpack.c.h.b16 %v2451
      %v2764 = vunpack.c.l.b16 %v2452
      %v2765 = vunpack.c.h.b16 %v2452
      %v2766 = vunpack.c.l.b16 %v2453
      %v2767 = vunpack.c.h.b16 %v2453
      %v2768 = vunpack.c.l.b16 %v2454
      %v2769 = vunpack.c.h.b16 %v2454
      %v2770 = vunpack.c.l.b16 %v2455
      %v2771 = vunpack.c.h.b16 %v2455
      %v2772 = vunpack.c.l.b16 %v2456
      %v2773 = vunpack.c.h.b16 %v2456
      %v2774 = vunpack.c.l.b16 %v2457
      %v2775 = vunpack.c.h.b16 %v2457
      %v2776 = vunpack.c.l.b16 %v2458
      %v2777 = vunpack.c.h.b16 %v2458
      %v2778 = vunpack.c.l.b16 %v2459
      %v2779 = vunpack.c.h.b16 %v2459
      %v2780 = vunpack.c.l.b16 %v2460
      %v2781 = vunpack.c.h.b16 %v2460
      %v2782 = vunpack.c.l.b16 %v2461
      %v2783 = vunpack.c.h.b16 %v2461
      %v2784 = vunpack.c.l.b16 %v2462
      %v2785 = vunpack.c.h.b16 %v2462
      %v2786 = vunpack.c.l.b16 %v2463
      %v2787 = vunpack.c.h.b16 %v2463
      %v2788 = vunpack.c.l.b16 %v2464
      %v2789 = vunpack.c.h.b16 %v2464
      %v2790 = vunpack.c.l.b16 %v2465
      %v2791 = vunpack.c.h.b16 %v2465
      %v2792 = vunpack.c.l.b16 %v2466
      %v2793 = vunpack.c.h.b16 %v2466
      %v2794 = vunpack.c.l.b16 %v2467
      %v2795 = vunpack.c.h.b16 %v2467
      %v2796 = vunpack.c.l.b16 %v2468
      %v2797 = vunpack.c.h.b16 %v2468
      %v2798 = vunpack.c.l.b16 %v2469
      %v2799 = vunpack.c.h.b16 %v2469
      %v2800 = vunpack.c.l.b16 %v2470
      %v2801 = vunpack.c.h.b16 %v2470
      %v2802 = vunpack.c.l.b16 %v2471
      %v2803 = vunpack.c.h.b16 %v2471
      %v2804 = vunpack.c.l.b16 %v2472
      %v2805 = vunpack.c.h.b16 %v2472
      %v2806 = vunpack.c.l.b16 %v2473
      %v2807 = vunpack.c.h.b16 %v2473
      %v2808 = vunpack.c.l.b16 %v2474
      %v2809 = vunpack.c.h.b16 %v2474
      %v2810 = vunpack.c.l.b16 %v2475
      %v2811 = vunpack.c.h.b16 %v2475
      %v2812 = vunpack.c.l.b16 %v2476
      %v2813 = vunpack.c.h.b16 %v2476
      %v2814 = vunpack.c.l.b16 %v2477
      %v2815 = vunpack.c.h.b16 %v2477
      %v2816 = vunpack.c.l.b16 %v2478
      %v2817 = vunpack.c.h.b16 %v2478
      %v2818 = vunpack.c.l.b16 %v2479
      %v2819 = vunpack.c.h.b16 %v2479
      %v2820 = vunpack.c.l.b16 %v2480
      %v2821 = vunpack.c.h.b16 %v2480
      %v2822 = vunpack.c.l.b16 %v2481
      %v2823 = vunpack.c.h.b16 %v2481
      %v2824 = vunpack.c.l.b16 %v2482
      %v2825 = vunpack.c.h.b16 %v2482
      %v2826 = vunpack.c.l.b16 %v2483
      %v2827 = vunpack.c.h.b16 %v2483
      %v2828 = vunpack.c.l.b16 %v2484
      %v2829 = vunpack.c.h.b16 %v2484
      %v2830 = vunpack.c.l.b16 %v2485
      %v2831 = vunpack.c.h.b16 %v2485
      %v2832 = vunpack.c.l.b16 %v2486
      %v2833 = vunpack.c.h.b16 %v2486
      %v2834 = vunpack.c.l.b16 %v2487
      %v2835 = vunpack.c.h.b16 %v2487
      %v2836 = vunpack.c.l.b16 %v2488
      %v2837 = vunpack.c.h.b16 %v2488
      %v2838 = vunpack.c.l.b16 %v2489
      %v2839 = vunpack.c.h.b16 %v2489
      %v2840 = vunpack.c.l.b16 %v2490
      %v2841 = vunpack.c.h.b16 %v2490
      %v2842 = vunpack.c.l.b16 %v2491
      %v2843 = vunpack.c.h.b16 %v2491
      %v2844 = vunpack.c.l.b16 %v2492
      %v2845 = vunpack.c.h.b16 %v2492
      %v2846 = vunpack.c.l.b16 %v2493
      %v2847 = vunpack.c.h.b16 %v2493
      %v2848 = vunpack.c.l.b16 %v2494
      %v2849 = vunpack.c.h.b16 %v2494
      %v2850 = vunpack.c.l.b16 %v2495
      %v2851 = vunpack.c.h.b16 %v2495
      %v2852 = vunpack.c.l.b16 %v2496
      %v2853 = vunpack.c.h.b16 %v2496
      %v2854 = vunpack.c.l.b16 %v2497
      %v2855 = vunpack.c.h.b16 %v2497
      %v2856 = vunpack.c.l.b16 %v2498
      %v2857 = vunpack.c.h.b16 %v2498
      %v2858 = vunpack.c.l.b16 %v2499
      %v2859 = vunpack.c.h.b16 %v2499
      %v2860 = vunpack.c.l.b16 %v2500
      %v2861 = vunpack.c.h.b16 %v2500
      %v2862 = vunpack.c.l.b16 %v2501
      %v2863 = vunpack.c.h.b16 %v2501
      %v2864 = vunpack.c.l.b16 %v2502
      %v2865 = vunpack.c.h.b16 %v2502
      %v2866 = vunpack.c.l.b16 %v2503
      %v2867 = vunpack.c.h.b16 %v2503
      %v2868 = vunpack.c.l.b16 %v2504
      %v2869 = vunpack.c.h.b16 %v2504
      %v2870 = vunpack.c.l.b16 %v2505
      %v2871 = vunpack.c.h.b16 %v2505
      %v2872 = vunpack.c.l.b16 %v2506
      %v2873 = vunpack.c.h.b16 %v2506
      %v2874 = vunpack.c.l.b16 %v2507
      %v2875 = vunpack.c.h.b16 %v2507
      %v2876 = vunpack.c.l.b16 %v2508
      %v2877 = vunpack.c.h.b16 %v2508
      %v2878 = vunpack.c.l.b16 %v2509
      %v2879 = vunpack.c.h.b16 %v2509
      %v2880 = vunpack.c.l.b16 %v2510
      %v2881 = vunpack.c.h.b16 %v2510
      %v2882 = vunpack.c.l.b16 %v2511
      %v2883 = vunpack.c.h.b16 %v2511
      %v2884 = vunpack.c.l.b16 %v2512
      %v2885 = vunpack.c.h.b16 %v2512
      %v2886 = vunpack.c.l.b16 %v2513
      %v2887 = vunpack.c.h.b16 %v2513
      %v2888 = vunpack.c.l.b16 %v2514
      %v2889 = vunpack.c.h.b16 %v2514
      %v2890 = vunpack.c.l.b16 %v2515
      %v2891 = vunpack.c.h.b16 %v2515
      %v2892 = vunpack.c.l.b16 %v2516
      %v2893 = vunpack.c.h.b16 %v2516
      %v2894 = vunpack.c.l.b16 %v2517
      %v2895 = vunpack.c.h.b16 %v2517
      %v2896 = vunpack.c.l.b16 %v2518
      %v2897 = vunpack.c.h.b16 %v2518
      %v2898 = vunpack.c.l.b16 %v2519
      %v2899 = vunpack.c.h.b16 %v2519
      %v2900 = vunpack.c.l.b16 %v2520
      %v2901 = vunpack.c.h.b16 %v2520
      %v2902 = vunpack.c.l.b16 %v2521
      %v2903 = vunpack.c.h.b16 %v2521
      %v2904 = vunpack.c.l.b16 %v2522
      %v2905 = vunpack.c.h.b16 %v2522
      %v2906 = vunpack.c.l.b16 %v2523
      %v2907 = vunpack.c.h.b16 %v2523
      %v2908 = vpack.c.b16 %v2656, %v2652
      %v2909 = vpack.c.b16 %v2657, %v2653
      %v2910 = vpack.c.b16 %v2658, %v2654
      %v2911 = vpack.c.b16 %v2659, %v2655
      %v2912 = vpack.c.b16 %v2664, %v2660
      %v2913 = vpack.c.b16 %v2665, %v2661
      %v2914 = vpack.c.b16 %v2666, %v2662
      %v2915 = vpack.c.b16 %v2667, %v2663
      %v2916 = vpack.c.b16 %v2672, %v2668
      %v2917 = vpack.c.b16 %v2673, %v2669
      %v2918 = vpack.c.b16 %v2674, %v2670
      %v2919 = vpack.c.b16 %v2675, %v2671
      %v2920 = vpack.c.b16 %v2680, %v2676
      %v2921 = vpack.c.b16 %v2681, %v2677
      %v2922 = vpack.c.b16 %v2682, %v2678
      %v2923 = vpack.c.b16 %v2683, %v2679
      %v2924 = vpack.c.b16 %v2688, %v2684
      %v2925 = vpack.c.b16 %v2689, %v2685
      %v2926 = vpack.c.b16 %v2690, %v2686
      %v2927 = vpack.c.b16 %v2691, %v2687
      %v2928 = vpack.c.b16 %v2696, %v2692
      %v2929 = vpack.c.b16 %v2697, %v2693
      %v2930 = vpack.c.b16 %v2698, %v2694
      %v2931 = vpack.c.b16 %v2699, %v2695
      %v2932 = vpack.c.b16 %v2704, %v2700
      %v2933 = vpack.c.b16 %v2705, %v2701
      %v2934 = vpack.c.b16 %v2706, %v2702
      %v2935 = vpack.c.b16 %v2707, %v2703
      %v2936 = vpack.c.b16 %v2712, %v2708
      %v2937 = vpack.c.b16 %v2713, %v2709
      %v2938 = vpack.c.b16 %v2714, %v2710
      %v2939 = vpack.c.b16 %v2715, %v2711
      %v2940 = vpack.c.b16 %v2720, %v2716
      %v2941 = vpack.c.b16 %v2721, %v2717
      %v2942 = vpack.c.b16 %v2722, %v2718
      %v2943 = vpack.c.b16 %v2723, %v2719
      %v2944 = vpack.c.b16 %v2728, %v2724
      %v2945 = vpack.c.b16 %v2729, %v2725
      %v2946 = vpack.c.b16 %v2730, %v2726
      %v2947 = vpack.c.b16 %v2731, %v2727
      %v2948 = vpack.c.b16 %v2736, %v2732
      %v2949 = vpack.c.b16 %v2737, %v2733
      %v2950 = vpack.c.b16 %v2738, %v2734
      %v2951 = vpack.c.b16 %v2739, %v2735
      %v2952 = vpack.c.b16 %v2744, %v2740
      %v2953 = vpack.c.b16 %v2745, %v2741
      %v2954 = vpack.c.b16 %v2746, %v2742
      %v2955 = vpack.c.b16 %v2747, %v2743
      %v2956 = vpack.c.b16 %v2752, %v2748
      %v2957 = vpack.c.b16 %v2753, %v2749
      %v2958 = vpack.c.b16 %v2754, %v2750
      %v2959 = vpack.c.b16 %v2755, %v2751
      %v2960 = vpack.c.b16 %v2760, %v2756
      %v2961 = vpack.c.b16 %v2761, %v2757
      %v2962 = vpack.c.b16 %v2762, %v2758
      %v2963 = vpack.c.b16 %v2763, %v2759
      %v2964 = vpack.c.b16 %v2768, %v2764
      %v2965 = vpack.c.b16 %v2769, %v2765
      %v2966 = vpack.c.b16 %v2770, %v2766
      %v2967 = vpack.c.b16 %v2771, %v2767
      %v2968 = vpack.c.b16 %v2776, %v2772
      %v2969 = vpack.c.b16 %v2777, %v2773
      %v2970 = vpack.c.b16 %v2778, %v2774
      %v2971 = vpack.c.b16 %v2779, %v2775
      %v2972 = vpack.c.b16 %v2784, %v2780
      %v2973 = vpack.c.b16 %v2785, %v2781
      %v2974 = vpack.c.b16 %v2786, %v2782
      %v2975 = vpack.c.b16 %v2787, %v2783
      %v2976 = vpack.c.b16 %v2792, %v2788
      %v2977 = vpack.c.b16 %v2793, %v2789
      %v2978 = vpack.c.b16 %v2794, %v2790
      %v2979 = vpack.c.b16 %v2795, %v2791
      %v2980 = vpack.c.b16 %v2800, %v2796
      %v2981 = vpack.c.b16 %v2801, %v2797
      %v2982 = vpack.c.b16 %v2802, %v2798
      %v2983 = vpack.c.b16 %v2803, %v2799
      %v2984 = vpack.c.b16 %v2808, %v2804
      %v2985 = vpack.c.b16 %v2809, %v2805
      %v2986 = vpack.c.b16 %v2810, %v2806
      %v2987 = vpack.c.b16 %v2811, %v2807
      %v2988 = vpack.c.b16 %v2816, %v2812
      %v2989 = vpack.c.b16 %v2817, %v2813
      %v2990 = vpack.c.b16 %v2818, %v2814
      %v2991 = vpack.c.b16 %v2819, %v2815
      %v2992 = vpack.c.b16 %v2824, %v2820
      %v2993 = vpack.c.b16 %v2825, %v2821
      %v2994 = vpack.c.b16 %v2826, %v2822
      %v2995 = vpack.c.b16 %v2827, %v2823
      %v2996 = vpack.c.b16 %v2832, %v2828
      %v2997 = vpack.c.b16 %v2833, %v2829
      %v2998 = vpack.c.b16 %v2834, %v2830
      %v2999 = vpack.c.b16 %v2835, %v2831
      %v3000 = vpack.c.b16 %v2840, %v2836
      %v3001 = vpack.c.b16 %v2841, %v2837
      %v3002 = vpack.c.b16 %v2842, %v2838
      %v3003 = vpack.c.b16 %v2843, %v2839
      %v3004 = vpack.c.b16 %v2848, %v2844
      %v3005 = vpack.c.b16 %v2849, %v2845
      %v3006 = vpack.c.b16 %v2850, %v2846
      %v3007 = vpack.c.b16 %v2851, %v2847
      %v3008 = vpack.c.b16 %v2856, %v2852
      %v3009 = vpack.c.b16 %v2857, %v2853
      %v3010 = vpack.c.b16 %v2858, %v2854
      %v3011 = vpack.c.b16 %v2859, %v2855
      %v3012 = vpack.c.b16 %v2864, %v2860
      %v3013 = vpack.c.b16 %v2865, %v2861
      %v3014 = vpack.c.b16 %v2866, %v2862
      %v3015 = vpack.c.b16 %v2867, %v2863
      %v3016 = vpack.c.b16 %v2872, %v2868
      %v3017 = vpack.c.b16 %v2873, %v2869
      %v3018 = vpack.c.b16 %v2874, %v2870
      %v3019 = vpack.c.b16 %v2875, %v2871
      %v3020 = vpack.c.b16 %v2880, %v2876
      %v3021 = vpack.c.b16 %v2881, %v2877
      %v3022 = vpack.c.b16 %v2882, %v2878
      %v3023 = vpack.c.b16 %v2883, %v2879
      %v3024 = vpack.c.b16 %v2888, %v2884
      %v3025 = vpack.c.b16 %v2889, %v2885
      %v3026 = vpack.c.b16 %v2890, %v2886
      %v3027 = vpack.c.b16 %v2891, %v2887
      %v3028 = vpack.c.b16 %v2896, %v2892
      %v3029 = vpack.c.b16 %v2897, %v2893
      %v3030 = vpack.c.b16 %v2898, %v2894
      %v3031 = vpack.c.b16 %v2899, %v2895
      %v3032 = vpack.c.b16 %v2904, %v2900
      %v3033 = vpack.c.b16 %v2905, %v2901
      %v3034 = vpack.c.b16 %v2906, %v2902
      %v3035 = vpack.c.b16 %v2907, %v2903
      %3164 = vmatprep.subr.bf16.mxu0 %v2909
      %3165 = vmatpush1.bf16.msra.mxu0 %v2908
      %3166 = vmatprep.subr.bf16.mxu0 %v2913
      %3167 = vmatpush1.bf16.msra.mxu0 %v2912
      %3168 = vmatprep.subr.bf16.mxu0 %v2917
      %3169 = vmatpush1.bf16.msra.mxu0 %v2916
      %3170 = vmatprep.subr.bf16.mxu0 %v2921
      %3171 = vmatpush1.bf16.msra.mxu0 %v2920
      %3172 = vmatprep.subr.bf16.mxu0 %v2925
      %3173 = vmatpush1.bf16.msra.mxu0 %v2924
      %3174 = vmatprep.subr.bf16.mxu0 %v2929
      %3175 = vmatpush1.bf16.msra.mxu0 %v2928
      %3176 = vmatprep.subr.bf16.mxu0 %v2933
      %3177 = vmatpush1.bf16.msra.mxu0 %v2932
      %3178 = vmatprep.subr.bf16.mxu0 %v2937
      %3179 = vmatpush1.bf16.msra.mxu0 %v2936
      %3180 = vmatprep.subr.bf16.mxu0 %v2941
      %3181 = vmatpush1.bf16.msra.mxu0 %v2940
      %3182 = vmatprep.subr.bf16.mxu0 %v2945
      %3183 = vmatpush1.bf16.msra.mxu0 %v2944
      %3184 = vmatprep.subr.bf16.mxu0 %v2949
      %3185 = vmatpush1.bf16.msra.mxu0 %v2948
      %3186 = vmatprep.subr.bf16.mxu0 %v2953
      %3187 = vmatpush1.bf16.msra.mxu0 %v2952
      %3188 = vmatprep.subr.bf16.mxu0 %v2957
      %3189 = vmatpush1.bf16.msra.mxu0 %v2956
      %3190 = vmatprep.subr.bf16.mxu0 %v2961
      %3191 = vmatpush1.bf16.msra.mxu0 %v2960
      %3192 = vmatprep.subr.bf16.mxu0 %v2965
      %3193 = vmatpush1.bf16.msra.mxu0 %v2964
      %3194 = vmatprep.subr.bf16.mxu0 %v2969
      %3195 = vmatpush1.bf16.msra.mxu0 %v2968
      %3196 = vmatprep.mubr.bf16.mxu0 %v1468
      %3197 = vmatmul.mubr.bf16.gmra.mrb[0].mxu0 %v1467
      %v3198 = vpop.f32.mrb[0].mxu0
      %v3199 = vadd.f32 0.0, %v3198
      %v3200 = vpop.f32.mrb[0].mxu0
      %v3201 = vadd.f32 0.0, %v3200
      %v3202 = vpop.f32.mrb[0].mxu0
      %v3203 = vadd.f32 0.0, %v3202
      %v3204 = vpop.f32.mrb[0].mxu0
      %v3205 = vadd.f32 0.0, %v3204
      %3206 = vmatprep.mubr.bf16.mxu0 %v1472
      %3207 = vmatmul.mubr.bf16.gmra.mrb[0].mxu0 %v1471
      %v3208 = vpop.f32.mrb[0].mxu0
      %v3209 = vadd.f32 0.0, %v3208
      %v3210 = vpop.f32.mrb[0].mxu0
      %v3211 = vadd.f32 0.0, %v3210
      %v3212 = vpop.f32.mrb[0].mxu0
      %v3213 = vpop.f32.mrb[0].mxu0
      %3214 = vdwg.mxu0
      %3215 = vmatprep.subr.bf16.mxu0 %v2973
      %3216 = vmatpush1.bf16.msra.mxu0 %v2972
      %3217 = vmatprep.subr.bf16.mxu0 %v2977
      %3218 = vmatpush1.bf16.msra.mxu0 %v2976
      %3219 = vmatprep.subr.bf16.mxu0 %v2981
      %3220 = vmatpush1.bf16.msra.mxu0 %v2980
      %3221 = vmatprep.subr.bf16.mxu0 %v2985
      %3222 = vmatpush1.bf16.msra.mxu0 %v2984
      %3223 = vmatprep.subr.bf16.mxu0 %v2989
      %3224 = vmatpush1.bf16.msra.mxu0 %v2988
      %3225 = vmatprep.subr.bf16.mxu0 %v2993
      %3226 = vmatpush1.bf16.msra.mxu0 %v2992
      %3227 = vmatprep.subr.bf16.mxu0 %v2997
      %3228 = vmatpush1.bf16.msra.mxu0 %v2996
      %3229 = vmatprep.subr.bf16.mxu0 %v3001
      %3230 = vmatpush1.bf16.msra.mxu0 %v3000
      %3231 = vmatprep.subr.bf16.mxu0 %v3005
      %3232 = vmatpush1.bf16.msra.mxu0 %v3004
      %3233 = vmatprep.subr.bf16.mxu0 %v3009
      %3234 = vmatpush1.bf16.msra.mxu0 %v3008
      %3235 = vmatprep.subr.bf16.mxu0 %v3013
      %3236 = vmatpush1.bf16.msra.mxu0 %v3012
      %3237 = vmatprep.subr.bf16.mxu0 %v3017
      %3238 = vmatpush1.bf16.msra.mxu0 %v3016
      %3239 = vmatprep.subr.bf16.mxu0 %v3021
      %3240 = vmatpush1.bf16.msra.mxu0 %v3020
      %3241 = vmatprep.subr.bf16.mxu0 %v3025
      %3242 = vmatpush1.bf16.msra.mxu0 %v3024
      %3243 = vmatprep.subr.bf16.mxu0 %v3029
      %3244 = vmatpush1.bf16.msra.mxu0 %v3028
      %3245 = vmatprep.subr.bf16.mxu0 %v3033
      %3246 = vmatpush1.bf16.msra.mxu0 %v3032
      %3247 = vmatprep.mubr.bf16.mxu0 %v1470
      %3248 = vmatmul.mubr.bf16.gmra.mrb[0].mxu0 %v1469
      %v3249 = vpop.f32.mrb[0].mxu0
      %v3250 = vadd.f32 %v3199, %v3249
      %v3251 = vpop.f32.mrb[0].mxu0
      %v3252 = vadd.f32 %v3201, %v3251
      %v3253 = vpop.f32.mrb[0].mxu0
      %v3254 = vadd.f32 %v3203, %v3253
      %v3255 = vpop.f32.mrb[0].mxu0
      %v3256 = vadd.f32 %v3205, %v3255
      %3257 = vmatprep.mubr.bf16.mxu0 %v1474
      %3258 = vmatmul.mubr.bf16.gmra.mrb[0].mxu0 %v1473
      %v3259 = vpop.f32.mrb[0].mxu0
      %v3260 = vadd.f32 %v3209, %v3259
      %v3261 = vpop.f32.mrb[0].mxu0
      %v3262 = vadd.f32 %v3211, %v3261
      %v3263 = vpop.f32.mrb[0].mxu0
      %v3264 = vpop.f32.mrb[0].mxu0
      %3265 = vdwg.mxu0
      %3266 = vmatprep.subr.bf16.mxu0 %v2911
      %3267 = vmatpush1.bf16.msra.mxu0 %v2910
      %3268 = vmatprep.subr.bf16.mxu0 %v2915
      %3269 = vmatpush1.bf16.msra.mxu0 %v2914
      %3270 = vmatprep.subr.bf16.mxu0 %v2919
      %3271 = vmatpush1.bf16.msra.mxu0 %v2918
      %3272 = vmatprep.subr.bf16.mxu0 %v2923
      %3273 = vmatpush1.bf16.msra.mxu0 %v2922
      %3274 = vmatprep.subr.bf16.mxu0 %v2927
      %3275 = vmatpush1.bf16.msra.mxu0 %v2926
      %3276 = vmatprep.subr.bf16.mxu0 %v2931
      %3277 = vmatpush1.bf16.msra.mxu0 %v2930
      %3278 = vmatprep.subr.bf16.mxu0 %v2935
      %3279 = vmatpush1.bf16.msra.mxu0 %v2934
      %3280 = vmatprep.subr.bf16.mxu0 %v2939
      %3281 = vmatpush1.bf16.msra.mxu0 %v2938
      %3282 = vmatprep.subr.bf16.mxu0 %v2943
      %3283 = vmatpush1.bf16.msra.mxu0 %v2942
      %3284 = vmatprep.subr.bf16.mxu0 %v2947
      %3285 = vmatpush1.bf16.msra.mxu0 %v2946
      %3286 = vmatprep.subr.bf16.mxu0 %v2951
      %3287 = vmatpush1.bf16.msra.mxu0 %v2950
      %3288 = vmatprep.subr.bf16.mxu0 %v2955
      %3289 = vmatpush1.bf16.msra.mxu0 %v2954
      %3290 = vmatprep.subr.bf16.mxu0 %v2959
      %3291 = vmatpush1.bf16.msra.mxu0 %v2958
      %3292 = vmatprep.subr.bf16.mxu0 %v2963
      %3293 = vmatpush1.bf16.msra.mxu0 %v2962
      %3294 = vmatprep.subr.bf16.mxu0 %v2967
      %3295 = vmatpush1.bf16.msra.mxu0 %v2966
      %3296 = vmatprep.subr.bf16.mxu0 %v2971
      %3297 = vmatpush1.bf16.msra.mxu0 %v2970
      %3298 = vmatprep.mubr.bf16.mxu0 %v1468
      %3299 = vmatmul.mubr.bf16.gmra.mrb[0].mxu0 %v1467
      %v3300 = vpop.f32.mrb[0].mxu0
      %v3301 = vadd.f32 0.0, %v3300
      %v3302 = vpop.f32.mrb[0].mxu0
      %v3303 = vadd.f32 0.0, %v3302
      %v3304 = vpop.f32.mrb[0].mxu0
      %v3305 = vadd.f32 0.0, %v3304
      %v3306 = vpop.f32.mrb[0].mxu0
      %v3307 = vadd.f32 0.0, %v3306
      %3308 = vmatprep.mubr.bf16.mxu0 %v1472
      %3309 = vmatmul.mubr.bf16.gmra.mrb[0].mxu0 %v1471
      %v3310 = vpop.f32.mrb[0].mxu0
      %v3311 = vadd.f32 0.0, %v3310
      %v3312 = vpop.f32.mrb[0].mxu0
      %v3313 = vadd.f32 0.0, %v3312
      %v3314 = vpop.f32.mrb[0].mxu0
      %v3315 = vpop.f32.mrb[0].mxu0
      %3316 = vdwg.mxu0
      %3317 = vmatprep.subr.bf16.mxu0 %v2975
      %3318 = vmatpush1.bf16.msra.mxu0 %v2974
      %3319 = vmatprep.subr.bf16.mxu0 %v2979
      %3320 = vmatpush1.bf16.msra.mxu0 %v2978
      %3321 = vmatprep.subr.bf16.mxu0 %v2983
      %3322 = vmatpush1.bf16.msra.mxu0 %v2982
      %3323 = vmatprep.subr.bf16.mxu0 %v2987
      %3324 = vmatpush1.bf16.msra.mxu0 %v2986
      %3325 = vmatprep.subr.bf16.mxu0 %v2991
      %3326 = vmatpush1.bf16.msra.mxu0 %v2990
      %3327 = vmatprep.subr.bf16.mxu0 %v2995
      %3328 = vmatpush1.bf16.msra.mxu0 %v2994
      %3329 = vmatprep.subr.bf16.mxu0 %v2999
      %3330 = vmatpush1.bf16.msra.mxu0 %v2998
      %3331 = vmatprep.subr.bf16.mxu0 %v3003
      %3332 = vmatpush1.bf16.msra.mxu0 %v3002
      %3333 = vmatprep.subr.bf16.mxu0 %v3007
      %3334 = vmatpush1.bf16.msra.mxu0 %v3006
      %3335 = vmatprep.subr.bf16.mxu0 %v3011
      %3336 = vmatpush1.bf16.msra.mxu0 %v3010
      %3337 = vmatprep.subr.bf16.mxu0 %v3015
      %3338 = vmatpush1.bf16.msra.mxu0 %v3014
      %3339 = vmatprep.subr.bf16.mxu0 %v3019
      %3340 = vmatpush1.bf16.msra.mxu0 %v3018
      %3341 = vmatprep.subr.bf16.mxu0 %v3023
      %3342 = vmatpush1.bf16.msra.mxu0 %v3022
      %3343 = vmatprep.subr.bf16.mxu0 %v3027
      %3344 = vmatpush1.bf16.msra.mxu0 %v3026
      %3345 = vmatprep.subr.bf16.mxu0 %v3031
      %3346 = vmatpush1.bf16.msra.mxu0 %v3030
      %3347 = vmatprep.subr.bf16.mxu0 %v3035
      %3348 = vmatpush1.bf16.msra.mxu0 %v3034
      %3349 = vmatprep.mubr.bf16.mxu0 %v1470
      %3350 = vmatmul.mubr.bf16.gmra.mrb[0].mxu0 %v1469
      %v3351 = vpop.f32.mrb[0].mxu0
      %v3352 = vadd.f32 %v3301, %v3351
      %v3353 = vpop.f32.mrb[0].mxu0
      %v3354 = vadd.f32 %v3303, %v3353
      %v3355 = vpop.f32.mrb[0].mxu0
      %v3356 = vadd.f32 %v3305, %v3355
      %v3357 = vpop.f32.mrb[0].mxu0
      %v3358 = vadd.f32 %v3307, %v3357
      %3359 = vmatprep.mubr.bf16.mxu0 %v1474
      %3360 = vmatmul.mubr.bf16.gmra.mrb[0].mxu0 %v1473
      %v3361 = vpop.f32.mrb[0].mxu0
      %v3362 = vadd.f32 %v3311, %v3361
      %v3363 = vpop.f32.mrb[0].mxu0
      %v3364 = vadd.f32 %v3313, %v3363
      %v3365 = vpop.f32.mrb[0].mxu0
      %v3366 = vpop.f32.mrb[0].mxu0
      %3367 = vdwg.mxu0
      %v3368 = vadd.f32 %v2383, %v3250
      %v3369 = vadd.f32 %v2384, %v3252
      %v3370 = vadd.f32 %v2385, %v3352
      %v3371 = vadd.f32 %v2386, %v3354
      %v3372 = vadd.f32 %v2387, %v3254
      %v3373 = vadd.f32 %v2388, %v3256
      %v3374 = vadd.f32 %v2389, %v3356
      %v3375 = vadd.f32 %v2390, %v3358
      %v3376 = vadd.f32 %v2391, %v3260
      %v3377 = vadd.f32 %v2392, %v3262
      %v3378 = vadd.f32 %v2393, %v3362
      %v3379 = vadd.f32 %v2394, %v3364
      %3380 = vst [vmem:[#allocation2 + $0x20] sm:$0xff] %v3368
      %3381 = vst [vmem:[#allocation2 + $0x28] sm:$0xff] %v3369
      %3382 = vst [vmem:[#allocation2 + $0x30] sm:$0xff] %v3370
      %3383 = vst [vmem:[#allocation2 + $0x38] sm:$0xff] %v3371
      %3384 = vst [vmem:[#allocation2 + $0x40] sm:$0xff] %v3372
      %3385 = vst [vmem:[#allocation2 + $0x48] sm:$0xff] %v3373
      %3386 = vst [vmem:[#allocation2 + $0x50] sm:$0xff] %v3374
      %3387 = vst [vmem:[#allocation2 + $0x58] sm:$0xff] %v3375
      %3388 = vst [vmem:[#allocation2 + $0x60] sm:$0x3] %v3376
      %3389 = vst [vmem:[#allocation2 + $0x68] sm:$0x3] %v3377
      %3390 = vst [vmem:[#allocation2 + $0x70] sm:$0x3] %v3378
      %3391 = vst [vmem:[#allocation2 + $0x78] sm:$0x3] %v3379
      %v3392 = vld [vmem:[#allocation2] sm:$0x80]
      %v3393 = vld [vmem:[#allocation2 + $0x8] sm:$0x80]
      %v3394 = vld [vmem:[#allocation2 + $0x10] sm:$0x80]
      %v3395 = vld [vmem:[#allocation2 + $0x18] sm:$0x80]
      %v3396 = vld [vmem:[#allocation2 + $0x20] sm:$0xff]
      %v3397 = vld [vmem:[#allocation2 + $0x28] sm:$0xff]
      %v3398 = vld [vmem:[#allocation2 + $0x30] sm:$0xff]
      %v3399 = vld [vmem:[#allocation2 + $0x38] sm:$0xff]
      %v3400 = vld [vmem:[#allocation2 + $0x40] sm:$0xff]
      %v3401 = vld [vmem:[#allocation2 + $0x48] sm:$0xff]
      %v3402 = vld [vmem:[#allocation2 + $0x50] sm:$0xff]
      %v3403 = vld [vmem:[#allocation2 + $0x58] sm:$0xff]
      %v3404 = vld [vmem:[#allocation2 + $0x60] sm:$0x1]
      %v3405 = vld [vmem:[#allocation2 + $0x68] sm:$0x1]
      %v3406 = vld [vmem:[#allocation2 + $0x70] sm:$0x1]
      %v3407 = vld [vmem:[#allocation2 + $0x78] sm:$0x1]
      %s3408 = scalar_lea.vmem %s2, 2048
      %v3409 = vld [vmem:[%s3408] sm:$0xff]
      %v3410 = vld [vmem:[%s3408 + $0x8] sm:$0xff]
      %v3411 = vld [vmem:[%s3408 + $0x10] sm:$0xff]
      %v3412 = vld [vmem:[%s3408 + $0x18] sm:$0xff]
      %v3413 = vld [vmem:[%s3408 + $0x20] sm:$0xff]
      %v3414 = vld [vmem:[%s3408 + $0x28] sm:$0xff]
      %v3415 = vld [vmem:[%s3408 + $0x30] sm:$0xff]
      %v3416 = vld [vmem:[%s3408 + $0x38] sm:$0xff]
      %v3417 = vld [vmem:[%s3408 + $0x40] sm:$0xff]
      %v3418 = vld [vmem:[%s3408 + $0x48] sm:$0xff]
      %v3419 = vld [vmem:[%s3408 + $0x50] sm:$0xff]
      %v3420 = vld [vmem:[%s3408 + $0x58] sm:$0xff]
      %v3421 = vld [vmem:[%s3408 + $0x60] sm:$0xff]
      %v3422 = vld [vmem:[%s3408 + $0x68] sm:$0xff]
      %v3423 = vld [vmem:[%s3408 + $0x70] sm:$0xff]
      %v3424 = vld [vmem:[%s3408 + $0x78] sm:$0xff]
      %v3425 = vld [vmem:[%s3408 + $0x80] sm:$0xff]
      %v3426 = vld [vmem:[%s3408 + $0x88] sm:$0xff]
      %v3427 = vld [vmem:[%s3408 + $0x90] sm:$0xff]
      %v3428 = vld [vmem:[%s3408 + $0x98] sm:$0xff]
      %v3429 = vld [vmem:[%s3408 + $0xa0] sm:$0xff]
      %v3430 = vld [vmem:[%s3408 + $0xa8] sm:$0xff]
      %v3431 = vld [vmem:[%s3408 + $0xb0] sm:$0xff]
      %v3432 = vld [vmem:[%s3408 + $0xb8] sm:$0xff]
      %v3433 = vld [vmem:[%s3408 + $0xc0] sm:$0xff]
      %v3434 = vld [vmem:[%s3408 + $0xc8] sm:$0xff]
      %v3435 = vld [vmem:[%s3408 + $0xd0] sm:$0xff]
      %v3436 = vld [vmem:[%s3408 + $0xd8] sm:$0xff]
      %v3437 = vld [vmem:[%s3408 + $0xe0] sm:$0xff]
      %v3438 = vld [vmem:[%s3408 + $0xe8] sm:$0xff]
      %v3439 = vld [vmem:[%s3408 + $0xf0] sm:$0xff]
      %v3440 = vld [vmem:[%s3408 + $0xf8] sm:$0xff]
      %v3441 = vld [vmem:[%s3408 + $0x100] sm:$0xff]
      %v3442 = vld [vmem:[%s3408 + $0x108] sm:$0xff]
      %v3443 = vld [vmem:[%s3408 + $0x110] sm:$0xff]
      %v3444 = vld [vmem:[%s3408 + $0x118] sm:$0xff]
      %v3445 = vld [vmem:[%s3408 + $0x120] sm:$0xff]
      %v3446 = vld [vmem:[%s3408 + $0x128] sm:$0xff]
      %v3447 = vld [vmem:[%s3408 + $0x130] sm:$0xff]
      %v3448 = vld [vmem:[%s3408 + $0x138] sm:$0xff]
      %v3449 = vld [vmem:[%s3408 + $0x140] sm:$0xff]
      %v3450 = vld [vmem:[%s3408 + $0x148] sm:$0xff]
      %v3451 = vld [vmem:[%s3408 + $0x150] sm:$0xff]
      %v3452 = vld [vmem:[%s3408 + $0x158] sm:$0xff]
      %v3453 = vld [vmem:[%s3408 + $0x160] sm:$0xff]
      %v3454 = vld [vmem:[%s3408 + $0x168] sm:$0xff]
      %v3455 = vld [vmem:[%s3408 + $0x170] sm:$0xff]
      %v3456 = vld [vmem:[%s3408 + $0x178] sm:$0xff]
      %v3457 = vld [vmem:[%s3408 + $0x180] sm:$0xff]
      %v3458 = vld [vmem:[%s3408 + $0x188] sm:$0xff]
      %v3459 = vld [vmem:[%s3408 + $0x190] sm:$0xff]
      %v3460 = vld [vmem:[%s3408 + $0x198] sm:$0xff]
      %v3461 = vld [vmem:[%s3408 + $0x1a0] sm:$0xff]
      %v3462 = vld [vmem:[%s3408 + $0x1a8] sm:$0xff]
      %v3463 = vld [vmem:[%s3408 + $0x1b0] sm:$0xff]
      %v3464 = vld [vmem:[%s3408 + $0x1b8] sm:$0xff]
      %v3465 = vld [vmem:[%s3408 + $0x1c0] sm:$0xff]
      %v3466 = vld [vmem:[%s3408 + $0x1c8] sm:$0xff]
      %v3467 = vld [vmem:[%s3408 + $0x1d0] sm:$0xff]
      %v3468 = vld [vmem:[%s3408 + $0x1d8] sm:$0xff]
      %v3469 = vld [vmem:[%s3408 + $0x1e0] sm:$0xff]
      %v3470 = vld [vmem:[%s3408 + $0x1e8] sm:$0xff]
      %v3471 = vld [vmem:[%s3408 + $0x1f0] sm:$0xff]
      %v3472 = vld [vmem:[%s3408 + $0x1f8] sm:$0xff]
      %v3473 = vld [vmem:[%s3408 + $0x200] sm:$0xff]
      %v3474 = vld [vmem:[%s3408 + $0x208] sm:$0xff]
      %v3475 = vld [vmem:[%s3408 + $0x210] sm:$0xff]
      %v3476 = vld [vmem:[%s3408 + $0x218] sm:$0xff]
      %v3477 = vld [vmem:[%s3408 + $0x220] sm:$0xff]
      %v3478 = vld [vmem:[%s3408 + $0x228] sm:$0xff]
      %v3479 = vld [vmem:[%s3408 + $0x230] sm:$0xff]
      %v3480 = vld [vmem:[%s3408 + $0x238] sm:$0xff]
      %v3481 = vld [vmem:[%s3408 + $0x240] sm:$0xff]
      %v3482 = vld [vmem:[%s3408 + $0x248] sm:$0xff]
      %v3483 = vld [vmem:[%s3408 + $0x250] sm:$0xff]
      %v3484 = vld [vmem:[%s3408 + $0x258] sm:$0xff]
      %v3485 = vld [vmem:[%s3408 + $0x260] sm:$0xff]
      %v3486 = vld [vmem:[%s3408 + $0x268] sm:$0xff]
      %v3487 = vld [vmem:[%s3408 + $0x270] sm:$0xff]
      %v3488 = vld [vmem:[%s3408 + $0x278] sm:$0xff]
      %v3489 = vld [vmem:[%s3408 + $0x280] sm:$0xff]
      %v3490 = vld [vmem:[%s3408 + $0x288] sm:$0xff]
      %v3491 = vld [vmem:[%s3408 + $0x290] sm:$0xff]
      %v3492 = vld [vmem:[%s3408 + $0x298] sm:$0xff]
      %v3493 = vld [vmem:[%s3408 + $0x2a0] sm:$0xff]
      %v3494 = vld [vmem:[%s3408 + $0x2a8] sm:$0xff]
      %v3495 = vld [vmem:[%s3408 + $0x2b0] sm:$0xff]
      %v3496 = vld [vmem:[%s3408 + $0x2b8] sm:$0xff]
      %v3497 = vld [vmem:[%s3408 + $0x2c0] sm:$0xff]
      %v3498 = vld [vmem:[%s3408 + $0x2c8] sm:$0xff]
      %v3499 = vld [vmem:[%s3408 + $0x2d0] sm:$0xff]
      %v3500 = vld [vmem:[%s3408 + $0x2d8] sm:$0xff]
      %v3501 = vld [vmem:[%s3408 + $0x2e0] sm:$0xff]
      %v3502 = vld [vmem:[%s3408 + $0x2e8] sm:$0xff]
      %v3503 = vld [vmem:[%s3408 + $0x2f0] sm:$0xff]
      %v3504 = vld [vmem:[%s3408 + $0x2f8] sm:$0xff]
      %v3505 = vld [vmem:[%s3408 + $0x300] sm:$0xff]
      %v3506 = vld [vmem:[%s3408 + $0x308] sm:$0xff]
      %v3507 = vld [vmem:[%s3408 + $0x310] sm:$0xff]
      %v3508 = vld [vmem:[%s3408 + $0x318] sm:$0xff]
      %v3509 = vld [vmem:[%s3408 + $0x320] sm:$0xff]
      %v3510 = vld [vmem:[%s3408 + $0x328] sm:$0xff]
      %v3511 = vld [vmem:[%s3408 + $0x330] sm:$0xff]
      %v3512 = vld [vmem:[%s3408 + $0x338] sm:$0xff]
      %v3513 = vld [vmem:[%s3408 + $0x340] sm:$0xff]
      %v3514 = vld [vmem:[%s3408 + $0x348] sm:$0xff]
      %v3515 = vld [vmem:[%s3408 + $0x350] sm:$0xff]
      %v3516 = vld [vmem:[%s3408 + $0x358] sm:$0xff]
      %v3517 = vld [vmem:[%s3408 + $0x360] sm:$0xff]
      %v3518 = vld [vmem:[%s3408 + $0x368] sm:$0xff]
      %v3519 = vld [vmem:[%s3408 + $0x370] sm:$0xff]
      %v3520 = vld [vmem:[%s3408 + $0x378] sm:$0xff]
      %v3521 = vld [vmem:[%s3408 + $0x380] sm:$0xff]
      %v3522 = vld [vmem:[%s3408 + $0x388] sm:$0xff]
      %v3523 = vld [vmem:[%s3408 + $0x390] sm:$0xff]
      %v3524 = vld [vmem:[%s3408 + $0x398] sm:$0xff]
      %v3525 = vld [vmem:[%s3408 + $0x3a0] sm:$0xff]
      %v3526 = vld [vmem:[%s3408 + $0x3a8] sm:$0xff]
      %v3527 = vld [vmem:[%s3408 + $0x3b0] sm:$0xff]
      %v3528 = vld [vmem:[%s3408 + $0x3b8] sm:$0xff]
      %v3529 = vld [vmem:[%s3408 + $0x3c0] sm:$0xff]
      %v3530 = vld [vmem:[%s3408 + $0x3c8] sm:$0xff]
      %v3531 = vld [vmem:[%s3408 + $0x3d0] sm:$0xff]
      %v3532 = vld [vmem:[%s3408 + $0x3d8] sm:$0xff]
      %v3533 = vld [vmem:[%s3408 + $0x3e0] sm:$0xff]
      %v3534 = vld [vmem:[%s3408 + $0x3e8] sm:$0xff]
      %v3535 = vld [vmem:[%s3408 + $0x3f0] sm:$0xff]
      %v3536 = vld [vmem:[%s3408 + $0x3f8] sm:$0xff]
      %v3665 = vunpack.c.l.b16 %v3409
      %v3666 = vunpack.c.h.b16 %v3409
      %v3667 = vunpack.c.l.b16 %v3410
      %v3668 = vunpack.c.h.b16 %v3410
      %v3669 = vunpack.c.l.b16 %v3411
      %v3670 = vunpack.c.h.b16 %v3411
      %v3671 = vunpack.c.l.b16 %v3412
      %v3672 = vunpack.c.h.b16 %v3412
      %v3673 = vunpack.c.l.b16 %v3413
      %v3674 = vunpack.c.h.b16 %v3413
      %v3675 = vunpack.c.l.b16 %v3414
      %v3676 = vunpack.c.h.b16 %v3414
      %v3677 = vunpack.c.l.b16 %v3415
      %v3678 = vunpack.c.h.b16 %v3415
      %v3679 = vunpack.c.l.b16 %v3416
      %v3680 = vunpack.c.h.b16 %v3416
      %v3681 = vunpack.c.l.b16 %v3417
      %v3682 = vunpack.c.h.b16 %v3417
      %v3683 = vunpack.c.l.b16 %v3418
      %v3684 = vunpack.c.h.b16 %v3418
      %v3685 = vunpack.c.l.b16 %v3419
      %v3686 = vunpack.c.h.b16 %v3419
      %v3687 = vunpack.c.l.b16 %v3420
      %v3688 = vunpack.c.h.b16 %v3420
      %v3689 = vunpack.c.l.b16 %v3421
      %v3690 = vunpack.c.h.b16 %v3421
      %v3691 = vunpack.c.l.b16 %v3422
      %v3692 = vunpack.c.h.b16 %v3422
      %v3693 = vunpack.c.l.b16 %v3423
      %v3694 = vunpack.c.h.b16 %v3423
      %v3695 = vunpack.c.l.b16 %v3424
      %v3696 = vunpack.c.h.b16 %v3424
      %v3697 = vunpack.c.l.b16 %v3425
      %v3698 = vunpack.c.h.b16 %v3425
      %v3699 = vunpack.c.l.b16 %v3426
      %v3700 = vunpack.c.h.b16 %v3426
      %v3701 = vunpack.c.l.b16 %v3427
      %v3702 = vunpack.c.h.b16 %v3427
      %v3703 = vunpack.c.l.b16 %v3428
      %v3704 = vunpack.c.h.b16 %v3428
      %v3705 = vunpack.c.l.b16 %v3429
      %v3706 = vunpack.c.h.b16 %v3429
      %v3707 = vunpack.c.l.b16 %v3430
      %v3708 = vunpack.c.h.b16 %v3430
      %v3709 = vunpack.c.l.b16 %v3431
      %v3710 = vunpack.c.h.b16 %v3431
      %v3711 = vunpack.c.l.b16 %v3432
      %v3712 = vunpack.c.h.b16 %v3432
      %v3713 = vunpack.c.l.b16 %v3433
      %v3714 = vunpack.c.h.b16 %v3433
      %v3715 = vunpack.c.l.b16 %v3434
      %v3716 = vunpack.c.h.b16 %v3434
      %v3717 = vunpack.c.l.b16 %v3435
      %v3718 = vunpack.c.h.b16 %v3435
      %v3719 = vunpack.c.l.b16 %v3436
      %v3720 = vunpack.c.h.b16 %v3436
      %v3721 = vunpack.c.l.b16 %v3437
      %v3722 = vunpack.c.h.b16 %v3437
      %v3723 = vunpack.c.l.b16 %v3438
      %v3724 = vunpack.c.h.b16 %v3438
      %v3725 = vunpack.c.l.b16 %v3439
      %v3726 = vunpack.c.h.b16 %v3439
      %v3727 = vunpack.c.l.b16 %v3440
      %v3728 = vunpack.c.h.b16 %v3440
      %v3729 = vunpack.c.l.b16 %v3441
      %v3730 = vunpack.c.h.b16 %v3441
      %v3731 = vunpack.c.l.b16 %v3442
      %v3732 = vunpack.c.h.b16 %v3442
      %v3733 = vunpack.c.l.b16 %v3443
      %v3734 = vunpack.c.h.b16 %v3443
      %v3735 = vunpack.c.l.b16 %v3444
      %v3736 = vunpack.c.h.b16 %v3444
      %v3737 = vunpack.c.l.b16 %v3445
      %v3738 = vunpack.c.h.b16 %v3445
      %v3739 = vunpack.c.l.b16 %v3446
      %v3740 = vunpack.c.h.b16 %v3446
      %v3741 = vunpack.c.l.b16 %v3447
      %v3742 = vunpack.c.h.b16 %v3447
      %v3743 = vunpack.c.l.b16 %v3448
      %v3744 = vunpack.c.h.b16 %v3448
      %v3745 = vunpack.c.l.b16 %v3449
      %v3746 = vunpack.c.h.b16 %v3449
      %v3747 = vunpack.c.l.b16 %v3450
      %v3748 = vunpack.c.h.b16 %v3450
      %v3749 = vunpack.c.l.b16 %v3451
      %v3750 = vunpack.c.h.b16 %v3451
      %v3751 = vunpack.c.l.b16 %v3452
      %v3752 = vunpack.c.h.b16 %v3452
      %v3753 = vunpack.c.l.b16 %v3453
      %v3754 = vunpack.c.h.b16 %v3453
      %v3755 = vunpack.c.l.b16 %v3454
      %v3756 = vunpack.c.h.b16 %v3454
      %v3757 = vunpack.c.l.b16 %v3455
      %v3758 = vunpack.c.h.b16 %v3455
      %v3759 = vunpack.c.l.b16 %v3456
      %v3760 = vunpack.c.h.b16 %v3456
      %v3761 = vunpack.c.l.b16 %v3457
      %v3762 = vunpack.c.h.b16 %v3457
      %v3763 = vunpack.c.l.b16 %v3458
      %v3764 = vunpack.c.h.b16 %v3458
      %v3765 = vunpack.c.l.b16 %v3459
      %v3766 = vunpack.c.h.b16 %v3459
      %v3767 = vunpack.c.l.b16 %v3460
      %v3768 = vunpack.c.h.b16 %v3460
      %v3769 = vunpack.c.l.b16 %v3461
      %v3770 = vunpack.c.h.b16 %v3461
      %v3771 = vunpack.c.l.b16 %v3462
      %v3772 = vunpack.c.h.b16 %v3462
      %v3773 = vunpack.c.l.b16 %v3463
      %v3774 = vunpack.c.h.b16 %v3463
      %v3775 = vunpack.c.l.b16 %v3464
      %v3776 = vunpack.c.h.b16 %v3464
      %v3777 = vunpack.c.l.b16 %v3465
      %v3778 = vunpack.c.h.b16 %v3465
      %v3779 = vunpack.c.l.b16 %v3466
      %v3780 = vunpack.c.h.b16 %v3466
      %v3781 = vunpack.c.l.b16 %v3467
      %v3782 = vunpack.c.h.b16 %v3467
      %v3783 = vunpack.c.l.b16 %v3468
      %v3784 = vunpack.c.h.b16 %v3468
      %v3785 = vunpack.c.l.b16 %v3469
      %v3786 = vunpack.c.h.b16 %v3469
      %v3787 = vunpack.c.l.b16 %v3470
      %v3788 = vunpack.c.h.b16 %v3470
      %v3789 = vunpack.c.l.b16 %v3471
      %v3790 = vunpack.c.h.b16 %v3471
      %v3791 = vunpack.c.l.b16 %v3472
      %v3792 = vunpack.c.h.b16 %v3472
      %v3793 = vunpack.c.l.b16 %v3473
      %v3794 = vunpack.c.h.b16 %v3473
      %v3795 = vunpack.c.l.b16 %v3474
      %v3796 = vunpack.c.h.b16 %v3474
      %v3797 = vunpack.c.l.b16 %v3475
      %v3798 = vunpack.c.h.b16 %v3475
      %v3799 = vunpack.c.l.b16 %v3476
      %v3800 = vunpack.c.h.b16 %v3476
      %v3801 = vunpack.c.l.b16 %v3477
      %v3802 = vunpack.c.h.b16 %v3477
      %v3803 = vunpack.c.l.b16 %v3478
      %v3804 = vunpack.c.h.b16 %v3478
      %v3805 = vunpack.c.l.b16 %v3479
      %v3806 = vunpack.c.h.b16 %v3479
      %v3807 = vunpack.c.l.b16 %v3480
      %v3808 = vunpack.c.h.b16 %v3480
      %v3809 = vunpack.c.l.b16 %v3481
      %v3810 = vunpack.c.h.b16 %v3481
      %v3811 = vunpack.c.l.b16 %v3482
      %v3812 = vunpack.c.h.b16 %v3482
      %v3813 = vunpack.c.l.b16 %v3483
      %v3814 = vunpack.c.h.b16 %v3483
      %v3815 = vunpack.c.l.b16 %v3484
      %v3816 = vunpack.c.h.b16 %v3484
      %v3817 = vunpack.c.l.b16 %v3485
      %v3818 = vunpack.c.h.b16 %v3485
      %v3819 = vunpack.c.l.b16 %v3486
      %v3820 = vunpack.c.h.b16 %v3486
      %v3821 = vunpack.c.l.b16 %v3487
      %v3822 = vunpack.c.h.b16 %v3487
      %v3823 = vunpack.c.l.b16 %v3488
      %v3824 = vunpack.c.h.b16 %v3488
      %v3825 = vunpack.c.l.b16 %v3489
      %v3826 = vunpack.c.h.b16 %v3489
      %v3827 = vunpack.c.l.b16 %v3490
      %v3828 = vunpack.c.h.b16 %v3490
      %v3829 = vunpack.c.l.b16 %v3491
      %v3830 = vunpack.c.h.b16 %v3491
      %v3831 = vunpack.c.l.b16 %v3492
      %v3832 = vunpack.c.h.b16 %v3492
      %v3833 = vunpack.c.l.b16 %v3493
      %v3834 = vunpack.c.h.b16 %v3493
      %v3835 = vunpack.c.l.b16 %v3494
      %v3836 = vunpack.c.h.b16 %v3494
      %v3837 = vunpack.c.l.b16 %v3495
      %v3838 = vunpack.c.h.b16 %v3495
      %v3839 = vunpack.c.l.b16 %v3496
      %v3840 = vunpack.c.h.b16 %v3496
      %v3841 = vunpack.c.l.b16 %v3497
      %v3842 = vunpack.c.h.b16 %v3497
      %v3843 = vunpack.c.l.b16 %v3498
      %v3844 = vunpack.c.h.b16 %v3498
      %v3845 = vunpack.c.l.b16 %v3499
      %v3846 = vunpack.c.h.b16 %v3499
      %v3847 = vunpack.c.l.b16 %v3500
      %v3848 = vunpack.c.h.b16 %v3500
      %v3849 = vunpack.c.l.b16 %v3501
      %v3850 = vunpack.c.h.b16 %v3501
      %v3851 = vunpack.c.l.b16 %v3502
      %v3852 = vunpack.c.h.b16 %v3502
      %v3853 = vunpack.c.l.b16 %v3503
      %v3854 = vunpack.c.h.b16 %v3503
      %v3855 = vunpack.c.l.b16 %v3504
      %v3856 = vunpack.c.h.b16 %v3504
      %v3857 = vunpack.c.l.b16 %v3505
      %v3858 = vunpack.c.h.b16 %v3505
      %v3859 = vunpack.c.l.b16 %v3506
      %v3860 = vunpack.c.h.b16 %v3506
      %v3861 = vunpack.c.l.b16 %v3507
      %v3862 = vunpack.c.h.b16 %v3507
      %v3863 = vunpack.c.l.b16 %v3508
      %v3864 = vunpack.c.h.b16 %v3508
      %v3865 = vunpack.c.l.b16 %v3509
      %v3866 = vunpack.c.h.b16 %v3509
      %v3867 = vunpack.c.l.b16 %v3510
      %v3868 = vunpack.c.h.b16 %v3510
      %v3869 = vunpack.c.l.b16 %v3511
      %v3870 = vunpack.c.h.b16 %v3511
      %v3871 = vunpack.c.l.b16 %v3512
      %v3872 = vunpack.c.h.b16 %v3512
      %v3873 = vunpack.c.l.b16 %v3513
      %v3874 = vunpack.c.h.b16 %v3513
      %v3875 = vunpack.c.l.b16 %v3514
      %v3876 = vunpack.c.h.b16 %v3514
      %v3877 = vunpack.c.l.b16 %v3515
      %v3878 = vunpack.c.h.b16 %v3515
      %v3879 = vunpack.c.l.b16 %v3516
      %v3880 = vunpack.c.h.b16 %v3516
      %v3881 = vunpack.c.l.b16 %v3517
      %v3882 = vunpack.c.h.b16 %v3517
      %v3883 = vunpack.c.l.b16 %v3518
      %v3884 = vunpack.c.h.b16 %v3518
      %v3885 = vunpack.c.l.b16 %v3519
      %v3886 = vunpack.c.h.b16 %v3519
      %v3887 = vunpack.c.l.b16 %v3520
      %v3888 = vunpack.c.h.b16 %v3520
      %v3889 = vunpack.c.l.b16 %v3521
      %v3890 = vunpack.c.h.b16 %v3521
      %v3891 = vunpack.c.l.b16 %v3522
      %v3892 = vunpack.c.h.b16 %v3522
      %v3893 = vunpack.c.l.b16 %v3523
      %v3894 = vunpack.c.h.b16 %v3523
      %v3895 = vunpack.c.l.b16 %v3524
      %v3896 = vunpack.c.h.b16 %v3524
      %v3897 = vunpack.c.l.b16 %v3525
      %v3898 = vunpack.c.h.b16 %v3525
      %v3899 = vunpack.c.l.b16 %v3526
      %v3900 = vunpack.c.h.b16 %v3526
      %v3901 = vunpack.c.l.b16 %v3527
      %v3902 = vunpack.c.h.b16 %v3527
      %v3903 = vunpack.c.l.b16 %v3528
      %v3904 = vunpack.c.h.b16 %v3528
      %v3905 = vunpack.c.l.b16 %v3529
      %v3906 = vunpack.c.h.b16 %v3529
      %v3907 = vunpack.c.l.b16 %v3530
      %v3908 = vunpack.c.h.b16 %v3530
      %v3909 = vunpack.c.l.b16 %v3531
      %v3910 = vunpack.c.h.b16 %v3531
      %v3911 = vunpack.c.l.b16 %v3532
      %v3912 = vunpack.c.h.b16 %v3532
      %v3913 = vunpack.c.l.b16 %v3533
      %v3914 = vunpack.c.h.b16 %v3533
      %v3915 = vunpack.c.l.b16 %v3534
      %v3916 = vunpack.c.h.b16 %v3534
      %v3917 = vunpack.c.l.b16 %v3535
      %v3918 = vunpack.c.h.b16 %v3535
      %v3919 = vunpack.c.l.b16 %v3536
      %v3920 = vunpack.c.h.b16 %v3536
      %v3921 = vpack.c.b16 %v3669, %v3665
      %v3922 = vpack.c.b16 %v3670, %v3666
      %v3923 = vpack.c.b16 %v3671, %v3667
      %v3924 = vpack.c.b16 %v3672, %v3668
      %v3925 = vpack.c.b16 %v3677, %v3673
      %v3926 = vpack.c.b16 %v3678, %v3674
      %v3927 = vpack.c.b16 %v3679, %v3675
      %v3928 = vpack.c.b16 %v3680, %v3676
      %v3929 = vpack.c.b16 %v3685, %v3681
      %v3930 = vpack.c.b16 %v3686, %v3682
      %v3931 = vpack.c.b16 %v3687, %v3683
      %v3932 = vpack.c.b16 %v3688, %v3684
      %v3933 = vpack.c.b16 %v3693, %v3689
      %v3934 = vpack.c.b16 %v3694, %v3690
      %v3935 = vpack.c.b16 %v3695, %v3691
      %v3936 = vpack.c.b16 %v3696, %v3692
      %v3937 = vpack.c.b16 %v3701, %v3697
      %v3938 = vpack.c.b16 %v3702, %v3698
      %v3939 = vpack.c.b16 %v3703, %v3699
      %v3940 = vpack.c.b16 %v3704, %v3700
      %v3941 = vpack.c.b16 %v3709, %v3705
      %v3942 = vpack.c.b16 %v3710, %v3706
      %v3943 = vpack.c.b16 %v3711, %v3707
      %v3944 = vpack.c.b16 %v3712, %v3708
      %v3945 = vpack.c.b16 %v3717, %v3713
      %v3946 = vpack.c.b16 %v3718, %v3714
      %v3947 = vpack.c.b16 %v3719, %v3715
      %v3948 = vpack.c.b16 %v3720, %v3716
      %v3949 = vpack.c.b16 %v3725, %v3721
      %v3950 = vpack.c.b16 %v3726, %v3722
      %v3951 = vpack.c.b16 %v3727, %v3723
      %v3952 = vpack.c.b16 %v3728, %v3724
      %v3953 = vpack.c.b16 %v3733, %v3729
      %v3954 = vpack.c.b16 %v3734, %v3730
      %v3955 = vpack.c.b16 %v3735, %v3731
      %v3956 = vpack.c.b16 %v3736, %v3732
      %v3957 = vpack.c.b16 %v3741, %v3737
      %v3958 = vpack.c.b16 %v3742, %v3738
      %v3959 = vpack.c.b16 %v3743, %v3739
      %v3960 = vpack.c.b16 %v3744, %v3740
      %v3961 = vpack.c.b16 %v3749, %v3745
      %v3962 = vpack.c.b16 %v3750, %v3746
      %v3963 = vpack.c.b16 %v3751, %v3747
      %v3964 = vpack.c.b16 %v3752, %v3748
      %v3965 = vpack.c.b16 %v3757, %v3753
      %v3966 = vpack.c.b16 %v3758, %v3754
      %v3967 = vpack.c.b16 %v3759, %v3755
      %v3968 = vpack.c.b16 %v3760, %v3756
      %v3969 = vpack.c.b16 %v3765, %v3761
      %v3970 = vpack.c.b16 %v3766, %v3762
      %v3971 = vpack.c.b16 %v3767, %v3763
      %v3972 = vpack.c.b16 %v3768, %v3764
      %v3973 = vpack.c.b16 %v3773, %v3769
      %v3974 = vpack.c.b16 %v3774, %v3770
      %v3975 = vpack.c.b16 %v3775, %v3771
      %v3976 = vpack.c.b16 %v3776, %v3772
      %v3977 = vpack.c.b16 %v3781, %v3777
      %v3978 = vpack.c.b16 %v3782, %v3778
      %v3979 = vpack.c.b16 %v3783, %v3779
      %v3980 = vpack.c.b16 %v3784, %v3780
      %v3981 = vpack.c.b16 %v3789, %v3785
      %v3982 = vpack.c.b16 %v3790, %v3786
      %v3983 = vpack.c.b16 %v3791, %v3787
      %v3984 = vpack.c.b16 %v3792, %v3788
      %v3985 = vpack.c.b16 %v3797, %v3793
      %v3986 = vpack.c.b16 %v3798, %v3794
      %v3987 = vpack.c.b16 %v3799, %v3795
      %v3988 = vpack.c.b16 %v3800, %v3796
      %v3989 = vpack.c.b16 %v3805, %v3801
      %v3990 = vpack.c.b16 %v3806, %v3802
      %v3991 = vpack.c.b16 %v3807, %v3803
      %v3992 = vpack.c.b16 %v3808, %v3804
      %v3993 = vpack.c.b16 %v3813, %v3809
      %v3994 = vpack.c.b16 %v3814, %v3810
      %v3995 = vpack.c.b16 %v3815, %v3811
      %v3996 = vpack.c.b16 %v3816, %v3812
      %v3997 = vpack.c.b16 %v3821, %v3817
      %v3998 = vpack.c.b16 %v3822, %v3818
      %v3999 = vpack.c.b16 %v3823, %v3819
      %v4000 = vpack.c.b16 %v3824, %v3820
      %v4001 = vpack.c.b16 %v3829, %v3825
      %v4002 = vpack.c.b16 %v3830, %v3826
      %v4003 = vpack.c.b16 %v3831, %v3827
      %v4004 = vpack.c.b16 %v3832, %v3828
      %v4005 = vpack.c.b16 %v3837, %v3833
      %v4006 = vpack.c.b16 %v3838, %v3834
      %v4007 = vpack.c.b16 %v3839, %v3835
      %v4008 = vpack.c.b16 %v3840, %v3836
      %v4009 = vpack.c.b16 %v3845, %v3841
      %v4010 = vpack.c.b16 %v3846, %v3842
      %v4011 = vpack.c.b16 %v3847, %v3843
      %v4012 = vpack.c.b16 %v3848, %v3844
      %v4013 = vpack.c.b16 %v3853, %v3849
      %v4014 = vpack.c.b16 %v3854, %v3850
      %v4015 = vpack.c.b16 %v3855, %v3851
      %v4016 = vpack.c.b16 %v3856, %v3852
      %v4017 = vpack.c.b16 %v3861, %v3857
      %v4018 = vpack.c.b16 %v3862, %v3858
      %v4019 = vpack.c.b16 %v3863, %v3859
      %v4020 = vpack.c.b16 %v3864, %v3860
      %v4021 = vpack.c.b16 %v3869, %v3865
      %v4022 = vpack.c.b16 %v3870, %v3866
      %v4023 = vpack.c.b16 %v3871, %v3867
      %v4024 = vpack.c.b16 %v3872, %v3868
      %v4025 = vpack.c.b16 %v3877, %v3873
      %v4026 = vpack.c.b16 %v3878, %v3874
      %v4027 = vpack.c.b16 %v3879, %v3875
      %v4028 = vpack.c.b16 %v3880, %v3876
      %v4029 = vpack.c.b16 %v3885, %v3881
      %v4030 = vpack.c.b16 %v3886, %v3882
      %v4031 = vpack.c.b16 %v3887, %v3883
      %v4032 = vpack.c.b16 %v3888, %v3884
      %v4033 = vpack.c.b16 %v3893, %v3889
      %v4034 = vpack.c.b16 %v3894, %v3890
      %v4035 = vpack.c.b16 %v3895, %v3891
      %v4036 = vpack.c.b16 %v3896, %v3892
      %v4037 = vpack.c.b16 %v3901, %v3897
      %v4038 = vpack.c.b16 %v3902, %v3898
      %v4039 = vpack.c.b16 %v3903, %v3899
      %v4040 = vpack.c.b16 %v3904, %v3900
      %v4041 = vpack.c.b16 %v3909, %v3905
      %v4042 = vpack.c.b16 %v3910, %v3906
      %v4043 = vpack.c.b16 %v3911, %v3907
      %v4044 = vpack.c.b16 %v3912, %v3908
      %v4045 = vpack.c.b16 %v3917, %v3913
      %v4046 = vpack.c.b16 %v3918, %v3914
      %v4047 = vpack.c.b16 %v3919, %v3915
      %v4048 = vpack.c.b16 %v3920, %v3916
      %4177 = vmatprep.subr.bf16.mxu0 %v3922
      %4178 = vmatpush1.bf16.msra.mxu0 %v3921
      %4179 = vmatprep.subr.bf16.mxu0 %v3926
      %4180 = vmatpush1.bf16.msra.mxu0 %v3925
      %4181 = vmatprep.subr.bf16.mxu0 %v3930
      %4182 = vmatpush1.bf16.msra.mxu0 %v3929
      %4183 = vmatprep.subr.bf16.mxu0 %v3934
      %4184 = vmatpush1.bf16.msra.mxu0 %v3933
      %4185 = vmatprep.subr.bf16.mxu0 %v3938
      %4186 = vmatpush1.bf16.msra.mxu0 %v3937
      %4187 = vmatprep.subr.bf16.mxu0 %v3942
      %4188 = vmatpush1.bf16.msra.mxu0 %v3941
      %4189 = vmatprep.subr.bf16.mxu0 %v3946
      %4190 = vmatpush1.bf16.msra.mxu0 %v3945
      %4191 = vmatprep.subr.bf16.mxu0 %v3950
      %4192 = vmatpush1.bf16.msra.mxu0 %v3949
      %4193 = vmatprep.subr.bf16.mxu0 %v3954
      %4194 = vmatpush1.bf16.msra.mxu0 %v3953
      %4195 = vmatprep.subr.bf16.mxu0 %v3958
      %4196 = vmatpush1.bf16.msra.mxu0 %v3957
      %4197 = vmatprep.subr.bf16.mxu0 %v3962
      %4198 = vmatpush1.bf16.msra.mxu0 %v3961
      %4199 = vmatprep.subr.bf16.mxu0 %v3966
      %4200 = vmatpush1.bf16.msra.mxu0 %v3965
      %4201 = vmatprep.subr.bf16.mxu0 %v3970
      %4202 = vmatpush1.bf16.msra.mxu0 %v3969
      %4203 = vmatprep.subr.bf16.mxu0 %v3974
      %4204 = vmatpush1.bf16.msra.mxu0 %v3973
      %4205 = vmatprep.subr.bf16.mxu0 %v3978
      %4206 = vmatpush1.bf16.msra.mxu0 %v3977
      %4207 = vmatprep.subr.bf16.mxu0 %v3982
      %4208 = vmatpush1.bf16.msra.mxu0 %v3981
      %4209 = vmatprep.mubr.bf16.mxu0 %v1468
      %4210 = vmatmul.mubr.bf16.gmra.mrb[0].mxu0 %v1467
      %v4211 = vpop.f32.mrb[0].mxu0
      %v4212 = vadd.f32 0.0, %v4211
      %v4213 = vpop.f32.mrb[0].mxu0
      %v4214 = vadd.f32 0.0, %v4213
      %v4215 = vpop.f32.mrb[0].mxu0
      %v4216 = vadd.f32 0.0, %v4215
      %v4217 = vpop.f32.mrb[0].mxu0
      %v4218 = vadd.f32 0.0, %v4217
      %4219 = vmatprep.mubr.bf16.mxu0 %v1472
      %4220 = vmatmul.mubr.bf16.gmra.mrb[0].mxu0 %v1471
      %v4221 = vpop.f32.mrb[0].mxu0
      %v4222 = vadd.f32 0.0, %v4221
      %v4223 = vpop.f32.mrb[0].mxu0
      %v4224 = vadd.f32 0.0, %v4223
      %v4225 = vpop.f32.mrb[0].mxu0
      %v4226 = vpop.f32.mrb[0].mxu0
      %4227 = vdwg.mxu0
      %4228 = vmatprep.subr.bf16.mxu0 %v3986
      %4229 = vmatpush1.bf16.msra.mxu0 %v3985
      %4230 = vmatprep.subr.bf16.mxu0 %v3990
      %4231 = vmatpush1.bf16.msra.mxu0 %v3989
      %4232 = vmatprep.subr.bf16.mxu0 %v3994
      %4233 = vmatpush1.bf16.msra.mxu0 %v3993
      %4234 = vmatprep.subr.bf16.mxu0 %v3998
      %4235 = vmatpush1.bf16.msra.mxu0 %v3997
      %4236 = vmatprep.subr.bf16.mxu0 %v4002
      %4237 = vmatpush1.bf16.msra.mxu0 %v4001
      %4238 = vmatprep.subr.bf16.mxu0 %v4006
      %4239 = vmatpush1.bf16.msra.mxu0 %v4005
      %4240 = vmatprep.subr.bf16.mxu0 %v4010
      %4241 = vmatpush1.bf16.msra.mxu0 %v4009
      %4242 = vmatprep.subr.bf16.mxu0 %v4014
      %4243 = vmatpush1.bf16.msra.mxu0 %v4013
      %4244 = vmatprep.subr.bf16.mxu0 %v4018
      %4245 = vmatpush1.bf16.msra.mxu0 %v4017
      %4246 = vmatprep.subr.bf16.mxu0 %v4022
      %4247 = vmatpush1.bf16.msra.mxu0 %v4021
      %4248 = vmatprep.subr.bf16.mxu0 %v4026
      %4249 = vmatpush1.bf16.msra.mxu0 %v4025
      %4250 = vmatprep.subr.bf16.mxu0 %v4030
      %4251 = vmatpush1.bf16.msra.mxu0 %v4029
      %4252 = vmatprep.subr.bf16.mxu0 %v4034
      %4253 = vmatpush1.bf16.msra.mxu0 %v4033
      %4254 = vmatprep.subr.bf16.mxu0 %v4038
      %4255 = vmatpush1.bf16.msra.mxu0 %v4037
      %4256 = vmatprep.subr.bf16.mxu0 %v4042
      %4257 = vmatpush1.bf16.msra.mxu0 %v4041
      %4258 = vmatprep.subr.bf16.mxu0 %v4046
      %4259 = vmatpush1.bf16.msra.mxu0 %v4045
      %4260 = vmatprep.mubr.bf16.mxu0 %v1470
      %4261 = vmatmul.mubr.bf16.gmra.mrb[0].mxu0 %v1469
      %v4262 = vpop.f32.mrb[0].mxu0
      %v4263 = vadd.f32 %v4212, %v4262
      %v4264 = vpop.f32.mrb[0].mxu0
      %v4265 = vadd.f32 %v4214, %v4264
      %v4266 = vpop.f32.mrb[0].mxu0
      %v4267 = vadd.f32 %v4216, %v4266
      %v4268 = vpop.f32.mrb[0].mxu0
      %v4269 = vadd.f32 %v4218, %v4268
      %4270 = vmatprep.mubr.bf16.mxu0 %v1474
      %4271 = vmatmul.mubr.bf16.gmra.mrb[0].mxu0 %v1473
      %v4272 = vpop.f32.mrb[0].mxu0
      %v4273 = vadd.f32 %v4222, %v4272
      %v4274 = vpop.f32.mrb[0].mxu0
      %v4275 = vadd.f32 %v4224, %v4274
      %v4276 = vpop.f32.mrb[0].mxu0
      %v4277 = vpop.f32.mrb[0].mxu0
      %4278 = vdwg.mxu0
      %4279 = vmatprep.subr.bf16.mxu0 %v3924
      %4280 = vmatpush1.bf16.msra.mxu0 %v3923
      %4281 = vmatprep.subr.bf16.mxu0 %v3928
      %4282 = vmatpush1.bf16.msra.mxu0 %v3927
      %4283 = vmatprep.subr.bf16.mxu0 %v3932
      %4284 = vmatpush1.bf16.msra.mxu0 %v3931
      %4285 = vmatprep.subr.bf16.mxu0 %v3936
      %4286 = vmatpush1.bf16.msra.mxu0 %v3935
      %4287 = vmatprep.subr.bf16.mxu0 %v3940
      %4288 = vmatpush1.bf16.msra.mxu0 %v3939
      %4289 = vmatprep.subr.bf16.mxu0 %v3944
      %4290 = vmatpush1.bf16.msra.mxu0 %v3943
      %4291 = vmatprep.subr.bf16.mxu0 %v3948
      %4292 = vmatpush1.bf16.msra.mxu0 %v3947
      %4293 = vmatprep.subr.bf16.mxu0 %v3952
      %4294 = vmatpush1.bf16.msra.mxu0 %v3951
      %4295 = vmatprep.subr.bf16.mxu0 %v3956
      %4296 = vmatpush1.bf16.msra.mxu0 %v3955
      %4297 = vmatprep.subr.bf16.mxu0 %v3960
      %4298 = vmatpush1.bf16.msra.mxu0 %v3959
      %4299 = vmatprep.subr.bf16.mxu0 %v3964
      %4300 = vmatpush1.bf16.msra.mxu0 %v3963
      %4301 = vmatprep.subr.bf16.mxu0 %v3968
      %4302 = vmatpush1.bf16.msra.mxu0 %v3967
      %4303 = vmatprep.subr.bf16.mxu0 %v3972
      %4304 = vmatpush1.bf16.msra.mxu0 %v3971
      %4305 = vmatprep.subr.bf16.mxu0 %v3976
      %4306 = vmatpush1.bf16.msra.mxu0 %v3975
      %4307 = vmatprep.subr.bf16.mxu0 %v3980
      %4308 = vmatpush1.bf16.msra.mxu0 %v3979
      %4309 = vmatprep.subr.bf16.mxu0 %v3984
      %4310 = vmatpush1.bf16.msra.mxu0 %v3983
      %4311 = vmatprep.mubr.bf16.mxu0 %v1468
      %4312 = vmatmul.mubr.bf16.gmra.mrb[0].mxu0 %v1467
      %v4313 = vpop.f32.mrb[0].mxu0
      %v4314 = vadd.f32 0.0, %v4313
      %v4315 = vpop.f32.mrb[0].mxu0
      %v4316 = vadd.f32 0.0, %v4315
      %v4317 = vpop.f32.mrb[0].mxu0
      %v4318 = vadd.f32 0.0, %v4317
      %v4319 = vpop.f32.mrb[0].mxu0
      %v4320 = vadd.f32 0.0, %v4319
      %4321 = vmatprep.mubr.bf16.mxu0 %v1472
      %4322 = vmatmul.mubr.bf16.gmra.mrb[0].mxu0 %v1471
      %v4323 = vpop.f32.mrb[0].mxu0
      %v4324 = vadd.f32 0.0, %v4323
      %v4325 = vpop.f32.mrb[0].mxu0
      %v4326 = vadd.f32 0.0, %v4325
      %v4327 = vpop.f32.mrb[0].mxu0
      %v4328 = vpop.f32.mrb[0].mxu0
      %4329 = vdwg.mxu0
      %4330 = vmatprep.subr.bf16.mxu0 %v3988
      %4331 = vmatpush1.bf16.msra.mxu0 %v3987
      %4332 = vmatprep.subr.bf16.mxu0 %v3992
      %4333 = vmatpush1.bf16.msra.mxu0 %v3991
      %4334 = vmatprep.subr.bf16.mxu0 %v3996
      %4335 = vmatpush1.bf16.msra.mxu0 %v3995
      %4336 = vmatprep.subr.bf16.mxu0 %v4000
      %4337 = vmatpush1.bf16.msra.mxu0 %v3999
      %4338 = vmatprep.subr.bf16.mxu0 %v4004
      %4339 = vmatpush1.bf16.msra.mxu0 %v4003
      %4340 = vmatprep.subr.bf16.mxu0 %v4008
      %4341 = vmatpush1.bf16.msra.mxu0 %v4007
      %4342 = vmatprep.subr.bf16.mxu0 %v4012
      %4343 = vmatpush1.bf16.msra.mxu0 %v4011
      %4344 = vmatprep.subr.bf16.mxu0 %v4016
      %4345 = vmatpush1.bf16.msra.mxu0 %v4015
      %4346 = vmatprep.subr.bf16.mxu0 %v4020
      %4347 = vmatpush1.bf16.msra.mxu0 %v4019
      %4348 = vmatprep.subr.bf16.mxu0 %v4024
      %4349 = vmatpush1.bf16.msra.mxu0 %v4023
      %4350 = vmatprep.subr.bf16.mxu0 %v4028
      %4351 = vmatpush1.bf16.msra.mxu0 %v4027
      %4352 = vmatprep.subr.bf16.mxu0 %v4032
      %4353 = vmatpush1.bf16.msra.mxu0 %v4031
      %4354 = vmatprep.subr.bf16.mxu0 %v4036
      %4355 = vmatpush1.bf16.msra.mxu0 %v4035
      %4356 = vmatprep.subr.bf16.mxu0 %v4040
      %4357 = vmatpush1.bf16.msra.mxu0 %v4039
      %4358 = vmatprep.subr.bf16.mxu0 %v4044
      %4359 = vmatpush1.bf16.msra.mxu0 %v4043
      %4360 = vmatprep.subr.bf16.mxu0 %v4048
      %4361 = vmatpush1.bf16.msra.mxu0 %v4047
      %4362 = vmatprep.mubr.bf16.mxu0 %v1470
      %4363 = vmatmul.mubr.bf16.gmra.mrb[0].mxu0 %v1469
      %v4364 = vpop.f32.mrb[0].mxu0
      %v4365 = vadd.f32 %v4314, %v4364
      %v4366 = vpop.f32.mrb[0].mxu0
      %v4367 = vadd.f32 %v4316, %v4366
      %v4368 = vpop.f32.mrb[0].mxu0
      %v4369 = vadd.f32 %v4318, %v4368
      %v4370 = vpop.f32.mrb[0].mxu0
      %v4371 = vadd.f32 %v4320, %v4370
      %4372 = vmatprep.mubr.bf16.mxu0 %v1474
      %4373 = vmatmul.mubr.bf16.gmra.mrb[0].mxu0 %v1473
      %v4374 = vpop.f32.mrb[0].mxu0
      %v4375 = vadd.f32 %v4324, %v4374
      %v4376 = vpop.f32.mrb[0].mxu0
      %v4377 = vadd.f32 %v4326, %v4376
      %v4378 = vpop.f32.mrb[0].mxu0
      %v4379 = vpop.f32.mrb[0].mxu0
      %4380 = vdwg.mxu0
      %v4393 = vrot.slane %v4263, 1
      %v4394 = vrot.slane %v4265, 1
      %v4395 = vrot.slane %v4365, 1
      %v4396 = vrot.slane %v4367, 1
      %v4397 = vrot.slane %v4267, 1
      %v4398 = vsel %vm1090, %v4393, %v4397
      %v4399 = vrot.slane %v4269, 1
      %v4400 = vsel %vm1090, %v4394, %v4399
      %v4401 = vrot.slane %v4369, 1
      %v4402 = vsel %vm1090, %v4395, %v4401
      %v4403 = vrot.slane %v4371, 1
      %v4404 = vsel %vm1090, %v4396, %v4403
      %v4405 = vrot.slane %v4273, 1
      %v4406 = vsel %vm1090, %v4397, %v4405
      %v4407 = vrot.slane %v4275, 1
      %v4408 = vsel %vm1090, %v4399, %v4407
      %v4409 = vrot.slane %v4375, 1
      %v4410 = vsel %vm1090, %v4401, %v4409
      %v4411 = vrot.slane %v4377, 1
      %v4412 = vsel %vm1090, %v4403, %v4411
      %v4429 = vadd.f32 %v3392, %v4393
      %v4430 = vadd.f32 %v3393, %v4394
      %v4431 = vadd.f32 %v3394, %v4395
      %v4432 = vadd.f32 %v3395, %v4396
      %v4433 = vadd.f32 %v3396, %v4398
      %v4434 = vadd.f32 %v3397, %v4400
      %v4435 = vadd.f32 %v3398, %v4402
      %v4436 = vadd.f32 %v3399, %v4404
      %v4437 = vadd.f32 %v3400, %v4406
      %v4438 = vadd.f32 %v3401, %v4408
      %v4439 = vadd.f32 %v3402, %v4410
      %v4440 = vadd.f32 %v3403, %v4412
      %v4441 = vadd.f32 %v3404, %v4405
      %v4442 = vadd.f32 %v3405, %v4407
      %v4443 = vadd.f32 %v3406, %v4409
      %v4444 = vadd.f32 %v3407, %v4411
      %4445 = vst [vmem:[#allocation2] sm:$0x80] %v4429
      %4446 = vst [vmem:[#allocation2 + $0x8] sm:$0x80] %v4430
      %4447 = vst [vmem:[#allocation2 + $0x10] sm:$0x80] %v4431
      %4448 = vst [vmem:[#allocation2 + $0x18] sm:$0x80] %v4432
      %4449 = vst [vmem:[#allocation2 + $0x20] sm:$0xff] %v4433
      %4450 = vst [vmem:[#allocation2 + $0x28] sm:$0xff] %v4434
      %4451 = vst [vmem:[#allocation2 + $0x30] sm:$0xff] %v4435
      %4452 = vst [vmem:[#allocation2 + $0x38] sm:$0xff] %v4436
      %4453 = vst [vmem:[#allocation2 + $0x40] sm:$0xff] %v4437
      %4454 = vst [vmem:[#allocation2 + $0x48] sm:$0xff] %v4438
      %4455 = vst [vmem:[#allocation2 + $0x50] sm:$0xff] %v4439
      %4456 = vst [vmem:[#allocation2 + $0x58] sm:$0xff] %v4440
      %4457 = vst [vmem:[#allocation2 + $0x60] sm:$0x1] %v4441
      %4458 = vst [vmem:[#allocation2 + $0x68] sm:$0x1] %v4442
      %4459 = vst [vmem:[#allocation2 + $0x70] sm:$0x1] %v4443
      %4460 = vst [vmem:[#allocation2 + $0x78] sm:$0x1] %v4444
      %v4461 = vld [vmem:[#allocation2 + $0x20] sm:$0xff]
      %v4462 = vld [vmem:[#allocation2 + $0x28] sm:$0xff]
      %v4463 = vld [vmem:[#allocation2 + $0x30] sm:$0xff]
      %v4464 = vld [vmem:[#allocation2 + $0x38] sm:$0xff]
      %v4465 = vld [vmem:[#allocation2 + $0x40] sm:$0xff]
      %v4466 = vld [vmem:[#allocation2 + $0x48] sm:$0xff]
      %v4467 = vld [vmem:[#allocation2 + $0x50] sm:$0xff]
      %v4468 = vld [vmem:[#allocation2 + $0x58] sm:$0xff]
      %v4469 = vld [vmem:[#allocation2 + $0x60] sm:$0x3]
      %v4470 = vld [vmem:[#allocation2 + $0x68] sm:$0x3]
      %v4471 = vld [vmem:[#allocation2 + $0x70] sm:$0x3]
      %v4472 = vld [vmem:[#allocation2 + $0x78] sm:$0x3]
      %v4473 = vld [vmem:[%s5] sm:$0xf]
      %v4475 = vlaneseq
      %v4476 = vshrl.u32 %v4475, 7
      %v4477 = vsub.s32 0, %v4476
      %v4478 = vrot.slane %v4473, %v4477
      %v4479 = vlaneseq
      %v4480 = vshrl.u32 %v4479, 7
      %v4481 = vsub.s32 1, %v4480
      %v4482 = vrot.slane %v4473, %v4481
      %v4483 = vlaneseq
      %v4484 = vshrl.u32 %v4483, 7
      %v4485 = vsub.s32 2, %v4484
      %v4486 = vrot.slane %v4473, %v4485
      %v4487 = vlaneseq
      %v4488 = vshrl.u32 %v4487, 7
      %v4489 = vsub.s32 3, %v4488
      %v4490 = vrot.slane %v4473, %v4489
      %v4495 = vmul.f32 %v4461, %v4478
      %v4496 = vmul.f32 %v4462, %v4482
      %v4497 = vmul.f32 %v4463, %v4486
      %v4498 = vmul.f32 %v4464, %v4490
      %v4499 = vmul.f32 %v4465, %v4478
      %v4500 = vmul.f32 %v4466, %v4482
      %v4501 = vmul.f32 %v4467, %v4486
      %v4502 = vmul.f32 %v4468, %v4490
      %v4503 = vmul.f32 %v4469, %v4478
      %v4504 = vmul.f32 %v4470, %v4482
      %v4505 = vmul.f32 %v4471, %v4486
      %v4506 = vmul.f32 %v4472, %v4490
      %v4507 = vld [vmem:[%s6] sm:$0xf]
      %v4509 = vlaneseq
      %v4510 = vshrl.u32 %v4509, 7
      %v4511 = vsub.s32 0, %v4510
      %v4512 = vrot.slane %v4507, %v4511
      %v4513 = vlaneseq
      %v4514 = vshrl.u32 %v4513, 7
      %v4515 = vsub.s32 1, %v4514
      %v4516 = vrot.slane %v4507, %v4515
      %v4517 = vlaneseq
      %v4518 = vshrl.u32 %v4517, 7
      %v4519 = vsub.s32 2, %v4518
      %v4520 = vrot.slane %v4507, %v4519
      %v4521 = vlaneseq
      %v4522 = vshrl.u32 %v4521, 7
      %v4523 = vsub.s32 3, %v4522
      %v4524 = vrot.slane %v4507, %v4523
      %v4529 = vadd.f32 %v4495, %v4512
      %v4530 = vadd.f32 %v4496, %v4516
      %v4531 = vadd.f32 %v4497, %v4520
      %v4532 = vadd.f32 %v4498, %v4524
      %v4533 = vadd.f32 %v4499, %v4512
      %v4534 = vadd.f32 %v4500, %v4516
      %v4535 = vadd.f32 %v4501, %v4520
      %v4536 = vadd.f32 %v4502, %v4524
      %v4537 = vadd.f32 %v4503, %v4512
      %v4538 = vadd.f32 %v4504, %v4516
      %v4539 = vadd.f32 %v4505, %v4520
      %v4540 = vadd.f32 %v4506, %v4524
      %v4541 = vsel %vm1254, %v4529, 0.0
      %v4542 = vsel %vm1254, %v4530, 0.0
      %v4543 = vsel %vm1254, %v4531, 0.0
      %v4544 = vsel %vm1254, %v4532, 0.0
      %v4545 = vsel %vm1255, %v4533, 0.0
      %v4546 = vsel %vm1255, %v4534, 0.0
      %v4547 = vsel %vm1255, %v4535, 0.0
      %v4548 = vsel %vm1255, %v4536, 0.0
      %v4549 = vsel %vm1256, %v4537, 0.0
      %v4550 = vsel %vm1256, %v4538, 0.0
      %v4551 = vsel %vm1256, %v4539, 0.0
      %v4552 = vsel %vm1256, %v4540, 0.0
      %v4553 = vadd.f32 %v4541, %v4545
      %vm4554 = vcmask 1041408
      %v4555 = vsel %vm4554, %v4549, 0.0
      %v4556 = vadd.f32 %v4553, %v4555
      %v4557 = vrot.slane %v4556, 4
      %v4558 = vadd.f32 %v4556, %v4557
      %v4559 = vrot.slane %v4558, 2
      %v4560 = vadd.f32 %v4558, %v4559
      %v4561 = vrot.slane %v4560, 1
      %v4562 = vadd.f32 %v4560, %v4561
      %v4563 = vadd.f32 %v4542, %v4546
      %v4564 = vsel %vm4554, %v4550, 0.0
      %v4565 = vadd.f32 %v4563, %v4564
      %v4566 = vrot.slane %v4565, 4
      %v4567 = vadd.f32 %v4565, %v4566
      %v4568 = vrot.slane %v4567, 2
      %v4569 = vadd.f32 %v4567, %v4568
      %v4570 = vrot.slane %v4569, 1
      %v4571 = vadd.f32 %v4569, %v4570
      %v4572 = vadd.f32 %v4543, %v4547
      %v4573 = vsel %vm4554, %v4551, 0.0
      %v4574 = vadd.f32 %v4572, %v4573
      %v4575 = vrot.slane %v4574, 4
      %v4576 = vadd.f32 %v4574, %v4575
      %v4577 = vrot.slane %v4576, 2
      %v4578 = vadd.f32 %v4576, %v4577
      %v4579 = vrot.slane %v4578, 1
      %v4580 = vadd.f32 %v4578, %v4579
      %v4581 = vadd.f32 %v4544, %v4548
      %v4582 = vsel %vm4554, %v4552, 0.0
      %v4583 = vadd.f32 %v4581, %v4582
      %v4584 = vrot.slane %v4583, 4
      %v4585 = vadd.f32 %v4583, %v4584
      %v4586 = vrot.slane %v4585, 2
      %v4587 = vadd.f32 %v4585, %v4586
      %v4588 = vrot.slane %v4587, 1
      %v4589 = vadd.f32 %v4587, %v4588
      %4591 = vrot.lane.b32.xlu0 %v4562, 96
      %v4592 = vpop.permute.xlu0 %4591
      %v4594 = vadd.f32 %v4562, %v4592
      %4595 = vrot.lane.b32.xlu0 %v4562, 64
      %v4596 = vpop.permute.xlu0 %4595
      %v4598 = vadd.f32 %v4594, %v4596
      %4599 = vrot.lane.b32.xlu0 %v4562, 32
      %v4600 = vpop.permute.xlu0 %4599
      %v4602 = vadd.f32 %v4598, %v4600
      %v4603 = vadd.f32 %v4602, %v4571
      %4605 = vrot.lane.b32.xlu0 %v4571, 96
      %v4606 = vpop.permute.xlu0 %4605
      %v4608 = vadd.f32 %v4603, %v4606
      %4609 = vrot.lane.b32.xlu0 %v4571, 64
      %v4610 = vpop.permute.xlu0 %4609
      %v4612 = vadd.f32 %v4608, %v4610
      %4613 = vrot.lane.b32.xlu0 %v4571, 32
      %v4614 = vpop.permute.xlu0 %4613
      %v4616 = vadd.f32 %v4612, %v4614
      %v4617 = vadd.f32 %v4616, %v4580
      %4619 = vrot.lane.b32.xlu0 %v4580, 96
      %v4620 = vpop.permute.xlu0 %4619
      %v4622 = vadd.f32 %v4617, %v4620
      %4623 = vrot.lane.b32.xlu0 %v4580, 64
      %v4624 = vpop.permute.xlu0 %4623
      %v4626 = vadd.f32 %v4622, %v4624
      %4627 = vrot.lane.b32.xlu0 %v4580, 32
      %v4628 = vpop.permute.xlu0 %4627
      %v4630 = vadd.f32 %v4626, %v4628
      %v4631 = vadd.f32 %v4630, %v4589
      %4633 = vrot.lane.b32.xlu0 %v4589, 96
      %v4634 = vpop.permute.xlu0 %4633
      %v4636 = vadd.f32 %v4631, %v4634
      %4637 = vrot.lane.b32.xlu0 %v4589, 64
      %v4638 = vpop.permute.xlu0 %4637
      %v4640 = vadd.f32 %v4636, %v4638
      %4641 = vrot.lane.b32.xlu0 %v4589, 32
      %v4642 = vpop.permute.xlu0 %4641
      %v4644 = vadd.f32 %v4640, %v4642
      %v4645 = vmul.f32 %v4644, 0.00390625
      %v4646 = vld [vmem:[%s7] sm:$0x3]
      %v4647 = vlaneseq
      %v4648 = vshrl.u32 %v4647, 7
      %v4649 = vsub.s32 0, %v4648
      %v4650 = vrot.slane %v4645, %v4649
      %v4651 = vmul.f32 %v4646, %v4650
      %vm4652 = vcmask 254976
      %v4653 = vsel %vm4652, %v4651, 0.0
      %4654 = vadd.xlane.f32.xlu0 %v4653
      %v4655 = vpop.xlane.xlu0 %4654
      %v4656 = vmax.f32 %v4655, 0.0
      %v4657 = vld [vmem:[%s8] sm:$0xff]
      %v4660 = vunpack.c.l.s4 269488144
      %v4661 = vunpack.c.0.s8 %v4660
      %v4662 = vlaneseq
      %v4663 = vshrl.u32 %v4662, 7
      %v4664 = vsub.s32 %v4661, %v4663
      %v4665 = vrot.slane %v4656, %v4664
      %v4667 = vmul.f32 %v4657, %v4665
      %v4669 = vcombine.high %v4667, %v4667
      %v4671 = vunpack.c.l.s4 1983009808
      %v4672 = vunpack.c.0.s8 %v4671
      %v4673 = vlaneseq
      %v4674 = vshrl.u32 %v4673, 7
      %v4675 = vsub.s32 %v4672, %v4674
      %v4676 = vrot.slane %v4667, %v4675
      %v4678 = vunpack.c.l.s4 1983009808
      %v4679 = vunpack.c.0.s8 %v4678
      %v4680 = vlaneseq
      %v4681 = vshrl.u32 %v4680, 7
      %v4682 = vsub.s32 %v4679, %v4681
      %v4683 = vrot.slane %v4669, %v4682
      %v4684 = vcombine.high %v4676, %v4676
      %v4685 = vcombine.high %v4683, %v4683
      %v4690 = vsel %vm4554, %v4676, 0.0
      %v4691 = vrot.slane %v4690, 4
      %v4692 = vadd.f32 %v4690, %v4691
      %v4693 = vrot.slane %v4692, 2
      %v4694 = vadd.f32 %v4692, %v4693
      %v4695 = vrot.slane %v4694, 1
      %v4696 = vadd.f32 %v4694, %v4695
      %v4697 = vsel %vm4554, %v4684, 0.0
      %v4698 = vrot.slane %v4697, 4
      %v4699 = vadd.f32 %v4697, %v4698
      %v4700 = vrot.slane %v4699, 2
      %v4701 = vadd.f32 %v4699, %v4700
      %v4702 = vrot.slane %v4701, 1
      %v4703 = vadd.f32 %v4701, %v4702
      %v4704 = vsel %vm4554, %v4683, 0.0
      %v4705 = vrot.slane %v4704, 4
      %v4706 = vadd.f32 %v4704, %v4705
      %v4707 = vrot.slane %v4706, 2
      %v4708 = vadd.f32 %v4706, %v4707
      %v4709 = vrot.slane %v4708, 1
      %v4710 = vadd.f32 %v4708, %v4709
      %v4711 = vsel %vm4554, %v4685, 0.0
      %v4712 = vrot.slane %v4711, 4
      %v4713 = vadd.f32 %v4711, %v4712
      %v4714 = vrot.slane %v4713, 2
      %v4715 = vadd.f32 %v4713, %v4714
      %v4716 = vrot.slane %v4715, 1
      %v4717 = vadd.f32 %v4715, %v4716
      %v4718 = vxor.u32 %v4696, 2147483648
      %v4719 = vxor.u32 %v4703, 2147483648
      %v4720 = vxor.u32 %v4710, 2147483648
      %v4721 = vxor.u32 %v4717, 2147483648
      %v4722 = vmul.f32 %v4718, 1.442695
      %v4723 = vpow.pop %v4722
      %v4724 = vmul.f32 %v4719, 1.442695
      %v4725 = vpow.pop %v4724
      %v4726 = vmul.f32 %v4720, 1.442695
      %v4727 = vpow.pop %v4726
      %v4728 = vmul.f32 %v4721, 1.442695
      %v4729 = vpow.pop %v4728
      %v4730 = vadd.f32 %v4723, 1.0
      %v4731 = vadd.f32 %v4725, 1.0
      %v4732 = vadd.f32 %v4727, 1.0
      %v4733 = vadd.f32 %v4729, 1.0
      %v4734 = vrcp.pop %v4730
      %v4735 = vmul.f32 1.0, %v4734
      %v4736 = vrcp.pop %v4731
      %v4737 = vmul.f32 1.0, %v4736
      %v4738 = vrcp.pop %v4732
      %v4739 = vmul.f32 1.0, %v4738
      %v4740 = vrcp.pop %v4733
      %v4741 = vmul.f32 1.0, %v4740
      %v4742 = vmul.f32 %v4529, %v4735
      %v4743 = vmul.f32 %v4530, %v4737
      %v4744 = vmul.f32 %v4531, %v4739
      %v4745 = vmul.f32 %v4532, %v4741
      %v4746 = vmul.f32 %v4533, %v4735
      %v4747 = vmul.f32 %v4534, %v4737
      %v4748 = vmul.f32 %v4535, %v4739
      %v4749 = vmul.f32 %v4536, %v4741
      %v4750 = vmul.f32 %v4537, %v4735
      %v4751 = vmul.f32 %v4538, %v4737
      %v4752 = vmul.f32 %v4539, %v4739
      %v4753 = vmul.f32 %v4540, %v4741
      %4754 = vst [vmem:[%s339] sm:$0xff] %v4742
      %4755 = vst [vmem:[%s339 + $0x8] sm:$0xff] %v4743
      %4756 = vst [vmem:[%s339 + $0x10] sm:$0xff] %v4744
      %4757 = vst [vmem:[%s339 + $0x18] sm:$0xff] %v4745
      %4758 = vst [vmem:[%s339 + $0x20] sm:$0xff] %v4746
      %4759 = vst [vmem:[%s339 + $0x28] sm:$0xff] %v4747
      %4760 = vst [vmem:[%s339 + $0x30] sm:$0xff] %v4748
      %4761 = vst [vmem:[%s339 + $0x38] sm:$0xff] %v4749
      %4762 = vst [vmem:[%s339 + $0x40] sm:$0x3] %v4750
      %4763 = vst [vmem:[%s339 + $0x48] sm:$0x3] %v4751
      %4764 = vst [vmem:[%s339 + $0x50] sm:$0x3] %v4752
      %4765 = vst [vmem:[%s339 + $0x58] sm:$0x3] %v4753
      %s4766 = scalar_lea.vmem %s332, 12
      %v4767 = vld [vmem:[%s4766] sm:$0xf]
      %v4768 = vld [vmem:[%s4766 + $0x4] sm:$0xf]
      %v4769 = vld [vmem:[%s4766 + $0x8] sm:$0x1]
      %v4770 = vld [vmem:[%s1] sm:$0xff]
      %v4771 = vld [vmem:[%s1 + $0x8] sm:$0xff]
      %v4772 = vld [vmem:[%s1 + $0x10] sm:$0xff]
      %v4773 = vld [vmem:[%s1 + $0x18] sm:$0xff]
      %v4774 = vld [vmem:[%s1 + $0x20] sm:$0xff]
      %v4775 = vld [vmem:[%s1 + $0x28] sm:$0xff]
      %v4776 = vld [vmem:[%s1 + $0x30] sm:$0xff]
      %v4777 = vld [vmem:[%s1 + $0x38] sm:$0xff]
      %v4778 = vld [vmem:[%s1 + $0x40] sm:$0xff]
      %v4779 = vld [vmem:[%s1 + $0x48] sm:$0xff]
      %v4780 = vld [vmem:[%s1 + $0x50] sm:$0xff]
      %v4781 = vld [vmem:[%s1 + $0x58] sm:$0xff]
      %v4782 = vld [vmem:[%s1 + $0x60] sm:$0xff]
      %v4783 = vld [vmem:[%s1 + $0x68] sm:$0xff]
      %v4784 = vld [vmem:[%s1 + $0x70] sm:$0xff]
      %v4785 = vld [vmem:[%s1 + $0x78] sm:$0xff]
      %v4789 = vunpack.c.l.b16 %v4767
      %v4790 = vunpack.c.l.b16 %v4768
      %v4791 = vunpack.c.l.b16 %v4769
      %v4792 = vpack.c.b16 %v4790, %v4789
      %v4793 = vpack.c.b16 %v4791, %v4791
      %v4810 = vunpack.c.l.b16 %v4770
      %v4811 = vunpack.c.h.b16 %v4770
      %v4812 = vunpack.c.l.b16 %v4771
      %v4813 = vunpack.c.h.b16 %v4771
      %v4814 = vunpack.c.l.b16 %v4772
      %v4815 = vunpack.c.h.b16 %v4772
      %v4816 = vunpack.c.l.b16 %v4773
      %v4817 = vunpack.c.h.b16 %v4773
      %v4818 = vunpack.c.l.b16 %v4774
      %v4819 = vunpack.c.h.b16 %v4774
      %v4820 = vunpack.c.l.b16 %v4775
      %v4821 = vunpack.c.h.b16 %v4775
      %v4822 = vunpack.c.l.b16 %v4776
      %v4823 = vunpack.c.h.b16 %v4776
      %v4824 = vunpack.c.l.b16 %v4777
      %v4825 = vunpack.c.h.b16 %v4777
      %v4826 = vunpack.c.l.b16 %v4778
      %v4827 = vunpack.c.h.b16 %v4778
      %v4828 = vunpack.c.l.b16 %v4779
      %v4829 = vunpack.c.h.b16 %v4779
      %v4830 = vunpack.c.l.b16 %v4780
      %v4831 = vunpack.c.h.b16 %v4780
      %v4832 = vunpack.c.l.b16 %v4781
      %v4833 = vunpack.c.h.b16 %v4781
      %v4834 = vunpack.c.l.b16 %v4782
      %v4835 = vunpack.c.h.b16 %v4782
      %v4836 = vunpack.c.l.b16 %v4783
      %v4837 = vunpack.c.h.b16 %v4783
      %v4838 = vunpack.c.l.b16 %v4784
      %v4839 = vunpack.c.h.b16 %v4784
      %v4840 = vunpack.c.l.b16 %v4785
      %v4841 = vunpack.c.h.b16 %v4785
      %v4842 = vpack.c.b16 %v4814, %v4810
      %v4843 = vpack.c.b16 %v4815, %v4811
      %v4844 = vpack.c.b16 %v4816, %v4812
      %v4845 = vpack.c.b16 %v4817, %v4813
      %v4846 = vpack.c.b16 %v4822, %v4818
      %v4847 = vpack.c.b16 %v4823, %v4819
      %v4848 = vpack.c.b16 %v4824, %v4820
      %v4849 = vpack.c.b16 %v4825, %v4821
      %v4850 = vpack.c.b16 %v4830, %v4826
      %v4851 = vpack.c.b16 %v4831, %v4827
      %v4852 = vpack.c.b16 %v4832, %v4828
      %v4853 = vpack.c.b16 %v4833, %v4829
      %v4854 = vpack.c.b16 %v4838, %v4834
      %v4855 = vpack.c.b16 %v4839, %v4835
      %v4856 = vpack.c.b16 %v4840, %v4836
      %v4857 = vpack.c.b16 %v4841, %v4837
      %v4875 = vsel %vm462, %v4792, 0
      %v4878 = vsel %vm462, %v4793, 0
      %4880 = vmatprep.subr.bf16.mxu0 %v4843
      %4881 = vmatpush1.bf16.msra.mxu0 %v4842
      %4882 = vmatprep.subr.bf16.mxu0 %v4847
      %4883 = vmatpush1.bf16.msra.mxu0 %v4846
      %4884 = vmatprep.subr.bf16.mxu0 %v4851
      %4885 = vmatpush1.bf16.msra.mxu0 %v4850
      %4886 = vmatprep.subr.bf16.mxu0 %v4855
      %4887 = vmatpush1.bf16.msra.mxu0 %v4854
      %4888 = vmatprep.subr.bf16.mxu0 0
      %4889 = vmatpush1.bf16.msra.mxu0 0
      %4890 = vmatprep.subr.bf16.mxu0 0
      %4891 = vmatpush1.bf16.msra.mxu0 0
      %4892 = vmatprep.subr.bf16.mxu0 0
      %4893 = vmatpush1.bf16.msra.mxu0 0
      %4894 = vmatprep.subr.bf16.mxu0 0
      %4895 = vmatpush1.bf16.msra.mxu0 0
      %4896 = vmatprep.subr.bf16.mxu0 0
      %4897 = vmatpush1.bf16.msra.mxu0 0
      %4898 = vmatprep.subr.bf16.mxu0 0
      %4899 = vmatpush1.bf16.msra.mxu0 0
      %4900 = vmatprep.subr.bf16.mxu0 0
      %4901 = vmatpush1.bf16.msra.mxu0 0
      %4902 = vmatprep.subr.bf16.mxu0 0
      %4903 = vmatpush1.bf16.msra.mxu0 0
      %4904 = vmatprep.subr.bf16.mxu0 0
      %4905 = vmatpush1.bf16.msra.mxu0 0
      %4906 = vmatprep.subr.bf16.mxu0 0
      %4907 = vmatpush1.bf16.msra.mxu0 0
      %4908 = vmatprep.subr.bf16.mxu0 0
      %4909 = vmatpush1.bf16.msra.mxu0 0
      %4910 = vmatprep.subr.bf16.mxu0 0
      %4911 = vmatpush1.bf16.msra.mxu0 0
      %4912 = vmatprep.mubr.bf16.mxu0 0
      %4913 = vmatmul.mubr.bf16.gmra.mrb[0].mxu0 %v4875
      %v4914 = vpop.f32.mrb[0].mxu0
      %v4915 = vadd.f32 0.0, %v4914
      %v4916 = vpop.f32.mrb[0].mxu0
      %v4917 = vadd.f32 0.0, %v4916
      %v4918 = vpop.f32.mrb[0].mxu0
      %v4919 = vadd.f32 0.0, %v4918
      %v4920 = vpop.f32.mrb[0].mxu0
      %v4921 = vadd.f32 0.0, %v4920
      %4922 = vmatprep.mubr.bf16.mxu0 0
      %4923 = vmatmul.mubr.bf16.gmra.mrb[0].mxu0 %v4878
      %v4924 = vpop.f32.mrb[0].mxu0
      %v4925 = vadd.f32 0.0, %v4924
      %v4926 = vpop.f32.mrb[0].mxu0
      %v4927 = vadd.f32 0.0, %v4926
      %v4928 = vpop.f32.mrb[0].mxu0
      %v4929 = vpop.f32.mrb[0].mxu0
      %4930 = vdwg.mxu0
      %4931 = vmatprep.subr.bf16.mxu0 %v4845
      %4932 = vmatpush1.bf16.msra.mxu0 %v4844
      %4933 = vmatprep.subr.bf16.mxu0 %v4849
      %4934 = vmatpush1.bf16.msra.mxu0 %v4848
      %4935 = vmatprep.subr.bf16.mxu0 %v4853
      %4936 = vmatpush1.bf16.msra.mxu0 %v4852
      %4937 = vmatprep.subr.bf16.mxu0 %v4857
      %4938 = vmatpush1.bf16.msra.mxu0 %v4856
      %4939 = vmatprep.subr.bf16.mxu0 0
      %4940 = vmatpush1.bf16.msra.mxu0 0
      %4941 = vmatprep.subr.bf16.mxu0 0
      %4942 = vmatpush1.bf16.msra.mxu0 0
      %4943 = vmatprep.subr.bf16.mxu0 0
      %4944 = vmatpush1.bf16.msra.mxu0 0
      %4945 = vmatprep.subr.bf16.mxu0 0
      %4946 = vmatpush1.bf16.msra.mxu0 0
      %4947 = vmatprep.subr.bf16.mxu0 0
      %4948 = vmatpush1.bf16.msra.mxu0 0
      %4949 = vmatprep.subr.bf16.mxu0 0
      %4950 = vmatpush1.bf16.msra.mxu0 0
      %4951 = vmatprep.subr.bf16.mxu0 0
      %4952 = vmatpush1.bf16.msra.mxu0 0
      %4953 = vmatprep.subr.bf16.mxu0 0
      %4954 = vmatpush1.bf16.msra.mxu0 0
      %4955 = vmatprep.subr.bf16.mxu0 0
      %4956 = vmatpush1.bf16.msra.mxu0 0
      %4957 = vmatprep.subr.bf16.mxu0 0
      %4958 = vmatpush1.bf16.msra.mxu0 0
      %4959 = vmatprep.subr.bf16.mxu0 0
      %4960 = vmatpush1.bf16.msra.mxu0 0
      %4961 = vmatprep.subr.bf16.mxu0 0
      %4962 = vmatpush1.bf16.msra.mxu0 0
      %4963 = vmatprep.mubr.bf16.mxu0 0
      %4964 = vmatmul.mubr.bf16.gmra.mrb[0].mxu0 %v4875
      %v4965 = vpop.f32.mrb[0].mxu0
      %v4966 = vadd.f32 0.0, %v4965
      %v4967 = vpop.f32.mrb[0].mxu0
      %v4968 = vadd.f32 0.0, %v4967
      %v4969 = vpop.f32.mrb[0].mxu0
      %v4970 = vadd.f32 0.0, %v4969
      %v4971 = vpop.f32.mrb[0].mxu0
      %v4972 = vadd.f32 0.0, %v4971
      %4973 = vmatprep.mubr.bf16.mxu0 0
      %4974 = vmatmul.mubr.bf16.gmra.mrb[0].mxu0 %v4878
      %v4975 = vpop.f32.mrb[0].mxu0
      %v4976 = vadd.f32 0.0, %v4975
      %v4977 = vpop.f32.mrb[0].mxu0
      %v4978 = vadd.f32 0.0, %v4977
      %v4979 = vpop.f32.mrb[0].mxu0
      %v4980 = vpop.f32.mrb[0].mxu0
      %4981 = vdwg.mxu0
      %v4994 = vrot.slane %v4915, 7
      %v4995 = vrot.slane %v4917, 7
      %v4996 = vrot.slane %v4966, 7
      %v4997 = vrot.slane %v4968, 7
      %v4998 = vrot.slane %v4919, 7
      %v4999 = vsel %vm583, %v4994, %v4998
      %v5000 = vrot.slane %v4921, 7
      %v5001 = vsel %vm583, %v4995, %v5000
      %v5002 = vrot.slane %v4970, 7
      %v5003 = vsel %vm583, %v4996, %v5002
      %v5004 = vrot.slane %v4972, 7
      %v5005 = vsel %vm583, %v4997, %v5004
      %v5006 = vrot.slane %v4925, 7
      %v5007 = vsel %vm583, %v4998, %v5006
      %v5008 = vrot.slane %v4927, 7
      %v5009 = vsel %vm583, %v5000, %v5008
      %v5010 = vrot.slane %v4976, 7
      %v5011 = vsel %vm583, %v5002, %v5010
      %v5012 = vrot.slane %v4978, 7
      %v5013 = vsel %vm583, %v5004, %v5012
      %5026 = vst [vmem:[#allocation2 + $0x20] sm:$0xfe] %v4994
      %5027 = vst [vmem:[#allocation2 + $0x28] sm:$0xfe] %v4995
      %5028 = vst [vmem:[#allocation2 + $0x30] sm:$0xfe] %v4996
      %5029 = vst [vmem:[#allocation2 + $0x38] sm:$0xfe] %v4997
      %5030 = vst [vmem:[#allocation2 + $0x40] sm:$0xff] %v4999
      %5031 = vst [vmem:[#allocation2 + $0x48] sm:$0xff] %v5001
      %5032 = vst [vmem:[#allocation2 + $0x50] sm:$0xff] %v5003
      %5033 = vst [vmem:[#allocation2 + $0x58] sm:$0xff] %v5005
      %5034 = vst [vmem:[#allocation2 + $0x60] sm:$0x7] %v5007
      %5035 = vst [vmem:[#allocation2 + $0x68] sm:$0x7] %v5009
      %5036 = vst [vmem:[#allocation2 + $0x70] sm:$0x7] %v5011
      %5037 = vst [vmem:[#allocation2 + $0x78] sm:$0x7] %v5013
      %v5038 = vld [vmem:[#allocation2 + $0x20] sm:$0xff]
      %v5039 = vld [vmem:[#allocation2 + $0x28] sm:$0xff]
      %v5040 = vld [vmem:[#allocation2 + $0x30] sm:$0xff]
      %v5041 = vld [vmem:[#allocation2 + $0x38] sm:$0xff]
      %v5042 = vld [vmem:[#allocation2 + $0x40] sm:$0xff]
      %v5043 = vld [vmem:[#allocation2 + $0x48] sm:$0xff]
      %v5044 = vld [vmem:[#allocation2 + $0x50] sm:$0xff]
      %v5045 = vld [vmem:[#allocation2 + $0x58] sm:$0xff]
      %v5046 = vld [vmem:[#allocation2 + $0x60] sm:$0x3]
      %v5047 = vld [vmem:[#allocation2 + $0x68] sm:$0x3]
      %v5048 = vld [vmem:[#allocation2 + $0x70] sm:$0x3]
      %v5049 = vld [vmem:[#allocation2 + $0x78] sm:$0x3]
      %v5050 = vld [vmem:[%s640] sm:$0xff]
      %v5051 = vld [vmem:[%s640 + $0x8] sm:$0xff]
      %v5052 = vld [vmem:[%s640 + $0x10] sm:$0xff]
      %v5053 = vld [vmem:[%s640 + $0x18] sm:$0xff]
      %v5054 = vld [vmem:[%s640 + $0x20] sm:$0xff]
      %v5055 = vld [vmem:[%s640 + $0x28] sm:$0xff]
      %v5056 = vld [vmem:[%s640 + $0x30] sm:$0xff]
      %v5057 = vld [vmem:[%s640 + $0x38] sm:$0xff]
      %v5058 = vld [vmem:[%s640 + $0x40] sm:$0xff]
      %v5059 = vld [vmem:[%s640 + $0x48] sm:$0xff]
      %v5060 = vld [vmem:[%s640 + $0x50] sm:$0xff]
      %v5061 = vld [vmem:[%s640 + $0x58] sm:$0xff]
      %v5062 = vld [vmem:[%s640 + $0x60] sm:$0xff]
      %v5063 = vld [vmem:[%s640 + $0x68] sm:$0xff]
      %v5064 = vld [vmem:[%s640 + $0x70] sm:$0xff]
      %v5065 = vld [vmem:[%s640 + $0x78] sm:$0xff]
      %v5082 = vunpack.c.l.b16 %v5050
      %v5083 = vunpack.c.h.b16 %v5050
      %v5084 = vunpack.c.l.b16 %v5051
      %v5085 = vunpack.c.h.b16 %v5051
      %v5086 = vunpack.c.l.b16 %v5052
      %v5087 = vunpack.c.h.b16 %v5052
      %v5088 = vunpack.c.l.b16 %v5053
      %v5089 = vunpack.c.h.b16 %v5053
      %v5090 = vunpack.c.l.b16 %v5054
      %v5091 = vunpack.c.h.b16 %v5054
      %v5092 = vunpack.c.l.b16 %v5055
      %v5093 = vunpack.c.h.b16 %v5055
      %v5094 = vunpack.c.l.b16 %v5056
      %v5095 = vunpack.c.h.b16 %v5056
      %v5096 = vunpack.c.l.b16 %v5057
      %v5097 = vunpack.c.h.b16 %v5057
      %v5098 = vunpack.c.l.b16 %v5058
      %v5099 = vunpack.c.h.b16 %v5058
      %v5100 = vunpack.c.l.b16 %v5059
      %v5101 = vunpack.c.h.b16 %v5059
      %v5102 = vunpack.c.l.b16 %v5060
      %v5103 = vunpack.c.h.b16 %v5060
      %v5104 = vunpack.c.l.b16 %v5061
      %v5105 = vunpack.c.h.b16 %v5061
      %v5106 = vunpack.c.l.b16 %v5062
      %v5107 = vunpack.c.h.b16 %v5062
      %v5108 = vunpack.c.l.b16 %v5063
      %v5109 = vunpack.c.h.b16 %v5063
      %v5110 = vunpack.c.l.b16 %v5064
      %v5111 = vunpack.c.h.b16 %v5064
      %v5112 = vunpack.c.l.b16 %v5065
      %v5113 = vunpack.c.h.b16 %v5065
      %v5114 = vpack.c.b16 %v5086, %v5082
      %v5115 = vpack.c.b16 %v5087, %v5083
      %v5116 = vpack.c.b16 %v5088, %v5084
      %v5117 = vpack.c.b16 %v5089, %v5085
      %v5118 = vpack.c.b16 %v5094, %v5090
      %v5119 = vpack.c.b16 %v5095, %v5091
      %v5120 = vpack.c.b16 %v5096, %v5092
      %v5121 = vpack.c.b16 %v5097, %v5093
      %v5122 = vpack.c.b16 %v5102, %v5098
      %v5123 = vpack.c.b16 %v5103, %v5099
      %v5124 = vpack.c.b16 %v5104, %v5100
      %v5125 = vpack.c.b16 %v5105, %v5101
      %v5126 = vpack.c.b16 %v5110, %v5106
      %v5127 = vpack.c.b16 %v5111, %v5107
      %v5128 = vpack.c.b16 %v5112, %v5108
      %v5129 = vpack.c.b16 %v5113, %v5109
      %5146 = vmatprep.subr.bf16.mxu0 %v5115
      %5147 = vmatpush1.bf16.msra.mxu0 %v5114
      %5148 = vmatprep.subr.bf16.mxu0 %v5119
      %5149 = vmatpush1.bf16.msra.mxu0 %v5118
      %5150 = vmatprep.subr.bf16.mxu0 %v5123
      %5151 = vmatpush1.bf16.msra.mxu0 %v5122
      %5152 = vmatprep.subr.bf16.mxu0 %v5127
      %5153 = vmatpush1.bf16.msra.mxu0 %v5126
      %5154 = vmatprep.subr.bf16.mxu0 0
      %5155 = vmatpush1.bf16.msra.mxu0 0
      %5156 = vmatprep.subr.bf16.mxu0 0
      %5157 = vmatpush1.bf16.msra.mxu0 0
      %5158 = vmatprep.subr.bf16.mxu0 0
      %5159 = vmatpush1.bf16.msra.mxu0 0
      %5160 = vmatprep.subr.bf16.mxu0 0
      %5161 = vmatpush1.bf16.msra.mxu0 0
      %5162 = vmatprep.subr.bf16.mxu0 0
      %5163 = vmatpush1.bf16.msra.mxu0 0
      %5164 = vmatprep.subr.bf16.mxu0 0
      %5165 = vmatpush1.bf16.msra.mxu0 0
      %5166 = vmatprep.subr.bf16.mxu0 0
      %5167 = vmatpush1.bf16.msra.mxu0 0
      %5168 = vmatprep.subr.bf16.mxu0 0
      %5169 = vmatpush1.bf16.msra.mxu0 0
      %5170 = vmatprep.subr.bf16.mxu0 0
      %5171 = vmatpush1.bf16.msra.mxu0 0
      %5172 = vmatprep.subr.bf16.mxu0 0
      %5173 = vmatpush1.bf16.msra.mxu0 0
      %5174 = vmatprep.subr.bf16.mxu0 0
      %5175 = vmatpush1.bf16.msra.mxu0 0
      %5176 = vmatprep.subr.bf16.mxu0 0
      %5177 = vmatpush1.bf16.msra.mxu0 0
      %5178 = vmatprep.mubr.bf16.mxu0 0
      %5179 = vmatmul.mubr.bf16.gmra.mrb[0].mxu0 %v4875
      %v5180 = vpop.f32.mrb[0].mxu0
      %v5181 = vadd.f32 0.0, %v5180
      %v5182 = vpop.f32.mrb[0].mxu0
      %v5183 = vadd.f32 0.0, %v5182
      %v5184 = vpop.f32.mrb[0].mxu0
      %v5185 = vadd.f32 0.0, %v5184
      %v5186 = vpop.f32.mrb[0].mxu0
      %v5187 = vadd.f32 0.0, %v5186
      %5188 = vmatprep.mubr.bf16.mxu0 0
      %5189 = vmatmul.mubr.bf16.gmra.mrb[0].mxu0 %v4878
      %v5190 = vpop.f32.mrb[0].mxu0
      %v5191 = vadd.f32 0.0, %v5190
      %v5192 = vpop.f32.mrb[0].mxu0
      %v5193 = vadd.f32 0.0, %v5192
      %v5194 = vpop.f32.mrb[0].mxu0
      %v5195 = vpop.f32.mrb[0].mxu0
      %5196 = vdwg.mxu0
      %5197 = vmatprep.subr.bf16.mxu0 %v5117
      %5198 = vmatpush1.bf16.msra.mxu0 %v5116
      %5199 = vmatprep.subr.bf16.mxu0 %v5121
      %5200 = vmatpush1.bf16.msra.mxu0 %v5120
      %5201 = vmatprep.subr.bf16.mxu0 %v5125
      %5202 = vmatpush1.bf16.msra.mxu0 %v5124
      %5203 = vmatprep.subr.bf16.mxu0 %v5129
      %5204 = vmatpush1.bf16.msra.mxu0 %v5128
      %5205 = vmatprep.subr.bf16.mxu0 0
      %5206 = vmatpush1.bf16.msra.mxu0 0
      %5207 = vmatprep.subr.bf16.mxu0 0
      %5208 = vmatpush1.bf16.msra.mxu0 0
      %5209 = vmatprep.subr.bf16.mxu0 0
      %5210 = vmatpush1.bf16.msra.mxu0 0
      %5211 = vmatprep.subr.bf16.mxu0 0
      %5212 = vmatpush1.bf16.msra.mxu0 0
      %5213 = vmatprep.subr.bf16.mxu0 0
      %5214 = vmatpush1.bf16.msra.mxu0 0
      %5215 = vmatprep.subr.bf16.mxu0 0
      %5216 = vmatpush1.bf16.msra.mxu0 0
      %5217 = vmatprep.subr.bf16.mxu0 0
      %5218 = vmatpush1.bf16.msra.mxu0 0
      %5219 = vmatprep.subr.bf16.mxu0 0
      %5220 = vmatpush1.bf16.msra.mxu0 0
      %5221 = vmatprep.subr.bf16.mxu0 0
      %5222 = vmatpush1.bf16.msra.mxu0 0
      %5223 = vmatprep.subr.bf16.mxu0 0
      %5224 = vmatpush1.bf16.msra.mxu0 0
      %5225 = vmatprep.subr.bf16.mxu0 0
      %5226 = vmatpush1.bf16.msra.mxu0 0
      %5227 = vmatprep.subr.bf16.mxu0 0
      %5228 = vmatpush1.bf16.msra.mxu0 0
      %5229 = vmatprep.mubr.bf16.mxu0 0
      %5230 = vmatmul.mubr.bf16.gmra.mrb[0].mxu0 %v4875
      %v5231 = vpop.f32.mrb[0].mxu0
      %v5232 = vadd.f32 0.0, %v5231
      %v5233 = vpop.f32.mrb[0].mxu0
      %v5234 = vadd.f32 0.0, %v5233
      %v5235 = vpop.f32.mrb[0].mxu0
      %v5236 = vadd.f32 0.0, %v5235
      %v5237 = vpop.f32.mrb[0].mxu0
      %v5238 = vadd.f32 0.0, %v5237
      %5239 = vmatprep.mubr.bf16.mxu0 0
      %5240 = vmatmul.mubr.bf16.gmra.mrb[0].mxu0 %v4878
      %v5241 = vpop.f32.mrb[0].mxu0
      %v5242 = vadd.f32 0.0, %v5241
      %v5243 = vpop.f32.mrb[0].mxu0
      %v5244 = vadd.f32 0.0, %v5243
      %v5245 = vpop.f32.mrb[0].mxu0
      %v5246 = vpop.f32.mrb[0].mxu0
      %5247 = vdwg.mxu0
      %v5248 = vadd.f32 %v5038, %v5181
      %v5249 = vadd.f32 %v5039, %v5183
      %v5250 = vadd.f32 %v5040, %v5232
      %v5251 = vadd.f32 %v5041, %v5234
      %v5252 = vadd.f32 %v5042, %v5185
      %v5253 = vadd.f32 %v5043, %v5187
      %v5254 = vadd.f32 %v5044, %v5236
      %v5255 = vadd.f32 %v5045, %v5238
      %v5256 = vadd.f32 %v5046, %v5191
      %v5257 = vadd.f32 %v5047, %v5193
      %v5258 = vadd.f32 %v5048, %v5242
      %v5259 = vadd.f32 %v5049, %v5244
      %5260 = vst [vmem:[#allocation2 + $0x20] sm:$0xff] %v5248
      %5261 = vst [vmem:[#allocation2 + $0x28] sm:$0xff] %v5249
      %5262 = vst [vmem:[#allocation2 + $0x30] sm:$0xff] %v5250
      %5263 = vst [vmem:[#allocation2 + $0x38] sm:$0xff] %v5251
      %5264 = vst [vmem:[#allocation2 + $0x40] sm:$0xff] %v5252
      %5265 = vst [vmem:[#allocation2 + $0x48] sm:$0xff] %v5253
      %5266 = vst [vmem:[#allocation2 + $0x50] sm:$0xff] %v5254
      %5267 = vst [vmem:[#allocation2 + $0x58] sm:$0xff] %v5255
      %5268 = vst [vmem:[#allocation2 + $0x60] sm:$0x3] %v5256
      %5269 = vst [vmem:[#allocation2 + $0x68] sm:$0x3] %v5257
      %5270 = vst [vmem:[#allocation2 + $0x70] sm:$0x3] %v5258
      %5271 = vst [vmem:[#allocation2 + $0x78] sm:$0x3] %v5259
      %v5272 = vld [vmem:[#allocation2] sm:$0x80]
      %v5273 = vld [vmem:[#allocation2 + $0x8] sm:$0x80]
      %v5274 = vld [vmem:[#allocation2 + $0x10] sm:$0x80]
      %v5275 = vld [vmem:[#allocation2 + $0x18] sm:$0x80]
      %v5276 = vld [vmem:[#allocation2 + $0x20] sm:$0xff]
      %v5277 = vld [vmem:[#allocation2 + $0x28] sm:$0xff]
      %v5278 = vld [vmem:[#allocation2 + $0x30] sm:$0xff]
      %v5279 = vld [vmem:[#allocation2 + $0x38] sm:$0xff]
      %v5280 = vld [vmem:[#allocation2 + $0x40] sm:$0xff]
      %v5281 = vld [vmem:[#allocation2 + $0x48] sm:$0xff]
      %v5282 = vld [vmem:[#allocation2 + $0x50] sm:$0xff]
      %v5283 = vld [vmem:[#allocation2 + $0x58] sm:$0xff]
      %v5284 = vld [vmem:[#allocation2 + $0x60] sm:$0x1]
      %v5285 = vld [vmem:[#allocation2 + $0x68] sm:$0x1]
      %v5286 = vld [vmem:[#allocation2 + $0x70] sm:$0x1]
      %v5287 = vld [vmem:[#allocation2 + $0x78] sm:$0x1]
      %v5288 = vld [vmem:[%s879] sm:$0xff]
      %v5289 = vld [vmem:[%s879 + $0x8] sm:$0xff]
      %v5290 = vld [vmem:[%s879 + $0x10] sm:$0xff]
      %v5291 = vld [vmem:[%s879 + $0x18] sm:$0xff]
      %v5292 = vld [vmem:[%s879 + $0x20] sm:$0xff]
      %v5293 = vld [vmem:[%s879 + $0x28] sm:$0xff]
      %v5294 = vld [vmem:[%s879 + $0x30] sm:$0xff]
      %v5295 = vld [vmem:[%s879 + $0x38] sm:$0xff]
      %v5296 = vld [vmem:[%s879 + $0x40] sm:$0xff]
      %v5297 = vld [vmem:[%s879 + $0x48] sm:$0xff]
      %v5298 = vld [vmem:[%s879 + $0x50] sm:$0xff]
      %v5299 = vld [vmem:[%s879 + $0x58] sm:$0xff]
      %v5300 = vld [vmem:[%s879 + $0x60] sm:$0xff]
      %v5301 = vld [vmem:[%s879 + $0x68] sm:$0xff]
      %v5302 = vld [vmem:[%s879 + $0x70] sm:$0xff]
      %v5303 = vld [vmem:[%s879 + $0x78] sm:$0xff]
      %v5320 = vunpack.c.l.b16 %v5288
      %v5321 = vunpack.c.h.b16 %v5288
      %v5322 = vunpack.c.l.b16 %v5289
      %v5323 = vunpack.c.h.b16 %v5289
      %v5324 = vunpack.c.l.b16 %v5290
      %v5325 = vunpack.c.h.b16 %v5290
      %v5326 = vunpack.c.l.b16 %v5291
      %v5327 = vunpack.c.h.b16 %v5291
      %v5328 = vunpack.c.l.b16 %v5292
      %v5329 = vunpack.c.h.b16 %v5292
      %v5330 = vunpack.c.l.b16 %v5293
      %v5331 = vunpack.c.h.b16 %v5293
      %v5332 = vunpack.c.l.b16 %v5294
      %v5333 = vunpack.c.h.b16 %v5294
      %v5334 = vunpack.c.l.b16 %v5295
      %v5335 = vunpack.c.h.b16 %v5295
      %v5336 = vunpack.c.l.b16 %v5296
      %v5337 = vunpack.c.h.b16 %v5296
      %v5338 = vunpack.c.l.b16 %v5297
      %v5339 = vunpack.c.h.b16 %v5297
      %v5340 = vunpack.c.l.b16 %v5298
      %v5341 = vunpack.c.h.b16 %v5298
      %v5342 = vunpack.c.l.b16 %v5299
      %v5343 = vunpack.c.h.b16 %v5299
      %v5344 = vunpack.c.l.b16 %v5300
      %v5345 = vunpack.c.h.b16 %v5300
      %v5346 = vunpack.c.l.b16 %v5301
      %v5347 = vunpack.c.h.b16 %v5301
      %v5348 = vunpack.c.l.b16 %v5302
      %v5349 = vunpack.c.h.b16 %v5302
      %v5350 = vunpack.c.l.b16 %v5303
      %v5351 = vunpack.c.h.b16 %v5303
      %v5352 = vpack.c.b16 %v5324, %v5320
      %v5353 = vpack.c.b16 %v5325, %v5321
      %v5354 = vpack.c.b16 %v5326, %v5322
      %v5355 = vpack.c.b16 %v5327, %v5323
      %v5356 = vpack.c.b16 %v5332, %v5328
      %v5357 = vpack.c.b16 %v5333, %v5329
      %v5358 = vpack.c.b16 %v5334, %v5330
      %v5359 = vpack.c.b16 %v5335, %v5331
      %v5360 = vpack.c.b16 %v5340, %v5336
      %v5361 = vpack.c.b16 %v5341, %v5337
      %v5362 = vpack.c.b16 %v5342, %v5338
      %v5363 = vpack.c.b16 %v5343, %v5339
      %v5364 = vpack.c.b16 %v5348, %v5344
      %v5365 = vpack.c.b16 %v5349, %v5345
      %v5366 = vpack.c.b16 %v5350, %v5346
      %v5367 = vpack.c.b16 %v5351, %v5347
      %5384 = vmatprep.subr.bf16.mxu0 %v5353
      %5385 = vmatpush1.bf16.msra.mxu0 %v5352
      %5386 = vmatprep.subr.bf16.mxu0 %v5357
      %5387 = vmatpush1.bf16.msra.mxu0 %v5356
      %5388 = vmatprep.subr.bf16.mxu0 %v5361
      %5389 = vmatpush1.bf16.msra.mxu0 %v5360
      %5390 = vmatprep.subr.bf16.mxu0 %v5365
      %5391 = vmatpush1.bf16.msra.mxu0 %v5364
      %5392 = vmatprep.subr.bf16.mxu0 0
      %5393 = vmatpush1.bf16.msra.mxu0 0
      %5394 = vmatprep.subr.bf16.mxu0 0
      %5395 = vmatpush1.bf16.msra.mxu0 0
      %5396 = vmatprep.subr.bf16.mxu0 0
      %5397 = vmatpush1.bf16.msra.mxu0 0
      %5398 = vmatprep.subr.bf16.mxu0 0
      %5399 = vmatpush1.bf16.msra.mxu0 0
      %5400 = vmatprep.subr.bf16.mxu0 0
      %5401 = vmatpush1.bf16.msra.mxu0 0
      %5402 = vmatprep.subr.bf16.mxu0 0
      %5403 = vmatpush1.bf16.msra.mxu0 0
      %5404 = vmatprep.subr.bf16.mxu0 0
      %5405 = vmatpush1.bf16.msra.mxu0 0
      %5406 = vmatprep.subr.bf16.mxu0 0
      %5407 = vmatpush1.bf16.msra.mxu0 0
      %5408 = vmatprep.subr.bf16.mxu0 0
      %5409 = vmatpush1.bf16.msra.mxu0 0
      %5410 = vmatprep.subr.bf16.mxu0 0
      %5411 = vmatpush1.bf16.msra.mxu0 0
      %5412 = vmatprep.subr.bf16.mxu0 0
      %5413 = vmatpush1.bf16.msra.mxu0 0
      %5414 = vmatprep.subr.bf16.mxu0 0
      %5415 = vmatpush1.bf16.msra.mxu0 0
      %5416 = vmatprep.mubr.bf16.mxu0 0
      %5417 = vmatmul.mubr.bf16.gmra.mrb[0].mxu0 %v4875
      %v5418 = vpop.f32.mrb[0].mxu0
      %v5419 = vadd.f32 0.0, %v5418
      %v5420 = vpop.f32.mrb[0].mxu0
      %v5421 = vadd.f32 0.0, %v5420
      %v5422 = vpop.f32.mrb[0].mxu0
      %v5423 = vadd.f32 0.0, %v5422
      %v5424 = vpop.f32.mrb[0].mxu0
      %v5425 = vadd.f32 0.0, %v5424
      %5426 = vmatprep.mubr.bf16.mxu0 0
      %5427 = vmatmul.mubr.bf16.gmra.mrb[0].mxu0 %v4878
      %v5428 = vpop.f32.mrb[0].mxu0
      %v5429 = vadd.f32 0.0, %v5428
      %v5430 = vpop.f32.mrb[0].mxu0
      %v5431 = vadd.f32 0.0, %v5430
      %v5432 = vpop.f32.mrb[0].mxu0
      %v5433 = vpop.f32.mrb[0].mxu0
      %5434 = vdwg.mxu0
      %5435 = vmatprep.subr.bf16.mxu0 %v5355
      %5436 = vmatpush1.bf16.msra.mxu0 %v5354
      %5437 = vmatprep.subr.bf16.mxu0 %v5359
      %5438 = vmatpush1.bf16.msra.mxu0 %v5358
      %5439 = vmatprep.subr.bf16.mxu0 %v5363
      %5440 = vmatpush1.bf16.msra.mxu0 %v5362
      %5441 = vmatprep.subr.bf16.mxu0 %v5367
      %5442 = vmatpush1.bf16.msra.mxu0 %v5366
      %5443 = vmatprep.subr.bf16.mxu0 0
      %5444 = vmatpush1.bf16.msra.mxu0 0
      %5445 = vmatprep.subr.bf16.mxu0 0
      %5446 = vmatpush1.bf16.msra.mxu0 0
      %5447 = vmatprep.subr.bf16.mxu0 0
      %5448 = vmatpush1.bf16.msra.mxu0 0
      %5449 = vmatprep.subr.bf16.mxu0 0
      %5450 = vmatpush1.bf16.msra.mxu0 0
      %5451 = vmatprep.subr.bf16.mxu0 0
      %5452 = vmatpush1.bf16.msra.mxu0 0
      %5453 = vmatprep.subr.bf16.mxu0 0
      %5454 = vmatpush1.bf16.msra.mxu0 0
      %5455 = vmatprep.subr.bf16.mxu0 0
      %5456 = vmatpush1.bf16.msra.mxu0 0
      %5457 = vmatprep.subr.bf16.mxu0 0
      %5458 = vmatpush1.bf16.msra.mxu0 0
      %5459 = vmatprep.subr.bf16.mxu0 0
      %5460 = vmatpush1.bf16.msra.mxu0 0
      %5461 = vmatprep.subr.bf16.mxu0 0
      %5462 = vmatpush1.bf16.msra.mxu0 0
      %5463 = vmatprep.subr.bf16.mxu0 0
      %5464 = vmatpush1.bf16.msra.mxu0 0
      %5465 = vmatprep.subr.bf16.mxu0 0
      %5466 = vmatpush1.bf16.msra.mxu0 0
      %5467 = vmatprep.mubr.bf16.mxu0 0
      %5468 = vmatmul.mubr.bf16.gmra.mrb[0].mxu0 %v4875
      %v5469 = vpop.f32.mrb[0].mxu0
      %v5470 = vadd.f32 0.0, %v5469
      %v5471 = vpop.f32.mrb[0].mxu0
      %v5472 = vadd.f32 0.0, %v5471
      %v5473 = vpop.f32.mrb[0].mxu0
      %v5474 = vadd.f32 0.0, %v5473
      %v5475 = vpop.f32.mrb[0].mxu0
      %v5476 = vadd.f32 0.0, %v5475
      %5477 = vmatprep.mubr.bf16.mxu0 0
      %5478 = vmatmul.mubr.bf16.gmra.mrb[0].mxu0 %v4878
      %v5479 = vpop.f32.mrb[0].mxu0
      %v5480 = vadd.f32 0.0, %v5479
      %v5481 = vpop.f32.mrb[0].mxu0
      %v5482 = vadd.f32 0.0, %v5481
      %v5483 = vpop.f32.mrb[0].mxu0
      %v5484 = vpop.f32.mrb[0].mxu0
      %5485 = vdwg.mxu0
      %v5498 = vrot.slane %v5419, 1
      %v5499 = vrot.slane %v5421, 1
      %v5500 = vrot.slane %v5470, 1
      %v5501 = vrot.slane %v5472, 1
      %v5502 = vrot.slane %v5423, 1
      %v5503 = vsel %vm1090, %v5498, %v5502
      %v5504 = vrot.slane %v5425, 1
      %v5505 = vsel %vm1090, %v5499, %v5504
      %v5506 = vrot.slane %v5474, 1
      %v5507 = vsel %vm1090, %v5500, %v5506
      %v5508 = vrot.slane %v5476, 1
      %v5509 = vsel %vm1090, %v5501, %v5508
      %v5510 = vrot.slane %v5429, 1
      %v5511 = vsel %vm1090, %v5502, %v5510
      %v5512 = vrot.slane %v5431, 1
      %v5513 = vsel %vm1090, %v5504, %v5512
      %v5514 = vrot.slane %v5480, 1
      %v5515 = vsel %vm1090, %v5506, %v5514
      %v5516 = vrot.slane %v5482, 1
      %v5517 = vsel %vm1090, %v5508, %v5516
      %v5534 = vadd.f32 %v5272, %v5498
      %v5535 = vadd.f32 %v5273, %v5499
      %v5536 = vadd.f32 %v5274, %v5500
      %v5537 = vadd.f32 %v5275, %v5501
      %v5538 = vadd.f32 %v5276, %v5503
      %v5539 = vadd.f32 %v5277, %v5505
      %v5540 = vadd.f32 %v5278, %v5507
      %v5541 = vadd.f32 %v5279, %v5509
      %v5542 = vadd.f32 %v5280, %v5511
      %v5543 = vadd.f32 %v5281, %v5513
      %v5544 = vadd.f32 %v5282, %v5515
      %v5545 = vadd.f32 %v5283, %v5517
      %v5546 = vadd.f32 %v5284, %v5510
      %v5547 = vadd.f32 %v5285, %v5512
      %v5548 = vadd.f32 %v5286, %v5514
      %v5549 = vadd.f32 %v5287, %v5516
      %5550 = vst [vmem:[#allocation2] sm:$0x80] %v5534
      %5551 = vst [vmem:[#allocation2 + $0x8] sm:$0x80] %v5535
      %5552 = vst [vmem:[#allocation2 + $0x10] sm:$0x80] %v5536
      %5553 = vst [vmem:[#allocation2 + $0x18] sm:$0x80] %v5537
      %5554 = vst [vmem:[#allocation2 + $0x20] sm:$0xff] %v5538
      %5555 = vst [vmem:[#allocation2 + $0x28] sm:$0xff] %v5539
      %5556 = vst [vmem:[#allocation2 + $0x30] sm:$0xff] %v5540
      %5557 = vst [vmem:[#allocation2 + $0x38] sm:$0xff] %v5541
      %5558 = vst [vmem:[#allocation2 + $0x40] sm:$0xff] %v5542
      %5559 = vst [vmem:[#allocation2 + $0x48] sm:$0xff] %v5543
      %5560 = vst [vmem:[#allocation2 + $0x50] sm:$0xff] %v5544
      %5561 = vst [vmem:[#allocation2 + $0x58] sm:$0xff] %v5545
      %5562 = vst [vmem:[#allocation2 + $0x60] sm:$0x1] %v5546
      %5563 = vst [vmem:[#allocation2 + $0x68] sm:$0x1] %v5547
      %5564 = vst [vmem:[#allocation2 + $0x70] sm:$0x1] %v5548
      %5565 = vst [vmem:[#allocation2 + $0x78] sm:$0x1] %v5549
      %v5566 = vld [vmem:[#allocation2 + $0x20] sm:$0xff]
      %v5567 = vld [vmem:[#allocation2 + $0x28] sm:$0xff]
      %v5568 = vld [vmem:[#allocation2 + $0x30] sm:$0xff]
      %v5569 = vld [vmem:[#allocation2 + $0x38] sm:$0xff]
      %v5570 = vld [vmem:[#allocation2 + $0x40] sm:$0xff]
      %v5571 = vld [vmem:[#allocation2 + $0x48] sm:$0xff]
      %v5572 = vld [vmem:[#allocation2 + $0x50] sm:$0xff]
      %v5573 = vld [vmem:[#allocation2 + $0x58] sm:$0xff]
      %v5574 = vld [vmem:[#allocation2 + $0x60] sm:$0x3]
      %v5575 = vld [vmem:[#allocation2 + $0x68] sm:$0x3]
      %v5576 = vld [vmem:[#allocation2 + $0x70] sm:$0x3]
      %v5577 = vld [vmem:[#allocation2 + $0x78] sm:$0x3]
      %v5578 = vld [vmem:[%s3] sm:$0xf]
      %v5580 = vlaneseq
      %v5581 = vshrl.u32 %v5580, 7
      %v5582 = vsub.s32 0, %v5581
      %v5583 = vrot.slane %v5578, %v5582
      %v5584 = vlaneseq
      %v5585 = vshrl.u32 %v5584, 7
      %v5586 = vsub.s32 1, %v5585
      %v5587 = vrot.slane %v5578, %v5586
      %v5588 = vlaneseq
      %v5589 = vshrl.u32 %v5588, 7
      %v5590 = vsub.s32 2, %v5589
      %v5591 = vrot.slane %v5578, %v5590
      %v5592 = vlaneseq
      %v5593 = vshrl.u32 %v5592, 7
      %v5594 = vsub.s32 3, %v5593
      %v5595 = vrot.slane %v5578, %v5594
      %v5600 = vmul.f32 %v5566, %v5583
      %v5601 = vmul.f32 %v5567, %v5587
      %v5602 = vmul.f32 %v5568, %v5591
      %v5603 = vmul.f32 %v5569, %v5595
      %v5604 = vmul.f32 %v5570, %v5583
      %v5605 = vmul.f32 %v5571, %v5587
      %v5606 = vmul.f32 %v5572, %v5591
      %v5607 = vmul.f32 %v5573, %v5595
      %v5608 = vmul.f32 %v5574, %v5583
      %v5609 = vmul.f32 %v5575, %v5587
      %v5610 = vmul.f32 %v5576, %v5591
      %v5611 = vmul.f32 %v5577, %v5595
      %v5612 = vld [vmem:[%s4] sm:$0xf]
      %v5614 = vlaneseq
      %v5615 = vshrl.u32 %v5614, 7
      %v5616 = vsub.s32 0, %v5615
      %v5617 = vrot.slane %v5612, %v5616
      %v5618 = vlaneseq
      %v5619 = vshrl.u32 %v5618, 7
      %v5620 = vsub.s32 1, %v5619
      %v5621 = vrot.slane %v5612, %v5620
      %v5622 = vlaneseq
      %v5623 = vshrl.u32 %v5622, 7
      %v5624 = vsub.s32 2, %v5623
      %v5625 = vrot.slane %v5612, %v5624
      %v5626 = vlaneseq
      %v5627 = vshrl.u32 %v5626, 7
      %v5628 = vsub.s32 3, %v5627
      %v5629 = vrot.slane %v5612, %v5628
      %v5634 = vadd.f32 %v5600, %v5617
      %v5635 = vadd.f32 %v5601, %v5621
      %v5636 = vadd.f32 %v5602, %v5625
      %v5637 = vadd.f32 %v5603, %v5629
      %v5638 = vadd.f32 %v5604, %v5617
      %v5639 = vadd.f32 %v5605, %v5621
      %v5640 = vadd.f32 %v5606, %v5625
      %v5641 = vadd.f32 %v5607, %v5629
      %v5642 = vadd.f32 %v5608, %v5617
      %v5643 = vadd.f32 %v5609, %v5621
      %v5644 = vadd.f32 %v5610, %v5625
      %v5645 = vadd.f32 %v5611, %v5629
      %v5646 = vmax.f32 %v5634, 0.0
      %v5647 = vmax.f32 %v5635, 0.0
      %v5648 = vmax.f32 %v5636, 0.0
      %v5649 = vmax.f32 %v5637, 0.0
      %v5650 = vmax.f32 %v5638, 0.0
      %v5651 = vmax.f32 %v5639, 0.0
      %v5652 = vmax.f32 %v5640, 0.0
      %v5653 = vmax.f32 %v5641, 0.0
      %v5654 = vmax.f32 %v5642, 0.0
      %v5655 = vmax.f32 %v5643, 0.0
      %v5656 = vmax.f32 %v5644, 0.0
      %v5657 = vmax.f32 %v5645, 0.0
      %v5658 = vsel %vm1254, %v5646, 0.0
      %v5659 = vsel %vm1254, %v5647, 0.0
      %v5660 = vsel %vm1254, %v5648, 0.0
      %v5661 = vsel %vm1254, %v5649, 0.0
      %v5662 = vsel %vm1255, %v5650, 0.0
      %v5663 = vsel %vm1255, %v5651, 0.0
      %v5664 = vsel %vm1255, %v5652, 0.0
      %v5665 = vsel %vm1255, %v5653, 0.0
      %v5666 = vsel %vm1256, %v5654, 0.0
      %v5667 = vsel %vm1256, %v5655, 0.0
      %v5668 = vsel %vm1256, %v5656, 0.0
      %v5669 = vsel %vm1256, %v5657, 0.0
      %v5670 = vpack.c.bf16 %v5662, %v5658
      %v5671 = vpack.c.bf16 %v5663, %v5659
      %v5672 = vpack.c.bf16 %v5664, %v5660
      %v5673 = vpack.c.bf16 %v5665, %v5661
      %v5674 = vpack.c.bf16 %v5666, %v5666
      %v5675 = vpack.c.bf16 %v5667, %v5667
      %v5676 = vpack.c.bf16 %v5668, %v5668
      %v5677 = vpack.c.bf16 %v5669, %v5669
      %v5686 = vunpack.c.l.b16 %v5670
      %v5687 = vunpack.c.l.b16 %v5671
      %v5688 = vunpack.c.l.b16 %v5672
      %v5689 = vunpack.c.l.b16 %v5673
      %v5690 = vunpack.c.h.b16 %v5670
      %v5691 = vunpack.c.h.b16 %v5671
      %v5692 = vunpack.c.h.b16 %v5672
      %v5693 = vunpack.c.h.b16 %v5673
      %v5694 = vunpack.c.l.b16 %v5674
      %v5695 = vunpack.c.l.b16 %v5675
      %v5696 = vunpack.c.l.b16 %v5676
      %v5697 = vunpack.c.l.b16 %v5677
      %v5698 = vpack.c.b16 %v5687, %v5686
      %v5699 = vpack.c.b16 %v5689, %v5688
      %v5700 = vpack.c.b16 %v5691, %v5690
      %v5701 = vpack.c.b16 %v5693, %v5692
      %v5702 = vpack.c.b16 %v5695, %v5694
      %v5703 = vpack.c.b16 %v5697, %v5696
      %5710 = vst [vmem:[#allocation3] sm:$0xff] %v5698
      %5711 = vst [vmem:[#allocation3 + $0x8] sm:$0xff] %v5699
      %5712 = vst [vmem:[#allocation3 + $0x10] sm:$0xff] %v5700
      %5713 = vst [vmem:[#allocation3 + $0x18] sm:$0xff] %v5701
      %5714 = vst [vmem:[#allocation3 + $0x20] sm:$0x11] %v5702
      %5715 = vst [vmem:[#allocation3 + $0x28] sm:$0x11] %v5703
      %v5716 = vld [vmem:[#allocation3] sm:$0xff]
      %v5717 = vld [vmem:[#allocation3 + $0x8] sm:$0xff]
      %v5718 = vld [vmem:[#allocation3 + $0x10] sm:$0xff]
      %v5719 = vld [vmem:[#allocation3 + $0x18] sm:$0xff]
      %v5720 = vld [vmem:[#allocation3 + $0x20] sm:$0x11]
      %v5721 = vld [vmem:[#allocation3 + $0x28] sm:$0x11]
      %v5722 = vld [vmem:[%s2] sm:$0xff]
      %v5723 = vld [vmem:[%s2 + $0x8] sm:$0xff]
      %v5724 = vld [vmem:[%s2 + $0x10] sm:$0xff]
      %v5725 = vld [vmem:[%s2 + $0x18] sm:$0xff]
      %v5726 = vld [vmem:[%s2 + $0x20] sm:$0xff]
      %v5727 = vld [vmem:[%s2 + $0x28] sm:$0xff]
      %v5728 = vld [vmem:[%s2 + $0x30] sm:$0xff]
      %v5729 = vld [vmem:[%s2 + $0x38] sm:$0xff]
      %v5730 = vld [vmem:[%s2 + $0x40] sm:$0xff]
      %v5731 = vld [vmem:[%s2 + $0x48] sm:$0xff]
      %v5732 = vld [vmem:[%s2 + $0x50] sm:$0xff]
      %v5733 = vld [vmem:[%s2 + $0x58] sm:$0xff]
      %v5734 = vld [vmem:[%s2 + $0x60] sm:$0xff]
      %v5735 = vld [vmem:[%s2 + $0x68] sm:$0xff]
      %v5736 = vld [vmem:[%s2 + $0x70] sm:$0xff]
      %v5737 = vld [vmem:[%s2 + $0x78] sm:$0xff]
      %v5738 = vld [vmem:[%s2 + $0x80] sm:$0xff]
      %v5739 = vld [vmem:[%s2 + $0x88] sm:$0xff]
      %v5740 = vld [vmem:[%s2 + $0x90] sm:$0xff]
      %v5741 = vld [vmem:[%s2 + $0x98] sm:$0xff]
      %v5742 = vld [vmem:[%s2 + $0xa0] sm:$0xff]
      %v5743 = vld [vmem:[%s2 + $0xa8] sm:$0xff]
      %v5744 = vld [vmem:[%s2 + $0xb0] sm:$0xff]
      %v5745 = vld [vmem:[%s2 + $0xb8] sm:$0xff]
      %v5746 = vld [vmem:[%s2 + $0xc0] sm:$0xff]
      %v5747 = vld [vmem:[%s2 + $0xc8] sm:$0xff]
      %v5748 = vld [vmem:[%s2 + $0xd0] sm:$0xff]
      %v5749 = vld [vmem:[%s2 + $0xd8] sm:$0xff]
      %v5750 = vld [vmem:[%s2 + $0xe0] sm:$0xff]
      %v5751 = vld [vmem:[%s2 + $0xe8] sm:$0xff]
      %v5752 = vld [vmem:[%s2 + $0xf0] sm:$0xff]
      %v5753 = vld [vmem:[%s2 + $0xf8] sm:$0xff]
      %v5754 = vld [vmem:[%s2 + $0x100] sm:$0xff]
      %v5755 = vld [vmem:[%s2 + $0x108] sm:$0xff]
      %v5756 = vld [vmem:[%s2 + $0x110] sm:$0xff]
      %v5757 = vld [vmem:[%s2 + $0x118] sm:$0xff]
      %v5758 = vld [vmem:[%s2 + $0x120] sm:$0xff]
      %v5759 = vld [vmem:[%s2 + $0x128] sm:$0xff]
      %v5760 = vld [vmem:[%s2 + $0x130] sm:$0xff]
      %v5761 = vld [vmem:[%s2 + $0x138] sm:$0xff]
      %v5762 = vld [vmem:[%s2 + $0x140] sm:$0xff]
      %v5763 = vld [vmem:[%s2 + $0x148] sm:$0xff]
      %v5764 = vld [vmem:[%s2 + $0x150] sm:$0xff]
      %v5765 = vld [vmem:[%s2 + $0x158] sm:$0xff]
      %v5766 = vld [vmem:[%s2 + $0x160] sm:$0xff]
      %v5767 = vld [vmem:[%s2 + $0x168] sm:$0xff]
      %v5768 = vld [vmem:[%s2 + $0x170] sm:$0xff]
      %v5769 = vld [vmem:[%s2 + $0x178] sm:$0xff]
      %v5770 = vld [vmem:[%s2 + $0x180] sm:$0xff]
      %v5771 = vld [vmem:[%s2 + $0x188] sm:$0xff]
      %v5772 = vld [vmem:[%s2 + $0x190] sm:$0xff]
      %v5773 = vld [vmem:[%s2 + $0x198] sm:$0xff]
      %v5774 = vld [vmem:[%s2 + $0x1a0] sm:$0xff]
      %v5775 = vld [vmem:[%s2 + $0x1a8] sm:$0xff]
      %v5776 = vld [vmem:[%s2 + $0x1b0] sm:$0xff]
      %v5777 = vld [vmem:[%s2 + $0x1b8] sm:$0xff]
      %v5778 = vld [vmem:[%s2 + $0x1c0] sm:$0xff]
      %v5779 = vld [vmem:[%s2 + $0x1c8] sm:$0xff]
      %v5780 = vld [vmem:[%s2 + $0x1d0] sm:$0xff]
      %v5781 = vld [vmem:[%s2 + $0x1d8] sm:$0xff]
      %v5782 = vld [vmem:[%s2 + $0x1e0] sm:$0xff]
      %v5783 = vld [vmem:[%s2 + $0x1e8] sm:$0xff]
      %v5784 = vld [vmem:[%s2 + $0x1f0] sm:$0xff]
      %v5785 = vld [vmem:[%s2 + $0x1f8] sm:$0xff]
      %v5786 = vld [vmem:[%s2 + $0x200] sm:$0xff]
      %v5787 = vld [vmem:[%s2 + $0x208] sm:$0xff]
      %v5788 = vld [vmem:[%s2 + $0x210] sm:$0xff]
      %v5789 = vld [vmem:[%s2 + $0x218] sm:$0xff]
      %v5790 = vld [vmem:[%s2 + $0x220] sm:$0xff]
      %v5791 = vld [vmem:[%s2 + $0x228] sm:$0xff]
      %v5792 = vld [vmem:[%s2 + $0x230] sm:$0xff]
      %v5793 = vld [vmem:[%s2 + $0x238] sm:$0xff]
      %v5794 = vld [vmem:[%s2 + $0x240] sm:$0xff]
      %v5795 = vld [vmem:[%s2 + $0x248] sm:$0xff]
      %v5796 = vld [vmem:[%s2 + $0x250] sm:$0xff]
      %v5797 = vld [vmem:[%s2 + $0x258] sm:$0xff]
      %v5798 = vld [vmem:[%s2 + $0x260] sm:$0xff]
      %v5799 = vld [vmem:[%s2 + $0x268] sm:$0xff]
      %v5800 = vld [vmem:[%s2 + $0x270] sm:$0xff]
      %v5801 = vld [vmem:[%s2 + $0x278] sm:$0xff]
      %v5802 = vld [vmem:[%s2 + $0x280] sm:$0xff]
      %v5803 = vld [vmem:[%s2 + $0x288] sm:$0xff]
      %v5804 = vld [vmem:[%s2 + $0x290] sm:$0xff]
      %v5805 = vld [vmem:[%s2 + $0x298] sm:$0xff]
      %v5806 = vld [vmem:[%s2 + $0x2a0] sm:$0xff]
      %v5807 = vld [vmem:[%s2 + $0x2a8] sm:$0xff]
      %v5808 = vld [vmem:[%s2 + $0x2b0] sm:$0xff]
      %v5809 = vld [vmem:[%s2 + $0x2b8] sm:$0xff]
      %v5810 = vld [vmem:[%s2 + $0x2c0] sm:$0xff]
      %v5811 = vld [vmem:[%s2 + $0x2c8] sm:$0xff]
      %v5812 = vld [vmem:[%s2 + $0x2d0] sm:$0xff]
      %v5813 = vld [vmem:[%s2 + $0x2d8] sm:$0xff]
      %v5814 = vld [vmem:[%s2 + $0x2e0] sm:$0xff]
      %v5815 = vld [vmem:[%s2 + $0x2e8] sm:$0xff]
      %v5816 = vld [vmem:[%s2 + $0x2f0] sm:$0xff]
      %v5817 = vld [vmem:[%s2 + $0x2f8] sm:$0xff]
      %v5818 = vld [vmem:[%s2 + $0x300] sm:$0xff]
      %v5819 = vld [vmem:[%s2 + $0x308] sm:$0xff]
      %v5820 = vld [vmem:[%s2 + $0x310] sm:$0xff]
      %v5821 = vld [vmem:[%s2 + $0x318] sm:$0xff]
      %v5822 = vld [vmem:[%s2 + $0x320] sm:$0xff]
      %v5823 = vld [vmem:[%s2 + $0x328] sm:$0xff]
      %v5824 = vld [vmem:[%s2 + $0x330] sm:$0xff]
      %v5825 = vld [vmem:[%s2 + $0x338] sm:$0xff]
      %v5826 = vld [vmem:[%s2 + $0x340] sm:$0xff]
      %v5827 = vld [vmem:[%s2 + $0x348] sm:$0xff]
      %v5828 = vld [vmem:[%s2 + $0x350] sm:$0xff]
      %v5829 = vld [vmem:[%s2 + $0x358] sm:$0xff]
      %v5830 = vld [vmem:[%s2 + $0x360] sm:$0xff]
      %v5831 = vld [vmem:[%s2 + $0x368] sm:$0xff]
      %v5832 = vld [vmem:[%s2 + $0x370] sm:$0xff]
      %v5833 = vld [vmem:[%s2 + $0x378] sm:$0xff]
      %v5834 = vld [vmem:[%s2 + $0x380] sm:$0xff]
      %v5835 = vld [vmem:[%s2 + $0x388] sm:$0xff]
      %v5836 = vld [vmem:[%s2 + $0x390] sm:$0xff]
      %v5837 = vld [vmem:[%s2 + $0x398] sm:$0xff]
      %v5838 = vld [vmem:[%s2 + $0x3a0] sm:$0xff]
      %v5839 = vld [vmem:[%s2 + $0x3a8] sm:$0xff]
      %v5840 = vld [vmem:[%s2 + $0x3b0] sm:$0xff]
      %v5841 = vld [vmem:[%s2 + $0x3b8] sm:$0xff]
      %v5842 = vld [vmem:[%s2 + $0x3c0] sm:$0xff]
      %v5843 = vld [vmem:[%s2 + $0x3c8] sm:$0xff]
      %v5844 = vld [vmem:[%s2 + $0x3d0] sm:$0xff]
      %v5845 = vld [vmem:[%s2 + $0x3d8] sm:$0xff]
      %v5846 = vld [vmem:[%s2 + $0x3e0] sm:$0xff]
      %v5847 = vld [vmem:[%s2 + $0x3e8] sm:$0xff]
      %v5848 = vld [vmem:[%s2 + $0x3f0] sm:$0xff]
      %v5849 = vld [vmem:[%s2 + $0x3f8] sm:$0xff]
      %v5856 = vunpack.c.l.b16 %v5716
      %v5857 = vunpack.c.h.b16 %v5716
      %v5858 = vunpack.c.l.b16 %v5717
      %v5859 = vunpack.c.h.b16 %v5717
      %v5860 = vunpack.c.l.b16 %v5718
      %v5861 = vunpack.c.h.b16 %v5718
      %v5862 = vunpack.c.l.b16 %v5719
      %v5863 = vunpack.c.h.b16 %v5719
      %v5864 = vunpack.c.l.b16 %v5720
      %v5865 = vunpack.c.h.b16 %v5720
      %v5866 = vunpack.c.l.b16 %v5721
      %v5867 = vunpack.c.h.b16 %v5721
      %v5868 = vpack.c.b16 %v5860, %v5856
      %v5869 = vpack.c.b16 %v5861, %v5857
      %v5870 = vpack.c.b16 %v5862, %v5858
      %v5871 = vpack.c.b16 %v5863, %v5859
      %v5872 = vpack.c.b16 %v5864, %v5864
      %v5873 = vpack.c.b16 %v5865, %v5865
      %v5874 = vpack.c.b16 %v5866, %v5866
      %v5875 = vpack.c.b16 %v5867, %v5867
      %v6012 = vunpack.c.l.b16 %v5722
      %v6013 = vunpack.c.h.b16 %v5722
      %v6014 = vunpack.c.l.b16 %v5723
      %v6015 = vunpack.c.h.b16 %v5723
      %v6016 = vunpack.c.l.b16 %v5724
      %v6017 = vunpack.c.h.b16 %v5724
      %v6018 = vunpack.c.l.b16 %v5725
      %v6019 = vunpack.c.h.b16 %v5725
      %v6020 = vunpack.c.l.b16 %v5726
      %v6021 = vunpack.c.h.b16 %v5726
      %v6022 = vunpack.c.l.b16 %v5727
      %v6023 = vunpack.c.h.b16 %v5727
      %v6024 = vunpack.c.l.b16 %v5728
      %v6025 = vunpack.c.h.b16 %v5728
      %v6026 = vunpack.c.l.b16 %v5729
      %v6027 = vunpack.c.h.b16 %v5729
      %v6028 = vunpack.c.l.b16 %v5730
      %v6029 = vunpack.c.h.b16 %v5730
      %v6030 = vunpack.c.l.b16 %v5731
      %v6031 = vunpack.c.h.b16 %v5731
      %v6032 = vunpack.c.l.b16 %v5732
      %v6033 = vunpack.c.h.b16 %v5732
      %v6034 = vunpack.c.l.b16 %v5733
      %v6035 = vunpack.c.h.b16 %v5733
      %v6036 = vunpack.c.l.b16 %v5734
      %v6037 = vunpack.c.h.b16 %v5734
      %v6038 = vunpack.c.l.b16 %v5735
      %v6039 = vunpack.c.h.b16 %v5735
      %v6040 = vunpack.c.l.b16 %v5736
      %v6041 = vunpack.c.h.b16 %v5736
      %v6042 = vunpack.c.l.b16 %v5737
      %v6043 = vunpack.c.h.b16 %v5737
      %v6044 = vunpack.c.l.b16 %v5738
      %v6045 = vunpack.c.h.b16 %v5738
      %v6046 = vunpack.c.l.b16 %v5739
      %v6047 = vunpack.c.h.b16 %v5739
      %v6048 = vunpack.c.l.b16 %v5740
      %v6049 = vunpack.c.h.b16 %v5740
      %v6050 = vunpack.c.l.b16 %v5741
      %v6051 = vunpack.c.h.b16 %v5741
      %v6052 = vunpack.c.l.b16 %v5742
      %v6053 = vunpack.c.h.b16 %v5742
      %v6054 = vunpack.c.l.b16 %v5743
      %v6055 = vunpack.c.h.b16 %v5743
      %v6056 = vunpack.c.l.b16 %v5744
      %v6057 = vunpack.c.h.b16 %v5744
      %v6058 = vunpack.c.l.b16 %v5745
      %v6059 = vunpack.c.h.b16 %v5745
      %v6060 = vunpack.c.l.b16 %v5746
      %v6061 = vunpack.c.h.b16 %v5746
      %v6062 = vunpack.c.l.b16 %v5747
      %v6063 = vunpack.c.h.b16 %v5747
      %v6064 = vunpack.c.l.b16 %v5748
      %v6065 = vunpack.c.h.b16 %v5748
      %v6066 = vunpack.c.l.b16 %v5749
      %v6067 = vunpack.c.h.b16 %v5749
      %v6068 = vunpack.c.l.b16 %v5750
      %v6069 = vunpack.c.h.b16 %v5750
      %v6070 = vunpack.c.l.b16 %v5751
      %v6071 = vunpack.c.h.b16 %v5751
      %v6072 = vunpack.c.l.b16 %v5752
      %v6073 = vunpack.c.h.b16 %v5752
      %v6074 = vunpack.c.l.b16 %v5753
      %v6075 = vunpack.c.h.b16 %v5753
      %v6076 = vunpack.c.l.b16 %v5754
      %v6077 = vunpack.c.h.b16 %v5754
      %v6078 = vunpack.c.l.b16 %v5755
      %v6079 = vunpack.c.h.b16 %v5755
      %v6080 = vunpack.c.l.b16 %v5756
      %v6081 = vunpack.c.h.b16 %v5756
      %v6082 = vunpack.c.l.b16 %v5757
      %v6083 = vunpack.c.h.b16 %v5757
      %v6084 = vunpack.c.l.b16 %v5758
      %v6085 = vunpack.c.h.b16 %v5758
      %v6086 = vunpack.c.l.b16 %v5759
      %v6087 = vunpack.c.h.b16 %v5759
      %v6088 = vunpack.c.l.b16 %v5760
      %v6089 = vunpack.c.h.b16 %v5760
      %v6090 = vunpack.c.l.b16 %v5761
      %v6091 = vunpack.c.h.b16 %v5761
      %v6092 = vunpack.c.l.b16 %v5762
      %v6093 = vunpack.c.h.b16 %v5762
      %v6094 = vunpack.c.l.b16 %v5763
      %v6095 = vunpack.c.h.b16 %v5763
      %v6096 = vunpack.c.l.b16 %v5764
      %v6097 = vunpack.c.h.b16 %v5764
      %v6098 = vunpack.c.l.b16 %v5765
      %v6099 = vunpack.c.h.b16 %v5765
      %v6100 = vunpack.c.l.b16 %v5766
      %v6101 = vunpack.c.h.b16 %v5766
      %v6102 = vunpack.c.l.b16 %v5767
      %v6103 = vunpack.c.h.b16 %v5767
      %v6104 = vunpack.c.l.b16 %v5768
      %v6105 = vunpack.c.h.b16 %v5768
      %v6106 = vunpack.c.l.b16 %v5769
      %v6107 = vunpack.c.h.b16 %v5769
      %v6108 = vunpack.c.l.b16 %v5770
      %v6109 = vunpack.c.h.b16 %v5770
      %v6110 = vunpack.c.l.b16 %v5771
      %v6111 = vunpack.c.h.b16 %v5771
      %v6112 = vunpack.c.l.b16 %v5772
      %v6113 = vunpack.c.h.b16 %v5772
      %v6114 = vunpack.c.l.b16 %v5773
      %v6115 = vunpack.c.h.b16 %v5773
      %v6116 = vunpack.c.l.b16 %v5774
      %v6117 = vunpack.c.h.b16 %v5774
      %v6118 = vunpack.c.l.b16 %v5775
      %v6119 = vunpack.c.h.b16 %v5775
      %v6120 = vunpack.c.l.b16 %v5776
      %v6121 = vunpack.c.h.b16 %v5776
      %v6122 = vunpack.c.l.b16 %v5777
      %v6123 = vunpack.c.h.b16 %v5777
      %v6124 = vunpack.c.l.b16 %v5778
      %v6125 = vunpack.c.h.b16 %v5778
      %v6126 = vunpack.c.l.b16 %v5779
      %v6127 = vunpack.c.h.b16 %v5779
      %v6128 = vunpack.c.l.b16 %v5780
      %v6129 = vunpack.c.h.b16 %v5780
      %v6130 = vunpack.c.l.b16 %v5781
      %v6131 = vunpack.c.h.b16 %v5781
      %v6132 = vunpack.c.l.b16 %v5782
      %v6133 = vunpack.c.h.b16 %v5782
      %v6134 = vunpack.c.l.b16 %v5783
      %v6135 = vunpack.c.h.b16 %v5783
      %v6136 = vunpack.c.l.b16 %v5784
      %v6137 = vunpack.c.h.b16 %v5784
      %v6138 = vunpack.c.l.b16 %v5785
      %v6139 = vunpack.c.h.b16 %v5785
      %v6140 = vunpack.c.l.b16 %v5786
      %v6141 = vunpack.c.h.b16 %v5786
      %v6142 = vunpack.c.l.b16 %v5787
      %v6143 = vunpack.c.h.b16 %v5787
      %v6144 = vunpack.c.l.b16 %v5788
      %v6145 = vunpack.c.h.b16 %v5788
      %v6146 = vunpack.c.l.b16 %v5789
      %v6147 = vunpack.c.h.b16 %v5789
      %v6148 = vunpack.c.l.b16 %v5790
      %v6149 = vunpack.c.h.b16 %v5790
      %v6150 = vunpack.c.l.b16 %v5791
      %v6151 = vunpack.c.h.b16 %v5791
      %v6152 = vunpack.c.l.b16 %v5792
      %v6153 = vunpack.c.h.b16 %v5792
      %v6154 = vunpack.c.l.b16 %v5793
      %v6155 = vunpack.c.h.b16 %v5793
      %v6156 = vunpack.c.l.b16 %v5794
      %v6157 = vunpack.c.h.b16 %v5794
      %v6158 = vunpack.c.l.b16 %v5795
      %v6159 = vunpack.c.h.b16 %v5795
      %v6160 = vunpack.c.l.b16 %v5796
      %v6161 = vunpack.c.h.b16 %v5796
      %v6162 = vunpack.c.l.b16 %v5797
      %v6163 = vunpack.c.h.b16 %v5797
      %v6164 = vunpack.c.l.b16 %v5798
      %v6165 = vunpack.c.h.b16 %v5798
      %v6166 = vunpack.c.l.b16 %v5799
      %v6167 = vunpack.c.h.b16 %v5799
      %v6168 = vunpack.c.l.b16 %v5800
      %v6169 = vunpack.c.h.b16 %v5800
      %v6170 = vunpack.c.l.b16 %v5801
      %v6171 = vunpack.c.h.b16 %v5801
      %v6172 = vunpack.c.l.b16 %v5802
      %v6173 = vunpack.c.h.b16 %v5802
      %v6174 = vunpack.c.l.b16 %v5803
      %v6175 = vunpack.c.h.b16 %v5803
      %v6176 = vunpack.c.l.b16 %v5804
      %v6177 = vunpack.c.h.b16 %v5804
      %v6178 = vunpack.c.l.b16 %v5805
      %v6179 = vunpack.c.h.b16 %v5805
      %v6180 = vunpack.c.l.b16 %v5806
      %v6181 = vunpack.c.h.b16 %v5806
      %v6182 = vunpack.c.l.b16 %v5807
      %v6183 = vunpack.c.h.b16 %v5807
      %v6184 = vunpack.c.l.b16 %v5808
      %v6185 = vunpack.c.h.b16 %v5808
      %v6186 = vunpack.c.l.b16 %v5809
      %v6187 = vunpack.c.h.b16 %v5809
      %v6188 = vunpack.c.l.b16 %v5810
      %v6189 = vunpack.c.h.b16 %v5810
      %v6190 = vunpack.c.l.b16 %v5811
      %v6191 = vunpack.c.h.b16 %v5811
      %v6192 = vunpack.c.l.b16 %v5812
      %v6193 = vunpack.c.h.b16 %v5812
      %v6194 = vunpack.c.l.b16 %v5813
      %v6195 = vunpack.c.h.b16 %v5813
      %v6196 = vunpack.c.l.b16 %v5814
      %v6197 = vunpack.c.h.b16 %v5814
      %v6198 = vunpack.c.l.b16 %v5815
      %v6199 = vunpack.c.h.b16 %v5815
      %v6200 = vunpack.c.l.b16 %v5816
      %v6201 = vunpack.c.h.b16 %v5816
      %v6202 = vunpack.c.l.b16 %v5817
      %v6203 = vunpack.c.h.b16 %v5817
      %v6204 = vunpack.c.l.b16 %v5818
      %v6205 = vunpack.c.h.b16 %v5818
      %v6206 = vunpack.c.l.b16 %v5819
      %v6207 = vunpack.c.h.b16 %v5819
      %v6208 = vunpack.c.l.b16 %v5820
      %v6209 = vunpack.c.h.b16 %v5820
      %v6210 = vunpack.c.l.b16 %v5821
      %v6211 = vunpack.c.h.b16 %v5821
      %v6212 = vunpack.c.l.b16 %v5822
      %v6213 = vunpack.c.h.b16 %v5822
      %v6214 = vunpack.c.l.b16 %v5823
      %v6215 = vunpack.c.h.b16 %v5823
      %v6216 = vunpack.c.l.b16 %v5824
      %v6217 = vunpack.c.h.b16 %v5824
      %v6218 = vunpack.c.l.b16 %v5825
      %v6219 = vunpack.c.h.b16 %v5825
      %v6220 = vunpack.c.l.b16 %v5826
      %v6221 = vunpack.c.h.b16 %v5826
      %v6222 = vunpack.c.l.b16 %v5827
      %v6223 = vunpack.c.h.b16 %v5827
      %v6224 = vunpack.c.l.b16 %v5828
      %v6225 = vunpack.c.h.b16 %v5828
      %v6226 = vunpack.c.l.b16 %v5829
      %v6227 = vunpack.c.h.b16 %v5829
      %v6228 = vunpack.c.l.b16 %v5830
      %v6229 = vunpack.c.h.b16 %v5830
      %v6230 = vunpack.c.l.b16 %v5831
      %v6231 = vunpack.c.h.b16 %v5831
      %v6232 = vunpack.c.l.b16 %v5832
      %v6233 = vunpack.c.h.b16 %v5832
      %v6234 = vunpack.c.l.b16 %v5833
      %v6235 = vunpack.c.h.b16 %v5833
      %v6236 = vunpack.c.l.b16 %v5834
      %v6237 = vunpack.c.h.b16 %v5834
      %v6238 = vunpack.c.l.b16 %v5835
      %v6239 = vunpack.c.h.b16 %v5835
      %v6240 = vunpack.c.l.b16 %v5836
      %v6241 = vunpack.c.h.b16 %v5836
      %v6242 = vunpack.c.l.b16 %v5837
      %v6243 = vunpack.c.h.b16 %v5837
      %v6244 = vunpack.c.l.b16 %v5838
      %v6245 = vunpack.c.h.b16 %v5838
      %v6246 = vunpack.c.l.b16 %v5839
      %v6247 = vunpack.c.h.b16 %v5839
      %v6248 = vunpack.c.l.b16 %v5840
      %v6249 = vunpack.c.h.b16 %v5840
      %v6250 = vunpack.c.l.b16 %v5841
      %v6251 = vunpack.c.h.b16 %v5841
      %v6252 = vunpack.c.l.b16 %v5842
      %v6253 = vunpack.c.h.b16 %v5842
      %v6254 = vunpack.c.l.b16 %v5843
      %v6255 = vunpack.c.h.b16 %v5843
      %v6256 = vunpack.c.l.b16 %v5844
      %v6257 = vunpack.c.h.b16 %v5844
      %v6258 = vunpack.c.l.b16 %v5845
      %v6259 = vunpack.c.h.b16 %v5845
      %v6260 = vunpack.c.l.b16 %v5846
      %v6261 = vunpack.c.h.b16 %v5846
      %v6262 = vunpack.c.l.b16 %v5847
      %v6263 = vunpack.c.h.b16 %v5847
      %v6264 = vunpack.c.l.b16 %v5848
      %v6265 = vunpack.c.h.b16 %v5848
      %v6266 = vunpack.c.l.b16 %v5849
      %v6267 = vunpack.c.h.b16 %v5849
      %v6268 = vpack.c.b16 %v6016, %v6012
      %v6269 = vpack.c.b16 %v6017, %v6013
      %v6270 = vpack.c.b16 %v6018, %v6014
      %v6271 = vpack.c.b16 %v6019, %v6015
      %v6272 = vpack.c.b16 %v6024, %v6020
      %v6273 = vpack.c.b16 %v6025, %v6021
      %v6274 = vpack.c.b16 %v6026, %v6022
      %v6275 = vpack.c.b16 %v6027, %v6023
      %v6276 = vpack.c.b16 %v6032, %v6028
      %v6277 = vpack.c.b16 %v6033, %v6029
      %v6278 = vpack.c.b16 %v6034, %v6030
      %v6279 = vpack.c.b16 %v6035, %v6031
      %v6280 = vpack.c.b16 %v6040, %v6036
      %v6281 = vpack.c.b16 %v6041, %v6037
      %v6282 = vpack.c.b16 %v6042, %v6038
      %v6283 = vpack.c.b16 %v6043, %v6039
      %v6284 = vpack.c.b16 %v6048, %v6044
      %v6285 = vpack.c.b16 %v6049, %v6045
      %v6286 = vpack.c.b16 %v6050, %v6046
      %v6287 = vpack.c.b16 %v6051, %v6047
      %v6288 = vpack.c.b16 %v6056, %v6052
      %v6289 = vpack.c.b16 %v6057, %v6053
      %v6290 = vpack.c.b16 %v6058, %v6054
      %v6291 = vpack.c.b16 %v6059, %v6055
      %v6292 = vpack.c.b16 %v6064, %v6060
      %v6293 = vpack.c.b16 %v6065, %v6061
      %v6294 = vpack.c.b16 %v6066, %v6062
      %v6295 = vpack.c.b16 %v6067, %v6063
      %v6296 = vpack.c.b16 %v6072, %v6068
      %v6297 = vpack.c.b16 %v6073, %v6069
      %v6298 = vpack.c.b16 %v6074, %v6070
      %v6299 = vpack.c.b16 %v6075, %v6071
      %v6300 = vpack.c.b16 %v6080, %v6076
      %v6301 = vpack.c.b16 %v6081, %v6077
      %v6302 = vpack.c.b16 %v6082, %v6078
      %v6303 = vpack.c.b16 %v6083, %v6079
      %v6304 = vpack.c.b16 %v6088, %v6084
      %v6305 = vpack.c.b16 %v6089, %v6085
      %v6306 = vpack.c.b16 %v6090, %v6086
      %v6307 = vpack.c.b16 %v6091, %v6087
      %v6308 = vpack.c.b16 %v6096, %v6092
      %v6309 = vpack.c.b16 %v6097, %v6093
      %v6310 = vpack.c.b16 %v6098, %v6094
      %v6311 = vpack.c.b16 %v6099, %v6095
      %v6312 = vpack.c.b16 %v6104, %v6100
      %v6313 = vpack.c.b16 %v6105, %v6101
      %v6314 = vpack.c.b16 %v6106, %v6102
      %v6315 = vpack.c.b16 %v6107, %v6103
      %v6316 = vpack.c.b16 %v6112, %v6108
      %v6317 = vpack.c.b16 %v6113, %v6109
      %v6318 = vpack.c.b16 %v6114, %v6110
      %v6319 = vpack.c.b16 %v6115, %v6111
      %v6320 = vpack.c.b16 %v6120, %v6116
      %v6321 = vpack.c.b16 %v6121, %v6117
      %v6322 = vpack.c.b16 %v6122, %v6118
      %v6323 = vpack.c.b16 %v6123, %v6119
      %v6324 = vpack.c.b16 %v6128, %v6124
      %v6325 = vpack.c.b16 %v6129, %v6125
      %v6326 = vpack.c.b16 %v6130, %v6126
      %v6327 = vpack.c.b16 %v6131, %v6127
      %v6328 = vpack.c.b16 %v6136, %v6132
      %v6329 = vpack.c.b16 %v6137, %v6133
      %v6330 = vpack.c.b16 %v6138, %v6134
      %v6331 = vpack.c.b16 %v6139, %v6135
      %v6332 = vpack.c.b16 %v6144, %v6140
      %v6333 = vpack.c.b16 %v6145, %v6141
      %v6334 = vpack.c.b16 %v6146, %v6142
      %v6335 = vpack.c.b16 %v6147, %v6143
      %v6336 = vpack.c.b16 %v6152, %v6148
      %v6337 = vpack.c.b16 %v6153, %v6149
      %v6338 = vpack.c.b16 %v6154, %v6150
      %v6339 = vpack.c.b16 %v6155, %v6151
      %v6340 = vpack.c.b16 %v6160, %v6156
      %v6341 = vpack.c.b16 %v6161, %v6157
      %v6342 = vpack.c.b16 %v6162, %v6158
      %v6343 = vpack.c.b16 %v6163, %v6159
      %v6344 = vpack.c.b16 %v6168, %v6164
      %v6345 = vpack.c.b16 %v6169, %v6165
      %v6346 = vpack.c.b16 %v6170, %v6166
      %v6347 = vpack.c.b16 %v6171, %v6167
      %v6348 = vpack.c.b16 %v6176, %v6172
      %v6349 = vpack.c.b16 %v6177, %v6173
      %v6350 = vpack.c.b16 %v6178, %v6174
      %v6351 = vpack.c.b16 %v6179, %v6175
      %v6352 = vpack.c.b16 %v6184, %v6180
      %v6353 = vpack.c.b16 %v6185, %v6181
      %v6354 = vpack.c.b16 %v6186, %v6182
      %v6355 = vpack.c.b16 %v6187, %v6183
      %v6356 = vpack.c.b16 %v6192, %v6188
      %v6357 = vpack.c.b16 %v6193, %v6189
      %v6358 = vpack.c.b16 %v6194, %v6190
      %v6359 = vpack.c.b16 %v6195, %v6191
      %v6360 = vpack.c.b16 %v6200, %v6196
      %v6361 = vpack.c.b16 %v6201, %v6197
      %v6362 = vpack.c.b16 %v6202, %v6198
      %v6363 = vpack.c.b16 %v6203, %v6199
      %v6364 = vpack.c.b16 %v6208, %v6204
      %v6365 = vpack.c.b16 %v6209, %v6205
      %v6366 = vpack.c.b16 %v6210, %v6206
      %v6367 = vpack.c.b16 %v6211, %v6207
      %v6368 = vpack.c.b16 %v6216, %v6212
      %v6369 = vpack.c.b16 %v6217, %v6213
      %v6370 = vpack.c.b16 %v6218, %v6214
      %v6371 = vpack.c.b16 %v6219, %v6215
      %v6372 = vpack.c.b16 %v6224, %v6220
      %v6373 = vpack.c.b16 %v6225, %v6221
      %v6374 = vpack.c.b16 %v6226, %v6222
      %v6375 = vpack.c.b16 %v6227, %v6223
      %v6376 = vpack.c.b16 %v6232, %v6228
      %v6377 = vpack.c.b16 %v6233, %v6229
      %v6378 = vpack.c.b16 %v6234, %v6230
      %v6379 = vpack.c.b16 %v6235, %v6231
      %v6380 = vpack.c.b16 %v6240, %v6236
      %v6381 = vpack.c.b16 %v6241, %v6237
      %v6382 = vpack.c.b16 %v6242, %v6238
      %v6383 = vpack.c.b16 %v6243, %v6239
      %v6384 = vpack.c.b16 %v6248, %v6244
      %v6385 = vpack.c.b16 %v6249, %v6245
      %v6386 = vpack.c.b16 %v6250, %v6246
      %v6387 = vpack.c.b16 %v6251, %v6247
      %v6388 = vpack.c.b16 %v6256, %v6252
      %v6389 = vpack.c.b16 %v6257, %v6253
      %v6390 = vpack.c.b16 %v6258, %v6254
      %v6391 = vpack.c.b16 %v6259, %v6255
      %v6392 = vpack.c.b16 %v6264, %v6260
      %v6393 = vpack.c.b16 %v6265, %v6261
      %v6394 = vpack.c.b16 %v6266, %v6262
      %v6395 = vpack.c.b16 %v6267, %v6263
      %6524 = vmatprep.subr.bf16.mxu0 %v6269
      %6525 = vmatpush1.bf16.msra.mxu0 %v6268
      %6526 = vmatprep.subr.bf16.mxu0 %v6273
      %6527 = vmatpush1.bf16.msra.mxu0 %v6272
      %6528 = vmatprep.subr.bf16.mxu0 %v6277
      %6529 = vmatpush1.bf16.msra.mxu0 %v6276
      %6530 = vmatprep.subr.bf16.mxu0 %v6281
      %6531 = vmatpush1.bf16.msra.mxu0 %v6280
      %6532 = vmatprep.subr.bf16.mxu0 %v6285
      %6533 = vmatpush1.bf16.msra.mxu0 %v6284
      %6534 = vmatprep.subr.bf16.mxu0 %v6289
      %6535 = vmatpush1.bf16.msra.mxu0 %v6288
      %6536 = vmatprep.subr.bf16.mxu0 %v6293
      %6537 = vmatpush1.bf16.msra.mxu0 %v6292
      %6538 = vmatprep.subr.bf16.mxu0 %v6297
      %6539 = vmatpush1.bf16.msra.mxu0 %v6296
      %6540 = vmatprep.subr.bf16.mxu0 %v6301
      %6541 = vmatpush1.bf16.msra.mxu0 %v6300
      %6542 = vmatprep.subr.bf16.mxu0 %v6305
      %6543 = vmatpush1.bf16.msra.mxu0 %v6304
      %6544 = vmatprep.subr.bf16.mxu0 %v6309
      %6545 = vmatpush1.bf16.msra.mxu0 %v6308
      %6546 = vmatprep.subr.bf16.mxu0 %v6313
      %6547 = vmatpush1.bf16.msra.mxu0 %v6312
      %6548 = vmatprep.subr.bf16.mxu0 %v6317
      %6549 = vmatpush1.bf16.msra.mxu0 %v6316
      %6550 = vmatprep.subr.bf16.mxu0 %v6321
      %6551 = vmatpush1.bf16.msra.mxu0 %v6320
      %6552 = vmatprep.subr.bf16.mxu0 %v6325
      %6553 = vmatpush1.bf16.msra.mxu0 %v6324
      %6554 = vmatprep.subr.bf16.mxu0 %v6329
      %6555 = vmatpush1.bf16.msra.mxu0 %v6328
      %6556 = vmatprep.mubr.bf16.mxu0 %v5869
      %6557 = vmatmul.mubr.bf16.gmra.mrb[0].mxu0 %v5868
      %v6558 = vpop.f32.mrb[0].mxu0
      %v6559 = vadd.f32 0.0, %v6558
      %v6560 = vpop.f32.mrb[0].mxu0
      %v6561 = vadd.f32 0.0, %v6560
      %v6562 = vpop.f32.mrb[0].mxu0
      %v6563 = vadd.f32 0.0, %v6562
      %v6564 = vpop.f32.mrb[0].mxu0
      %v6565 = vadd.f32 0.0, %v6564
      %6566 = vmatprep.mubr.bf16.mxu0 %v5873
      %6567 = vmatmul.mubr.bf16.gmra.mrb[0].mxu0 %v5872
      %v6568 = vpop.f32.mrb[0].mxu0
      %v6569 = vadd.f32 0.0, %v6568
      %v6570 = vpop.f32.mrb[0].mxu0
      %v6571 = vadd.f32 0.0, %v6570
      %v6572 = vpop.f32.mrb[0].mxu0
      %v6573 = vpop.f32.mrb[0].mxu0
      %6574 = vdwg.mxu0
      %6575 = vmatprep.subr.bf16.mxu0 %v6333
      %6576 = vmatpush1.bf16.msra.mxu0 %v6332
      %6577 = vmatprep.subr.bf16.mxu0 %v6337
      %6578 = vmatpush1.bf16.msra.mxu0 %v6336
      %6579 = vmatprep.subr.bf16.mxu0 %v6341
      %6580 = vmatpush1.bf16.msra.mxu0 %v6340
      %6581 = vmatprep.subr.bf16.mxu0 %v6345
      %6582 = vmatpush1.bf16.msra.mxu0 %v6344
      %6583 = vmatprep.subr.bf16.mxu0 %v6349
      %6584 = vmatpush1.bf16.msra.mxu0 %v6348
      %6585 = vmatprep.subr.bf16.mxu0 %v6353
      %6586 = vmatpush1.bf16.msra.mxu0 %v6352
      %6587 = vmatprep.subr.bf16.mxu0 %v6357
      %6588 = vmatpush1.bf16.msra.mxu0 %v6356
      %6589 = vmatprep.subr.bf16.mxu0 %v6361
      %6590 = vmatpush1.bf16.msra.mxu0 %v6360
      %6591 = vmatprep.subr.bf16.mxu0 %v6365
      %6592 = vmatpush1.bf16.msra.mxu0 %v6364
      %6593 = vmatprep.subr.bf16.mxu0 %v6369
      %6594 = vmatpush1.bf16.msra.mxu0 %v6368
      %6595 = vmatprep.subr.bf16.mxu0 %v6373
      %6596 = vmatpush1.bf16.msra.mxu0 %v6372
      %6597 = vmatprep.subr.bf16.mxu0 %v6377
      %6598 = vmatpush1.bf16.msra.mxu0 %v6376
      %6599 = vmatprep.subr.bf16.mxu0 %v6381
      %6600 = vmatpush1.bf16.msra.mxu0 %v6380
      %6601 = vmatprep.subr.bf16.mxu0 %v6385
      %6602 = vmatpush1.bf16.msra.mxu0 %v6384
      %6603 = vmatprep.subr.bf16.mxu0 %v6389
      %6604 = vmatpush1.bf16.msra.mxu0 %v6388
      %6605 = vmatprep.subr.bf16.mxu0 %v6393
      %6606 = vmatpush1.bf16.msra.mxu0 %v6392
      %6607 = vmatprep.mubr.bf16.mxu0 %v5871
      %6608 = vmatmul.mubr.bf16.gmra.mrb[0].mxu0 %v5870
      %v6609 = vpop.f32.mrb[0].mxu0
      %v6610 = vadd.f32 %v6559, %v6609
      %v6611 = vpop.f32.mrb[0].mxu0
      %v6612 = vadd.f32 %v6561, %v6611
      %v6613 = vpop.f32.mrb[0].mxu0
      %v6614 = vadd.f32 %v6563, %v6613
      %v6615 = vpop.f32.mrb[0].mxu0
      %v6616 = vadd.f32 %v6565, %v6615
      %6617 = vmatprep.mubr.bf16.mxu0 %v5875
      %6618 = vmatmul.mubr.bf16.gmra.mrb[0].mxu0 %v5874
      %v6619 = vpop.f32.mrb[0].mxu0
      %v6620 = vadd.f32 %v6569, %v6619
      %v6621 = vpop.f32.mrb[0].mxu0
      %v6622 = vadd.f32 %v6571, %v6621
      %v6623 = vpop.f32.mrb[0].mxu0
      %v6624 = vpop.f32.mrb[0].mxu0
      %6625 = vdwg.mxu0
      %6626 = vmatprep.subr.bf16.mxu0 %v6271
      %6627 = vmatpush1.bf16.msra.mxu0 %v6270
      %6628 = vmatprep.subr.bf16.mxu0 %v6275
      %6629 = vmatpush1.bf16.msra.mxu0 %v6274
      %6630 = vmatprep.subr.bf16.mxu0 %v6279
      %6631 = vmatpush1.bf16.msra.mxu0 %v6278
      %6632 = vmatprep.subr.bf16.mxu0 %v6283
      %6633 = vmatpush1.bf16.msra.mxu0 %v6282
      %6634 = vmatprep.subr.bf16.mxu0 %v6287
      %6635 = vmatpush1.bf16.msra.mxu0 %v6286
      %6636 = vmatprep.subr.bf16.mxu0 %v6291
      %6637 = vmatpush1.bf16.msra.mxu0 %v6290
      %6638 = vmatprep.subr.bf16.mxu0 %v6295
      %6639 = vmatpush1.bf16.msra.mxu0 %v6294
      %6640 = vmatprep.subr.bf16.mxu0 %v6299
      %6641 = vmatpush1.bf16.msra.mxu0 %v6298
      %6642 = vmatprep.subr.bf16.mxu0 %v6303
      %6643 = vmatpush1.bf16.msra.mxu0 %v6302
      %6644 = vmatprep.subr.bf16.mxu0 %v6307
      %6645 = vmatpush1.bf16.msra.mxu0 %v6306
      %6646 = vmatprep.subr.bf16.mxu0 %v6311
      %6647 = vmatpush1.bf16.msra.mxu0 %v6310
      %6648 = vmatprep.subr.bf16.mxu0 %v6315
      %6649 = vmatpush1.bf16.msra.mxu0 %v6314
      %6650 = vmatprep.subr.bf16.mxu0 %v6319
      %6651 = vmatpush1.bf16.msra.mxu0 %v6318
      %6652 = vmatprep.subr.bf16.mxu0 %v6323
      %6653 = vmatpush1.bf16.msra.mxu0 %v6322
      %6654 = vmatprep.subr.bf16.mxu0 %v6327
      %6655 = vmatpush1.bf16.msra.mxu0 %v6326
      %6656 = vmatprep.subr.bf16.mxu0 %v6331
      %6657 = vmatpush1.bf16.msra.mxu0 %v6330
      %6658 = vmatprep.mubr.bf16.mxu0 %v5869
      %6659 = vmatmul.mubr.bf16.gmra.mrb[0].mxu0 %v5868
      %v6660 = vpop.f32.mrb[0].mxu0
      %v6661 = vadd.f32 0.0, %v6660
      %v6662 = vpop.f32.mrb[0].mxu0
      %v6663 = vadd.f32 0.0, %v6662
      %v6664 = vpop.f32.mrb[0].mxu0
      %v6665 = vadd.f32 0.0, %v6664
      %v6666 = vpop.f32.mrb[0].mxu0
      %v6667 = vadd.f32 0.0, %v6666
      %6668 = vmatprep.mubr.bf16.mxu0 %v5873
      %6669 = vmatmul.mubr.bf16.gmra.mrb[0].mxu0 %v5872
      %v6670 = vpop.f32.mrb[0].mxu0
      %v6671 = vadd.f32 0.0, %v6670
      %v6672 = vpop.f32.mrb[0].mxu0
      %v6673 = vadd.f32 0.0, %v6672
      %v6674 = vpop.f32.mrb[0].mxu0
      %v6675 = vpop.f32.mrb[0].mxu0
      %6676 = vdwg.mxu0
      %6677 = vmatprep.subr.bf16.mxu0 %v6335
      %6678 = vmatpush1.bf16.msra.mxu0 %v6334
      %6679 = vmatprep.subr.bf16.mxu0 %v6339
      %6680 = vmatpush1.bf16.msra.mxu0 %v6338
      %6681 = vmatprep.subr.bf16.mxu0 %v6343
      %6682 = vmatpush1.bf16.msra.mxu0 %v6342
      %6683 = vmatprep.subr.bf16.mxu0 %v6347
      %6684 = vmatpush1.bf16.msra.mxu0 %v6346
      %6685 = vmatprep.subr.bf16.mxu0 %v6351
      %6686 = vmatpush1.bf16.msra.mxu0 %v6350
      %6687 = vmatprep.subr.bf16.mxu0 %v6355
      %6688 = vmatpush1.bf16.msra.mxu0 %v6354
      %6689 = vmatprep.subr.bf16.mxu0 %v6359
      %6690 = vmatpush1.bf16.msra.mxu0 %v6358
      %6691 = vmatprep.subr.bf16.mxu0 %v6363
      %6692 = vmatpush1.bf16.msra.mxu0 %v6362
      %6693 = vmatprep.subr.bf16.mxu0 %v6367
      %6694 = vmatpush1.bf16.msra.mxu0 %v6366
      %6695 = vmatprep.subr.bf16.mxu0 %v6371
      %6696 = vmatpush1.bf16.msra.mxu0 %v6370
      %6697 = vmatprep.subr.bf16.mxu0 %v6375
      %6698 = vmatpush1.bf16.msra.mxu0 %v6374
      %6699 = vmatprep.subr.bf16.mxu0 %v6379
      %6700 = vmatpush1.bf16.msra.mxu0 %v6378
      %6701 = vmatprep.subr.bf16.mxu0 %v6383
      %6702 = vmatpush1.bf16.msra.mxu0 %v6382
      %6703 = vmatprep.subr.bf16.mxu0 %v6387
      %6704 = vmatpush1.bf16.msra.mxu0 %v6386
      %6705 = vmatprep.subr.bf16.mxu0 %v6391
      %6706 = vmatpush1.bf16.msra.mxu0 %v6390
      %6707 = vmatprep.subr.bf16.mxu0 %v6395
      %6708 = vmatpush1.bf16.msra.mxu0 %v6394
      %6709 = vmatprep.mubr.bf16.mxu0 %v5871
      %6710 = vmatmul.mubr.bf16.gmra.mrb[0].mxu0 %v5870
      %v6711 = vpop.f32.mrb[0].mxu0
      %v6712 = vadd.f32 %v6661, %v6711
      %v6713 = vpop.f32.mrb[0].mxu0
      %v6714 = vadd.f32 %v6663, %v6713
      %v6715 = vpop.f32.mrb[0].mxu0
      %v6716 = vadd.f32 %v6665, %v6715
      %v6717 = vpop.f32.mrb[0].mxu0
      %v6718 = vadd.f32 %v6667, %v6717
      %6719 = vmatprep.mubr.bf16.mxu0 %v5875
      %6720 = vmatmul.mubr.bf16.gmra.mrb[0].mxu0 %v5874
      %v6721 = vpop.f32.mrb[0].mxu0
      %v6722 = vadd.f32 %v6671, %v6721
      %v6723 = vpop.f32.mrb[0].mxu0
      %v6724 = vadd.f32 %v6673, %v6723
      %v6725 = vpop.f32.mrb[0].mxu0
      %v6726 = vpop.f32.mrb[0].mxu0
      %6727 = vdwg.mxu0
      %v6740 = vrot.slane %v6610, 7
      %v6741 = vrot.slane %v6612, 7
      %v6742 = vrot.slane %v6712, 7
      %v6743 = vrot.slane %v6714, 7
      %v6744 = vrot.slane %v6614, 7
      %v6745 = vsel %vm583, %v6740, %v6744
      %v6746 = vrot.slane %v6616, 7
      %v6747 = vsel %vm583, %v6741, %v6746
      %v6748 = vrot.slane %v6716, 7
      %v6749 = vsel %vm583, %v6742, %v6748
      %v6750 = vrot.slane %v6718, 7
      %v6751 = vsel %vm583, %v6743, %v6750
      %v6752 = vrot.slane %v6620, 7
      %v6753 = vsel %vm583, %v6744, %v6752
      %v6754 = vrot.slane %v6622, 7
      %v6755 = vsel %vm583, %v6746, %v6754
      %v6756 = vrot.slane %v6722, 7
      %v6757 = vsel %vm583, %v6748, %v6756
      %v6758 = vrot.slane %v6724, 7
      %v6759 = vsel %vm583, %v6750, %v6758
      %6772 = vst [vmem:[#allocation2 + $0x20] sm:$0xfe] %v6740
      %6773 = vst [vmem:[#allocation2 + $0x28] sm:$0xfe] %v6741
      %6774 = vst [vmem:[#allocation2 + $0x30] sm:$0xfe] %v6742
      %6775 = vst [vmem:[#allocation2 + $0x38] sm:$0xfe] %v6743
      %6776 = vst [vmem:[#allocation2 + $0x40] sm:$0xff] %v6745
      %6777 = vst [vmem:[#allocation2 + $0x48] sm:$0xff] %v6747
      %6778 = vst [vmem:[#allocation2 + $0x50] sm:$0xff] %v6749
      %6779 = vst [vmem:[#allocation2 + $0x58] sm:$0xff] %v6751
      %6780 = vst [vmem:[#allocation2 + $0x60] sm:$0x7] %v6753
      %6781 = vst [vmem:[#allocation2 + $0x68] sm:$0x7] %v6755
      %6782 = vst [vmem:[#allocation2 + $0x70] sm:$0x7] %v6757
      %6783 = vst [vmem:[#allocation2 + $0x78] sm:$0x7] %v6759
      %v6784 = vld [vmem:[#allocation2 + $0x20] sm:$0xff]
      %v6785 = vld [vmem:[#allocation2 + $0x28] sm:$0xff]
      %v6786 = vld [vmem:[#allocation2 + $0x30] sm:$0xff]
      %v6787 = vld [vmem:[#allocation2 + $0x38] sm:$0xff]
      %v6788 = vld [vmem:[#allocation2 + $0x40] sm:$0xff]
      %v6789 = vld [vmem:[#allocation2 + $0x48] sm:$0xff]
      %v6790 = vld [vmem:[#allocation2 + $0x50] sm:$0xff]
      %v6791 = vld [vmem:[#allocation2 + $0x58] sm:$0xff]
      %v6792 = vld [vmem:[#allocation2 + $0x60] sm:$0x3]
      %v6793 = vld [vmem:[#allocation2 + $0x68] sm:$0x3]
      %v6794 = vld [vmem:[#allocation2 + $0x70] sm:$0x3]
      %v6795 = vld [vmem:[#allocation2 + $0x78] sm:$0x3]
      %v6796 = vld [vmem:[%s2395] sm:$0xff]
      %v6797 = vld [vmem:[%s2395 + $0x8] sm:$0xff]
      %v6798 = vld [vmem:[%s2395 + $0x10] sm:$0xff]
      %v6799 = vld [vmem:[%s2395 + $0x18] sm:$0xff]
      %v6800 = vld [vmem:[%s2395 + $0x20] sm:$0xff]
      %v6801 = vld [vmem:[%s2395 + $0x28] sm:$0xff]
      %v6802 = vld [vmem:[%s2395 + $0x30] sm:$0xff]
      %v6803 = vld [vmem:[%s2395 + $0x38] sm:$0xff]
      %v6804 = vld [vmem:[%s2395 + $0x40] sm:$0xff]
      %v6805 = vld [vmem:[%s2395 + $0x48] sm:$0xff]
      %v6806 = vld [vmem:[%s2395 + $0x50] sm:$0xff]
      %v6807 = vld [vmem:[%s2395 + $0x58] sm:$0xff]
      %v6808 = vld [vmem:[%s2395 + $0x60] sm:$0xff]
      %v6809 = vld [vmem:[%s2395 + $0x68] sm:$0xff]
      %v6810 = vld [vmem:[%s2395 + $0x70] sm:$0xff]
      %v6811 = vld [vmem:[%s2395 + $0x78] sm:$0xff]
      %v6812 = vld [vmem:[%s2395 + $0x80] sm:$0xff]
      %v6813 = vld [vmem:[%s2395 + $0x88] sm:$0xff]
      %v6814 = vld [vmem:[%s2395 + $0x90] sm:$0xff]
      %v6815 = vld [vmem:[%s2395 + $0x98] sm:$0xff]
      %v6816 = vld [vmem:[%s2395 + $0xa0] sm:$0xff]
      %v6817 = vld [vmem:[%s2395 + $0xa8] sm:$0xff]
      %v6818 = vld [vmem:[%s2395 + $0xb0] sm:$0xff]
      %v6819 = vld [vmem:[%s2395 + $0xb8] sm:$0xff]
      %v6820 = vld [vmem:[%s2395 + $0xc0] sm:$0xff]
      %v6821 = vld [vmem:[%s2395 + $0xc8] sm:$0xff]
      %v6822 = vld [vmem:[%s2395 + $0xd0] sm:$0xff]
      %v6823 = vld [vmem:[%s2395 + $0xd8] sm:$0xff]
      %v6824 = vld [vmem:[%s2395 + $0xe0] sm:$0xff]
      %v6825 = vld [vmem:[%s2395 + $0xe8] sm:$0xff]
      %v6826 = vld [vmem:[%s2395 + $0xf0] sm:$0xff]
      %v6827 = vld [vmem:[%s2395 + $0xf8] sm:$0xff]
      %v6828 = vld [vmem:[%s2395 + $0x100] sm:$0xff]
      %v6829 = vld [vmem:[%s2395 + $0x108] sm:$0xff]
      %v6830 = vld [vmem:[%s2395 + $0x110] sm:$0xff]
      %v6831 = vld [vmem:[%s2395 + $0x118] sm:$0xff]
      %v6832 = vld [vmem:[%s2395 + $0x120] sm:$0xff]
      %v6833 = vld [vmem:[%s2395 + $0x128] sm:$0xff]
      %v6834 = vld [vmem:[%s2395 + $0x130] sm:$0xff]
      %v6835 = vld [vmem:[%s2395 + $0x138] sm:$0xff]
      %v6836 = vld [vmem:[%s2395 + $0x140] sm:$0xff]
      %v6837 = vld [vmem:[%s2395 + $0x148] sm:$0xff]
      %v6838 = vld [vmem:[%s2395 + $0x150] sm:$0xff]
      %v6839 = vld [vmem:[%s2395 + $0x158] sm:$0xff]
      %v6840 = vld [vmem:[%s2395 + $0x160] sm:$0xff]
      %v6841 = vld [vmem:[%s2395 + $0x168] sm:$0xff]
      %v6842 = vld [vmem:[%s2395 + $0x170] sm:$0xff]
      %v6843 = vld [vmem:[%s2395 + $0x178] sm:$0xff]
      %v6844 = vld [vmem:[%s2395 + $0x180] sm:$0xff]
      %v6845 = vld [vmem:[%s2395 + $0x188] sm:$0xff]
      %v6846 = vld [vmem:[%s2395 + $0x190] sm:$0xff]
      %v6847 = vld [vmem:[%s2395 + $0x198] sm:$0xff]
      %v6848 = vld [vmem:[%s2395 + $0x1a0] sm:$0xff]
      %v6849 = vld [vmem:[%s2395 + $0x1a8] sm:$0xff]
      %v6850 = vld [vmem:[%s2395 + $0x1b0] sm:$0xff]
      %v6851 = vld [vmem:[%s2395 + $0x1b8] sm:$0xff]
      %v6852 = vld [vmem:[%s2395 + $0x1c0] sm:$0xff]
      %v6853 = vld [vmem:[%s2395 + $0x1c8] sm:$0xff]
      %v6854 = vld [vmem:[%s2395 + $0x1d0] sm:$0xff]
      %v6855 = vld [vmem:[%s2395 + $0x1d8] sm:$0xff]
      %v6856 = vld [vmem:[%s2395 + $0x1e0] sm:$0xff]
      %v6857 = vld [vmem:[%s2395 + $0x1e8] sm:$0xff]
      %v6858 = vld [vmem:[%s2395 + $0x1f0] sm:$0xff]
      %v6859 = vld [vmem:[%s2395 + $0x1f8] sm:$0xff]
      %v6860 = vld [vmem:[%s2395 + $0x200] sm:$0xff]
      %v6861 = vld [vmem:[%s2395 + $0x208] sm:$0xff]
      %v6862 = vld [vmem:[%s2395 + $0x210] sm:$0xff]
      %v6863 = vld [vmem:[%s2395 + $0x218] sm:$0xff]
      %v6864 = vld [vmem:[%s2395 + $0x220] sm:$0xff]
      %v6865 = vld [vmem:[%s2395 + $0x228] sm:$0xff]
      %v6866 = vld [vmem:[%s2395 + $0x230] sm:$0xff]
      %v6867 = vld [vmem:[%s2395 + $0x238] sm:$0xff]
      %v6868 = vld [vmem:[%s2395 + $0x240] sm:$0xff]
      %v6869 = vld [vmem:[%s2395 + $0x248] sm:$0xff]
      %v6870 = vld [vmem:[%s2395 + $0x250] sm:$0xff]
      %v6871 = vld [vmem:[%s2395 + $0x258] sm:$0xff]
      %v6872 = vld [vmem:[%s2395 + $0x260] sm:$0xff]
      %v6873 = vld [vmem:[%s2395 + $0x268] sm:$0xff]
      %v6874 = vld [vmem:[%s2395 + $0x270] sm:$0xff]
      %v6875 = vld [vmem:[%s2395 + $0x278] sm:$0xff]
      %v6876 = vld [vmem:[%s2395 + $0x280] sm:$0xff]
      %v6877 = vld [vmem:[%s2395 + $0x288] sm:$0xff]
      %v6878 = vld [vmem:[%s2395 + $0x290] sm:$0xff]
      %v6879 = vld [vmem:[%s2395 + $0x298] sm:$0xff]
      %v6880 = vld [vmem:[%s2395 + $0x2a0] sm:$0xff]
      %v6881 = vld [vmem:[%s2395 + $0x2a8] sm:$0xff]
      %v6882 = vld [vmem:[%s2395 + $0x2b0] sm:$0xff]
      %v6883 = vld [vmem:[%s2395 + $0x2b8] sm:$0xff]
      %v6884 = vld [vmem:[%s2395 + $0x2c0] sm:$0xff]
      %v6885 = vld [vmem:[%s2395 + $0x2c8] sm:$0xff]
      %v6886 = vld [vmem:[%s2395 + $0x2d0] sm:$0xff]
      %v6887 = vld [vmem:[%s2395 + $0x2d8] sm:$0xff]
      %v6888 = vld [vmem:[%s2395 + $0x2e0] sm:$0xff]
      %v6889 = vld [vmem:[%s2395 + $0x2e8] sm:$0xff]
      %v6890 = vld [vmem:[%s2395 + $0x2f0] sm:$0xff]
      %v6891 = vld [vmem:[%s2395 + $0x2f8] sm:$0xff]
      %v6892 = vld [vmem:[%s2395 + $0x300] sm:$0xff]
      %v6893 = vld [vmem:[%s2395 + $0x308] sm:$0xff]
      %v6894 = vld [vmem:[%s2395 + $0x310] sm:$0xff]
      %v6895 = vld [vmem:[%s2395 + $0x318] sm:$0xff]
      %v6896 = vld [vmem:[%s2395 + $0x320] sm:$0xff]
      %v6897 = vld [vmem:[%s2395 + $0x328] sm:$0xff]
      %v6898 = vld [vmem:[%s2395 + $0x330] sm:$0xff]
      %v6899 = vld [vmem:[%s2395 + $0x338] sm:$0xff]
      %v6900 = vld [vmem:[%s2395 + $0x340] sm:$0xff]
      %v6901 = vld [vmem:[%s2395 + $0x348] sm:$0xff]
      %v6902 = vld [vmem:[%s2395 + $0x350] sm:$0xff]
      %v6903 = vld [vmem:[%s2395 + $0x358] sm:$0xff]
      %v6904 = vld [vmem:[%s2395 + $0x360] sm:$0xff]
      %v6905 = vld [vmem:[%s2395 + $0x368] sm:$0xff]
      %v6906 = vld [vmem:[%s2395 + $0x370] sm:$0xff]
      %v6907 = vld [vmem:[%s2395 + $0x378] sm:$0xff]
      %v6908 = vld [vmem:[%s2395 + $0x380] sm:$0xff]
      %v6909 = vld [vmem:[%s2395 + $0x388] sm:$0xff]
      %v6910 = vld [vmem:[%s2395 + $0x390] sm:$0xff]
      %v6911 = vld [vmem:[%s2395 + $0x398] sm:$0xff]
      %v6912 = vld [vmem:[%s2395 + $0x3a0] sm:$0xff]
      %v6913 = vld [vmem:[%s2395 + $0x3a8] sm:$0xff]
      %v6914 = vld [vmem:[%s2395 + $0x3b0] sm:$0xff]
      %v6915 = vld [vmem:[%s2395 + $0x3b8] sm:$0xff]
      %v6916 = vld [vmem:[%s2395 + $0x3c0] sm:$0xff]
      %v6917 = vld [vmem:[%s2395 + $0x3c8] sm:$0xff]
      %v6918 = vld [vmem:[%s2395 + $0x3d0] sm:$0xff]
      %v6919 = vld [vmem:[%s2395 + $0x3d8] sm:$0xff]
      %v6920 = vld [vmem:[%s2395 + $0x3e0] sm:$0xff]
      %v6921 = vld [vmem:[%s2395 + $0x3e8] sm:$0xff]
      %v6922 = vld [vmem:[%s2395 + $0x3f0] sm:$0xff]
      %v6923 = vld [vmem:[%s2395 + $0x3f8] sm:$0xff]
      %v7052 = vunpack.c.l.b16 %v6796
      %v7053 = vunpack.c.h.b16 %v6796
      %v7054 = vunpack.c.l.b16 %v6797
      %v7055 = vunpack.c.h.b16 %v6797
      %v7056 = vunpack.c.l.b16 %v6798
      %v7057 = vunpack.c.h.b16 %v6798
      %v7058 = vunpack.c.l.b16 %v6799
      %v7059 = vunpack.c.h.b16 %v6799
      %v7060 = vunpack.c.l.b16 %v6800
      %v7061 = vunpack.c.h.b16 %v6800
      %v7062 = vunpack.c.l.b16 %v6801
      %v7063 = vunpack.c.h.b16 %v6801
      %v7064 = vunpack.c.l.b16 %v6802
      %v7065 = vunpack.c.h.b16 %v6802
      %v7066 = vunpack.c.l.b16 %v6803
      %v7067 = vunpack.c.h.b16 %v6803
      %v7068 = vunpack.c.l.b16 %v6804
      %v7069 = vunpack.c.h.b16 %v6804
      %v7070 = vunpack.c.l.b16 %v6805
      %v7071 = vunpack.c.h.b16 %v6805
      %v7072 = vunpack.c.l.b16 %v6806
      %v7073 = vunpack.c.h.b16 %v6806
      %v7074 = vunpack.c.l.b16 %v6807
      %v7075 = vunpack.c.h.b16 %v6807
      %v7076 = vunpack.c.l.b16 %v6808
      %v7077 = vunpack.c.h.b16 %v6808
      %v7078 = vunpack.c.l.b16 %v6809
      %v7079 = vunpack.c.h.b16 %v6809
      %v7080 = vunpack.c.l.b16 %v6810
      %v7081 = vunpack.c.h.b16 %v6810
      %v7082 = vunpack.c.l.b16 %v6811
      %v7083 = vunpack.c.h.b16 %v6811
      %v7084 = vunpack.c.l.b16 %v6812
      %v7085 = vunpack.c.h.b16 %v6812
      %v7086 = vunpack.c.l.b16 %v6813
      %v7087 = vunpack.c.h.b16 %v6813
      %v7088 = vunpack.c.l.b16 %v6814
      %v7089 = vunpack.c.h.b16 %v6814
      %v7090 = vunpack.c.l.b16 %v6815
      %v7091 = vunpack.c.h.b16 %v6815
      %v7092 = vunpack.c.l.b16 %v6816
      %v7093 = vunpack.c.h.b16 %v6816
      %v7094 = vunpack.c.l.b16 %v6817
      %v7095 = vunpack.c.h.b16 %v6817
      %v7096 = vunpack.c.l.b16 %v6818
      %v7097 = vunpack.c.h.b16 %v6818
      %v7098 = vunpack.c.l.b16 %v6819
      %v7099 = vunpack.c.h.b16 %v6819
      %v7100 = vunpack.c.l.b16 %v6820
      %v7101 = vunpack.c.h.b16 %v6820
      %v7102 = vunpack.c.l.b16 %v6821
      %v7103 = vunpack.c.h.b16 %v6821
      %v7104 = vunpack.c.l.b16 %v6822
      %v7105 = vunpack.c.h.b16 %v6822
      %v7106 = vunpack.c.l.b16 %v6823
      %v7107 = vunpack.c.h.b16 %v6823
      %v7108 = vunpack.c.l.b16 %v6824
      %v7109 = vunpack.c.h.b16 %v6824
      %v7110 = vunpack.c.l.b16 %v6825
      %v7111 = vunpack.c.h.b16 %v6825
      %v7112 = vunpack.c.l.b16 %v6826
      %v7113 = vunpack.c.h.b16 %v6826
      %v7114 = vunpack.c.l.b16 %v6827
      %v7115 = vunpack.c.h.b16 %v6827
      %v7116 = vunpack.c.l.b16 %v6828
      %v7117 = vunpack.c.h.b16 %v6828
      %v7118 = vunpack.c.l.b16 %v6829
      %v7119 = vunpack.c.h.b16 %v6829
      %v7120 = vunpack.c.l.b16 %v6830
      %v7121 = vunpack.c.h.b16 %v6830
      %v7122 = vunpack.c.l.b16 %v6831
      %v7123 = vunpack.c.h.b16 %v6831
      %v7124 = vunpack.c.l.b16 %v6832
      %v7125 = vunpack.c.h.b16 %v6832
      %v7126 = vunpack.c.l.b16 %v6833
      %v7127 = vunpack.c.h.b16 %v6833
      %v7128 = vunpack.c.l.b16 %v6834
      %v7129 = vunpack.c.h.b16 %v6834
      %v7130 = vunpack.c.l.b16 %v6835
      %v7131 = vunpack.c.h.b16 %v6835
      %v7132 = vunpack.c.l.b16 %v6836
      %v7133 = vunpack.c.h.b16 %v6836
      %v7134 = vunpack.c.l.b16 %v6837
      %v7135 = vunpack.c.h.b16 %v6837
      %v7136 = vunpack.c.l.b16 %v6838
      %v7137 = vunpack.c.h.b16 %v6838
      %v7138 = vunpack.c.l.b16 %v6839
      %v7139 = vunpack.c.h.b16 %v6839
      %v7140 = vunpack.c.l.b16 %v6840
      %v7141 = vunpack.c.h.b16 %v6840
      %v7142 = vunpack.c.l.b16 %v6841
      %v7143 = vunpack.c.h.b16 %v6841
      %v7144 = vunpack.c.l.b16 %v6842
      %v7145 = vunpack.c.h.b16 %v6842
      %v7146 = vunpack.c.l.b16 %v6843
      %v7147 = vunpack.c.h.b16 %v6843
      %v7148 = vunpack.c.l.b16 %v6844
      %v7149 = vunpack.c.h.b16 %v6844
      %v7150 = vunpack.c.l.b16 %v6845
      %v7151 = vunpack.c.h.b16 %v6845
      %v7152 = vunpack.c.l.b16 %v6846
      %v7153 = vunpack.c.h.b16 %v6846
      %v7154 = vunpack.c.l.b16 %v6847
      %v7155 = vunpack.c.h.b16 %v6847
      %v7156 = vunpack.c.l.b16 %v6848
      %v7157 = vunpack.c.h.b16 %v6848
      %v7158 = vunpack.c.l.b16 %v6849
      %v7159 = vunpack.c.h.b16 %v6849
      %v7160 = vunpack.c.l.b16 %v6850
      %v7161 = vunpack.c.h.b16 %v6850
      %v7162 = vunpack.c.l.b16 %v6851
      %v7163 = vunpack.c.h.b16 %v6851
      %v7164 = vunpack.c.l.b16 %v6852
      %v7165 = vunpack.c.h.b16 %v6852
      %v7166 = vunpack.c.l.b16 %v6853
      %v7167 = vunpack.c.h.b16 %v6853
      %v7168 = vunpack.c.l.b16 %v6854
      %v7169 = vunpack.c.h.b16 %v6854
      %v7170 = vunpack.c.l.b16 %v6855
      %v7171 = vunpack.c.h.b16 %v6855
      %v7172 = vunpack.c.l.b16 %v6856
      %v7173 = vunpack.c.h.b16 %v6856
      %v7174 = vunpack.c.l.b16 %v6857
      %v7175 = vunpack.c.h.b16 %v6857
      %v7176 = vunpack.c.l.b16 %v6858
      %v7177 = vunpack.c.h.b16 %v6858
      %v7178 = vunpack.c.l.b16 %v6859
      %v7179 = vunpack.c.h.b16 %v6859
      %v7180 = vunpack.c.l.b16 %v6860
      %v7181 = vunpack.c.h.b16 %v6860
      %v7182 = vunpack.c.l.b16 %v6861
      %v7183 = vunpack.c.h.b16 %v6861
      %v7184 = vunpack.c.l.b16 %v6862
      %v7185 = vunpack.c.h.b16 %v6862
      %v7186 = vunpack.c.l.b16 %v6863
      %v7187 = vunpack.c.h.b16 %v6863
      %v7188 = vunpack.c.l.b16 %v6864
      %v7189 = vunpack.c.h.b16 %v6864
      %v7190 = vunpack.c.l.b16 %v6865
      %v7191 = vunpack.c.h.b16 %v6865
      %v7192 = vunpack.c.l.b16 %v6866
      %v7193 = vunpack.c.h.b16 %v6866
      %v7194 = vunpack.c.l.b16 %v6867
      %v7195 = vunpack.c.h.b16 %v6867
      %v7196 = vunpack.c.l.b16 %v6868
      %v7197 = vunpack.c.h.b16 %v6868
      %v7198 = vunpack.c.l.b16 %v6869
      %v7199 = vunpack.c.h.b16 %v6869
      %v7200 = vunpack.c.l.b16 %v6870
      %v7201 = vunpack.c.h.b16 %v6870
      %v7202 = vunpack.c.l.b16 %v6871
      %v7203 = vunpack.c.h.b16 %v6871
      %v7204 = vunpack.c.l.b16 %v6872
      %v7205 = vunpack.c.h.b16 %v6872
      %v7206 = vunpack.c.l.b16 %v6873
      %v7207 = vunpack.c.h.b16 %v6873
      %v7208 = vunpack.c.l.b16 %v6874
      %v7209 = vunpack.c.h.b16 %v6874
      %v7210 = vunpack.c.l.b16 %v6875
      %v7211 = vunpack.c.h.b16 %v6875
      %v7212 = vunpack.c.l.b16 %v6876
      %v7213 = vunpack.c.h.b16 %v6876
      %v7214 = vunpack.c.l.b16 %v6877
      %v7215 = vunpack.c.h.b16 %v6877
      %v7216 = vunpack.c.l.b16 %v6878
      %v7217 = vunpack.c.h.b16 %v6878
      %v7218 = vunpack.c.l.b16 %v6879
      %v7219 = vunpack.c.h.b16 %v6879
      %v7220 = vunpack.c.l.b16 %v6880
      %v7221 = vunpack.c.h.b16 %v6880
      %v7222 = vunpack.c.l.b16 %v6881
      %v7223 = vunpack.c.h.b16 %v6881
      %v7224 = vunpack.c.l.b16 %v6882
      %v7225 = vunpack.c.h.b16 %v6882
      %v7226 = vunpack.c.l.b16 %v6883
      %v7227 = vunpack.c.h.b16 %v6883
      %v7228 = vunpack.c.l.b16 %v6884
      %v7229 = vunpack.c.h.b16 %v6884
      %v7230 = vunpack.c.l.b16 %v6885
      %v7231 = vunpack.c.h.b16 %v6885
      %v7232 = vunpack.c.l.b16 %v6886
      %v7233 = vunpack.c.h.b16 %v6886
      %v7234 = vunpack.c.l.b16 %v6887
      %v7235 = vunpack.c.h.b16 %v6887
      %v7236 = vunpack.c.l.b16 %v6888
      %v7237 = vunpack.c.h.b16 %v6888
      %v7238 = vunpack.c.l.b16 %v6889
      %v7239 = vunpack.c.h.b16 %v6889
      %v7240 = vunpack.c.l.b16 %v6890
      %v7241 = vunpack.c.h.b16 %v6890
      %v7242 = vunpack.c.l.b16 %v6891
      %v7243 = vunpack.c.h.b16 %v6891
      %v7244 = vunpack.c.l.b16 %v6892
      %v7245 = vunpack.c.h.b16 %v6892
      %v7246 = vunpack.c.l.b16 %v6893
      %v7247 = vunpack.c.h.b16 %v6893
      %v7248 = vunpack.c.l.b16 %v6894
      %v7249 = vunpack.c.h.b16 %v6894
      %v7250 = vunpack.c.l.b16 %v6895
      %v7251 = vunpack.c.h.b16 %v6895
      %v7252 = vunpack.c.l.b16 %v6896
      %v7253 = vunpack.c.h.b16 %v6896
      %v7254 = vunpack.c.l.b16 %v6897
      %v7255 = vunpack.c.h.b16 %v6897
      %v7256 = vunpack.c.l.b16 %v6898
      %v7257 = vunpack.c.h.b16 %v6898
      %v7258 = vunpack.c.l.b16 %v6899
      %v7259 = vunpack.c.h.b16 %v6899
      %v7260 = vunpack.c.l.b16 %v6900
      %v7261 = vunpack.c.h.b16 %v6900
      %v7262 = vunpack.c.l.b16 %v6901
      %v7263 = vunpack.c.h.b16 %v6901
      %v7264 = vunpack.c.l.b16 %v6902
      %v7265 = vunpack.c.h.b16 %v6902
      %v7266 = vunpack.c.l.b16 %v6903
      %v7267 = vunpack.c.h.b16 %v6903
      %v7268 = vunpack.c.l.b16 %v6904
      %v7269 = vunpack.c.h.b16 %v6904
      %v7270 = vunpack.c.l.b16 %v6905
      %v7271 = vunpack.c.h.b16 %v6905
      %v7272 = vunpack.c.l.b16 %v6906
      %v7273 = vunpack.c.h.b16 %v6906
      %v7274 = vunpack.c.l.b16 %v6907
      %v7275 = vunpack.c.h.b16 %v6907
      %v7276 = vunpack.c.l.b16 %v6908
      %v7277 = vunpack.c.h.b16 %v6908
      %v7278 = vunpack.c.l.b16 %v6909
      %v7279 = vunpack.c.h.b16 %v6909
      %v7280 = vunpack.c.l.b16 %v6910
      %v7281 = vunpack.c.h.b16 %v6910
      %v7282 = vunpack.c.l.b16 %v6911
      %v7283 = vunpack.c.h.b16 %v6911
      %v7284 = vunpack.c.l.b16 %v6912
      %v7285 = vunpack.c.h.b16 %v6912
      %v7286 = vunpack.c.l.b16 %v6913
      %v7287 = vunpack.c.h.b16 %v6913
      %v7288 = vunpack.c.l.b16 %v6914
      %v7289 = vunpack.c.h.b16 %v6914
      %v7290 = vunpack.c.l.b16 %v6915
      %v7291 = vunpack.c.h.b16 %v6915
      %v7292 = vunpack.c.l.b16 %v6916
      %v7293 = vunpack.c.h.b16 %v6916
      %v7294 = vunpack.c.l.b16 %v6917
      %v7295 = vunpack.c.h.b16 %v6917
      %v7296 = vunpack.c.l.b16 %v6918
      %v7297 = vunpack.c.h.b16 %v6918
      %v7298 = vunpack.c.l.b16 %v6919
      %v7299 = vunpack.c.h.b16 %v6919
      %v7300 = vunpack.c.l.b16 %v6920
      %v7301 = vunpack.c.h.b16 %v6920
      %v7302 = vunpack.c.l.b16 %v6921
      %v7303 = vunpack.c.h.b16 %v6921
      %v7304 = vunpack.c.l.b16 %v6922
      %v7305 = vunpack.c.h.b16 %v6922
      %v7306 = vunpack.c.l.b16 %v6923
      %v7307 = vunpack.c.h.b16 %v6923
      %v7308 = vpack.c.b16 %v7056, %v7052
      %v7309 = vpack.c.b16 %v7057, %v7053
      %v7310 = vpack.c.b16 %v7058, %v7054
      %v7311 = vpack.c.b16 %v7059, %v7055
      %v7312 = vpack.c.b16 %v7064, %v7060
      %v7313 = vpack.c.b16 %v7065, %v7061
      %v7314 = vpack.c.b16 %v7066, %v7062
      %v7315 = vpack.c.b16 %v7067, %v7063
      %v7316 = vpack.c.b16 %v7072, %v7068
      %v7317 = vpack.c.b16 %v7073, %v7069
      %v7318 = vpack.c.b16 %v7074, %v7070
      %v7319 = vpack.c.b16 %v7075, %v7071
      %v7320 = vpack.c.b16 %v7080, %v7076
      %v7321 = vpack.c.b16 %v7081, %v7077
      %v7322 = vpack.c.b16 %v7082, %v7078
      %v7323 = vpack.c.b16 %v7083, %v7079
      %v7324 = vpack.c.b16 %v7088, %v7084
      %v7325 = vpack.c.b16 %v7089, %v7085
      %v7326 = vpack.c.b16 %v7090, %v7086
      %v7327 = vpack.c.b16 %v7091, %v7087
      %v7328 = vpack.c.b16 %v7096, %v7092
      %v7329 = vpack.c.b16 %v7097, %v7093
      %v7330 = vpack.c.b16 %v7098, %v7094
      %v7331 = vpack.c.b16 %v7099, %v7095
      %v7332 = vpack.c.b16 %v7104, %v7100
      %v7333 = vpack.c.b16 %v7105, %v7101
      %v7334 = vpack.c.b16 %v7106, %v7102
      %v7335 = vpack.c.b16 %v7107, %v7103
      %v7336 = vpack.c.b16 %v7112, %v7108
      %v7337 = vpack.c.b16 %v7113, %v7109
      %v7338 = vpack.c.b16 %v7114, %v7110
      %v7339 = vpack.c.b16 %v7115, %v7111
      %v7340 = vpack.c.b16 %v7120, %v7116
      %v7341 = vpack.c.b16 %v7121, %v7117
      %v7342 = vpack.c.b16 %v7122, %v7118
      %v7343 = vpack.c.b16 %v7123, %v7119
      %v7344 = vpack.c.b16 %v7128, %v7124
      %v7345 = vpack.c.b16 %v7129, %v7125
      %v7346 = vpack.c.b16 %v7130, %v7126
      %v7347 = vpack.c.b16 %v7131, %v7127
      %v7348 = vpack.c.b16 %v7136, %v7132
      %v7349 = vpack.c.b16 %v7137, %v7133
      %v7350 = vpack.c.b16 %v7138, %v7134
      %v7351 = vpack.c.b16 %v7139, %v7135
      %v7352 = vpack.c.b16 %v7144, %v7140
      %v7353 = vpack.c.b16 %v7145, %v7141
      %v7354 = vpack.c.b16 %v7146, %v7142
      %v7355 = vpack.c.b16 %v7147, %v7143
      %v7356 = vpack.c.b16 %v7152, %v7148
      %v7357 = vpack.c.b16 %v7153, %v7149
      %v7358 = vpack.c.b16 %v7154, %v7150
      %v7359 = vpack.c.b16 %v7155, %v7151
      %v7360 = vpack.c.b16 %v7160, %v7156
      %v7361 = vpack.c.b16 %v7161, %v7157
      %v7362 = vpack.c.b16 %v7162, %v7158
      %v7363 = vpack.c.b16 %v7163, %v7159
      %v7364 = vpack.c.b16 %v7168, %v7164
      %v7365 = vpack.c.b16 %v7169, %v7165
      %v7366 = vpack.c.b16 %v7170, %v7166
      %v7367 = vpack.c.b16 %v7171, %v7167
      %v7368 = vpack.c.b16 %v7176, %v7172
      %v7369 = vpack.c.b16 %v7177, %v7173
      %v7370 = vpack.c.b16 %v7178, %v7174
      %v7371 = vpack.c.b16 %v7179, %v7175
      %v7372 = vpack.c.b16 %v7184, %v7180
      %v7373 = vpack.c.b16 %v7185, %v7181
      %v7374 = vpack.c.b16 %v7186, %v7182
      %v7375 = vpack.c.b16 %v7187, %v7183
      %v7376 = vpack.c.b16 %v7192, %v7188
      %v7377 = vpack.c.b16 %v7193, %v7189
      %v7378 = vpack.c.b16 %v7194, %v7190
      %v7379 = vpack.c.b16 %v7195, %v7191
      %v7380 = vpack.c.b16 %v7200, %v7196
      %v7381 = vpack.c.b16 %v7201, %v7197
      %v7382 = vpack.c.b16 %v7202, %v7198
      %v7383 = vpack.c.b16 %v7203, %v7199
      %v7384 = vpack.c.b16 %v7208, %v7204
      %v7385 = vpack.c.b16 %v7209, %v7205
      %v7386 = vpack.c.b16 %v7210, %v7206
      %v7387 = vpack.c.b16 %v7211, %v7207
      %v7388 = vpack.c.b16 %v7216, %v7212
      %v7389 = vpack.c.b16 %v7217, %v7213
      %v7390 = vpack.c.b16 %v7218, %v7214
      %v7391 = vpack.c.b16 %v7219, %v7215
      %v7392 = vpack.c.b16 %v7224, %v7220
      %v7393 = vpack.c.b16 %v7225, %v7221
      %v7394 = vpack.c.b16 %v7226, %v7222
      %v7395 = vpack.c.b16 %v7227, %v7223
      %v7396 = vpack.c.b16 %v7232, %v7228
      %v7397 = vpack.c.b16 %v7233, %v7229
      %v7398 = vpack.c.b16 %v7234, %v7230
      %v7399 = vpack.c.b16 %v7235, %v7231
      %v7400 = vpack.c.b16 %v7240, %v7236
      %v7401 = vpack.c.b16 %v7241, %v7237
      %v7402 = vpack.c.b16 %v7242, %v7238
      %v7403 = vpack.c.b16 %v7243, %v7239
      %v7404 = vpack.c.b16 %v7248, %v7244
      %v7405 = vpack.c.b16 %v7249, %v7245
      %v7406 = vpack.c.b16 %v7250, %v7246
      %v7407 = vpack.c.b16 %v7251, %v7247
      %v7408 = vpack.c.b16 %v7256, %v7252
      %v7409 = vpack.c.b16 %v7257, %v7253
      %v7410 = vpack.c.b16 %v7258, %v7254
      %v7411 = vpack.c.b16 %v7259, %v7255
      %v7412 = vpack.c.b16 %v7264, %v7260
      %v7413 = vpack.c.b16 %v7265, %v7261
      %v7414 = vpack.c.b16 %v7266, %v7262
      %v7415 = vpack.c.b16 %v7267, %v7263
      %v7416 = vpack.c.b16 %v7272, %v7268
      %v7417 = vpack.c.b16 %v7273, %v7269
      %v7418 = vpack.c.b16 %v7274, %v7270
      %v7419 = vpack.c.b16 %v7275, %v7271
      %v7420 = vpack.c.b16 %v7280, %v7276
      %v7421 = vpack.c.b16 %v7281, %v7277
      %v7422 = vpack.c.b16 %v7282, %v7278
      %v7423 = vpack.c.b16 %v7283, %v7279
      %v7424 = vpack.c.b16 %v7288, %v7284
      %v7425 = vpack.c.b16 %v7289, %v7285
      %v7426 = vpack.c.b16 %v7290, %v7286
      %v7427 = vpack.c.b16 %v7291, %v7287
      %v7428 = vpack.c.b16 %v7296, %v7292
      %v7429 = vpack.c.b16 %v7297, %v7293
      %v7430 = vpack.c.b16 %v7298, %v7294
      %v7431 = vpack.c.b16 %v7299, %v7295
      %v7432 = vpack.c.b16 %v7304, %v7300
      %v7433 = vpack.c.b16 %v7305, %v7301
      %v7434 = vpack.c.b16 %v7306, %v7302
      %v7435 = vpack.c.b16 %v7307, %v7303
      %7564 = vmatprep.subr.bf16.mxu0 %v7309
      %7565 = vmatpush1.bf16.msra.mxu0 %v7308
      %7566 = vmatprep.subr.bf16.mxu0 %v7313
      %7567 = vmatpush1.bf16.msra.mxu0 %v7312
      %7568 = vmatprep.subr.bf16.mxu0 %v7317
      %7569 = vmatpush1.bf16.msra.mxu0 %v7316
      %7570 = vmatprep.subr.bf16.mxu0 %v7321
      %7571 = vmatpush1.bf16.msra.mxu0 %v7320
      %7572 = vmatprep.subr.bf16.mxu0 %v7325
      %7573 = vmatpush1.bf16.msra.mxu0 %v7324
      %7574 = vmatprep.subr.bf16.mxu0 %v7329
      %7575 = vmatpush1.bf16.msra.mxu0 %v7328
      %7576 = vmatprep.subr.bf16.mxu0 %v7333
      %7577 = vmatpush1.bf16.msra.mxu0 %v7332
      %7578 = vmatprep.subr.bf16.mxu0 %v7337
      %7579 = vmatpush1.bf16.msra.mxu0 %v7336
      %7580 = vmatprep.subr.bf16.mxu0 %v7341
      %7581 = vmatpush1.bf16.msra.mxu0 %v7340
      %7582 = vmatprep.subr.bf16.mxu0 %v7345
      %7583 = vmatpush1.bf16.msra.mxu0 %v7344
      %7584 = vmatprep.subr.bf16.mxu0 %v7349
      %7585 = vmatpush1.bf16.msra.mxu0 %v7348
      %7586 = vmatprep.subr.bf16.mxu0 %v7353
      %7587 = vmatpush1.bf16.msra.mxu0 %v7352
      %7588 = vmatprep.subr.bf16.mxu0 %v7357
      %7589 = vmatpush1.bf16.msra.mxu0 %v7356
      %7590 = vmatprep.subr.bf16.mxu0 %v7361
      %7591 = vmatpush1.bf16.msra.mxu0 %v7360
      %7592 = vmatprep.subr.bf16.mxu0 %v7365
      %7593 = vmatpush1.bf16.msra.mxu0 %v7364
      %7594 = vmatprep.subr.bf16.mxu0 %v7369
      %7595 = vmatpush1.bf16.msra.mxu0 %v7368
      %7596 = vmatprep.mubr.bf16.mxu0 %v5869
      %7597 = vmatmul.mubr.bf16.gmra.mrb[0].mxu0 %v5868
      %v7598 = vpop.f32.mrb[0].mxu0
      %v7599 = vadd.f32 0.0, %v7598
      %v7600 = vpop.f32.mrb[0].mxu0
      %v7601 = vadd.f32 0.0, %v7600
      %v7602 = vpop.f32.mrb[0].mxu0
      %v7603 = vadd.f32 0.0, %v7602
      %v7604 = vpop.f32.mrb[0].mxu0
      %v7605 = vadd.f32 0.0, %v7604
      %7606 = vmatprep.mubr.bf16.mxu0 %v5873
      %7607 = vmatmul.mubr.bf16.gmra.mrb[0].mxu0 %v5872
      %v7608 = vpop.f32.mrb[0].mxu0
      %v7609 = vadd.f32 0.0, %v7608
      %v7610 = vpop.f32.mrb[0].mxu0
      %v7611 = vadd.f32 0.0, %v7610
      %v7612 = vpop.f32.mrb[0].mxu0
      %v7613 = vpop.f32.mrb[0].mxu0
      %7614 = vdwg.mxu0
      %7615 = vmatprep.subr.bf16.mxu0 %v7373
      %7616 = vmatpush1.bf16.msra.mxu0 %v7372
      %7617 = vmatprep.subr.bf16.mxu0 %v7377
      %7618 = vmatpush1.bf16.msra.mxu0 %v7376
      %7619 = vmatprep.subr.bf16.mxu0 %v7381
      %7620 = vmatpush1.bf16.msra.mxu0 %v7380
      %7621 = vmatprep.subr.bf16.mxu0 %v7385
      %7622 = vmatpush1.bf16.msra.mxu0 %v7384
      %7623 = vmatprep.subr.bf16.mxu0 %v7389
      %7624 = vmatpush1.bf16.msra.mxu0 %v7388
      %7625 = vmatprep.subr.bf16.mxu0 %v7393
      %7626 = vmatpush1.bf16.msra.mxu0 %v7392
      %7627 = vmatprep.subr.bf16.mxu0 %v7397
      %7628 = vmatpush1.bf16.msra.mxu0 %v7396
      %7629 = vmatprep.subr.bf16.mxu0 %v7401
      %7630 = vmatpush1.bf16.msra.mxu0 %v7400
      %7631 = vmatprep.subr.bf16.mxu0 %v7405
      %7632 = vmatpush1.bf16.msra.mxu0 %v7404
      %7633 = vmatprep.subr.bf16.mxu0 %v7409
      %7634 = vmatpush1.bf16.msra.mxu0 %v7408
      %7635 = vmatprep.subr.bf16.mxu0 %v7413
      %7636 = vmatpush1.bf16.msra.mxu0 %v7412
      %7637 = vmatprep.subr.bf16.mxu0 %v7417
      %7638 = vmatpush1.bf16.msra.mxu0 %v7416
      %7639 = vmatprep.subr.bf16.mxu0 %v7421
      %7640 = vmatpush1.bf16.msra.mxu0 %v7420
      %7641 = vmatprep.subr.bf16.mxu0 %v7425
      %7642 = vmatpush1.bf16.msra.mxu0 %v7424
      %7643 = vmatprep.subr.bf16.mxu0 %v7429
      %7644 = vmatpush1.bf16.msra.mxu0 %v7428
      %7645 = vmatprep.subr.bf16.mxu0 %v7433
      %7646 = vmatpush1.bf16.msra.mxu0 %v7432
      %7647 = vmatprep.mubr.bf16.mxu0 %v5871
      %7648 = vmatmul.mubr.bf16.gmra.mrb[0].mxu0 %v5870
      %v7649 = vpop.f32.mrb[0].mxu0
      %v7650 = vadd.f32 %v7599, %v7649
      %v7651 = vpop.f32.mrb[0].mxu0
      %v7652 = vadd.f32 %v7601, %v7651
      %v7653 = vpop.f32.mrb[0].mxu0
      %v7654 = vadd.f32 %v7603, %v7653
      %v7655 = vpop.f32.mrb[0].mxu0
      %v7656 = vadd.f32 %v7605, %v7655
      %7657 = vmatprep.mubr.bf16.mxu0 %v5875
      %7658 = vmatmul.mubr.bf16.gmra.mrb[0].mxu0 %v5874
      %v7659 = vpop.f32.mrb[0].mxu0
      %v7660 = vadd.f32 %v7609, %v7659
      %v7661 = vpop.f32.mrb[0].mxu0
      %v7662 = vadd.f32 %v7611, %v7661
      %v7663 = vpop.f32.mrb[0].mxu0
      %v7664 = vpop.f32.mrb[0].mxu0
      %7665 = vdwg.mxu0
      %7666 = vmatprep.subr.bf16.mxu0 %v7311
      %7667 = vmatpush1.bf16.msra.mxu0 %v7310
      %7668 = vmatprep.subr.bf16.mxu0 %v7315
      %7669 = vmatpush1.bf16.msra.mxu0 %v7314
      %7670 = vmatprep.subr.bf16.mxu0 %v7319
      %7671 = vmatpush1.bf16.msra.mxu0 %v7318
      %7672 = vmatprep.subr.bf16.mxu0 %v7323
      %7673 = vmatpush1.bf16.msra.mxu0 %v7322
      %7674 = vmatprep.subr.bf16.mxu0 %v7327
      %7675 = vmatpush1.bf16.msra.mxu0 %v7326
      %7676 = vmatprep.subr.bf16.mxu0 %v7331
      %7677 = vmatpush1.bf16.msra.mxu0 %v7330
      %7678 = vmatprep.subr.bf16.mxu0 %v7335
      %7679 = vmatpush1.bf16.msra.mxu0 %v7334
      %7680 = vmatprep.subr.bf16.mxu0 %v7339
      %7681 = vmatpush1.bf16.msra.mxu0 %v7338
      %7682 = vmatprep.subr.bf16.mxu0 %v7343
      %7683 = vmatpush1.bf16.msra.mxu0 %v7342
      %7684 = vmatprep.subr.bf16.mxu0 %v7347
      %7685 = vmatpush1.bf16.msra.mxu0 %v7346
      %7686 = vmatprep.subr.bf16.mxu0 %v7351
      %7687 = vmatpush1.bf16.msra.mxu0 %v7350
      %7688 = vmatprep.subr.bf16.mxu0 %v7355
      %7689 = vmatpush1.bf16.msra.mxu0 %v7354
      %7690 = vmatprep.subr.bf16.mxu0 %v7359
      %7691 = vmatpush1.bf16.msra.mxu0 %v7358
      %7692 = vmatprep.subr.bf16.mxu0 %v7363
      %7693 = vmatpush1.bf16.msra.mxu0 %v7362
      %7694 = vmatprep.subr.bf16.mxu0 %v7367
      %7695 = vmatpush1.bf16.msra.mxu0 %v7366
      %7696 = vmatprep.subr.bf16.mxu0 %v7371
      %7697 = vmatpush1.bf16.msra.mxu0 %v7370
      %7698 = vmatprep.mubr.bf16.mxu0 %v5869
      %7699 = vmatmul.mubr.bf16.gmra.mrb[0].mxu0 %v5868
      %v7700 = vpop.f32.mrb[0].mxu0
      %v7701 = vadd.f32 0.0, %v7700
      %v7702 = vpop.f32.mrb[0].mxu0
      %v7703 = vadd.f32 0.0, %v7702
      %v7704 = vpop.f32.mrb[0].mxu0
      %v7705 = vadd.f32 0.0, %v7704
      %v7706 = vpop.f32.mrb[0].mxu0
      %v7707 = vadd.f32 0.0, %v7706
      %7708 = vmatprep.mubr.bf16.mxu0 %v5873
      %7709 = vmatmul.mubr.bf16.gmra.mrb[0].mxu0 %v5872
      %v7710 = vpop.f32.mrb[0].mxu0
      %v7711 = vadd.f32 0.0, %v7710
      %v7712 = vpop.f32.mrb[0].mxu0
      %v7713 = vadd.f32 0.0, %v7712
      %v7714 = vpop.f32.mrb[0].mxu0
      %v7715 = vpop.f32.mrb[0].mxu0
      %7716 = vdwg.mxu0
      %7717 = vmatprep.subr.bf16.mxu0 %v7375
      %7718 = vmatpush1.bf16.msra.mxu0 %v7374
      %7719 = vmatprep.subr.bf16.mxu0 %v7379
      %7720 = vmatpush1.bf16.msra.mxu0 %v7378
      %7721 = vmatprep.subr.bf16.mxu0 %v7383
      %7722 = vmatpush1.bf16.msra.mxu0 %v7382
      %7723 = vmatprep.subr.bf16.mxu0 %v7387
      %7724 = vmatpush1.bf16.msra.mxu0 %v7386
      %7725 = vmatprep.subr.bf16.mxu0 %v7391
      %7726 = vmatpush1.bf16.msra.mxu0 %v7390
      %7727 = vmatprep.subr.bf16.mxu0 %v7395
      %7728 = vmatpush1.bf16.msra.mxu0 %v7394
      %7729 = vmatprep.subr.bf16.mxu0 %v7399
      %7730 = vmatpush1.bf16.msra.mxu0 %v7398
      %7731 = vmatprep.subr.bf16.mxu0 %v7403
      %7732 = vmatpush1.bf16.msra.mxu0 %v7402
      %7733 = vmatprep.subr.bf16.mxu0 %v7407
      %7734 = vmatpush1.bf16.msra.mxu0 %v7406
      %7735 = vmatprep.subr.bf16.mxu0 %v7411
      %7736 = vmatpush1.bf16.msra.mxu0 %v7410
      %7737 = vmatprep.subr.bf16.mxu0 %v7415
      %7738 = vmatpush1.bf16.msra.mxu0 %v7414
      %7739 = vmatprep.subr.bf16.mxu0 %v7419
      %7740 = vmatpush1.bf16.msra.mxu0 %v7418
      %7741 = vmatprep.subr.bf16.mxu0 %v7423
      %7742 = vmatpush1.bf16.msra.mxu0 %v7422
      %7743 = vmatprep.subr.bf16.mxu0 %v7427
      %7744 = vmatpush1.bf16.msra.mxu0 %v7426
      %7745 = vmatprep.subr.bf16.mxu0 %v7431
      %7746 = vmatpush1.bf16.msra.mxu0 %v7430
      %7747 = vmatprep.subr.bf16.mxu0 %v7435
      %7748 = vmatpush1.bf16.msra.mxu0 %v7434
      %7749 = vmatprep.mubr.bf16.mxu0 %v5871
      %7750 = vmatmul.mubr.bf16.gmra.mrb[0].mxu0 %v5870
      %v7751 = vpop.f32.mrb[0].mxu0
      %v7752 = vadd.f32 %v7701, %v7751
      %v7753 = vpop.f32.mrb[0].mxu0
      %v7754 = vadd.f32 %v7703, %v7753
      %v7755 = vpop.f32.mrb[0].mxu0
      %v7756 = vadd.f32 %v7705, %v7755
      %v7757 = vpop.f32.mrb[0].mxu0
      %v7758 = vadd.f32 %v7707, %v7757
      %7759 = vmatprep.mubr.bf16.mxu0 %v5875
      %7760 = vmatmul.mubr.bf16.gmra.mrb[0].mxu0 %v5874
      %v7761 = vpop.f32.mrb[0].mxu0
      %v7762 = vadd.f32 %v7711, %v7761
      %v7763 = vpop.f32.mrb[0].mxu0
      %v7764 = vadd.f32 %v7713, %v7763
      %v7765 = vpop.f32.mrb[0].mxu0
      %v7766 = vpop.f32.mrb[0].mxu0
      %7767 = vdwg.mxu0
      %v7768 = vadd.f32 %v6784, %v7650
      %v7769 = vadd.f32 %v6785, %v7652
      %v7770 = vadd.f32 %v6786, %v7752
      %v7771 = vadd.f32 %v6787, %v7754
      %v7772 = vadd.f32 %v6788, %v7654
      %v7773 = vadd.f32 %v6789, %v7656
      %v7774 = vadd.f32 %v6790, %v7756
      %v7775 = vadd.f32 %v6791, %v7758
      %v7776 = vadd.f32 %v6792, %v7660
      %v7777 = vadd.f32 %v6793, %v7662
      %v7778 = vadd.f32 %v6794, %v7762
      %v7779 = vadd.f32 %v6795, %v7764
      %7780 = vst [vmem:[#allocation2 + $0x20] sm:$0xff] %v7768
      %7781 = vst [vmem:[#allocation2 + $0x28] sm:$0xff] %v7769
      %7782 = vst [vmem:[#allocation2 + $0x30] sm:$0xff] %v7770
      %7783 = vst [vmem:[#allocation2 + $0x38] sm:$0xff] %v7771
      %7784 = vst [vmem:[#allocation2 + $0x40] sm:$0xff] %v7772
      %7785 = vst [vmem:[#allocation2 + $0x48] sm:$0xff] %v7773
      %7786 = vst [vmem:[#allocation2 + $0x50] sm:$0xff] %v7774
      %7787 = vst [vmem:[#allocation2 + $0x58] sm:$0xff] %v7775
      %7788 = vst [vmem:[#allocation2 + $0x60] sm:$0x3] %v7776
      %7789 = vst [vmem:[#allocation2 + $0x68] sm:$0x3] %v7777
      %7790 = vst [vmem:[#allocation2 + $0x70] sm:$0x3] %v7778
      %7791 = vst [vmem:[#allocation2 + $0x78] sm:$0x3] %v7779
      %v7792 = vld [vmem:[#allocation2] sm:$0x80]
      %v7793 = vld [vmem:[#allocation2 + $0x8] sm:$0x80]
      %v7794 = vld [vmem:[#allocation2 + $0x10] sm:$0x80]
      %v7795 = vld [vmem:[#allocation2 + $0x18] sm:$0x80]
      %v7796 = vld [vmem:[#allocation2 + $0x20] sm:$0xff]
      %v7797 = vld [vmem:[#allocation2 + $0x28] sm:$0xff]
      %v7798 = vld [vmem:[#allocation2 + $0x30] sm:$0xff]
      %v7799 = vld [vmem:[#allocation2 + $0x38] sm:$0xff]
      %v7800 = vld [vmem:[#allocation2 + $0x40] sm:$0xff]
      %v7801 = vld [vmem:[#allocation2 + $0x48] sm:$0xff]
      %v7802 = vld [vmem:[#allocation2 + $0x50] sm:$0xff]
      %v7803 = vld [vmem:[#allocation2 + $0x58] sm:$0xff]
      %v7804 = vld [vmem:[#allocation2 + $0x60] sm:$0x1]
      %v7805 = vld [vmem:[#allocation2 + $0x68] sm:$0x1]
      %v7806 = vld [vmem:[#allocation2 + $0x70] sm:$0x1]
      %v7807 = vld [vmem:[#allocation2 + $0x78] sm:$0x1]
      %v7808 = vld [vmem:[%s3408] sm:$0xff]
      %v7809 = vld [vmem:[%s3408 + $0x8] sm:$0xff]
      %v7810 = vld [vmem:[%s3408 + $0x10] sm:$0xff]
      %v7811 = vld [vmem:[%s3408 + $0x18] sm:$0xff]
      %v7812 = vld [vmem:[%s3408 + $0x20] sm:$0xff]
      %v7813 = vld [vmem:[%s3408 + $0x28] sm:$0xff]
      %v7814 = vld [vmem:[%s3408 + $0x30] sm:$0xff]
      %v7815 = vld [vmem:[%s3408 + $0x38] sm:$0xff]
      %v7816 = vld [vmem:[%s3408 + $0x40] sm:$0xff]
      %v7817 = vld [vmem:[%s3408 + $0x48] sm:$0xff]
      %v7818 = vld [vmem:[%s3408 + $0x50] sm:$0xff]
      %v7819 = vld [vmem:[%s3408 + $0x58] sm:$0xff]
      %v7820 = vld [vmem:[%s3408 + $0x60] sm:$0xff]
      %v7821 = vld [vmem:[%s3408 + $0x68] sm:$0xff]
      %v7822 = vld [vmem:[%s3408 + $0x70] sm:$0xff]
      %v7823 = vld [vmem:[%s3408 + $0x78] sm:$0xff]
      %v7824 = vld [vmem:[%s3408 + $0x80] sm:$0xff]
      %v7825 = vld [vmem:[%s3408 + $0x88] sm:$0xff]
      %v7826 = vld [vmem:[%s3408 + $0x90] sm:$0xff]
      %v7827 = vld [vmem:[%s3408 + $0x98] sm:$0xff]
      %v7828 = vld [vmem:[%s3408 + $0xa0] sm:$0xff]
      %v7829 = vld [vmem:[%s3408 + $0xa8] sm:$0xff]
      %v7830 = vld [vmem:[%s3408 + $0xb0] sm:$0xff]
      %v7831 = vld [vmem:[%s3408 + $0xb8] sm:$0xff]
      %v7832 = vld [vmem:[%s3408 + $0xc0] sm:$0xff]
      %v7833 = vld [vmem:[%s3408 + $0xc8] sm:$0xff]
      %v7834 = vld [vmem:[%s3408 + $0xd0] sm:$0xff]
      %v7835 = vld [vmem:[%s3408 + $0xd8] sm:$0xff]
      %v7836 = vld [vmem:[%s3408 + $0xe0] sm:$0xff]
      %v7837 = vld [vmem:[%s3408 + $0xe8] sm:$0xff]
      %v7838 = vld [vmem:[%s3408 + $0xf0] sm:$0xff]
      %v7839 = vld [vmem:[%s3408 + $0xf8] sm:$0xff]
      %v7840 = vld [vmem:[%s3408 + $0x100] sm:$0xff]
      %v7841 = vld [vmem:[%s3408 + $0x108] sm:$0xff]
      %v7842 = vld [vmem:[%s3408 + $0x110] sm:$0xff]
      %v7843 = vld [vmem:[%s3408 + $0x118] sm:$0xff]
      %v7844 = vld [vmem:[%s3408 + $0x120] sm:$0xff]
      %v7845 = vld [vmem:[%s3408 + $0x128] sm:$0xff]
      %v7846 = vld [vmem:[%s3408 + $0x130] sm:$0xff]
      %v7847 = vld [vmem:[%s3408 + $0x138] sm:$0xff]
      %v7848 = vld [vmem:[%s3408 + $0x140] sm:$0xff]
      %v7849 = vld [vmem:[%s3408 + $0x148] sm:$0xff]
      %v7850 = vld [vmem:[%s3408 + $0x150] sm:$0xff]
      %v7851 = vld [vmem:[%s3408 + $0x158] sm:$0xff]
      %v7852 = vld [vmem:[%s3408 + $0x160] sm:$0xff]
      %v7853 = vld [vmem:[%s3408 + $0x168] sm:$0xff]
      %v7854 = vld [vmem:[%s3408 + $0x170] sm:$0xff]
      %v7855 = vld [vmem:[%s3408 + $0x178] sm:$0xff]
      %v7856 = vld [vmem:[%s3408 + $0x180] sm:$0xff]
      %v7857 = vld [vmem:[%s3408 + $0x188] sm:$0xff]
      %v7858 = vld [vmem:[%s3408 + $0x190] sm:$0xff]
      %v7859 = vld [vmem:[%s3408 + $0x198] sm:$0xff]
      %v7860 = vld [vmem:[%s3408 + $0x1a0] sm:$0xff]
      %v7861 = vld [vmem:[%s3408 + $0x1a8] sm:$0xff]
      %v7862 = vld [vmem:[%s3408 + $0x1b0] sm:$0xff]
      %v7863 = vld [vmem:[%s3408 + $0x1b8] sm:$0xff]
      %v7864 = vld [vmem:[%s3408 + $0x1c0] sm:$0xff]
      %v7865 = vld [vmem:[%s3408 + $0x1c8] sm:$0xff]
      %v7866 = vld [vmem:[%s3408 + $0x1d0] sm:$0xff]
      %v7867 = vld [vmem:[%s3408 + $0x1d8] sm:$0xff]
      %v7868 = vld [vmem:[%s3408 + $0x1e0] sm:$0xff]
      %v7869 = vld [vmem:[%s3408 + $0x1e8] sm:$0xff]
      %v7870 = vld [vmem:[%s3408 + $0x1f0] sm:$0xff]
      %v7871 = vld [vmem:[%s3408 + $0x1f8] sm:$0xff]
      %v7872 = vld [vmem:[%s3408 + $0x200] sm:$0xff]
      %v7873 = vld [vmem:[%s3408 + $0x208] sm:$0xff]
      %v7874 = vld [vmem:[%s3408 + $0x210] sm:$0xff]
      %v7875 = vld [vmem:[%s3408 + $0x218] sm:$0xff]
      %v7876 = vld [vmem:[%s3408 + $0x220] sm:$0xff]
      %v7877 = vld [vmem:[%s3408 + $0x228] sm:$0xff]
      %v7878 = vld [vmem:[%s3408 + $0x230] sm:$0xff]
      %v7879 = vld [vmem:[%s3408 + $0x238] sm:$0xff]
      %v7880 = vld [vmem:[%s3408 + $0x240] sm:$0xff]
      %v7881 = vld [vmem:[%s3408 + $0x248] sm:$0xff]
      %v7882 = vld [vmem:[%s3408 + $0x250] sm:$0xff]
      %v7883 = vld [vmem:[%s3408 + $0x258] sm:$0xff]
      %v7884 = vld [vmem:[%s3408 + $0x260] sm:$0xff]
      %v7885 = vld [vmem:[%s3408 + $0x268] sm:$0xff]
      %v7886 = vld [vmem:[%s3408 + $0x270] sm:$0xff]
      %v7887 = vld [vmem:[%s3408 + $0x278] sm:$0xff]
      %v7888 = vld [vmem:[%s3408 + $0x280] sm:$0xff]
      %v7889 = vld [vmem:[%s3408 + $0x288] sm:$0xff]
      %v7890 = vld [vmem:[%s3408 + $0x290] sm:$0xff]
      %v7891 = vld [vmem:[%s3408 + $0x298] sm:$0xff]
      %v7892 = vld [vmem:[%s3408 + $0x2a0] sm:$0xff]
      %v7893 = vld [vmem:[%s3408 + $0x2a8] sm:$0xff]
      %v7894 = vld [vmem:[%s3408 + $0x2b0] sm:$0xff]
      %v7895 = vld [vmem:[%s3408 + $0x2b8] sm:$0xff]
      %v7896 = vld [vmem:[%s3408 + $0x2c0] sm:$0xff]
      %v7897 = vld [vmem:[%s3408 + $0x2c8] sm:$0xff]
      %v7898 = vld [vmem:[%s3408 + $0x2d0] sm:$0xff]
      %v7899 = vld [vmem:[%s3408 + $0x2d8] sm:$0xff]
      %v7900 = vld [vmem:[%s3408 + $0x2e0] sm:$0xff]
      %v7901 = vld [vmem:[%s3408 + $0x2e8] sm:$0xff]
      %v7902 = vld [vmem:[%s3408 + $0x2f0] sm:$0xff]
      %v7903 = vld [vmem:[%s3408 + $0x2f8] sm:$0xff]
      %v7904 = vld [vmem:[%s3408 + $0x300] sm:$0xff]
      %v7905 = vld [vmem:[%s3408 + $0x308] sm:$0xff]
      %v7906 = vld [vmem:[%s3408 + $0x310] sm:$0xff]
      %v7907 = vld [vmem:[%s3408 + $0x318] sm:$0xff]
      %v7908 = vld [vmem:[%s3408 + $0x320] sm:$0xff]
      %v7909 = vld [vmem:[%s3408 + $0x328] sm:$0xff]
      %v7910 = vld [vmem:[%s3408 + $0x330] sm:$0xff]
      %v7911 = vld [vmem:[%s3408 + $0x338] sm:$0xff]
      %v7912 = vld [vmem:[%s3408 + $0x340] sm:$0xff]
      %v7913 = vld [vmem:[%s3408 + $0x348] sm:$0xff]
      %v7914 = vld [vmem:[%s3408 + $0x350] sm:$0xff]
      %v7915 = vld [vmem:[%s3408 + $0x358] sm:$0xff]
      %v7916 = vld [vmem:[%s3408 + $0x360] sm:$0xff]
      %v7917 = vld [vmem:[%s3408 + $0x368] sm:$0xff]
      %v7918 = vld [vmem:[%s3408 + $0x370] sm:$0xff]
      %v7919 = vld [vmem:[%s3408 + $0x378] sm:$0xff]
      %v7920 = vld [vmem:[%s3408 + $0x380] sm:$0xff]
      %v7921 = vld [vmem:[%s3408 + $0x388] sm:$0xff]
      %v7922 = vld [vmem:[%s3408 + $0x390] sm:$0xff]
      %v7923 = vld [vmem:[%s3408 + $0x398] sm:$0xff]
      %v7924 = vld [vmem:[%s3408 + $0x3a0] sm:$0xff]
      %v7925 = vld [vmem:[%s3408 + $0x3a8] sm:$0xff]
      %v7926 = vld [vmem:[%s3408 + $0x3b0] sm:$0xff]
      %v7927 = vld [vmem:[%s3408 + $0x3b8] sm:$0xff]
      %v7928 = vld [vmem:[%s3408 + $0x3c0] sm:$0xff]
      %v7929 = vld [vmem:[%s3408 + $0x3c8] sm:$0xff]
      %v7930 = vld [vmem:[%s3408 + $0x3d0] sm:$0xff]
      %v7931 = vld [vmem:[%s3408 + $0x3d8] sm:$0xff]
      %v7932 = vld [vmem:[%s3408 + $0x3e0] sm:$0xff]
      %v7933 = vld [vmem:[%s3408 + $0x3e8] sm:$0xff]
      %v7934 = vld [vmem:[%s3408 + $0x3f0] sm:$0xff]
      %v7935 = vld [vmem:[%s3408 + $0x3f8] sm:$0xff]
      %v8064 = vunpack.c.l.b16 %v7808
      %v8065 = vunpack.c.h.b16 %v7808
      %v8066 = vunpack.c.l.b16 %v7809
      %v8067 = vunpack.c.h.b16 %v7809
      %v8068 = vunpack.c.l.b16 %v7810
      %v8069 = vunpack.c.h.b16 %v7810
      %v8070 = vunpack.c.l.b16 %v7811
      %v8071 = vunpack.c.h.b16 %v7811
      %v8072 = vunpack.c.l.b16 %v7812
      %v8073 = vunpack.c.h.b16 %v7812
      %v8074 = vunpack.c.l.b16 %v7813
      %v8075 = vunpack.c.h.b16 %v7813
      %v8076 = vunpack.c.l.b16 %v7814
      %v8077 = vunpack.c.h.b16 %v7814
      %v8078 = vunpack.c.l.b16 %v7815
      %v8079 = vunpack.c.h.b16 %v7815
      %v8080 = vunpack.c.l.b16 %v7816
      %v8081 = vunpack.c.h.b16 %v7816
      %v8082 = vunpack.c.l.b16 %v7817
      %v8083 = vunpack.c.h.b16 %v7817
      %v8084 = vunpack.c.l.b16 %v7818
      %v8085 = vunpack.c.h.b16 %v7818
      %v8086 = vunpack.c.l.b16 %v7819
      %v8087 = vunpack.c.h.b16 %v7819
      %v8088 = vunpack.c.l.b16 %v7820
      %v8089 = vunpack.c.h.b16 %v7820
      %v8090 = vunpack.c.l.b16 %v7821
      %v8091 = vunpack.c.h.b16 %v7821
      %v8092 = vunpack.c.l.b16 %v7822
      %v8093 = vunpack.c.h.b16 %v7822
      %v8094 = vunpack.c.l.b16 %v7823
      %v8095 = vunpack.c.h.b16 %v7823
      %v8096 = vunpack.c.l.b16 %v7824
      %v8097 = vunpack.c.h.b16 %v7824
      %v8098 = vunpack.c.l.b16 %v7825
      %v8099 = vunpack.c.h.b16 %v7825
      %v8100 = vunpack.c.l.b16 %v7826
      %v8101 = vunpack.c.h.b16 %v7826
      %v8102 = vunpack.c.l.b16 %v7827
      %v8103 = vunpack.c.h.b16 %v7827
      %v8104 = vunpack.c.l.b16 %v7828
      %v8105 = vunpack.c.h.b16 %v7828
      %v8106 = vunpack.c.l.b16 %v7829
      %v8107 = vunpack.c.h.b16 %v7829
      %v8108 = vunpack.c.l.b16 %v7830
      %v8109 = vunpack.c.h.b16 %v7830
      %v8110 = vunpack.c.l.b16 %v7831
      %v8111 = vunpack.c.h.b16 %v7831
      %v8112 = vunpack.c.l.b16 %v7832
      %v8113 = vunpack.c.h.b16 %v7832
      %v8114 = vunpack.c.l.b16 %v7833
      %v8115 = vunpack.c.h.b16 %v7833
      %v8116 = vunpack.c.l.b16 %v7834
      %v8117 = vunpack.c.h.b16 %v7834
      %v8118 = vunpack.c.l.b16 %v7835
      %v8119 = vunpack.c.h.b16 %v7835
      %v8120 = vunpack.c.l.b16 %v7836
      %v8121 = vunpack.c.h.b16 %v7836
      %v8122 = vunpack.c.l.b16 %v7837
      %v8123 = vunpack.c.h.b16 %v7837
      %v8124 = vunpack.c.l.b16 %v7838
      %v8125 = vunpack.c.h.b16 %v7838
      %v8126 = vunpack.c.l.b16 %v7839
      %v8127 = vunpack.c.h.b16 %v7839
      %v8128 = vunpack.c.l.b16 %v7840
      %v8129 = vunpack.c.h.b16 %v7840
      %v8130 = vunpack.c.l.b16 %v7841
      %v8131 = vunpack.c.h.b16 %v7841
      %v8132 = vunpack.c.l.b16 %v7842
      %v8133 = vunpack.c.h.b16 %v7842
      %v8134 = vunpack.c.l.b16 %v7843
      %v8135 = vunpack.c.h.b16 %v7843
      %v8136 = vunpack.c.l.b16 %v7844
      %v8137 = vunpack.c.h.b16 %v7844
      %v8138 = vunpack.c.l.b16 %v7845
      %v8139 = vunpack.c.h.b16 %v7845
      %v8140 = vunpack.c.l.b16 %v7846
      %v8141 = vunpack.c.h.b16 %v7846
      %v8142 = vunpack.c.l.b16 %v7847
      %v8143 = vunpack.c.h.b16 %v7847
      %v8144 = vunpack.c.l.b16 %v7848
      %v8145 = vunpack.c.h.b16 %v7848
      %v8146 = vunpack.c.l.b16 %v7849
      %v8147 = vunpack.c.h.b16 %v7849
      %v8148 = vunpack.c.l.b16 %v7850
      %v8149 = vunpack.c.h.b16 %v7850
      %v8150 = vunpack.c.l.b16 %v7851
      %v8151 = vunpack.c.h.b16 %v7851
      %v8152 = vunpack.c.l.b16 %v7852
      %v8153 = vunpack.c.h.b16 %v7852
      %v8154 = vunpack.c.l.b16 %v7853
      %v8155 = vunpack.c.h.b16 %v7853
      %v8156 = vunpack.c.l.b16 %v7854
      %v8157 = vunpack.c.h.b16 %v7854
      %v8158 = vunpack.c.l.b16 %v7855
      %v8159 = vunpack.c.h.b16 %v7855
      %v8160 = vunpack.c.l.b16 %v7856
      %v8161 = vunpack.c.h.b16 %v7856
      %v8162 = vunpack.c.l.b16 %v7857
      %v8163 = vunpack.c.h.b16 %v7857
      %v8164 = vunpack.c.l.b16 %v7858
      %v8165 = vunpack.c.h.b16 %v7858
      %v8166 = vunpack.c.l.b16 %v7859
      %v8167 = vunpack.c.h.b16 %v7859
      %v8168 = vunpack.c.l.b16 %v7860
      %v8169 = vunpack.c.h.b16 %v7860
      %v8170 = vunpack.c.l.b16 %v7861
      %v8171 = vunpack.c.h.b16 %v7861
      %v8172 = vunpack.c.l.b16 %v7862
      %v8173 = vunpack.c.h.b16 %v7862
      %v8174 = vunpack.c.l.b16 %v7863
      %v8175 = vunpack.c.h.b16 %v7863
      %v8176 = vunpack.c.l.b16 %v7864
      %v8177 = vunpack.c.h.b16 %v7864
      %v8178 = vunpack.c.l.b16 %v7865
      %v8179 = vunpack.c.h.b16 %v7865
      %v8180 = vunpack.c.l.b16 %v7866
      %v8181 = vunpack.c.h.b16 %v7866
      %v8182 = vunpack.c.l.b16 %v7867
      %v8183 = vunpack.c.h.b16 %v7867
      %v8184 = vunpack.c.l.b16 %v7868
      %v8185 = vunpack.c.h.b16 %v7868
      %v8186 = vunpack.c.l.b16 %v7869
      %v8187 = vunpack.c.h.b16 %v7869
      %v8188 = vunpack.c.l.b16 %v7870
      %v8189 = vunpack.c.h.b16 %v7870
      %v8190 = vunpack.c.l.b16 %v7871
      %v8191 = vunpack.c.h.b16 %v7871
      %v8192 = vunpack.c.l.b16 %v7872
      %v8193 = vunpack.c.h.b16 %v7872
      %v8194 = vunpack.c.l.b16 %v7873
      %v8195 = vunpack.c.h.b16 %v7873
      %v8196 = vunpack.c.l.b16 %v7874
      %v8197 = vunpack.c.h.b16 %v7874
      %v8198 = vunpack.c.l.b16 %v7875
      %v8199 = vunpack.c.h.b16 %v7875
      %v8200 = vunpack.c.l.b16 %v7876
      %v8201 = vunpack.c.h.b16 %v7876
      %v8202 = vunpack.c.l.b16 %v7877
      %v8203 = vunpack.c.h.b16 %v7877
      %v8204 = vunpack.c.l.b16 %v7878
      %v8205 = vunpack.c.h.b16 %v7878
      %v8206 = vunpack.c.l.b16 %v7879
      %v8207 = vunpack.c.h.b16 %v7879
      %v8208 = vunpack.c.l.b16 %v7880
      %v8209 = vunpack.c.h.b16 %v7880
      %v8210 = vunpack.c.l.b16 %v7881
      %v8211 = vunpack.c.h.b16 %v7881
      %v8212 = vunpack.c.l.b16 %v7882
      %v8213 = vunpack.c.h.b16 %v7882
      %v8214 = vunpack.c.l.b16 %v7883
      %v8215 = vunpack.c.h.b16 %v7883
      %v8216 = vunpack.c.l.b16 %v7884
      %v8217 = vunpack.c.h.b16 %v7884
      %v8218 = vunpack.c.l.b16 %v7885
      %v8219 = vunpack.c.h.b16 %v7885
      %v8220 = vunpack.c.l.b16 %v7886
      %v8221 = vunpack.c.h.b16 %v7886
      %v8222 = vunpack.c.l.b16 %v7887
      %v8223 = vunpack.c.h.b16 %v7887
      %v8224 = vunpack.c.l.b16 %v7888
      %v8225 = vunpack.c.h.b16 %v7888
      %v8226 = vunpack.c.l.b16 %v7889
      %v8227 = vunpack.c.h.b16 %v7889
      %v8228 = vunpack.c.l.b16 %v7890
      %v8229 = vunpack.c.h.b16 %v7890
      %v8230 = vunpack.c.l.b16 %v7891
      %v8231 = vunpack.c.h.b16 %v7891
      %v8232 = vunpack.c.l.b16 %v7892
      %v8233 = vunpack.c.h.b16 %v7892
      %v8234 = vunpack.c.l.b16 %v7893
      %v8235 = vunpack.c.h.b16 %v7893
      %v8236 = vunpack.c.l.b16 %v7894
      %v8237 = vunpack.c.h.b16 %v7894
      %v8238 = vunpack.c.l.b16 %v7895
      %v8239 = vunpack.c.h.b16 %v7895
      %v8240 = vunpack.c.l.b16 %v7896
      %v8241 = vunpack.c.h.b16 %v7896
      %v8242 = vunpack.c.l.b16 %v7897
      %v8243 = vunpack.c.h.b16 %v7897
      %v8244 = vunpack.c.l.b16 %v7898
      %v8245 = vunpack.c.h.b16 %v7898
      %v8246 = vunpack.c.l.b16 %v7899
      %v8247 = vunpack.c.h.b16 %v7899
      %v8248 = vunpack.c.l.b16 %v7900
      %v8249 = vunpack.c.h.b16 %v7900
      %v8250 = vunpack.c.l.b16 %v7901
      %v8251 = vunpack.c.h.b16 %v7901
      %v8252 = vunpack.c.l.b16 %v7902
      %v8253 = vunpack.c.h.b16 %v7902
      %v8254 = vunpack.c.l.b16 %v7903
      %v8255 = vunpack.c.h.b16 %v7903
      %v8256 = vunpack.c.l.b16 %v7904
      %v8257 = vunpack.c.h.b16 %v7904
      %v8258 = vunpack.c.l.b16 %v7905
      %v8259 = vunpack.c.h.b16 %v7905
      %v8260 = vunpack.c.l.b16 %v7906
      %v8261 = vunpack.c.h.b16 %v7906
      %v8262 = vunpack.c.l.b16 %v7907
      %v8263 = vunpack.c.h.b16 %v7907
      %v8264 = vunpack.c.l.b16 %v7908
      %v8265 = vunpack.c.h.b16 %v7908
      %v8266 = vunpack.c.l.b16 %v7909
      %v8267 = vunpack.c.h.b16 %v7909
      %v8268 = vunpack.c.l.b16 %v7910
      %v8269 = vunpack.c.h.b16 %v7910
      %v8270 = vunpack.c.l.b16 %v7911
      %v8271 = vunpack.c.h.b16 %v7911
      %v8272 = vunpack.c.l.b16 %v7912
      %v8273 = vunpack.c.h.b16 %v7912
      %v8274 = vunpack.c.l.b16 %v7913
      %v8275 = vunpack.c.h.b16 %v7913
      %v8276 = vunpack.c.l.b16 %v7914
      %v8277 = vunpack.c.h.b16 %v7914
      %v8278 = vunpack.c.l.b16 %v7915
      %v8279 = vunpack.c.h.b16 %v7915
      %v8280 = vunpack.c.l.b16 %v7916
      %v8281 = vunpack.c.h.b16 %v7916
      %v8282 = vunpack.c.l.b16 %v7917
      %v8283 = vunpack.c.h.b16 %v7917
      %v8284 = vunpack.c.l.b16 %v7918
      %v8285 = vunpack.c.h.b16 %v7918
      %v8286 = vunpack.c.l.b16 %v7919
      %v8287 = vunpack.c.h.b16 %v7919
      %v8288 = vunpack.c.l.b16 %v7920
      %v8289 = vunpack.c.h.b16 %v7920
      %v8290 = vunpack.c.l.b16 %v7921
      %v8291 = vunpack.c.h.b16 %v7921
      %v8292 = vunpack.c.l.b16 %v7922
      %v8293 = vunpack.c.h.b16 %v7922
      %v8294 = vunpack.c.l.b16 %v7923
      %v8295 = vunpack.c.h.b16 %v7923
      %v8296 = vunpack.c.l.b16 %v7924
      %v8297 = vunpack.c.h.b16 %v7924
      %v8298 = vunpack.c.l.b16 %v7925
      %v8299 = vunpack.c.h.b16 %v7925
      %v8300 = vunpack.c.l.b16 %v7926
      %v8301 = vunpack.c.h.b16 %v7926
      %v8302 = vunpack.c.l.b16 %v7927
      %v8303 = vunpack.c.h.b16 %v7927
      %v8304 = vunpack.c.l.b16 %v7928
      %v8305 = vunpack.c.h.b16 %v7928
      %v8306 = vunpack.c.l.b16 %v7929
      %v8307 = vunpack.c.h.b16 %v7929
      %v8308 = vunpack.c.l.b16 %v7930
      %v8309 = vunpack.c.h.b16 %v7930
      %v8310 = vunpack.c.l.b16 %v7931
      %v8311 = vunpack.c.h.b16 %v7931
      %v8312 = vunpack.c.l.b16 %v7932
      %v8313 = vunpack.c.h.b16 %v7932
      %v8314 = vunpack.c.l.b16 %v7933
      %v8315 = vunpack.c.h.b16 %v7933
      %v8316 = vunpack.c.l.b16 %v7934
      %v8317 = vunpack.c.h.b16 %v7934
      %v8318 = vunpack.c.l.b16 %v7935
      %v8319 = vunpack.c.h.b16 %v7935
      %v8320 = vpack.c.b16 %v8068, %v8064
      %v8321 = vpack.c.b16 %v8069, %v8065
      %v8322 = vpack.c.b16 %v8070, %v8066
      %v8323 = vpack.c.b16 %v8071, %v8067
      %v8324 = vpack.c.b16 %v8076, %v8072
      %v8325 = vpack.c.b16 %v8077, %v8073
      %v8326 = vpack.c.b16 %v8078, %v8074
      %v8327 = vpack.c.b16 %v8079, %v8075
      %v8328 = vpack.c.b16 %v8084, %v8080
      %v8329 = vpack.c.b16 %v8085, %v8081
      %v8330 = vpack.c.b16 %v8086, %v8082
      %v8331 = vpack.c.b16 %v8087, %v8083
      %v8332 = vpack.c.b16 %v8092, %v8088
      %v8333 = vpack.c.b16 %v8093, %v8089
      %v8334 = vpack.c.b16 %v8094, %v8090
      %v8335 = vpack.c.b16 %v8095, %v8091
      %v8336 = vpack.c.b16 %v8100, %v8096
      %v8337 = vpack.c.b16 %v8101, %v8097
      %v8338 = vpack.c.b16 %v8102, %v8098
      %v8339 = vpack.c.b16 %v8103, %v8099
      %v8340 = vpack.c.b16 %v8108, %v8104
      %v8341 = vpack.c.b16 %v8109, %v8105
      %v8342 = vpack.c.b16 %v8110, %v8106
      %v8343 = vpack.c.b16 %v8111, %v8107
      %v8344 = vpack.c.b16 %v8116, %v8112
      %v8345 = vpack.c.b16 %v8117, %v8113
      %v8346 = vpack.c.b16 %v8118, %v8114
      %v8347 = vpack.c.b16 %v8119, %v8115
      %v8348 = vpack.c.b16 %v8124, %v8120
      %v8349 = vpack.c.b16 %v8125, %v8121
      %v8350 = vpack.c.b16 %v8126, %v8122
      %v8351 = vpack.c.b16 %v8127, %v8123
      %v8352 = vpack.c.b16 %v8132, %v8128
      %v8353 = vpack.c.b16 %v8133, %v8129
      %v8354 = vpack.c.b16 %v8134, %v8130
      %v8355 = vpack.c.b16 %v8135, %v8131
      %v8356 = vpack.c.b16 %v8140, %v8136
      %v8357 = vpack.c.b16 %v8141, %v8137
      %v8358 = vpack.c.b16 %v8142, %v8138
      %v8359 = vpack.c.b16 %v8143, %v8139
      %v8360 = vpack.c.b16 %v8148, %v8144
      %v8361 = vpack.c.b16 %v8149, %v8145
      %v8362 = vpack.c.b16 %v8150, %v8146
      %v8363 = vpack.c.b16 %v8151, %v8147
      %v8364 = vpack.c.b16 %v8156, %v8152
      %v8365 = vpack.c.b16 %v8157, %v8153
      %v8366 = vpack.c.b16 %v8158, %v8154
      %v8367 = vpack.c.b16 %v8159, %v8155
      %v8368 = vpack.c.b16 %v8164, %v8160
      %v8369 = vpack.c.b16 %v8165, %v8161
      %v8370 = vpack.c.b16 %v8166, %v8162
      %v8371 = vpack.c.b16 %v8167, %v8163
      %v8372 = vpack.c.b16 %v8172, %v8168
      %v8373 = vpack.c.b16 %v8173, %v8169
      %v8374 = vpack.c.b16 %v8174, %v8170
      %v8375 = vpack.c.b16 %v8175, %v8171
      %v8376 = vpack.c.b16 %v8180, %v8176
      %v8377 = vpack.c.b16 %v8181, %v8177
      %v8378 = vpack.c.b16 %v8182, %v8178
      %v8379 = vpack.c.b16 %v8183, %v8179
      %v8380 = vpack.c.b16 %v8188, %v8184
      %v8381 = vpack.c.b16 %v8189, %v8185
      %v8382 = vpack.c.b16 %v8190, %v8186
      %v8383 = vpack.c.b16 %v8191, %v8187
      %v8384 = vpack.c.b16 %v8196, %v8192
      %v8385 = vpack.c.b16 %v8197, %v8193
      %v8386 = vpack.c.b16 %v8198, %v8194
      %v8387 = vpack.c.b16 %v8199, %v8195
      %v8388 = vpack.c.b16 %v8204, %v8200
      %v8389 = vpack.c.b16 %v8205, %v8201
      %v8390 = vpack.c.b16 %v8206, %v8202
      %v8391 = vpack.c.b16 %v8207, %v8203
      %v8392 = vpack.c.b16 %v8212, %v8208
      %v8393 = vpack.c.b16 %v8213, %v8209
      %v8394 = vpack.c.b16 %v8214, %v8210
      %v8395 = vpack.c.b16 %v8215, %v8211
      %v8396 = vpack.c.b16 %v8220, %v8216
      %v8397 = vpack.c.b16 %v8221, %v8217
      %v8398 = vpack.c.b16 %v8222, %v8218
      %v8399 = vpack.c.b16 %v8223, %v8219
      %v8400 = vpack.c.b16 %v8228, %v8224
      %v8401 = vpack.c.b16 %v8229, %v8225
      %v8402 = vpack.c.b16 %v8230, %v8226
      %v8403 = vpack.c.b16 %v8231, %v8227
      %v8404 = vpack.c.b16 %v8236, %v8232
      %v8405 = vpack.c.b16 %v8237, %v8233
      %v8406 = vpack.c.b16 %v8238, %v8234
      %v8407 = vpack.c.b16 %v8239, %v8235
      %v8408 = vpack.c.b16 %v8244, %v8240
      %v8409 = vpack.c.b16 %v8245, %v8241
      %v8410 = vpack.c.b16 %v8246, %v8242
      %v8411 = vpack.c.b16 %v8247, %v8243
      %v8412 = vpack.c.b16 %v8252, %v8248
      %v8413 = vpack.c.b16 %v8253, %v8249
      %v8414 = vpack.c.b16 %v8254, %v8250
      %v8415 = vpack.c.b16 %v8255, %v8251
      %v8416 = vpack.c.b16 %v8260, %v8256
      %v8417 = vpack.c.b16 %v8261, %v8257
      %v8418 = vpack.c.b16 %v8262, %v8258
      %v8419 = vpack.c.b16 %v8263, %v8259
      %v8420 = vpack.c.b16 %v8268, %v8264
      %v8421 = vpack.c.b16 %v8269, %v8265
      %v8422 = vpack.c.b16 %v8270, %v8266
      %v8423 = vpack.c.b16 %v8271, %v8267
      %v8424 = vpack.c.b16 %v8276, %v8272
      %v8425 = vpack.c.b16 %v8277, %v8273
      %v8426 = vpack.c.b16 %v8278, %v8274
      %v8427 = vpack.c.b16 %v8279, %v8275
      %v8428 = vpack.c.b16 %v8284, %v8280
      %v8429 = vpack.c.b16 %v8285, %v8281
      %v8430 = vpack.c.b16 %v8286, %v8282
      %v8431 = vpack.c.b16 %v8287, %v8283
      %v8432 = vpack.c.b16 %v8292, %v8288
      %v8433 = vpack.c.b16 %v8293, %v8289
      %v8434 = vpack.c.b16 %v8294, %v8290
      %v8435 = vpack.c.b16 %v8295, %v8291
      %v8436 = vpack.c.b16 %v8300, %v8296
      %v8437 = vpack.c.b16 %v8301, %v8297
      %v8438 = vpack.c.b16 %v8302, %v8298
      %v8439 = vpack.c.b16 %v8303, %v8299
      %v8440 = vpack.c.b16 %v8308, %v8304
      %v8441 = vpack.c.b16 %v8309, %v8305
      %v8442 = vpack.c.b16 %v8310, %v8306
      %v8443 = vpack.c.b16 %v8311, %v8307
      %v8444 = vpack.c.b16 %v8316, %v8312
      %v8445 = vpack.c.b16 %v8317, %v8313
      %v8446 = vpack.c.b16 %v8318, %v8314
      %v8447 = vpack.c.b16 %v8319, %v8315
      %8576 = vmatprep.subr.bf16.mxu0 %v8321
      %8577 = vmatpush1.bf16.msra.mxu0 %v8320
      %8578 = vmatprep.subr.bf16.mxu0 %v8325
      %8579 = vmatpush1.bf16.msra.mxu0 %v8324
      %8580 = vmatprep.subr.bf16.mxu0 %v8329
      %8581 = vmatpush1.bf16.msra.mxu0 %v8328
      %8582 = vmatprep.subr.bf16.mxu0 %v8333
      %8583 = vmatpush1.bf16.msra.mxu0 %v8332
      %8584 = vmatprep.subr.bf16.mxu0 %v8337
      %8585 = vmatpush1.bf16.msra.mxu0 %v8336
      %8586 = vmatprep.subr.bf16.mxu0 %v8341
      %8587 = vmatpush1.bf16.msra.mxu0 %v8340
      %8588 = vmatprep.subr.bf16.mxu0 %v8345
      %8589 = vmatpush1.bf16.msra.mxu0 %v8344
      %8590 = vmatprep.subr.bf16.mxu0 %v8349
      %8591 = vmatpush1.bf16.msra.mxu0 %v8348
      %8592 = vmatprep.subr.bf16.mxu0 %v8353
      %8593 = vmatpush1.bf16.msra.mxu0 %v8352
      %8594 = vmatprep.subr.bf16.mxu0 %v8357
      %8595 = vmatpush1.bf16.msra.mxu0 %v8356
      %8596 = vmatprep.subr.bf16.mxu0 %v8361
      %8597 = vmatpush1.bf16.msra.mxu0 %v8360
      %8598 = vmatprep.subr.bf16.mxu0 %v8365
      %8599 = vmatpush1.bf16.msra.mxu0 %v8364
      %8600 = vmatprep.subr.bf16.mxu0 %v8369
      %8601 = vmatpush1.bf16.msra.mxu0 %v8368
      %8602 = vmatprep.subr.bf16.mxu0 %v8373
      %8603 = vmatpush1.bf16.msra.mxu0 %v8372
      %8604 = vmatprep.subr.bf16.mxu0 %v8377
      %8605 = vmatpush1.bf16.msra.mxu0 %v8376
      %8606 = vmatprep.subr.bf16.mxu0 %v8381
      %8607 = vmatpush1.bf16.msra.mxu0 %v8380
      %8608 = vmatprep.mubr.bf16.mxu0 %v5869
      %8609 = vmatmul.mubr.bf16.gmra.mrb[0].mxu0 %v5868
      %v8610 = vpop.f32.mrb[0].mxu0
      %v8611 = vadd.f32 0.0, %v8610
      %v8612 = vpop.f32.mrb[0].mxu0
      %v8613 = vadd.f32 0.0, %v8612
      %v8614 = vpop.f32.mrb[0].mxu0
      %v8615 = vadd.f32 0.0, %v8614
      %v8616 = vpop.f32.mrb[0].mxu0
      %v8617 = vadd.f32 0.0, %v8616
      %8618 = vmatprep.mubr.bf16.mxu0 %v5873
      %8619 = vmatmul.mubr.bf16.gmra.mrb[0].mxu0 %v5872
      %v8620 = vpop.f32.mrb[0].mxu0
      %v8621 = vadd.f32 0.0, %v8620
      %v8622 = vpop.f32.mrb[0].mxu0
      %v8623 = vadd.f32 0.0, %v8622
      %v8624 = vpop.f32.mrb[0].mxu0
      %v8625 = vpop.f32.mrb[0].mxu0
      %8626 = vdwg.mxu0
      %8627 = vmatprep.subr.bf16.mxu0 %v8385
      %8628 = vmatpush1.bf16.msra.mxu0 %v8384
      %8629 = vmatprep.subr.bf16.mxu0 %v8389
      %8630 = vmatpush1.bf16.msra.mxu0 %v8388
      %8631 = vmatprep.subr.bf16.mxu0 %v8393
      %8632 = vmatpush1.bf16.msra.mxu0 %v8392
      %8633 = vmatprep.subr.bf16.mxu0 %v8397
      %8634 = vmatpush1.bf16.msra.mxu0 %v8396
      %8635 = vmatprep.subr.bf16.mxu0 %v8401
      %8636 = vmatpush1.bf16.msra.mxu0 %v8400
      %8637 = vmatprep.subr.bf16.mxu0 %v8405
      %8638 = vmatpush1.bf16.msra.mxu0 %v8404
      %8639 = vmatprep.subr.bf16.mxu0 %v8409
      %8640 = vmatpush1.bf16.msra.mxu0 %v8408
      %8641 = vmatprep.subr.bf16.mxu0 %v8413
      %8642 = vmatpush1.bf16.msra.mxu0 %v8412
      %8643 = vmatprep.subr.bf16.mxu0 %v8417
      %8644 = vmatpush1.bf16.msra.mxu0 %v8416
      %8645 = vmatprep.subr.bf16.mxu0 %v8421
      %8646 = vmatpush1.bf16.msra.mxu0 %v8420
      %8647 = vmatprep.subr.bf16.mxu0 %v8425
      %8648 = vmatpush1.bf16.msra.mxu0 %v8424
      %8649 = vmatprep.subr.bf16.mxu0 %v8429
      %8650 = vmatpush1.bf16.msra.mxu0 %v8428
      %8651 = vmatprep.subr.bf16.mxu0 %v8433
      %8652 = vmatpush1.bf16.msra.mxu0 %v8432
      %8653 = vmatprep.subr.bf16.mxu0 %v8437
      %8654 = vmatpush1.bf16.msra.mxu0 %v8436
      %8655 = vmatprep.subr.bf16.mxu0 %v8441
      %8656 = vmatpush1.bf16.msra.mxu0 %v8440
      %8657 = vmatprep.subr.bf16.mxu0 %v8445
      %8658 = vmatpush1.bf16.msra.mxu0 %v8444
      %8659 = vmatprep.mubr.bf16.mxu0 %v5871
      %8660 = vmatmul.mubr.bf16.gmra.mrb[0].mxu0 %v5870
      %v8661 = vpop.f32.mrb[0].mxu0
      %v8662 = vadd.f32 %v8611, %v8661
      %v8663 = vpop.f32.mrb[0].mxu0
      %v8664 = vadd.f32 %v8613, %v8663
      %v8665 = vpop.f32.mrb[0].mxu0
      %v8666 = vadd.f32 %v8615, %v8665
      %v8667 = vpop.f32.mrb[0].mxu0
      %v8668 = vadd.f32 %v8617, %v8667
      %8669 = vmatprep.mubr.bf16.mxu0 %v5875
      %8670 = vmatmul.mubr.bf16.gmra.mrb[0].mxu0 %v5874
      %v8671 = vpop.f32.mrb[0].mxu0
      %v8672 = vadd.f32 %v8621, %v8671
      %v8673 = vpop.f32.mrb[0].mxu0
      %v8674 = vadd.f32 %v8623, %v8673
      %v8675 = vpop.f32.mrb[0].mxu0
      %v8676 = vpop.f32.mrb[0].mxu0
      %8677 = vdwg.mxu0
      %8678 = vmatprep.subr.bf16.mxu0 %v8323
      %8679 = vmatpush1.bf16.msra.mxu0 %v8322
      %8680 = vmatprep.subr.bf16.mxu0 %v8327
      %8681 = vmatpush1.bf16.msra.mxu0 %v8326
      %8682 = vmatprep.subr.bf16.mxu0 %v8331
      %8683 = vmatpush1.bf16.msra.mxu0 %v8330
      %8684 = vmatprep.subr.bf16.mxu0 %v8335
      %8685 = vmatpush1.bf16.msra.mxu0 %v8334
      %8686 = vmatprep.subr.bf16.mxu0 %v8339
      %8687 = vmatpush1.bf16.msra.mxu0 %v8338
      %8688 = vmatprep.subr.bf16.mxu0 %v8343
      %8689 = vmatpush1.bf16.msra.mxu0 %v8342
      %8690 = vmatprep.subr.bf16.mxu0 %v8347
      %8691 = vmatpush1.bf16.msra.mxu0 %v8346
      %8692 = vmatprep.subr.bf16.mxu0 %v8351
      %8693 = vmatpush1.bf16.msra.mxu0 %v8350
      %8694 = vmatprep.subr.bf16.mxu0 %v8355
      %8695 = vmatpush1.bf16.msra.mxu0 %v8354
      %8696 = vmatprep.subr.bf16.mxu0 %v8359
      %8697 = vmatpush1.bf16.msra.mxu0 %v8358
      %8698 = vmatprep.subr.bf16.mxu0 %v8363
      %8699 = vmatpush1.bf16.msra.mxu0 %v8362
      %8700 = vmatprep.subr.bf16.mxu0 %v8367
      %8701 = vmatpush1.bf16.msra.mxu0 %v8366
      %8702 = vmatprep.subr.bf16.mxu0 %v8371
      %8703 = vmatpush1.bf16.msra.mxu0 %v8370
      %8704 = vmatprep.subr.bf16.mxu0 %v8375
      %8705 = vmatpush1.bf16.msra.mxu0 %v8374
      %8706 = vmatprep.subr.bf16.mxu0 %v8379
      %8707 = vmatpush1.bf16.msra.mxu0 %v8378
      %8708 = vmatprep.subr.bf16.mxu0 %v8383
      %8709 = vmatpush1.bf16.msra.mxu0 %v8382
      %8710 = vmatprep.mubr.bf16.mxu0 %v5869
      %8711 = vmatmul.mubr.bf16.gmra.mrb[0].mxu0 %v5868
      %v8712 = vpop.f32.mrb[0].mxu0
      %v8713 = vadd.f32 0.0, %v8712
      %v8714 = vpop.f32.mrb[0].mxu0
      %v8715 = vadd.f32 0.0, %v8714
      %v8716 = vpop.f32.mrb[0].mxu0
      %v8717 = vadd.f32 0.0, %v8716
      %v8718 = vpop.f32.mrb[0].mxu0
      %v8719 = vadd.f32 0.0, %v8718
      %8720 = vmatprep.mubr.bf16.mxu0 %v5873
      %8721 = vmatmul.mubr.bf16.gmra.mrb[0].mxu0 %v5872
      %v8722 = vpop.f32.mrb[0].mxu0
      %v8723 = vadd.f32 0.0, %v8722
      %v8724 = vpop.f32.mrb[0].mxu0
      %v8725 = vadd.f32 0.0, %v8724
      %v8726 = vpop.f32.mrb[0].mxu0
      %v8727 = vpop.f32.mrb[0].mxu0
      %8728 = vdwg.mxu0
      %8729 = vmatprep.subr.bf16.mxu0 %v8387
      %8730 = vmatpush1.bf16.msra.mxu0 %v8386
      %8731 = vmatprep.subr.bf16.mxu0 %v8391
      %8732 = vmatpush1.bf16.msra.mxu0 %v8390
      %8733 = vmatprep.subr.bf16.mxu0 %v8395
      %8734 = vmatpush1.bf16.msra.mxu0 %v8394
      %8735 = vmatprep.subr.bf16.mxu0 %v8399
      %8736 = vmatpush1.bf16.msra.mxu0 %v8398
      %8737 = vmatprep.subr.bf16.mxu0 %v8403
      %8738 = vmatpush1.bf16.msra.mxu0 %v8402
      %8739 = vmatprep.subr.bf16.mxu0 %v8407
      %8740 = vmatpush1.bf16.msra.mxu0 %v8406
      %8741 = vmatprep.subr.bf16.mxu0 %v8411
      %8742 = vmatpush1.bf16.msra.mxu0 %v8410
      %8743 = vmatprep.subr.bf16.mxu0 %v8415
      %8744 = vmatpush1.bf16.msra.mxu0 %v8414
      %8745 = vmatprep.subr.bf16.mxu0 %v8419
      %8746 = vmatpush1.bf16.msra.mxu0 %v8418
      %8747 = vmatprep.subr.bf16.mxu0 %v8423
      %8748 = vmatpush1.bf16.msra.mxu0 %v8422
      %8749 = vmatprep.subr.bf16.mxu0 %v8427
      %8750 = vmatpush1.bf16.msra.mxu0 %v8426
      %8751 = vmatprep.subr.bf16.mxu0 %v8431
      %8752 = vmatpush1.bf16.msra.mxu0 %v8430
      %8753 = vmatprep.subr.bf16.mxu0 %v8435
      %8754 = vmatpush1.bf16.msra.mxu0 %v8434
      %8755 = vmatprep.subr.bf16.mxu0 %v8439
      %8756 = vmatpush1.bf16.msra.mxu0 %v8438
      %8757 = vmatprep.subr.bf16.mxu0 %v8443
      %8758 = vmatpush1.bf16.msra.mxu0 %v8442
      %8759 = vmatprep.subr.bf16.mxu0 %v8447
      %8760 = vmatpush1.bf16.msra.mxu0 %v8446
      %8761 = vmatprep.mubr.bf16.mxu0 %v5871
      %8762 = vmatmul.mubr.bf16.gmra.mrb[0].mxu0 %v5870
      %v8763 = vpop.f32.mrb[0].mxu0
      %v8764 = vadd.f32 %v8713, %v8763
      %v8765 = vpop.f32.mrb[0].mxu0
      %v8766 = vadd.f32 %v8715, %v8765
      %v8767 = vpop.f32.mrb[0].mxu0
      %v8768 = vadd.f32 %v8717, %v8767
      %v8769 = vpop.f32.mrb[0].mxu0
      %v8770 = vadd.f32 %v8719, %v8769
      %8771 = vmatprep.mubr.bf16.mxu0 %v5875
      %8772 = vmatmul.mubr.bf16.gmra.mrb[0].mxu0 %v5874
      %v8773 = vpop.f32.mrb[0].mxu0
      %v8774 = vadd.f32 %v8723, %v8773
      %v8775 = vpop.f32.mrb[0].mxu0
      %v8776 = vadd.f32 %v8725, %v8775
      %v8777 = vpop.f32.mrb[0].mxu0
      %v8778 = vpop.f32.mrb[0].mxu0
      %8779 = vdwg.mxu0
      %v8792 = vrot.slane %v8662, 1
      %v8793 = vrot.slane %v8664, 1
      %v8794 = vrot.slane %v8764, 1
      %v8795 = vrot.slane %v8766, 1
      %v8796 = vrot.slane %v8666, 1
      %v8797 = vsel %vm1090, %v8792, %v8796
      %v8798 = vrot.slane %v8668, 1
      %v8799 = vsel %vm1090, %v8793, %v8798
      %v8800 = vrot.slane %v8768, 1
      %v8801 = vsel %vm1090, %v8794, %v8800
      %v8802 = vrot.slane %v8770, 1
      %v8803 = vsel %vm1090, %v8795, %v8802
      %v8804 = vrot.slane %v8672, 1
      %v8805 = vsel %vm1090, %v8796, %v8804
      %v8806 = vrot.slane %v8674, 1
      %v8807 = vsel %vm1090, %v8798, %v8806
      %v8808 = vrot.slane %v8774, 1
      %v8809 = vsel %vm1090, %v8800, %v8808
      %v8810 = vrot.slane %v8776, 1
      %v8811 = vsel %vm1090, %v8802, %v8810
      %v8828 = vadd.f32 %v7792, %v8792
      %v8829 = vadd.f32 %v7793, %v8793
      %v8830 = vadd.f32 %v7794, %v8794
      %v8831 = vadd.f32 %v7795, %v8795
      %v8832 = vadd.f32 %v7796, %v8797
      %v8833 = vadd.f32 %v7797, %v8799
      %v8834 = vadd.f32 %v7798, %v8801
      %v8835 = vadd.f32 %v7799, %v8803
      %v8836 = vadd.f32 %v7800, %v8805
      %v8837 = vadd.f32 %v7801, %v8807
      %v8838 = vadd.f32 %v7802, %v8809
      %v8839 = vadd.f32 %v7803, %v8811
      %v8840 = vadd.f32 %v7804, %v8804
      %v8841 = vadd.f32 %v7805, %v8806
      %v8842 = vadd.f32 %v7806, %v8808
      %v8843 = vadd.f32 %v7807, %v8810
      %8844 = vst [vmem:[#allocation2] sm:$0x80] %v8828
      %8845 = vst [vmem:[#allocation2 + $0x8] sm:$0x80] %v8829
      %8846 = vst [vmem:[#allocation2 + $0x10] sm:$0x80] %v8830
      %8847 = vst [vmem:[#allocation2 + $0x18] sm:$0x80] %v8831
      %8848 = vst [vmem:[#allocation2 + $0x20] sm:$0xff] %v8832
      %8849 = vst [vmem:[#allocation2 + $0x28] sm:$0xff] %v8833
      %8850 = vst [vmem:[#allocation2 + $0x30] sm:$0xff] %v8834
      %8851 = vst [vmem:[#allocation2 + $0x38] sm:$0xff] %v8835
      %8852 = vst [vmem:[#allocation2 + $0x40] sm:$0xff] %v8836
      %8853 = vst [vmem:[#allocation2 + $0x48] sm:$0xff] %v8837
      %8854 = vst [vmem:[#allocation2 + $0x50] sm:$0xff] %v8838
      %8855 = vst [vmem:[#allocation2 + $0x58] sm:$0xff] %v8839
      %8856 = vst [vmem:[#allocation2 + $0x60] sm:$0x1] %v8840
      %8857 = vst [vmem:[#allocation2 + $0x68] sm:$0x1] %v8841
      %8858 = vst [vmem:[#allocation2 + $0x70] sm:$0x1] %v8842
      %8859 = vst [vmem:[#allocation2 + $0x78] sm:$0x1] %v8843
      %v8860 = vld [vmem:[#allocation2 + $0x20] sm:$0xff]
      %v8861 = vld [vmem:[#allocation2 + $0x28] sm:$0xff]
      %v8862 = vld [vmem:[#allocation2 + $0x30] sm:$0xff]
      %v8863 = vld [vmem:[#allocation2 + $0x38] sm:$0xff]
      %v8864 = vld [vmem:[#allocation2 + $0x40] sm:$0xff]
      %v8865 = vld [vmem:[#allocation2 + $0x48] sm:$0xff]
      %v8866 = vld [vmem:[#allocation2 + $0x50] sm:$0xff]
      %v8867 = vld [vmem:[#allocation2 + $0x58] sm:$0xff]
      %v8868 = vld [vmem:[#allocation2 + $0x60] sm:$0x3]
      %v8869 = vld [vmem:[#allocation2 + $0x68] sm:$0x3]
      %v8870 = vld [vmem:[#allocation2 + $0x70] sm:$0x3]
      %v8871 = vld [vmem:[#allocation2 + $0x78] sm:$0x3]
      %v8872 = vld [vmem:[%s5] sm:$0xf]
      %v8874 = vlaneseq
      %v8875 = vshrl.u32 %v8874, 7
      %v8876 = vsub.s32 0, %v8875
      %v8877 = vrot.slane %v8872, %v8876
      %v8878 = vlaneseq
      %v8879 = vshrl.u32 %v8878, 7
      %v8880 = vsub.s32 1, %v8879
      %v8881 = vrot.slane %v8872, %v8880
      %v8882 = vlaneseq
      %v8883 = vshrl.u32 %v8882, 7
      %v8884 = vsub.s32 2, %v8883
      %v8885 = vrot.slane %v8872, %v8884
      %v8886 = vlaneseq
      %v8887 = vshrl.u32 %v8886, 7
      %v8888 = vsub.s32 3, %v8887
      %v8889 = vrot.slane %v8872, %v8888
      %v8894 = vmul.f32 %v8860, %v8877
      %v8895 = vmul.f32 %v8861, %v8881
      %v8896 = vmul.f32 %v8862, %v8885
      %v8897 = vmul.f32 %v8863, %v8889
      %v8898 = vmul.f32 %v8864, %v8877
      %v8899 = vmul.f32 %v8865, %v8881
      %v8900 = vmul.f32 %v8866, %v8885
      %v8901 = vmul.f32 %v8867, %v8889
      %v8902 = vmul.f32 %v8868, %v8877
      %v8903 = vmul.f32 %v8869, %v8881
      %v8904 = vmul.f32 %v8870, %v8885
      %v8905 = vmul.f32 %v8871, %v8889
      %v8906 = vld [vmem:[%s6] sm:$0xf]
      %v8908 = vlaneseq
      %v8909 = vshrl.u32 %v8908, 7
      %v8910 = vsub.s32 0, %v8909
      %v8911 = vrot.slane %v8906, %v8910
      %v8912 = vlaneseq
      %v8913 = vshrl.u32 %v8912, 7
      %v8914 = vsub.s32 1, %v8913
      %v8915 = vrot.slane %v8906, %v8914
      %v8916 = vlaneseq
      %v8917 = vshrl.u32 %v8916, 7
      %v8918 = vsub.s32 2, %v8917
      %v8919 = vrot.slane %v8906, %v8918
      %v8920 = vlaneseq
      %v8921 = vshrl.u32 %v8920, 7
      %v8922 = vsub.s32 3, %v8921
      %v8923 = vrot.slane %v8906, %v8922
      %v8928 = vadd.f32 %v8894, %v8911
      %v8929 = vadd.f32 %v8895, %v8915
      %v8930 = vadd.f32 %v8896, %v8919
      %v8931 = vadd.f32 %v8897, %v8923
      %v8932 = vadd.f32 %v8898, %v8911
      %v8933 = vadd.f32 %v8899, %v8915
      %v8934 = vadd.f32 %v8900, %v8919
      %v8935 = vadd.f32 %v8901, %v8923
      %v8936 = vadd.f32 %v8902, %v8911
      %v8937 = vadd.f32 %v8903, %v8915
      %v8938 = vadd.f32 %v8904, %v8919
      %v8939 = vadd.f32 %v8905, %v8923
      %v8940 = vsel %vm1254, %v8928, 0.0
      %v8941 = vsel %vm1254, %v8929, 0.0
      %v8942 = vsel %vm1254, %v8930, 0.0
      %v8943 = vsel %vm1254, %v8931, 0.0
      %v8944 = vsel %vm1255, %v8932, 0.0
      %v8945 = vsel %vm1255, %v8933, 0.0
      %v8946 = vsel %vm1255, %v8934, 0.0
      %v8947 = vsel %vm1255, %v8935, 0.0
      %v8948 = vsel %vm1256, %v8936, 0.0
      %v8949 = vsel %vm1256, %v8937, 0.0
      %v8950 = vsel %vm1256, %v8938, 0.0
      %v8951 = vsel %vm1256, %v8939, 0.0
      %v8952 = vadd.f32 %v8940, %v8944
      %v8953 = vsel %vm4554, %v8948, 0.0
      %v8954 = vadd.f32 %v8952, %v8953
      %v8955 = vrot.slane %v8954, 4
      %v8956 = vadd.f32 %v8954, %v8955
      %v8957 = vrot.slane %v8956, 2
      %v8958 = vadd.f32 %v8956, %v8957
      %v8959 = vrot.slane %v8958, 1
      %v8960 = vadd.f32 %v8958, %v8959
      %v8961 = vadd.f32 %v8941, %v8945
      %v8962 = vsel %vm4554, %v8949, 0.0
      %v8963 = vadd.f32 %v8961, %v8962
      %v8964 = vrot.slane %v8963, 4
      %v8965 = vadd.f32 %v8963, %v8964
      %v8966 = vrot.slane %v8965, 2
      %v8967 = vadd.f32 %v8965, %v8966
      %v8968 = vrot.slane %v8967, 1
      %v8969 = vadd.f32 %v8967, %v8968
      %v8970 = vadd.f32 %v8942, %v8946
      %v8971 = vsel %vm4554, %v8950, 0.0
      %v8972 = vadd.f32 %v8970, %v8971
      %v8973 = vrot.slane %v8972, 4
      %v8974 = vadd.f32 %v8972, %v8973
      %v8975 = vrot.slane %v8974, 2
      %v8976 = vadd.f32 %v8974, %v8975
      %v8977 = vrot.slane %v8976, 1
      %v8978 = vadd.f32 %v8976, %v8977
      %v8979 = vadd.f32 %v8943, %v8947
      %v8980 = vsel %vm4554, %v8951, 0.0
      %v8981 = vadd.f32 %v8979, %v8980
      %v8982 = vrot.slane %v8981, 4
      %v8983 = vadd.f32 %v8981, %v8982
      %v8984 = vrot.slane %v8983, 2
      %v8985 = vadd.f32 %v8983, %v8984
      %v8986 = vrot.slane %v8985, 1
      %v8987 = vadd.f32 %v8985, %v8986
      %8989 = vrot.lane.b32.xlu0 %v8960, 96
      %v8990 = vpop.permute.xlu0 %8989
      %v8992 = vadd.f32 %v8960, %v8990
      %8993 = vrot.lane.b32.xlu0 %v8960, 64
      %v8994 = vpop.permute.xlu0 %8993
      %v8996 = vadd.f32 %v8992, %v8994
      %8997 = vrot.lane.b32.xlu0 %v8960, 32
      %v8998 = vpop.permute.xlu0 %8997
      %v9000 = vadd.f32 %v8996, %v8998
      %v9001 = vadd.f32 %v9000, %v8969
      %9003 = vrot.lane.b32.xlu0 %v8969, 96
      %v9004 = vpop.permute.xlu0 %9003
      %v9006 = vadd.f32 %v9001, %v9004
      %9007 = vrot.lane.b32.xlu0 %v8969, 64
      %v9008 = vpop.permute.xlu0 %9007
      %v9010 = vadd.f32 %v9006, %v9008
      %9011 = vrot.lane.b32.xlu0 %v8969, 32
      %v9012 = vpop.permute.xlu0 %9011
      %v9014 = vadd.f32 %v9010, %v9012
      %v9015 = vadd.f32 %v9014, %v8978
      %9017 = vrot.lane.b32.xlu0 %v8978, 96
      %v9018 = vpop.permute.xlu0 %9017
      %v9020 = vadd.f32 %v9015, %v9018
      %9021 = vrot.lane.b32.xlu0 %v8978, 64
      %v9022 = vpop.permute.xlu0 %9021
      %v9024 = vadd.f32 %v9020, %v9022
      %9025 = vrot.lane.b32.xlu0 %v8978, 32
      %v9026 = vpop.permute.xlu0 %9025
      %v9028 = vadd.f32 %v9024, %v9026
      %v9029 = vadd.f32 %v9028, %v8987
      %9031 = vrot.lane.b32.xlu0 %v8987, 96
      %v9032 = vpop.permute.xlu0 %9031
      %v9034 = vadd.f32 %v9029, %v9032
      %9035 = vrot.lane.b32.xlu0 %v8987, 64
      %v9036 = vpop.permute.xlu0 %9035
      %v9038 = vadd.f32 %v9034, %v9036
      %9039 = vrot.lane.b32.xlu0 %v8987, 32
      %v9040 = vpop.permute.xlu0 %9039
      %v9042 = vadd.f32 %v9038, %v9040
      %v9043 = vmul.f32 %v9042, 0.00390625
      %v9044 = vld [vmem:[%s7] sm:$0x3]
      %v9045 = vlaneseq
      %v9046 = vshrl.u32 %v9045, 7
      %v9047 = vsub.s32 0, %v9046
      %v9048 = vrot.slane %v9043, %v9047
      %v9049 = vmul.f32 %v9044, %v9048
      %v9050 = vsel %vm4652, %v9049, 0.0
      %9051 = vadd.xlane.f32.xlu0 %v9050
      %v9052 = vpop.xlane.xlu0 %9051
      %v9053 = vmax.f32 %v9052, 0.0
      %v9054 = vld [vmem:[%s8] sm:$0xff]
      %v9057 = vunpack.c.l.s4 269488144
      %v9058 = vunpack.c.0.s8 %v9057
      %v9059 = vlaneseq
      %v9060 = vshrl.u32 %v9059, 7
      %v9061 = vsub.s32 %v9058, %v9060
      %v9062 = vrot.slane %v9053, %v9061
      %v9064 = vmul.f32 %v9054, %v9062
      %v9066 = vcombine.high %v9064, %v9064
      %v9068 = vunpack.c.l.s4 1983009808
      %v9069 = vunpack.c.0.s8 %v9068
      %v9070 = vlaneseq
      %v9071 = vshrl.u32 %v9070, 7
      %v9072 = vsub.s32 %v9069, %v9071
      %v9073 = vrot.slane %v9064, %v9072
      %v9075 = vunpack.c.l.s4 1983009808
      %v9076 = vunpack.c.0.s8 %v9075
      %v9077 = vlaneseq
      %v9078 = vshrl.u32 %v9077, 7
      %v9079 = vsub.s32 %v9076, %v9078
      %v9080 = vrot.slane %v9066, %v9079
      %v9081 = vcombine.high %v9073, %v9073
      %v9082 = vcombine.high %v9080, %v9080
      %v9087 = vsel %vm4554, %v9073, 0.0
      %v9088 = vrot.slane %v9087, 4
      %v9089 = vadd.f32 %v9087, %v9088
      %v9090 = vrot.slane %v9089, 2
      %v9091 = vadd.f32 %v9089, %v9090
      %v9092 = vrot.slane %v9091, 1
      %v9093 = vadd.f32 %v9091, %v9092
      %v9094 = vsel %vm4554, %v9081, 0.0
      %v9095 = vrot.slane %v9094, 4
      %v9096 = vadd.f32 %v9094, %v9095
      %v9097 = vrot.slane %v9096, 2
      %v9098 = vadd.f32 %v9096, %v9097
      %v9099 = vrot.slane %v9098, 1
      %v9100 = vadd.f32 %v9098, %v9099
      %v9101 = vsel %vm4554, %v9080, 0.0
      %v9102 = vrot.slane %v9101, 4
      %v9103 = vadd.f32 %v9101, %v9102
      %v9104 = vrot.slane %v9103, 2
      %v9105 = vadd.f32 %v9103, %v9104
      %v9106 = vrot.slane %v9105, 1
      %v9107 = vadd.f32 %v9105, %v9106
      %v9108 = vsel %vm4554, %v9082, 0.0
      %v9109 = vrot.slane %v9108, 4
      %v9110 = vadd.f32 %v9108, %v9109
      %v9111 = vrot.slane %v9110, 2
      %v9112 = vadd.f32 %v9110, %v9111
      %v9113 = vrot.slane %v9112, 1
      %v9114 = vadd.f32 %v9112, %v9113
      %v9115 = vxor.u32 %v9093, 2147483648
      %v9116 = vxor.u32 %v9100, 2147483648
      %v9117 = vxor.u32 %v9107, 2147483648
      %v9118 = vxor.u32 %v9114, 2147483648
      %v9119 = vmul.f32 %v9115, 1.442695
      %v9120 = vpow.pop %v9119
      %v9121 = vmul.f32 %v9116, 1.442695
      %v9122 = vpow.pop %v9121
      %v9123 = vmul.f32 %v9117, 1.442695
      %v9124 = vpow.pop %v9123
      %v9125 = vmul.f32 %v9118, 1.442695
      %v9126 = vpow.pop %v9125
      %v9127 = vadd.f32 %v9120, 1.0
      %v9128 = vadd.f32 %v9122, 1.0
      %v9129 = vadd.f32 %v9124, 1.0
      %v9130 = vadd.f32 %v9126, 1.0
      %v9131 = vrcp.pop %v9127
      %v9132 = vmul.f32 1.0, %v9131
      %v9133 = vrcp.pop %v9128
      %v9134 = vmul.f32 1.0, %v9133
      %v9135 = vrcp.pop %v9129
      %v9136 = vmul.f32 1.0, %v9135
      %v9137 = vrcp.pop %v9130
      %v9138 = vmul.f32 1.0, %v9137
      %v9139 = vmul.f32 %v8928, %v9132
      %v9140 = vmul.f32 %v8929, %v9134
      %v9141 = vmul.f32 %v8930, %v9136
      %v9142 = vmul.f32 %v8931, %v9138
      %v9143 = vmul.f32 %v8932, %v9132
      %v9144 = vmul.f32 %v8933, %v9134
      %v9145 = vmul.f32 %v8934, %v9136
      %v9146 = vmul.f32 %v8935, %v9138
      %v9147 = vmul.f32 %v8936, %v9132
      %v9148 = vmul.f32 %v8937, %v9134
      %v9149 = vmul.f32 %v8938, %v9136
      %v9150 = vmul.f32 %v8939, %v9138
      %s9151 = scalar_lea.vmem %s339, 96
      %9152 = vst [vmem:[%s9151] sm:$0xff] %v9139
      %9153 = vst [vmem:[%s9151 + $0x8] sm:$0xff] %v9140
      %9154 = vst [vmem:[%s9151 + $0x10] sm:$0xff] %v9141
      %9155 = vst [vmem:[%s9151 + $0x18] sm:$0xff] %v9142
      %9156 = vst [vmem:[%s9151 + $0x20] sm:$0xff] %v9143
      %9157 = vst [vmem:[%s9151 + $0x28] sm:$0xff] %v9144
      %9158 = vst [vmem:[%s9151 + $0x30] sm:$0xff] %v9145
      %9159 = vst [vmem:[%s9151 + $0x38] sm:$0xff] %v9146
      %9160 = vst [vmem:[%s9151 + $0x40] sm:$0x3] %v9147
      %9161 = vst [vmem:[%s9151 + $0x48] sm:$0x3] %v9148
      %9162 = vst [vmem:[%s9151 + $0x50] sm:$0x3] %v9149
      %9163 = vst [vmem:[%s9151 + $0x58] sm:$0x3] %v9150
      %s9164 = smul.u32 2, %s20
      %p9165 = scmp.lt.s32.totalorder %s9164, 3
      %s9166 = scalar_select %p9165, %s9164, 3
      %s9167 = smul.addr %s9166, 12
      %s9168 = smul.addr %s9167, 8
      %s9169 = scalar_lea.vmem %s9, %s9168
      // Predicated region
      $region57: #{conv_conv_se_forward.1} parent=55 // pred_check
        %p9170 = pneg %p232
      $region58: #{conv_conv_se_forward.1} parent=55 // pred_check_branch
        %9172 = sbr.rel (%p9170) target = $region60
      $region59: #{conv_conv_se_forward.1} parent=55 // pred_region
        %s9173 = smul.u32 2, %s20
      $region60: #{conv_conv_se_forward.1} parent=55 // pred_fallthru
        _
    $region56: #{conv_conv_se_forward.1} parent=5 // pred_fallthru
      _
    %p9174 = scmp.le.s32.totalorder 2, %s15
    // Predicated region
    $region61: #{conv_conv_se_forward.1} parent=5 // pred_check
      %p9175 = pneg %p9174
    $region62: #{conv_conv_se_forward.1} parent=5 // pred_check_branch
      %9177 = sbr.rel (%p9175) target = $region64
    $region63: #{conv_conv_se_forward.1} parent=5 // pred_region
      %s9178 = ssub.s32 %s15, 2
      // Predicated region
      $region65: #{conv_conv_se_forward.1} parent=63 // pred_check
        %p9179 = pneg %p238
      $region66: #{conv_conv_se_forward.1} parent=63 // pred_check_branch
        %9181 = sbr.rel (%p9179) target = $region68
      $region67: #{conv_conv_se_forward.1} parent=63 // pred_region
        %s9182 = smul.u32 2, %s21
        %p9183 = scmp.lt.s32.totalorder %s9182, 3
        %s9184 = scalar_select %p9183, %s9182, 3
        %s9185 = smul.addr %s9184, 12
        %s9186 = smul.addr %s9185, 8
        %s9187 = scalar_lea.vmem %s9, %s9186
      $region68: #{conv_conv_se_forward.1} parent=63 // pred_fallthru
        _
    $region64: #{conv_conv_se_forward.1} parent=5 // pred_fallthru
      _
  $region6: #{conv_conv_se_forward.1} parent=0 // loop_footer
    %s19 = sadd.s32 1, %s15
  $region7: #{conv_conv_se_forward.1} parent=0 // loop_footer_branch
    %14 = sbr.rel target = $region3
  $region8: #{conv_conv_se_forward.1} parent=0 // loop_exit
    _

</llo_original>
